<compile_context>
chip_gen: v7x
topology: tpu7x:2x2x1
jax: 0.10.0
libtpu: 0.0.40
codegen_flags: <defaults>
</compile_context>

<pallas_src>
import functools
from dataclasses import dataclass

import jax
import jax.numpy as jnp
from jax import lax
from jax.experimental import pallas as pl
from jax.experimental.pallas import tpu as pltpu

_LN_EPS = 1e-5
_LANE = 128


def _round_up(x, m):
    return ((x + m - 1) // m) * m


# ---------------------------- in-kernel helpers ----------------------------

def _layer_norm(z, gamma, beta, *, d_model, eps):
    """LayerNorm over the real d_model columns of a lane-padded (S, Dp) block.

    Padding columns of z are zero on entry; zero-padded gamma/beta force them back to
    zero on exit, so padding stays exactly 0 through the whole network."""
    dp = z.shape[-1]
    inv_d = 1.0 / float(d_model)
    mean = jnp.sum(z, axis=-1, keepdims=True) * inv_d          # zero padding adds nothing
    diff = z - mean
    if dp != d_model:
        lane = lax.broadcasted_iota(jnp.int32, z.shape, 1)
        diff = jnp.where(lane < d_model, diff, 0.0)            # mask padding out of the variance
    var = jnp.sum(diff * diff, axis=-1, keepdims=True) * inv_d  # unbiased=False
    norm = (z - mean) * lax.rsqrt(var + eps)
    return gamma * norm + beta


def _attention(xq, xkv, wq, wk, wv, wo, *, scale, causal, num_heads, head_dim):
    """Multi-head attention on lane-padded activations.

    xq: (Sq, Dp), xkv: (Sk, Dp) f32 (padding lanes zero).
    wq/wk/wv: (Dp, d_model) pre-transposed, zero-padded rows.  wo: (d_model, Dp),
    zero-padded output columns.  Returns (Sq, Dp) with zero padding lanes."""
    # Full-width projections: one MXU matmul each (review item: no rank-8 projections).
    q = jnp.dot(xq, wq, preferred_element_type=jnp.float32)     # (Sq, d_model)
    k = jnp.dot(xkv, wk, preferred_element_type=jnp.float32)    # (Sk, d_model)
    v = jnp.dot(xkv, wv, preferred_element_type=jnp.float32)    # (Sk, d_model)
    sq, sk = q.shape[0], k.shape[0]

    if causal:
        row = lax.broadcasted_iota(jnp.int32, (sq, sk), 0)
        col = lax.broadcasted_iota(jnp.int32, (sq, sk), 1)
        causal_mask = col > row                                  # triu(diag=1)

    contract_last = (((1,), (1,)), ((), ()))                     # QK^T without a transpose
    ctx_heads = []
    for h in range(num_heads):                                   # tiny static unroll (H=4)
        sl = slice(h * head_dim, (h + 1) * head_dim)
        s = lax.dot_general(q[:, sl], k[:, sl], contract_last,
                            preferred_element_type=jnp.float32)  # (Sq, Sk)
        if causal:
            s = jnp.where(causal_mask, -jnp.inf, s)
        s = s * scale                                            # /= sqrt(d_model), as reference
        m = jnp.max(s, axis=-1, keepdims=True)
        p = jnp.exp(s - m)
        w = p / jnp.sum(p, axis=-1, keepdims=True)               # exact softmax normalization
        ctx_heads.append(jnp.dot(w, v[:, sl], preferred_element_type=jnp.float32))
    ctx = jnp.concatenate(ctx_heads, axis=-1)                    # (Sq, d_model) merged heads
    # ONE merged output projection (padded output cols keep lane padding zero).
    return jnp.dot(ctx, wo, preferred_element_type=jnp.float32)  # (Sq, Dp)


def _ffn(x, w1, b1, w2, b2):
    """x:(S,Dp) -> relu(x@W1+b1)@W2+b2, weights pre-transposed & zero-padded."""
    h = jnp.dot(x, w1, preferred_element_type=jnp.float32) + b1
    h = jnp.maximum(h, 0.0)
    return jnp.dot(h, w2, preferred_element_type=jnp.float32) + b2


# ---------------------------- Pallas kernels ----------------------------

def _encoder_layer_kernel(x_ref,
                          wq_ref, wk_ref, wv_ref, wo_ref, g1_ref, s1_ref,
                          w1_ref, b1_ref, w2_ref, b2_ref, g2_ref, s2_ref,
                          o_ref, *, scale, num_heads, head_dim, d_model, eps):
    x = x_ref[0]                                                  # (S, Dp), lane-padded
    attn = _attention(x, x, wq_ref[...], wk_ref[...], wv_ref[...], wo_ref[...],
                      scale=scale, causal=False,
                      num_heads=num_heads, head_dim=head_dim)
    z = _layer_norm(x + attn, g1_ref[...], s1_ref[...], d_model=d_model, eps=eps)
    y = _ffn(z, w1_ref[...], b1_ref[...], w2_ref[...], b2_ref[...])
    out = _layer_norm(z + y, g2_ref[...], s2_ref[...], d_model=d_model, eps=eps)
    o_ref[0] = out.astype(o_ref.dtype)


def _decoder_layer_kernel(x_ref, enc_ref,
                          swq_ref, swk_ref, swv_ref, swo_ref, g1_ref, s1_ref,
                          cwq_ref, cwk_ref, cwv_ref, cwo_ref, g2_ref, s2_ref,
                          w1_ref, b1_ref, w2_ref, b2_ref, g3_ref, s3_ref,
                          o_ref, *, scale, num_heads, head_dim, d_model, eps):
    x = x_ref[0]                                                  # (S, Dp) decoder state
    enc = enc_ref[0]                                              # (Se, Dp) encoder output
    a1 = _attention(x, x, swq_ref[...], swk_ref[...], swv_ref[...], swo_ref[...],
                    scale=scale, causal=True,
                    num_heads=num_heads, head_dim=head_dim)
    z1 = _layer_norm(x + a1, g1_ref[...], s1_ref[...], d_model=d_model, eps=eps)
    a2 = _attention(z1, enc, cwq_ref[...], cwk_ref[...], cwv_ref[...], cwo_ref[...],
                    scale=scale, causal=False,
                    num_heads=num_heads, head_dim=head_dim)
    z2 = _layer_norm(z1 + a2, g2_ref[...], s2_ref[...], d_model=d_model, eps=eps)
    y = _ffn(z2, w1_ref[...], b1_ref[...], w2_ref[...], b2_ref[...])
    out = _layer_norm(z2 + y, g3_ref[...], s3_ref[...], d_model=d_model, eps=eps)
    o_ref[0] = out.astype(o_ref.dtype)


def _linear_kernel(x_ref, w_ref, b_ref, o_ref):
    # x: (tm, K), w: (K, tn) pre-transposed, b: (1, tn)  -> out: (tm, tn), lane-dense.
    y = jnp.dot(x_ref[...], w_ref[...], preferred_element_type=jnp.float32)
    o_ref[...] = (y + b_ref[...]).astype(o_ref.dtype)


# ---------------------------- wrappers ----------------------------

def _full_block(a):
    """BlockSpec for a whole (resident) array, independent of the grid index."""
    return pl.BlockSpec(a.shape, lambda b, _n=a.ndim: (0,) * _n)


def encoder_layer(x, lp, cfg):
    B, S, Dp = x.shape
    args = (x,
            lp["mha"]["Wq"], lp["mha"]["Wk"], lp["mha"]["Wv"], lp["mha"]["Wo"],
            lp["norm1"]["scale"], lp["norm1"]["shift"],
            lp["ff"]["W1"], lp["ff"]["b1"], lp["ff"]["W2"], lp["ff"]["b2"],
            lp["norm2"]["scale"], lp["norm2"]["shift"])
    kernel = functools.partial(
        _encoder_layer_kernel,
        scale=1.0 / float(cfg.d_model) ** 0.5,
        num_heads=cfg.num_heads, head_dim=cfg.d_model // cfg.num_heads,
        d_model=cfg.d_model, eps=_LN_EPS)
    in_specs = [pl.BlockSpec((1, S, Dp), lambda b: (b, 0, 0))]
    in_specs += [_full_block(a) for a in args[1:]]
    return pl.pallas_call(
        kernel,
        grid=(B,),
        in_specs=in_specs,
        out_specs=pl.BlockSpec((1, S, Dp), lambda b: (b, 0, 0)),
        out_shape=jax.ShapeDtypeStruct((B, S, Dp), x.dtype),
        compiler_params=pltpu.CompilerParams(dimension_semantics=("parallel",)),
    )(*args)


def decoder_layer(x, enc, lp, cfg):
    B, S, Dp = x.shape
    Se = enc.shape[1]
    args = (x, enc,
            lp["mha"]["Wq"], lp["mha"]["Wk"], lp["mha"]["Wv"], lp["mha"]["Wo"],
            lp["norm1"]["scale"], lp["norm1"]["shift"],
            lp["cross"]["Wq"], lp["cross"]["Wk"], lp["cross"]["Wv"], lp["cross"]["Wo"],
            lp["norm2"]["scale"], lp["norm2"]["shift"],
            lp["ff"]["W1"], lp["ff"]["b1"], lp["ff"]["W2"], lp["ff"]["b2"],
            lp["norm3"]["scale"], lp["norm3"]["shift"])
    kernel = functools.partial(
        _decoder_layer_kernel,
        scale=1.0 / float(cfg.d_model) ** 0.5,
        num_heads=cfg.num_heads, head_dim=cfg.d_model // cfg.num_heads,
        d_model=cfg.d_model, eps=_LN_EPS)
    in_specs = [pl.BlockSpec((1, S, Dp), lambda b: (b, 0, 0)),
                pl.BlockSpec((1, Se, Dp), lambda b: (b, 0, 0))]
    in_specs += [_full_block(a) for a in args[2:]]
    return pl.pallas_call(
        kernel,
        grid=(B,),
        in_specs=in_specs,
        out_specs=pl.BlockSpec((1, S, Dp), lambda b: (b, 0, 0)),
        out_shape=jax.ShapeDtypeStruct((B, S, Dp), x.dtype),
        compiler_params=pltpu.CompilerParams(dimension_semantics=("parallel",)),
    )(*args)


def linear(x2d, w_t, b):
    """y = x @ w_t + b, w_t in (K, N) layout with N lane-padded.  Tiled over (M, N)."""
    M, K = x2d.shape
    N = w_t.shape[1]
    tm = M if M <= 256 else 256
    tn = N if N <= 512 else 512
    grid = (pl.cdiv(M, tm), pl.cdiv(N, tn))
    cost = pl.CostEstimate(
        flops=2 * M * N * K,
        transcendentals=0,
        bytes_accessed=4 * (M * K + K * N + N + M * N),
    )
    return pl.pallas_call(
        _linear_kernel,
        grid=grid,
        in_specs=[
            pl.BlockSpec((tm, K), lambda i, j: (i, 0)),
            pl.BlockSpec((K, tn), lambda i, j: (0, j)),
            pl.BlockSpec((1, tn), lambda i, j: (0, j)),
        ],
        out_specs=pl.BlockSpec((tm, tn), lambda i, j: (i, j)),
        out_shape=jax.ShapeDtypeStruct((M, N), x2d.dtype),
        compiler_params=pltpu.CompilerParams(
            dimension_semantics=("parallel", "parallel")),
        cost_estimate=cost,
    )(x2d, w_t, b)


# ---------------------------- model glue (plain JAX) ----------------------------

def positional_encoding(d_model, max_seq_len):
    even_i = jnp.arange(0, d_model, 2, dtype=jnp.float32)
    denom = jnp.power(10000.0, even_i / d_model)
    pos = jnp.arange(max_seq_len, dtype=jnp.float32).reshape(max_seq_len, 1)
    even_pe = jnp.sin(pos / denom)
    odd_pe = jnp.cos(pos / denom)
    stacked = jnp.stack([even_pe, odd_pe], axis=2).reshape(max_seq_len, d_model)
    return stacked[None]  # (1, S, D)


def transformer_forward(params, cfg, src_ids, tgt_ids):
    d = cfg.d_model
    scale = jnp.sqrt(jnp.float32(d))
    # Embedding table & PE are lane-padded at prep time, so activations are born padded.
    src = jnp.take(params["embedding"], src_ids, axis=0) * scale        # (B, S, Dp)
    tgt = jnp.take(params["embedding"], tgt_ids, axis=0) * scale
    pe = params["pe"]
    src = src + pe[:, : src.shape[1], :]
    tgt = tgt + pe[:, : tgt.shape[1], :]

    enc = src
    for lp in params["encoder"]:
        enc = encoder_layer(enc, lp, cfg)

    dec = tgt
    for lp in params["decoder"]:
        dec = decoder_layer(dec, enc, lp, cfg)

    B, S, Dp = dec.shape
    logits_p = linear(dec.reshape(B * S, Dp), params["out_w"], params["out_b"])
    V = params["vocab_size"]
    return logits_p[:, :V].reshape(B, S, V)


# ---------------------------- parameters ----------------------------

@dataclass
class Config:
    d_model: int = 32
    seq_len: int = 8
    dropout: float = 0.0
    num_heads: int = 4
    num_layers: int = 2


def init_params(key, cfg, vocab_size):
    """Raw parameters in PyTorch layout (Linear weight = (out, in))."""
    keys = iter(jax.random.split(key, 512))

    def w(shape):
        return 0.02 * jax.random.normal(next(keys), shape, jnp.float32)

    d = cfg.d_model

    def attn_params():
        return {"Wq": w((d, d)), "Wk": w((d, d)), "Wv": w((d, d)), "Wo": w((d, d))}

    def norm_params():
        return {"scale": jnp.ones((d,), jnp.float32), "shift": jnp.zeros((d,), jnp.float32)}

    def ff_params():
        return {"w1": w((4 * d, d)), "b1": jnp.zeros((4 * d,), jnp.float32),
                "w2": w((d, 4 * d)), "b2": jnp.zeros((d,), jnp.float32)}

    enc_layers = [{"mha": attn_params(), "norm1": norm_params(),
                   "ff": ff_params(), "norm2": norm_params()}
                  for _ in range(cfg.num_layers)]
    dec_layers = [{"mha": attn_params(), "norm1": norm_params(),
                   "cross": attn_params(), "norm2": norm_params(),
                   "ff": ff_params(), "norm3": norm_params()}
                  for _ in range(cfg.num_layers)]

    return {
        "embedding": w((vocab_size, d)),
        "encoder": enc_layers,
        "decoder": dec_layers,
        "out_w": w((vocab_size, d)),
        "out_b": jnp.zeros((vocab_size,), jnp.float32),
    }


def prepare_params(raw, cfg, vocab_size):
    """One-time re-layout: transpose Linear weights to (in, out) and zero-pad the lane
    axis (d_model -> 128, vocab -> 128) so every kernel block is lane-dense and no kernel
    ever transposes or relayouts weights."""
    d = cfg.d_model
    dp = _round_up(d, _LANE)                 # padded model width (lane-dense)
    hp = _round_up(4 * d, _LANE)             # padded FFN hidden width
    vp = _round_up(vocab_size, _LANE)        # padded vocab width

    def pad2(a, rows, cols):
        r, c = a.shape
        return jnp.pad(a, ((0, rows - r), (0, cols - c)))

    def pad_vec(v, cols):
        return jnp.pad(v.reshape(1, -1), ((0, 0), (0, cols - v.shape[0])))

    def prep_attn(p):
        return {
            "Wq": pad2(p["Wq"].T, dp, d),    # (Dp, d): padded input rows (x padding is 0)
            "Wk": pad2(p["Wk"].T, dp, d),
            "Wv": pad2(p["Wv"].T, dp, d),
            "Wo": pad2(p["Wo"].T, d, dp),    # (d, Dp): padded output cols stay 0
        }

    def prep_norm(p):
        # zero-padded gamma/beta keep padding lanes exactly 0 after every LayerNorm
        return {"scale": pad_vec(p["scale"], dp), "shift": pad_vec(p["shift"], dp)}

    def prep_ff(p):
        return {"W1": pad2(p["w1"].T, dp, hp), "b1": pad_vec(p["b1"], hp),
                "W2": pad2(p["w2"].T, hp, dp), "b2": pad_vec(p["b2"], dp)}

    enc = [{"mha": prep_attn(lp["mha"]), "norm1": prep_norm(lp["norm1"]),
            "ff": prep_ff(lp["ff"]), "norm2": prep_norm(lp["norm2"])}
           for lp in raw["encoder"]]
    dec = [{"mha": prep_attn(lp["mha"]), "norm1": prep_norm(lp["norm1"]),
            "cross": prep_attn(lp["cross"]), "norm2": prep_norm(lp["norm2"]),
            "ff": prep_ff(lp["ff"]), "norm3": prep_norm(lp["norm3"])}
           for lp in raw["decoder"]]

    pe = positional_encoding(d, cfg.seq_len)
    pe_p = jnp.pad(pe, ((0, 0), (0, 0), (0, dp - d)))
    emb_p = jnp.pad(raw["embedding"], ((0, 0), (0, dp - d)))

    return {"embedding": emb_p, "pe": pe_p, "encoder": enc, "decoder": dec,
            "out_w": pad2(raw["out_w"].T, dp, vp), "out_b": pad_vec(raw["out_b"], vp),
            "vocab_size": vocab_size}


# ---------------------------- pure-JAX reference (sanity check) ----------------------------

def _reference_forward(raw, cfg, src_ids, tgt_ids):
    d, H = cfg.d_model, cfg.num_heads
    hd = d // H
    hi = "highest"

    def ln(x, p):
        mean = x.mean(-1, keepdims=True)
        var = jnp.mean((x - mean) ** 2, -1, keepdims=True)
        return p["scale"] * (x - mean) / jnp.sqrt(var + _LN_EPS) + p["shift"]

    def mha(xq, xkv, p, causal):
        B, Sq, _ = xq.shape
        Sk = xkv.shape[1]
        q = jnp.einsum("bsd,ed->bse", xq, p["Wq"], precision=hi)
        k = jnp.einsum("bsd,ed->bse", xkv, p["Wk"], precision=hi)
        v = jnp.einsum("bsd,ed->bse", xkv, p["Wv"], precision=hi)
        q = q.reshape(B, Sq, H, hd).transpose(0, 2, 1, 3)
        k = k.reshape(B, Sk, H, hd).transpose(0, 2, 1, 3)
        v = v.reshape(B, Sk, H, hd).transpose(0, 2, 1, 3)
        s = jnp.einsum("bhqd,bhkd->bhqk", q, k, precision=hi)
        if causal:
            s = jnp.where(jnp.triu(jnp.ones((Sq, Sk), bool), k=1), -jnp.inf, s)
        w = jax.nn.softmax(s / d ** 0.5, axis=-1)
        ctx = jnp.einsum("bhqk,bhkd->bhqd", w, v, precision=hi)
        ctx = ctx.transpose(0, 2, 1, 3).reshape(B, Sq, d)
        return jnp.einsum("bsd,ed->bse", ctx, p["Wo"], precision=hi)

    def ffn(x, p):
        h = jnp.maximum(jnp.einsum("bsd,hd->bsh", x, p["w1"], precision=hi) + p["b1"], 0.0)
        return jnp.einsum("bsh,dh->bsd", h, p["w2"], precision=hi) + p["b2"]

    scale = jnp.sqrt(jnp.float32(d))
    pe = positional_encoding(d, cfg.seq_len)
    src = jnp.take(raw["embedding"], src_ids, axis=0) * scale + pe[:, :src_ids.shape[1]]
    tgt = jnp.take(raw["embedding"], tgt_ids, axis=0) * scale + pe[:, :tgt_ids.shape[1]]

    x = src
    for lp in raw["encoder"]:
        x = ln(x + mha(x, x, lp["mha"], False), lp["norm1"])
        x = ln(x + ffn(x, lp["ff"]), lp["norm2"])
    enc = x

    y = tgt
    for lp in raw["decoder"]:
        y = ln(y + mha(y, y, lp["mha"], True), lp["norm1"])
        y = ln(y + mha(y, enc, lp["cross"], False), lp["norm2"])
        y = ln(y + ffn(y, lp["ff"]), lp["norm3"])

    return jnp.einsum("bsd,vd->bsv", y, raw["out_w"], precision=hi) + raw["out_b"]


# ---------------------------- main ----------------------------

if __name__ == "__main__":
    cfg = Config(d_model=32, seq_len=8, dropout=0.0, num_heads=4, num_layers=2)
    vocab_size = 64
    batch = 2

    root = jax.random.PRNGKey(0)
    k_param, k_src, k_tgt = jax.random.split(root, 3)
    raw_params = init_params(k_param, cfg, vocab_size)
    params = prepare_params(raw_params, cfg, vocab_size)
    src_ids = jax.random.randint(k_src, (batch, cfg.seq_len), 0, vocab_size, dtype=jnp.int32)
    tgt_ids = jax.random.randint(k_tgt, (batch, cfg.seq_len), 0, vocab_size, dtype=jnp.int32)

    fwd = jax.jit(functools.partial(transformer_forward, params, cfg))
    out = fwd(src_ids, tgt_ids)
    jax.block_until_ready(out)

    assert out.shape == (batch, cfg.seq_len, vocab_size), out.shape
    assert bool(jnp.all(jnp.isfinite(out))), "non-finite outputs"

    # Loose sanity check against a plain-JAX (unpadded) reference; tolerance covers MXU
    # f32 pass differences, not the (zero-exact) lane padding.
    ref = jax.jit(functools.partial(_reference_forward, raw_params, cfg))(src_ids, tgt_ids)
    jax.block_until_ready(ref)
    max_err = float(jnp.max(jnp.abs(out - ref)))
    assert max_err < 3e-2, f"mismatch vs pure-JAX reference: max abs err {max_err}"

    print("KERNEL_OK")
</pallas_src>

<mosaic_0001>
module attributes {stable_mosaic.version = 11 : i64} {
  func.func @_linear_kernel(%arg0: i32, %arg1: i32, %arg2: memref<16x128xf32, #tpu.memory_space<vmem>>, %arg3: memref<128x128xf32, #tpu.memory_space<vmem>>, %arg4: memref<1x128xf32, #tpu.memory_space<vmem>>, %arg5: memref<16x128xf32, #tpu.memory_space<vmem>>) attributes {dimension_semantics = [#tpu.dimension_semantics<parallel>, #tpu.dimension_semantics<parallel>], iteration_bounds = array<i64: 1, 1>, scalar_prefetch = 0 : i64, scratch_operands = 0 : i64, tpu.core_type = #tpu.core_type<tc>, window_params = [{transform_indices = @transform_0, window_bounds = array<i64: 16, 128>}, {transform_indices = @transform_1, window_bounds = array<i64: 128, 128>}, {transform_indices = @transform_2, window_bounds = array<i64: 1, 128>}, {transform_indices = @transform_3, window_bounds = array<i64: 16, 128>}]} {
    %c0 = arith.constant 0 : index
    %c0_0 = arith.constant 0 : index
    %0 = vector.load %arg2[%c0, %c0_0] : memref<16x128xf32, #tpu.memory_space<vmem>>, vector<16x128xf32>
    %c0_1 = arith.constant 0 : index
    %c0_2 = arith.constant 0 : index
    %1 = vector.load %arg3[%c0_1, %c0_2] : memref<128x128xf32, #tpu.memory_space<vmem>>, vector<128x128xf32>
    %cst = arith.constant dense<0.000000e+00> : vector<16x128xf32>
    %2 = tpu.matmul %0, %1, %cst {dimension_numbers = #tpu.dot_dimension_numbers<[1], [0], [0], [1], [0, 0, 1, 1], [], []>} : vector<16x128xf32>, vector<128x128xf32>, vector<16x128xf32> -> vector<16x128xf32>
    %c0_3 = arith.constant 0 : index
    %c0_4 = arith.constant 0 : index
    %3 = vector.load %arg4[%c0_3, %c0_4] : memref<1x128xf32, #tpu.memory_space<vmem>>, vector<1x128xf32>
    %4 = vector.broadcast %3 : vector<1x128xf32> to vector<16x128xf32>
    %5 = arith.addf %2, %4 : vector<16x128xf32>
    %c0_5 = arith.constant 0 : index
    %c0_6 = arith.constant 0 : index
    %6 = vector.load %arg5[%c0_5, %c0_6] : memref<16x128xf32, #tpu.memory_space<vmem>>, vector<16x128xf32>
    tpu.vector_store %arg5[%c0_5, %c0_6], %5 {strides = array<i32>} : memref<16x128xf32, #tpu.memory_space<vmem>>, vector<16x128xf32>,
    return
  }
  func.func @transform_0(%arg0: i32, %arg1: i32) -> (i32, i32) {
    %c0_i32 = arith.constant 0 : i32
    %c0_i32_0 = arith.constant 0 : i32
    return %arg0, %c0_i32 : i32, i32
  }
  func.func @transform_1(%arg0: i32, %arg1: i32) -> (i32, i32) {
    %c0_i32 = arith.constant 0 : i32
    %c0_i32_0 = arith.constant 0 : i32
    return %c0_i32, %arg1 : i32, i32
  }
  func.func @transform_2(%arg0: i32, %arg1: i32) -> (i32, i32) {
    %c0_i32 = arith.constant 0 : i32
    %c0_i32_0 = arith.constant 0 : i32
    return %c0_i32, %arg1 : i32, i32
  }
  func.func @transform_3(%arg0: i32, %arg1: i32) -> (i32, i32) {
    %c0_i32 = arith.constant 0 : i32
    return %arg0, %arg1 : i32, i32
  }
}

module attributes {stable_mosaic.version = 11 : i64} {
  func.func @_encoder_layer_kernel(%arg0: i32, %arg1: memref<1x8x128xf32, #tpu.memory_space<vmem>>, %arg2: memref<128x32xf32, #tpu.memory_space<vmem>>, %arg3: memref<128x32xf32, #tpu.memory_space<vmem>>, %arg4: memref<128x32xf32, #tpu.memory_space<vmem>>, %arg5: memref<32x128xf32, #tpu.memory_space<vmem>>, %arg6: memref<1x128xf32, #tpu.memory_space<vmem>>, %arg7: memref<1x128xf32, #tpu.memory_space<vmem>>, %arg8: memref<128x128xf32, #tpu.memory_space<vmem>>, %arg9: memref<1x128xf32, #tpu.memory_space<vmem>>, %arg10: memref<128x128xf32, #tpu.memory_space<vmem>>, %arg11: memref<1x128xf32, #tpu.memory_space<vmem>>, %arg12: memref<1x128xf32, #tpu.memory_space<vmem>>, %arg13: memref<1x128xf32, #tpu.memory_space<vmem>>, %arg14: memref<1x8x128xf32, #tpu.memory_space<vmem>>) attributes {dimension_semantics = [#tpu.dimension_semantics<parallel>], iteration_bounds = array<i64: 2>, scalar_prefetch = 0 : i64, scratch_operands = 0 : i64, tpu.core_type = #tpu.core_type<tc>, window_params = [{transform_indices = @transform_0, window_bounds = array<i64: 1, 8, 128>}, {pipeline_mode = #tpu.pipeline_mode<synchronous>, transform_indices = @transform_1, window_bounds = array<i64: 128, 32>}, {pipeline_mode = #tpu.pipeline_mode<synchronous>, transform_indices = @transform_2, window_bounds = array<i64: 128, 32>}, {pipeline_mode = #tpu.pipeline_mode<synchronous>, transform_indices = @transform_3, window_bounds = array<i64: 128, 32>}, {pipeline_mode = #tpu.pipeline_mode<synchronous>, transform_indices = @transform_4, window_bounds = array<i64: 32, 128>}, {pipeline_mode = #tpu.pipeline_mode<synchronous>, transform_indices = @transform_5, window_bounds = array<i64: 1, 128>}, {pipeline_mode = #tpu.pipeline_mode<synchronous>, transform_indices = @transform_6, window_bounds = array<i64: 1, 128>}, {pipeline_mode = #tpu.pipeline_mode<synchronous>, transform_indices = @transform_7, window_bounds = array<i64: 128, 128>}, {pipeline_mode = #tpu.pipeline_mode<synchronous>, transform_indices = @transform_8, window_bounds = array<i64: 1, 128>}, {pipeline_mode = #tpu.pipeline_mode<synchronous>, transform_indices = @transform_9, window_bounds = array<i64: 128, 128>}, {pipeline_mode = #tpu.pipeline_mode<synchronous>, transform_indices = @transform_10, window_bounds = array<i64: 1, 128>}, {pipeline_mode = #tpu.pipeline_mode<synchronous>, transform_indices = @transform_11, window_bounds = array<i64: 1, 128>}, {pipeline_mode = #tpu.pipeline_mode<synchronous>, transform_indices = @transform_12, window_bounds = array<i64: 1, 128>}, {transform_indices = @transform_13, window_bounds = array<i64: 1, 8, 128>}]} {
    %c0 = arith.constant 0 : index
    %c0_0 = arith.constant 0 : index
    %c0_1 = arith.constant 0 : index
    %0 = vector.load %arg1[%c0, %c0_0, %c0_1] : memref<1x8x128xf32, #tpu.memory_space<vmem>>, vector<1x8x128xf32>
    %1 = vector.shape_cast %0 : vector<1x8x128xf32> to vector<8x128xf32>
    %c0_2 = arith.constant 0 : index
    %c0_3 = arith.constant 0 : index
    %2 = vector.load %arg2[%c0_2, %c0_3] : memref<128x32xf32, #tpu.memory_space<vmem>>, vector<128x32xf32>
    %c0_4 = arith.constant 0 : index
    %c0_5 = arith.constant 0 : index
    %3 = vector.load %arg3[%c0_4, %c0_5] : memref<128x32xf32, #tpu.memory_space<vmem>>, vector<128x32xf32>
    %c0_6 = arith.constant 0 : index
    %c0_7 = arith.constant 0 : index
    %4 = vector.load %arg4[%c0_6, %c0_7] : memref<128x32xf32, #tpu.memory_space<vmem>>, vector<128x32xf32>
    %c0_8 = arith.constant 0 : index
    %c0_9 = arith.constant 0 : index
    %5 = vector.load %arg5[%c0_8, %c0_9] : memref<32x128xf32, #tpu.memory_space<vmem>>, vector<32x128xf32>
    %cst = arith.constant dense<0.000000e+00> : vector<8x32xf32>
    %6 = tpu.matmul %1, %2, %cst {dimension_numbers = #tpu.dot_dimension_numbers<[1], [0], [0], [1], [0, 0, 1, 1], [], []>} : vector<8x128xf32>, vector<128x32xf32>, vector<8x32xf32> -> vector<8x32xf32>
    %cst_10 = arith.constant dense<0.000000e+00> : vector<8x32xf32>
    %7 = tpu.matmul %1, %3, %cst_10 {dimension_numbers = #tpu.dot_dimension_numbers<[1], [0], [0], [1], [0, 0, 1, 1], [], []>} : vector<8x128xf32>, vector<128x32xf32>, vector<8x32xf32> -> vector<8x32xf32>
    %cst_11 = arith.constant dense<0.000000e+00> : vector<8x32xf32>
    %8 = tpu.matmul %1, %4, %cst_11 {dimension_numbers = #tpu.dot_dimension_numbers<[1], [0], [0], [1], [0, 0, 1, 1], [], []>} : vector<8x128xf32>, vector<128x32xf32>, vector<8x32xf32> -> vector<8x32xf32>
    %9 = vector.extract_strided_slice %6 {offsets = [0, 0], sizes = [8, 8], strides = [1, 1]} : vector<8x32xf32> to vector<8x8xf32>
    %10 = vector.extract_strided_slice %7 {offsets = [0, 0], sizes = [8, 8], strides = [1, 1]} : vector<8x32xf32> to vector<8x8xf32>
    %cst_12 = arith.constant dense<0.000000e+00> : vector<8x8xf32>
    %11 = tpu.matmul %9, %10, %cst_12 {dimension_numbers = #tpu.dot_dimension_numbers<[1], [1], [0], [0], [0, 0, 1, 0], [], []>} : vector<8x8xf32>, vector<8x8xf32>, vector<8x8xf32> -> vector<8x8xf32>
    %cst_13 = arith.constant 0.176776692 : f32
    %12 = vector.broadcast %cst_13 : f32 to vector<8x8xf32>
    %13 = arith.mulf %11, %12 : vector<8x8xf32>
    %cst_14 = arith.constant dense<0xFF800000> : vector<8xf32>
    %14 = vector.multi_reduction <maximumf>, %13, %cst_14 [1] : vector<8x8xf32> to vector<8xf32>
    %15 = vector.shape_cast %14 : vector<8xf32> to vector<8x1xf32>
    %16 = vector.broadcast %15 : vector<8x1xf32> to vector<8x8xf32>
    %17 = arith.subf %13, %16 : vector<8x8xf32>
    %18 = math.exp %17 : vector<8x8xf32>
    %cst_15 = arith.constant dense<0.000000e+00> : vector<8xf32>
    %19 = vector.multi_reduction <add>, %18, %cst_15 [1] : vector<8x8xf32> to vector<8xf32>
    %20 = vector.shape_cast %19 : vector<8xf32> to vector<8x1xf32>
    %21 = vector.broadcast %20 : vector<8x1xf32> to vector<8x8xf32>
    %22 = arith.divf %18, %21 : vector<8x8xf32>
    %23 = vector.extract_strided_slice %8 {offsets = [0, 0], sizes = [8, 8], strides = [1, 1]} : vector<8x32xf32> to vector<8x8xf32>
    %cst_16 = arith.constant dense<0.000000e+00> : vector<8x8xf32>
    %24 = tpu.matmul %22, %23, %cst_16 {dimension_numbers = #tpu.dot_dimension_numbers<[1], [0], [0], [1], [0, 0, 1, 1], [], []>} : vector<8x8xf32>, vector<8x8xf32>, vector<8x8xf32> -> vector<8x8xf32>
    %25 = vector.extract_strided_slice %6 {offsets = [0, 8], sizes = [8, 8], strides = [1, 1]} : vector<8x32xf32> to vector<8x8xf32>
    %26 = vector.extract_strided_slice %7 {offsets = [0, 8], sizes = [8, 8], strides = [1, 1]} : vector<8x32xf32> to vector<8x8xf32>
    %cst_17 = arith.constant dense<0.000000e+00> : vector<8x8xf32>
    %27 = tpu.matmul %25, %26, %cst_17 {dimension_numbers = #tpu.dot_dimension_numbers<[1], [1], [0], [0], [0, 0, 1, 0], [], []>} : vector<8x8xf32>, vector<8x8xf32>, vector<8x8xf32> -> vector<8x8xf32>
    %cst_18 = arith.constant 0.176776692 : f32
    %28 = vector.broadcast %cst_18 : f32 to vector<8x8xf32>
    %29 = arith.mulf %27, %28 : vector<8x8xf32>
    %cst_19 = arith.constant dense<0xFF800000> : vector<8xf32>
    %30 = vector.multi_reduction <maximumf>, %29, %cst_19 [1] : vector<8x8xf32> to vector<8xf32>
    %31 = vector.shape_cast %30 : vector<8xf32> to vector<8x1xf32>
    %32 = vector.broadcast %31 : vector<8x1xf32> to vector<8x8xf32>
    %33 = arith.subf %29, %32 : vector<8x8xf32>
    %34 = math.exp %33 : vector<8x8xf32>
    %cst_20 = arith.constant dense<0.000000e+00> : vector<8xf32>
    %35 = vector.multi_reduction <add>, %34, %cst_20 [1] : vector<8x8xf32> to vector<8xf32>
    %36 = vector.shape_cast %35 : vector<8xf32> to vector<8x1xf32>
    %37 = vector.broadcast %36 : vector<8x1xf32> to vector<8x8xf32>
    %38 = arith.divf %34, %37 : vector<8x8xf32>
    %39 = vector.extract_strided_slice %8 {offsets = [0, 8], sizes = [8, 8], strides = [1, 1]} : vector<8x32xf32> to vector<8x8xf32>
    %cst_21 = arith.constant dense<0.000000e+00> : vector<8x8xf32>
    %40 = tpu.matmul %38, %39, %cst_21 {dimension_numbers = #tpu.dot_dimension_numbers<[1], [0], [0], [1], [0, 0, 1, 1], [], []>} : vector<8x8xf32>, vector<8x8xf32>, vector<8x8xf32> -> vector<8x8xf32>
    %41 = vector.extract_strided_slice %6 {offsets = [0, 16], sizes = [8, 8], strides = [1, 1]} : vector<8x32xf32> to vector<8x8xf32>
    %42 = vector.extract_strided_slice %7 {offsets = [0, 16], sizes = [8, 8], strides = [1, 1]} : vector<8x32xf32> to vector<8x8xf32>
    %cst_22 = arith.constant dense<0.000000e+00> : vector<8x8xf32>
    %43 = tpu.matmul %41, %42, %cst_22 {dimension_numbers = #tpu.dot_dimension_numbers<[1], [1], [0], [0], [0, 0, 1, 0], [], []>} : vector<8x8xf32>, vector<8x8xf32>, vector<8x8xf32> -> vector<8x8xf32>
    %cst_23 = arith.constant 0.176776692 : f32
    %44 = vector.broadcast %cst_23 : f32 to vector<8x8xf32>
    %45 = arith.mulf %43, %44 : vector<8x8xf32>
    %cst_24 = arith.constant dense<0xFF800000> : vector<8xf32>
    %46 = vector.multi_reduction <maximumf>, %45, %cst_24 [1] : vector<8x8xf32> to vector<8xf32>
    %47 = vector.shape_cast %46 : vector<8xf32> to vector<8x1xf32>
    %48 = vector.broadcast %47 : vector<8x1xf32> to vector<8x8xf32>
    %49 = arith.subf %45, %48 : vector<8x8xf32>
    %50 = math.exp %49 : vector<8x8xf32>
    %cst_25 = arith.constant dense<0.000000e+00> : vector<8xf32>
    %51 = vector.multi_reduction <add>, %50, %cst_25 [1] : vector<8x8xf32> to vector<8xf32>
    %52 = vector.shape_cast %51 : vector<8xf32> to vector<8x1xf32>
    %53 = vector.broadcast %52 : vector<8x1xf32> to vector<8x8xf32>
    %54 = arith.divf %50, %53 : vector<8x8xf32>
    %55 = vector.extract_strided_slice %8 {offsets = [0, 16], sizes = [8, 8], strides = [1, 1]} : vector<8x32xf32> to vector<8x8xf32>
    %cst_26 = arith.constant dense<0.000000e+00> : vector<8x8xf32>
    %56 = tpu.matmul %54, %55, %cst_26 {dimension_numbers = #tpu.dot_dimension_numbers<[1], [0], [0], [1], [0, 0, 1, 1], [], []>} : vector<8x8xf32>, vector<8x8xf32>, vector<8x8xf32> -> vector<8x8xf32>
    %57 = vector.extract_strided_slice %6 {offsets = [0, 24], sizes = [8, 8], strides = [1, 1]} : vector<8x32xf32> to vector<8x8xf32>
    %58 = vector.extract_strided_slice %7 {offsets = [0, 24], sizes = [8, 8], strides = [1, 1]} : vector<8x32xf32> to vector<8x8xf32>
    %cst_27 = arith.constant dense<0.000000e+00> : vector<8x8xf32>
    %59 = tpu.matmul %57, %58, %cst_27 {dimension_numbers = #tpu.dot_dimension_numbers<[1], [1], [0], [0], [0, 0, 1, 0], [], []>} : vector<8x8xf32>, vector<8x8xf32>, vector<8x8xf32> -> vector<8x8xf32>
    %cst_28 = arith.constant 0.176776692 : f32
    %60 = vector.broadcast %cst_28 : f32 to vector<8x8xf32>
    %61 = arith.mulf %59, %60 : vector<8x8xf32>
    %cst_29 = arith.constant dense<0xFF800000> : vector<8xf32>
    %62 = vector.multi_reduction <maximumf>, %61, %cst_29 [1] : vector<8x8xf32> to vector<8xf32>
    %63 = vector.shape_cast %62 : vector<8xf32> to vector<8x1xf32>
    %64 = vector.broadcast %63 : vector<8x1xf32> to vector<8x8xf32>
    %65 = arith.subf %61, %64 : vector<8x8xf32>
    %66 = math.exp %65 : vector<8x8xf32>
    %cst_30 = arith.constant dense<0.000000e+00> : vector<8xf32>
    %67 = vector.multi_reduction <add>, %66, %cst_30 [1] : vector<8x8xf32> to vector<8xf32>
    %68 = vector.shape_cast %67 : vector<8xf32> to vector<8x1xf32>
    %69 = vector.broadcast %68 : vector<8x1xf32> to vector<8x8xf32>
    %70 = arith.divf %66, %69 : vector<8x8xf32>
    %71 = vector.extract_strided_slice %8 {offsets = [0, 24], sizes = [8, 8], strides = [1, 1]} : vector<8x32xf32> to vector<8x8xf32>
    %cst_31 = arith.constant dense<0.000000e+00> : vector<8x8xf32>
    %72 = tpu.matmul %70, %71, %cst_31 {dimension_numbers = #tpu.dot_dimension_numbers<[1], [0], [0], [1], [0, 0, 1, 1], [], []>} : vector<8x8xf32>, vector<8x8xf32>, vector<8x8xf32> -> vector<8x8xf32>
    %73 = tpu.concatenate %24, %40, %56, %72 in 1 : vector<8x8xf32>, vector<8x8xf32>, vector<8x8xf32>, vector<8x8xf32> -> vector<8x32xf32>
    %cst_32 = arith.constant dense<0.000000e+00> : vector<8x128xf32>
    %74 = tpu.matmul %73, %5, %cst_32 {dimension_numbers = #tpu.dot_dimension_numbers<[1], [0], [0], [1], [0, 0, 1, 1], [], []>} : vector<8x32xf32>, vector<32x128xf32>, vector<8x128xf32> -> vector<8x128xf32>
    %75 = arith.addf %1, %74 : vector<8x128xf32>
    %c0_33 = arith.constant 0 : index
    %c0_34 = arith.constant 0 : index
    %76 = vector.load %arg6[%c0_33, %c0_34] : memref<1x128xf32, #tpu.memory_space<vmem>>, vector<1x128xf32>
    %c0_35 = arith.constant 0 : index
    %c0_36 = arith.constant 0 : index
    %77 = vector.load %arg7[%c0_35, %c0_36] : memref<1x128xf32, #tpu.memory_space<vmem>>, vector<1x128xf32>
    %cst_37 = arith.constant dense<0.000000e+00> : vector<8xf32>
    %78 = vector.multi_reduction <add>, %75, %cst_37 [1] : vector<8x128xf32> to vector<8xf32>
    %79 = vector.shape_cast %78 : vector<8xf32> to vector<8x1xf32>
    %cst_38 = arith.constant 3.125000e-02 : f32
    %80 = vector.broadcast %cst_38 : f32 to vector<8x1xf32>
    %81 = arith.mulf %79, %80 : vector<8x1xf32>
    %82 = vector.broadcast %81 : vector<8x1xf32> to vector<8x128xf32>
    %83 = arith.subf %75, %82 : vector<8x128xf32>
    %84 = tpu.iota {dimensions = array<i32: 1>} : vector<8x128xi32>
    %c32_i32 = arith.constant 32 : i32
    %85 = vector.broadcast %c32_i32 : i32 to vector<8x128xi32>
    %86 = arith.cmpi slt, %84, %85 : vector<8x128xi32>
    %cst_39 = arith.constant 0.000000e+00 : f32
    %87 = vector.broadcast %cst_39 : f32 to vector<8x128xf32>
    %88 = arith.select %86, %83, %87 : vector<8x128xi1>, vector<8x128xf32>
    %89 = arith.mulf %88, %88 : vector<8x128xf32>
    %cst_40 = arith.constant dense<0.000000e+00> : vector<8xf32>
    %90 = vector.multi_reduction <add>, %89, %cst_40 [1] : vector<8x128xf32> to vector<8xf32>
    %91 = vector.shape_cast %90 : vector<8xf32> to vector<8x1xf32>
    %cst_41 = arith.constant 3.125000e-02 : f32
    %92 = vector.broadcast %cst_41 : f32 to vector<8x1xf32>
    %93 = arith.mulf %91, %92 : vector<8x1xf32>
    %94 = vector.broadcast %81 : vector<8x1xf32> to vector<8x128xf32>
    %95 = arith.subf %75, %94 : vector<8x128xf32>
    %cst_42 = arith.constant 9.99999974E-6 : f32
    %96 = vector.broadcast %cst_42 : f32 to vector<8x1xf32>
    %97 = arith.addf %93, %96 : vector<8x1xf32>
    %98 = math.rsqrt %97 : vector<8x1xf32>
    %99 = vector.broadcast %98 : vector<8x1xf32> to vector<8x128xf32>
    %100 = arith.mulf %95, %99 : vector<8x128xf32>
    %101 = vector.broadcast %76 : vector<1x128xf32> to vector<8x128xf32>
    %102 = arith.mulf %101, %100 : vector<8x128xf32>
    %103 = vector.broadcast %77 : vector<1x128xf32> to vector<8x128xf32>
    %104 = arith.addf %102, %103 : vector<8x128xf32>
    %c0_43 = arith.constant 0 : index
    %c0_44 = arith.constant 0 : index
    %105 = vector.load %arg8[%c0_43, %c0_44] : memref<128x128xf32, #tpu.memory_space<vmem>>, vector<128x128xf32>
    %c0_45 = arith.constant 0 : index
    %c0_46 = arith.constant 0 : index
    %106 = vector.load %arg9[%c0_45, %c0_46] : memref<1x128xf32, #tpu.memory_space<vmem>>, vector<1x128xf32>
    %c0_47 = arith.constant 0 : index
    %c0_48 = arith.constant 0 : index
    %107 = vector.load %arg10[%c0_47, %c0_48] : memref<128x128xf32, #tpu.memory_space<vmem>>, vector<128x128xf32>
    %c0_49 = arith.constant 0 : index
    %c0_50 = arith.constant 0 : index
    %108 = vector.load %arg11[%c0_49, %c0_50] : memref<1x128xf32, #tpu.memory_space<vmem>>, vector<1x128xf32>
    %cst_51 = arith.constant dense<0.000000e+00> : vector<8x128xf32>
    %109 = tpu.matmul %104, %105, %cst_51 {dimension_numbers = #tpu.dot_dimension_numbers<[1], [0], [0], [1], [0, 0, 1, 1], [], []>} : vector<8x128xf32>, vector<128x128xf32>, vector<8x128xf32> -> vector<8x128xf32>
    %110 = vector.broadcast %106 : vector<1x128xf32> to vector<8x128xf32>
    %111 = arith.addf %109, %110 : vector<8x128xf32>
    %cst_52 = arith.constant 0.000000e+00 : f32
    %112 = vector.broadcast %cst_52 : f32 to vector<8x128xf32>
    %113 = arith.maximumf %111, %112 : vector<8x128xf32>
    %cst_53 = arith.constant dense<0.000000e+00> : vector<8x128xf32>
    %114 = tpu.matmul %113, %107, %cst_53 {dimension_numbers = #tpu.dot_dimension_numbers<[1], [0], [0], [1], [0, 0, 1, 1], [], []>} : vector<8x128xf32>, vector<128x128xf32>, vector<8x128xf32> -> vector<8x128xf32>
    %115 = vector.broadcast %108 : vector<1x128xf32> to vector<8x128xf32>
    %116 = arith.addf %114, %115 : vector<8x128xf32>
    %117 = arith.addf %104, %116 : vector<8x128xf32>
    %c0_54 = arith.constant 0 : index
    %c0_55 = arith.constant 0 : index
    %118 = vector.load %arg12[%c0_54, %c0_55] : memref<1x128xf32, #tpu.memory_space<vmem>>, vector<1x128xf32>
    %c0_56 = arith.constant 0 : index
    %c0_57 = arith.constant 0 : index
    %119 = vector.load %arg13[%c0_56, %c0_57] : memref<1x128xf32, #tpu.memory_space<vmem>>, vector<1x128xf32>
    %cst_58 = arith.constant dense<0.000000e+00> : vector<8xf32>
    %120 = vector.multi_reduction <add>, %117, %cst_58 [1] : vector<8x128xf32> to vector<8xf32>
    %121 = vector.shape_cast %120 : vector<8xf32> to vector<8x1xf32>
    %cst_59 = arith.constant 3.125000e-02 : f32
    %122 = vector.broadcast %cst_59 : f32 to vector<8x1xf32>
    %123 = arith.mulf %121, %122 : vector<8x1xf32>
    %124 = vector.broadcast %123 : vector<8x1xf32> to vector<8x128xf32>
    %125 = arith.subf %117, %124 : vector<8x128xf32>
    %126 = tpu.iota {dimensions = array<i32: 1>} : vector<8x128xi32>
    %c32_i32_60 = arith.constant 32 : i32
    %127 = vector.broadcast %c32_i32_60 : i32 to vector<8x128xi32>
    %128 = arith.cmpi slt, %126, %127 : vector<8x128xi32>
    %cst_61 = arith.constant 0.000000e+00 : f32
    %129 = vector.broadcast %cst_61 : f32 to vector<8x128xf32>
    %130 = arith.select %128, %125, %129 : vector<8x128xi1>, vector<8x128xf32>
    %131 = arith.mulf %130, %130 : vector<8x128xf32>
    %cst_62 = arith.constant dense<0.000000e+00> : vector<8xf32>
    %132 = vector.multi_reduction <add>, %131, %cst_62 [1] : vector<8x128xf32> to vector<8xf32>
    %133 = vector.shape_cast %132 : vector<8xf32> to vector<8x1xf32>
    %cst_63 = arith.constant 3.125000e-02 : f32
    %134 = vector.broadcast %cst_63 : f32 to vector<8x1xf32>
    %135 = arith.mulf %133, %134 : vector<8x1xf32>
    %136 = vector.broadcast %123 : vector<8x1xf32> to vector<8x128xf32>
    %137 = arith.subf %117, %136 : vector<8x128xf32>
    %cst_64 = arith.constant 9.99999974E-6 : f32
    %138 = vector.broadcast %cst_64 : f32 to vector<8x1xf32>
    %139 = arith.addf %135, %138 : vector<8x1xf32>
    %140 = math.rsqrt %139 : vector<8x1xf32>
    %141 = vector.broadcast %140 : vector<8x1xf32> to vector<8x128xf32>
    %142 = arith.mulf %137, %141 : vector<8x128xf32>
    %143 = vector.broadcast %118 : vector<1x128xf32> to vector<8x128xf32>
    %144 = arith.mulf %143, %142 : vector<8x128xf32>
    %145 = vector.broadcast %119 : vector<1x128xf32> to vector<8x128xf32>
    %146 = arith.addf %144, %145 : vector<8x128xf32>
    %c0_65 = arith.constant 0 : index
    %c0_66 = arith.constant 0 : index
    %c0_67 = arith.constant 0 : index
    %147 = vector.load %arg14[%c0_65, %c0_66, %c0_67] : memref<1x8x128xf32, #tpu.memory_space<vmem>>, vector<1x8x128xf32>
    %148 = vector.shape_cast %147 : vector<1x8x128xf32> to vector<8x128xf32>
    %149 = vector.shape_cast %146 : vector<8x128xf32> to vector<1x8x128xf32>
    tpu.vector_store %arg14[%c0_65, %c0_66, %c0_67], %149 {strides = array<i32>} : memref<1x8x128xf32, #tpu.memory_space<vmem>>, vector<1x8x128xf32>,
    return
  }
  func.func @transform_0(%arg0: i32) -> (i32, i32, i32) {
    %c0_i32 = arith.constant 0 : i32
    %c0_i32_0 = arith.constant 0 : i32
    %c0_i32_1 = arith.constant 0 : i32
    return %arg0, %c0_i32, %c0_i32_0 : i32, i32, i32
  }
  func.func @transform_1(%arg0: i32) -> (i32, i32) {
    %c0_i32 = arith.constant 0 : i32
    %c0_i32_0 = arith.constant 0 : i32
    %c0_i32_1 = arith.constant 0 : i32
    return %c0_i32, %c0_i32_0 : i32, i32
  }
  func.func @transform_2(%arg0: i32) -> (i32, i32) {
    %c0_i32 = arith.constant 0 : i32
    %c0_i32_0 = arith.constant 0 : i32
    %c0_i32_1 = arith.constant 0 : i32
    return %c0_i32, %c0_i32_0 : i32, i32
  }
  func.func @transform_3(%arg0: i32) -> (i32, i32) {
    %c0_i32 = arith.constant 0 : i32
    %c0_i32_0 = arith.constant 0 : i32
    %c0_i32_1 = arith.constant 0 : i32
    return %c0_i32, %c0_i32_0 : i32, i32
  }
  func.func @transform_4(%arg0: i32) -> (i32, i32) {
    %c0_i32 = arith.constant 0 : i32
    %c0_i32_0 = arith.constant 0 : i32
    %c0_i32_1 = arith.constant 0 : i32
    return %c0_i32, %c0_i32_0 : i32, i32
  }
  func.func @transform_5(%arg0: i32) -> (i32, i32) {
    %c0_i32 = arith.constant 0 : i32
    %c0_i32_0 = arith.constant 0 : i32
    %c0_i32_1 = arith.constant 0 : i32
    return %c0_i32, %c0_i32_0 : i32, i32
  }
  func.func @transform_6(%arg0: i32) -> (i32, i32) {
    %c0_i32 = arith.constant 0 : i32
    %c0_i32_0 = arith.constant 0 : i32
    %c0_i32_1 = arith.constant 0 : i32
    return %c0_i32, %c0_i32_0 : i32, i32
  }
  func.func @transform_7(%arg0: i32) -> (i32, i32) {
    %c0_i32 = arith.constant 0 : i32
    %c0_i32_0 = arith.constant 0 : i32
    %c0_i32_1 = arith.constant 0 : i32
    return %c0_i32, %c0_i32_0 : i32, i32
  }
  func.func @transform_8(%arg0: i32) -> (i32, i32) {
    %c0_i32 = arith.constant 0 : i32
    %c0_i32_0 = arith.constant 0 : i32
    %c0_i32_1 = arith.constant 0 : i32
    return %c0_i32, %c0_i32_0 : i32, i32
  }
  func.func @transform_9(%arg0: i32) -> (i32, i32) {
    %c0_i32 = arith.constant 0 : i32
    %c0_i32_0 = arith.constant 0 : i32
    %c0_i32_1 = arith.constant 0 : i32
    return %c0_i32, %c0_i32_0 : i32, i32
  }
  func.func @transform_10(%arg0: i32) -> (i32, i32) {
    %c0_i32 = arith.constant 0 : i32
    %c0_i32_0 = arith.constant 0 : i32
    %c0_i32_1 = arith.constant 0 : i32
    return %c0_i32, %c0_i32_0 : i32, i32
  }
  func.func @transform_11(%arg0: i32) -> (i32, i32) {
    %c0_i32 = arith.constant 0 : i32
    %c0_i32_0 = arith.constant 0 : i32
    %c0_i32_1 = arith.constant 0 : i32
    return %c0_i32, %c0_i32_0 : i32, i32
  }
  func.func @transform_12(%arg0: i32) -> (i32, i32) {
    %c0_i32 = arith.constant 0 : i32
    %c0_i32_0 = arith.constant 0 : i32
    %c0_i32_1 = arith.constant 0 : i32
    return %c0_i32, %c0_i32_0 : i32, i32
  }
  func.func @transform_13(%arg0: i32) -> (i32, i32, i32) {
    %c0_i32 = arith.constant 0 : i32
    %c0_i32_0 = arith.constant 0 : i32
    %c0_i32_1 = arith.constant 0 : i32
    return %arg0, %c0_i32, %c0_i32_0 : i32, i32, i32
  }
}

module attributes {stable_mosaic.version = 11 : i64} {
  func.func @_encoder_layer_kernel(%arg0: i32, %arg1: memref<1x8x128xf32, #tpu.memory_space<vmem>>, %arg2: memref<128x32xf32, #tpu.memory_space<vmem>>, %arg3: memref<128x32xf32, #tpu.memory_space<vmem>>, %arg4: memref<128x32xf32, #tpu.memory_space<vmem>>, %arg5: memref<32x128xf32, #tpu.memory_space<vmem>>, %arg6: memref<1x128xf32, #tpu.memory_space<vmem>>, %arg7: memref<1x128xf32, #tpu.memory_space<vmem>>, %arg8: memref<128x128xf32, #tpu.memory_space<vmem>>, %arg9: memref<1x128xf32, #tpu.memory_space<vmem>>, %arg10: memref<128x128xf32, #tpu.memory_space<vmem>>, %arg11: memref<1x128xf32, #tpu.memory_space<vmem>>, %arg12: memref<1x128xf32, #tpu.memory_space<vmem>>, %arg13: memref<1x128xf32, #tpu.memory_space<vmem>>, %arg14: memref<1x8x128xf32, #tpu.memory_space<vmem>>) attributes {dimension_semantics = [#tpu.dimension_semantics<parallel>], iteration_bounds = array<i64: 2>, scalar_prefetch = 0 : i64, scratch_operands = 0 : i64, tpu.core_type = #tpu.core_type<tc>, window_params = [{transform_indices = @transform_0, window_bounds = array<i64: 1, 8, 128>}, {pipeline_mode = #tpu.pipeline_mode<synchronous>, transform_indices = @transform_1, window_bounds = array<i64: 128, 32>}, {pipeline_mode = #tpu.pipeline_mode<synchronous>, transform_indices = @transform_2, window_bounds = array<i64: 128, 32>}, {pipeline_mode = #tpu.pipeline_mode<synchronous>, transform_indices = @transform_3, window_bounds = array<i64: 128, 32>}, {pipeline_mode = #tpu.pipeline_mode<synchronous>, transform_indices = @transform_4, window_bounds = array<i64: 32, 128>}, {pipeline_mode = #tpu.pipeline_mode<synchronous>, transform_indices = @transform_5, window_bounds = array<i64: 1, 128>}, {pipeline_mode = #tpu.pipeline_mode<synchronous>, transform_indices = @transform_6, window_bounds = array<i64: 1, 128>}, {pipeline_mode = #tpu.pipeline_mode<synchronous>, transform_indices = @transform_7, window_bounds = array<i64: 128, 128>}, {pipeline_mode = #tpu.pipeline_mode<synchronous>, transform_indices = @transform_8, window_bounds = array<i64: 1, 128>}, {pipeline_mode = #tpu.pipeline_mode<synchronous>, transform_indices = @transform_9, window_bounds = array<i64: 128, 128>}, {pipeline_mode = #tpu.pipeline_mode<synchronous>, transform_indices = @transform_10, window_bounds = array<i64: 1, 128>}, {pipeline_mode = #tpu.pipeline_mode<synchronous>, transform_indices = @transform_11, window_bounds = array<i64: 1, 128>}, {pipeline_mode = #tpu.pipeline_mode<synchronous>, transform_indices = @transform_12, window_bounds = array<i64: 1, 128>}, {transform_indices = @transform_13, window_bounds = array<i64: 1, 8, 128>}]} {
    %c0 = arith.constant 0 : index
    %c0_0 = arith.constant 0 : index
    %c0_1 = arith.constant 0 : index
    %0 = vector.load %arg1[%c0, %c0_0, %c0_1] : memref<1x8x128xf32, #tpu.memory_space<vmem>>, vector<1x8x128xf32>
    %1 = vector.shape_cast %0 : vector<1x8x128xf32> to vector<8x128xf32>
    %c0_2 = arith.constant 0 : index
    %c0_3 = arith.constant 0 : index
    %2 = vector.load %arg2[%c0_2, %c0_3] : memref<128x32xf32, #tpu.memory_space<vmem>>, vector<128x32xf32>
    %c0_4 = arith.constant 0 : index
    %c0_5 = arith.constant 0 : index
    %3 = vector.load %arg3[%c0_4, %c0_5] : memref<128x32xf32, #tpu.memory_space<vmem>>, vector<128x32xf32>
    %c0_6 = arith.constant 0 : index
    %c0_7 = arith.constant 0 : index
    %4 = vector.load %arg4[%c0_6, %c0_7] : memref<128x32xf32, #tpu.memory_space<vmem>>, vector<128x32xf32>
    %c0_8 = arith.constant 0 : index
    %c0_9 = arith.constant 0 : index
    %5 = vector.load %arg5[%c0_8, %c0_9] : memref<32x128xf32, #tpu.memory_space<vmem>>, vector<32x128xf32>
    %cst = arith.constant dense<0.000000e+00> : vector<8x32xf32>
    %6 = tpu.matmul %1, %2, %cst {dimension_numbers = #tpu.dot_dimension_numbers<[1], [0], [0], [1], [0, 0, 1, 1], [], []>} : vector<8x128xf32>, vector<128x32xf32>, vector<8x32xf32> -> vector<8x32xf32>
    %cst_10 = arith.constant dense<0.000000e+00> : vector<8x32xf32>
    %7 = tpu.matmul %1, %3, %cst_10 {dimension_numbers = #tpu.dot_dimension_numbers<[1], [0], [0], [1], [0, 0, 1, 1], [], []>} : vector<8x128xf32>, vector<128x32xf32>, vector<8x32xf32> -> vector<8x32xf32>
    %cst_11 = arith.constant dense<0.000000e+00> : vector<8x32xf32>
    %8 = tpu.matmul %1, %4, %cst_11 {dimension_numbers = #tpu.dot_dimension_numbers<[1], [0], [0], [1], [0, 0, 1, 1], [], []>} : vector<8x128xf32>, vector<128x32xf32>, vector<8x32xf32> -> vector<8x32xf32>
    %9 = vector.extract_strided_slice %6 {offsets = [0, 0], sizes = [8, 8], strides = [1, 1]} : vector<8x32xf32> to vector<8x8xf32>
    %10 = vector.extract_strided_slice %7 {offsets = [0, 0], sizes = [8, 8], strides = [1, 1]} : vector<8x32xf32> to vector<8x8xf32>
    %cst_12 = arith.constant dense<0.000000e+00> : vector<8x8xf32>
    %11 = tpu.matmul %9, %10, %cst_12 {dimension_numbers = #tpu.dot_dimension_numbers<[1], [1], [0], [0], [0, 0, 1, 0], [], []>} : vector<8x8xf32>, vector<8x8xf32>, vector<8x8xf32> -> vector<8x8xf32>
    %cst_13 = arith.constant 0.176776692 : f32
    %12 = vector.broadcast %cst_13 : f32 to vector<8x8xf32>
    %13 = arith.mulf %11, %12 : vector<8x8xf32>
    %cst_14 = arith.constant dense<0xFF800000> : vector<8xf32>
    %14 = vector.multi_reduction <maximumf>, %13, %cst_14 [1] : vector<8x8xf32> to vector<8xf32>
    %15 = vector.shape_cast %14 : vector<8xf32> to vector<8x1xf32>
    %16 = vector.broadcast %15 : vector<8x1xf32> to vector<8x8xf32>
    %17 = arith.subf %13, %16 : vector<8x8xf32>
    %18 = math.exp %17 : vector<8x8xf32>
    %cst_15 = arith.constant dense<0.000000e+00> : vector<8xf32>
    %19 = vector.multi_reduction <add>, %18, %cst_15 [1] : vector<8x8xf32> to vector<8xf32>
    %20 = vector.shape_cast %19 : vector<8xf32> to vector<8x1xf32>
    %21 = vector.broadcast %20 : vector<8x1xf32> to vector<8x8xf32>
    %22 = arith.divf %18, %21 : vector<8x8xf32>
    %23 = vector.extract_strided_slice %8 {offsets = [0, 0], sizes = [8, 8], strides = [1, 1]} : vector<8x32xf32> to vector<8x8xf32>
    %cst_16 = arith.constant dense<0.000000e+00> : vector<8x8xf32>
    %24 = tpu.matmul %22, %23, %cst_16 {dimension_numbers = #tpu.dot_dimension_numbers<[1], [0], [0], [1], [0, 0, 1, 1], [], []>} : vector<8x8xf32>, vector<8x8xf32>, vector<8x8xf32> -> vector<8x8xf32>
    %25 = vector.extract_strided_slice %6 {offsets = [0, 8], sizes = [8, 8], strides = [1, 1]} : vector<8x32xf32> to vector<8x8xf32>
    %26 = vector.extract_strided_slice %7 {offsets = [0, 8], sizes = [8, 8], strides = [1, 1]} : vector<8x32xf32> to vector<8x8xf32>
    %cst_17 = arith.constant dense<0.000000e+00> : vector<8x8xf32>
    %27 = tpu.matmul %25, %26, %cst_17 {dimension_numbers = #tpu.dot_dimension_numbers<[1], [1], [0], [0], [0, 0, 1, 0], [], []>} : vector<8x8xf32>, vector<8x8xf32>, vector<8x8xf32> -> vector<8x8xf32>
    %cst_18 = arith.constant 0.176776692 : f32
    %28 = vector.broadcast %cst_18 : f32 to vector<8x8xf32>
    %29 = arith.mulf %27, %28 : vector<8x8xf32>
    %cst_19 = arith.constant dense<0xFF800000> : vector<8xf32>
    %30 = vector.multi_reduction <maximumf>, %29, %cst_19 [1] : vector<8x8xf32> to vector<8xf32>
    %31 = vector.shape_cast %30 : vector<8xf32> to vector<8x1xf32>
    %32 = vector.broadcast %31 : vector<8x1xf32> to vector<8x8xf32>
    %33 = arith.subf %29, %32 : vector<8x8xf32>
    %34 = math.exp %33 : vector<8x8xf32>
    %cst_20 = arith.constant dense<0.000000e+00> : vector<8xf32>
    %35 = vector.multi_reduction <add>, %34, %cst_20 [1] : vector<8x8xf32> to vector<8xf32>
    %36 = vector.shape_cast %35 : vector<8xf32> to vector<8x1xf32>
    %37 = vector.broadcast %36 : vector<8x1xf32> to vector<8x8xf32>
    %38 = arith.divf %34, %37 : vector<8x8xf32>
    %39 = vector.extract_strided_slice %8 {offsets = [0, 8], sizes = [8, 8], strides = [1, 1]} : vector<8x32xf32> to vector<8x8xf32>
    %cst_21 = arith.constant dense<0.000000e+00> : vector<8x8xf32>
    %40 = tpu.matmul %38, %39, %cst_21 {dimension_numbers = #tpu.dot_dimension_numbers<[1], [0], [0], [1], [0, 0, 1, 1], [], []>} : vector<8x8xf32>, vector<8x8xf32>, vector<8x8xf32> -> vector<8x8xf32>
    %41 = vector.extract_strided_slice %6 {offsets = [0, 16], sizes = [8, 8], strides = [1, 1]} : vector<8x32xf32> to vector<8x8xf32>
    %42 = vector.extract_strided_slice %7 {offsets = [0, 16], sizes = [8, 8], strides = [1, 1]} : vector<8x32xf32> to vector<8x8xf32>
    %cst_22 = arith.constant dense<0.000000e+00> : vector<8x8xf32>
    %43 = tpu.matmul %41, %42, %cst_22 {dimension_numbers = #tpu.dot_dimension_numbers<[1], [1], [0], [0], [0, 0, 1, 0], [], []>} : vector<8x8xf32>, vector<8x8xf32>, vector<8x8xf32> -> vector<8x8xf32>
    %cst_23 = arith.constant 0.176776692 : f32
    %44 = vector.broadcast %cst_23 : f32 to vector<8x8xf32>
    %45 = arith.mulf %43, %44 : vector<8x8xf32>
    %cst_24 = arith.constant dense<0xFF800000> : vector<8xf32>
    %46 = vector.multi_reduction <maximumf>, %45, %cst_24 [1] : vector<8x8xf32> to vector<8xf32>
    %47 = vector.shape_cast %46 : vector<8xf32> to vector<8x1xf32>
    %48 = vector.broadcast %47 : vector<8x1xf32> to vector<8x8xf32>
    %49 = arith.subf %45, %48 : vector<8x8xf32>
    %50 = math.exp %49 : vector<8x8xf32>
    %cst_25 = arith.constant dense<0.000000e+00> : vector<8xf32>
    %51 = vector.multi_reduction <add>, %50, %cst_25 [1] : vector<8x8xf32> to vector<8xf32>
    %52 = vector.shape_cast %51 : vector<8xf32> to vector<8x1xf32>
    %53 = vector.broadcast %52 : vector<8x1xf32> to vector<8x8xf32>
    %54 = arith.divf %50, %53 : vector<8x8xf32>
    %55 = vector.extract_strided_slice %8 {offsets = [0, 16], sizes = [8, 8], strides = [1, 1]} : vector<8x32xf32> to vector<8x8xf32>
    %cst_26 = arith.constant dense<0.000000e+00> : vector<8x8xf32>
    %56 = tpu.matmul %54, %55, %cst_26 {dimension_numbers = #tpu.dot_dimension_numbers<[1], [0], [0], [1], [0, 0, 1, 1], [], []>} : vector<8x8xf32>, vector<8x8xf32>, vector<8x8xf32> -> vector<8x8xf32>
    %57 = vector.extract_strided_slice %6 {offsets = [0, 24], sizes = [8, 8], strides = [1, 1]} : vector<8x32xf32> to vector<8x8xf32>
    %58 = vector.extract_strided_slice %7 {offsets = [0, 24], sizes = [8, 8], strides = [1, 1]} : vector<8x32xf32> to vector<8x8xf32>
    %cst_27 = arith.constant dense<0.000000e+00> : vector<8x8xf32>
    %59 = tpu.matmul %57, %58, %cst_27 {dimension_numbers = #tpu.dot_dimension_numbers<[1], [1], [0], [0], [0, 0, 1, 0], [], []>} : vector<8x8xf32>, vector<8x8xf32>, vector<8x8xf32> -> vector<8x8xf32>
    %cst_28 = arith.constant 0.176776692 : f32
    %60 = vector.broadcast %cst_28 : f32 to vector<8x8xf32>
    %61 = arith.mulf %59, %60 : vector<8x8xf32>
    %cst_29 = arith.constant dense<0xFF800000> : vector<8xf32>
    %62 = vector.multi_reduction <maximumf>, %61, %cst_29 [1] : vector<8x8xf32> to vector<8xf32>
    %63 = vector.shape_cast %62 : vector<8xf32> to vector<8x1xf32>
    %64 = vector.broadcast %63 : vector<8x1xf32> to vector<8x8xf32>
    %65 = arith.subf %61, %64 : vector<8x8xf32>
    %66 = math.exp %65 : vector<8x8xf32>
    %cst_30 = arith.constant dense<0.000000e+00> : vector<8xf32>
    %67 = vector.multi_reduction <add>, %66, %cst_30 [1] : vector<8x8xf32> to vector<8xf32>
    %68 = vector.shape_cast %67 : vector<8xf32> to vector<8x1xf32>
    %69 = vector.broadcast %68 : vector<8x1xf32> to vector<8x8xf32>
    %70 = arith.divf %66, %69 : vector<8x8xf32>
    %71 = vector.extract_strided_slice %8 {offsets = [0, 24], sizes = [8, 8], strides = [1, 1]} : vector<8x32xf32> to vector<8x8xf32>
    %cst_31 = arith.constant dense<0.000000e+00> : vector<8x8xf32>
    %72 = tpu.matmul %70, %71, %cst_31 {dimension_numbers = #tpu.dot_dimension_numbers<[1], [0], [0], [1], [0, 0, 1, 1], [], []>} : vector<8x8xf32>, vector<8x8xf32>, vector<8x8xf32> -> vector<8x8xf32>
    %73 = tpu.concatenate %24, %40, %56, %72 in 1 : vector<8x8xf32>, vector<8x8xf32>, vector<8x8xf32>, vector<8x8xf32> -> vector<8x32xf32>
    %cst_32 = arith.constant dense<0.000000e+00> : vector<8x128xf32>
    %74 = tpu.matmul %73, %5, %cst_32 {dimension_numbers = #tpu.dot_dimension_numbers<[1], [0], [0], [1], [0, 0, 1, 1], [], []>} : vector<8x32xf32>, vector<32x128xf32>, vector<8x128xf32> -> vector<8x128xf32>
    %75 = arith.addf %1, %74 : vector<8x128xf32>
    %c0_33 = arith.constant 0 : index
    %c0_34 = arith.constant 0 : index
    %76 = vector.load %arg6[%c0_33, %c0_34] : memref<1x128xf32, #tpu.memory_space<vmem>>, vector<1x128xf32>
    %c0_35 = arith.constant 0 : index
    %c0_36 = arith.constant 0 : index
    %77 = vector.load %arg7[%c0_35, %c0_36] : memref<1x128xf32, #tpu.memory_space<vmem>>, vector<1x128xf32>
    %cst_37 = arith.constant dense<0.000000e+00> : vector<8xf32>
    %78 = vector.multi_reduction <add>, %75, %cst_37 [1] : vector<8x128xf32> to vector<8xf32>
    %79 = vector.shape_cast %78 : vector<8xf32> to vector<8x1xf32>
    %cst_38 = arith.constant 3.125000e-02 : f32
    %80 = vector.broadcast %cst_38 : f32 to vector<8x1xf32>
    %81 = arith.mulf %79, %80 : vector<8x1xf32>
    %82 = vector.broadcast %81 : vector<8x1xf32> to vector<8x128xf32>
    %83 = arith.subf %75, %82 : vector<8x128xf32>
    %84 = tpu.iota {dimensions = array<i32: 1>} : vector<8x128xi32>
    %c32_i32 = arith.constant 32 : i32
    %85 = vector.broadcast %c32_i32 : i32 to vector<8x128xi32>
    %86 = arith.cmpi slt, %84, %85 : vector<8x128xi32>
    %cst_39 = arith.constant 0.000000e+00 : f32
    %87 = vector.broadcast %cst_39 : f32 to vector<8x128xf32>
    %88 = arith.select %86, %83, %87 : vector<8x128xi1>, vector<8x128xf32>
    %89 = arith.mulf %88, %88 : vector<8x128xf32>
    %cst_40 = arith.constant dense<0.000000e+00> : vector<8xf32>
    %90 = vector.multi_reduction <add>, %89, %cst_40 [1] : vector<8x128xf32> to vector<8xf32>
    %91 = vector.shape_cast %90 : vector<8xf32> to vector<8x1xf32>
    %cst_41 = arith.constant 3.125000e-02 : f32
    %92 = vector.broadcast %cst_41 : f32 to vector<8x1xf32>
    %93 = arith.mulf %91, %92 : vector<8x1xf32>
    %94 = vector.broadcast %81 : vector<8x1xf32> to vector<8x128xf32>
    %95 = arith.subf %75, %94 : vector<8x128xf32>
    %cst_42 = arith.constant 9.99999974E-6 : f32
    %96 = vector.broadcast %cst_42 : f32 to vector<8x1xf32>
    %97 = arith.addf %93, %96 : vector<8x1xf32>
    %98 = math.rsqrt %97 : vector<8x1xf32>
    %99 = vector.broadcast %98 : vector<8x1xf32> to vector<8x128xf32>
    %100 = arith.mulf %95, %99 : vector<8x128xf32>
    %101 = vector.broadcast %76 : vector<1x128xf32> to vector<8x128xf32>
    %102 = arith.mulf %101, %100 : vector<8x128xf32>
    %103 = vector.broadcast %77 : vector<1x128xf32> to vector<8x128xf32>
    %104 = arith.addf %102, %103 : vector<8x128xf32>
    %c0_43 = arith.constant 0 : index
    %c0_44 = arith.constant 0 : index
    %105 = vector.load %arg8[%c0_43, %c0_44] : memref<128x128xf32, #tpu.memory_space<vmem>>, vector<128x128xf32>
    %c0_45 = arith.constant 0 : index
    %c0_46 = arith.constant 0 : index
    %106 = vector.load %arg9[%c0_45, %c0_46] : memref<1x128xf32, #tpu.memory_space<vmem>>, vector<1x128xf32>
    %c0_47 = arith.constant 0 : index
    %c0_48 = arith.constant 0 : index
    %107 = vector.load %arg10[%c0_47, %c0_48] : memref<128x128xf32, #tpu.memory_space<vmem>>, vector<128x128xf32>
    %c0_49 = arith.constant 0 : index
    %c0_50 = arith.constant 0 : index
    %108 = vector.load %arg11[%c0_49, %c0_50] : memref<1x128xf32, #tpu.memory_space<vmem>>, vector<1x128xf32>
    %cst_51 = arith.constant dense<0.000000e+00> : vector<8x128xf32>
    %109 = tpu.matmul %104, %105, %cst_51 {dimension_numbers = #tpu.dot_dimension_numbers<[1], [0], [0], [1], [0, 0, 1, 1], [], []>} : vector<8x128xf32>, vector<128x128xf32>, vector<8x128xf32> -> vector<8x128xf32>
    %110 = vector.broadcast %106 : vector<1x128xf32> to vector<8x128xf32>
    %111 = arith.addf %109, %110 : vector<8x128xf32>
    %cst_52 = arith.constant 0.000000e+00 : f32
    %112 = vector.broadcast %cst_52 : f32 to vector<8x128xf32>
    %113 = arith.maximumf %111, %112 : vector<8x128xf32>
    %cst_53 = arith.constant dense<0.000000e+00> : vector<8x128xf32>
    %114 = tpu.matmul %113, %107, %cst_53 {dimension_numbers = #tpu.dot_dimension_numbers<[1], [0], [0], [1], [0, 0, 1, 1], [], []>} : vector<8x128xf32>, vector<128x128xf32>, vector<8x128xf32> -> vector<8x128xf32>
    %115 = vector.broadcast %108 : vector<1x128xf32> to vector<8x128xf32>
    %116 = arith.addf %114, %115 : vector<8x128xf32>
    %117 = arith.addf %104, %116 : vector<8x128xf32>
    %c0_54 = arith.constant 0 : index
    %c0_55 = arith.constant 0 : index
    %118 = vector.load %arg12[%c0_54, %c0_55] : memref<1x128xf32, #tpu.memory_space<vmem>>, vector<1x128xf32>
    %c0_56 = arith.constant 0 : index
    %c0_57 = arith.constant 0 : index
    %119 = vector.load %arg13[%c0_56, %c0_57] : memref<1x128xf32, #tpu.memory_space<vmem>>, vector<1x128xf32>
    %cst_58 = arith.constant dense<0.000000e+00> : vector<8xf32>
    %120 = vector.multi_reduction <add>, %117, %cst_58 [1] : vector<8x128xf32> to vector<8xf32>
    %121 = vector.shape_cast %120 : vector<8xf32> to vector<8x1xf32>
    %cst_59 = arith.constant 3.125000e-02 : f32
    %122 = vector.broadcast %cst_59 : f32 to vector<8x1xf32>
    %123 = arith.mulf %121, %122 : vector<8x1xf32>
    %124 = vector.broadcast %123 : vector<8x1xf32> to vector<8x128xf32>
    %125 = arith.subf %117, %124 : vector<8x128xf32>
    %126 = tpu.iota {dimensions = array<i32: 1>} : vector<8x128xi32>
    %c32_i32_60 = arith.constant 32 : i32
    %127 = vector.broadcast %c32_i32_60 : i32 to vector<8x128xi32>
    %128 = arith.cmpi slt, %126, %127 : vector<8x128xi32>
    %cst_61 = arith.constant 0.000000e+00 : f32
    %129 = vector.broadcast %cst_61 : f32 to vector<8x128xf32>
    %130 = arith.select %128, %125, %129 : vector<8x128xi1>, vector<8x128xf32>
    %131 = arith.mulf %130, %130 : vector<8x128xf32>
    %cst_62 = arith.constant dense<0.000000e+00> : vector<8xf32>
    %132 = vector.multi_reduction <add>, %131, %cst_62 [1] : vector<8x128xf32> to vector<8xf32>
    %133 = vector.shape_cast %132 : vector<8xf32> to vector<8x1xf32>
    %cst_63 = arith.constant 3.125000e-02 : f32
    %134 = vector.broadcast %cst_63 : f32 to vector<8x1xf32>
    %135 = arith.mulf %133, %134 : vector<8x1xf32>
    %136 = vector.broadcast %123 : vector<8x1xf32> to vector<8x128xf32>
    %137 = arith.subf %117, %136 : vector<8x128xf32>
    %cst_64 = arith.constant 9.99999974E-6 : f32
    %138 = vector.broadcast %cst_64 : f32 to vector<8x1xf32>
    %139 = arith.addf %135, %138 : vector<8x1xf32>
    %140 = math.rsqrt %139 : vector<8x1xf32>
    %141 = vector.broadcast %140 : vector<8x1xf32> to vector<8x128xf32>
    %142 = arith.mulf %137, %141 : vector<8x128xf32>
    %143 = vector.broadcast %118 : vector<1x128xf32> to vector<8x128xf32>
    %144 = arith.mulf %143, %142 : vector<8x128xf32>
    %145 = vector.broadcast %119 : vector<1x128xf32> to vector<8x128xf32>
    %146 = arith.addf %144, %145 : vector<8x128xf32>
    %c0_65 = arith.constant 0 : index
    %c0_66 = arith.constant 0 : index
    %c0_67 = arith.constant 0 : index
    %147 = vector.load %arg14[%c0_65, %c0_66, %c0_67] : memref<1x8x128xf32, #tpu.memory_space<vmem>>, vector<1x8x128xf32>
    %148 = vector.shape_cast %147 : vector<1x8x128xf32> to vector<8x128xf32>
    %149 = vector.shape_cast %146 : vector<8x128xf32> to vector<1x8x128xf32>
    tpu.vector_store %arg14[%c0_65, %c0_66, %c0_67], %149 {strides = array<i32>} : memref<1x8x128xf32, #tpu.memory_space<vmem>>, vector<1x8x128xf32>,
    return
  }
  func.func @transform_0(%arg0: i32) -> (i32, i32, i32) {
    %c0_i32 = arith.constant 0 : i32
    %c0_i32_0 = arith.constant 0 : i32
    %c0_i32_1 = arith.constant 0 : i32
    return %arg0, %c0_i32, %c0_i32_0 : i32, i32, i32
  }
  func.func @transform_1(%arg0: i32) -> (i32, i32) {
    %c0_i32 = arith.constant 0 : i32
    %c0_i32_0 = arith.constant 0 : i32
    %c0_i32_1 = arith.constant 0 : i32
    return %c0_i32, %c0_i32_0 : i32, i32
  }
  func.func @transform_2(%arg0: i32) -> (i32, i32) {
    %c0_i32 = arith.constant 0 : i32
    %c0_i32_0 = arith.constant 0 : i32
    %c0_i32_1 = arith.constant 0 : i32
    return %c0_i32, %c0_i32_0 : i32, i32
  }
  func.func @transform_3(%arg0: i32) -> (i32, i32) {
    %c0_i32 = arith.constant 0 : i32
    %c0_i32_0 = arith.constant 0 : i32
    %c0_i32_1 = arith.constant 0 : i32
    return %c0_i32, %c0_i32_0 : i32, i32
  }
  func.func @transform_4(%arg0: i32) -> (i32, i32) {
    %c0_i32 = arith.constant 0 : i32
    %c0_i32_0 = arith.constant 0 : i32
    %c0_i32_1 = arith.constant 0 : i32
    return %c0_i32, %c0_i32_0 : i32, i32
  }
  func.func @transform_5(%arg0: i32) -> (i32, i32) {
    %c0_i32 = arith.constant 0 : i32
    %c0_i32_0 = arith.constant 0 : i32
    %c0_i32_1 = arith.constant 0 : i32
    return %c0_i32, %c0_i32_0 : i32, i32
  }
  func.func @transform_6(%arg0: i32) -> (i32, i32) {
    %c0_i32 = arith.constant 0 : i32
    %c0_i32_0 = arith.constant 0 : i32
    %c0_i32_1 = arith.constant 0 : i32
    return %c0_i32, %c0_i32_0 : i32, i32
  }
  func.func @transform_7(%arg0: i32) -> (i32, i32) {
    %c0_i32 = arith.constant 0 : i32
    %c0_i32_0 = arith.constant 0 : i32
    %c0_i32_1 = arith.constant 0 : i32
    return %c0_i32, %c0_i32_0 : i32, i32
  }
  func.func @transform_8(%arg0: i32) -> (i32, i32) {
    %c0_i32 = arith.constant 0 : i32
    %c0_i32_0 = arith.constant 0 : i32
    %c0_i32_1 = arith.constant 0 : i32
    return %c0_i32, %c0_i32_0 : i32, i32
  }
  func.func @transform_9(%arg0: i32) -> (i32, i32) {
    %c0_i32 = arith.constant 0 : i32
    %c0_i32_0 = arith.constant 0 : i32
    %c0_i32_1 = arith.constant 0 : i32
    return %c0_i32, %c0_i32_0 : i32, i32
  }
  func.func @transform_10(%arg0: i32) -> (i32, i32) {
    %c0_i32 = arith.constant 0 : i32
    %c0_i32_0 = arith.constant 0 : i32
    %c0_i32_1 = arith.constant 0 : i32
    return %c0_i32, %c0_i32_0 : i32, i32
  }
  func.func @transform_11(%arg0: i32) -> (i32, i32) {
    %c0_i32 = arith.constant 0 : i32
    %c0_i32_0 = arith.constant 0 : i32
    %c0_i32_1 = arith.constant 0 : i32
    return %c0_i32, %c0_i32_0 : i32, i32
  }
  func.func @transform_12(%arg0: i32) -> (i32, i32) {
    %c0_i32 = arith.constant 0 : i32
    %c0_i32_0 = arith.constant 0 : i32
    %c0_i32_1 = arith.constant 0 : i32
    return %c0_i32, %c0_i32_0 : i32, i32
  }
  func.func @transform_13(%arg0: i32) -> (i32, i32, i32) {
    %c0_i32 = arith.constant 0 : i32
    %c0_i32_0 = arith.constant 0 : i32
    %c0_i32_1 = arith.constant 0 : i32
    return %arg0, %c0_i32, %c0_i32_0 : i32, i32, i32
  }
}

module attributes {stable_mosaic.version = 11 : i64} {
  func.func @_decoder_layer_kernel(%arg0: i32, %arg1: memref<1x8x128xf32, #tpu.memory_space<vmem>>, %arg2: memref<1x8x128xf32, #tpu.memory_space<vmem>>, %arg3: memref<128x32xf32, #tpu.memory_space<vmem>>, %arg4: memref<128x32xf32, #tpu.memory_space<vmem>>, %arg5: memref<128x32xf32, #tpu.memory_space<vmem>>, %arg6: memref<32x128xf32, #tpu.memory_space<vmem>>, %arg7: memref<1x128xf32, #tpu.memory_space<vmem>>, %arg8: memref<1x128xf32, #tpu.memory_space<vmem>>, %arg9: memref<128x32xf32, #tpu.memory_space<vmem>>, %arg10: memref<128x32xf32, #tpu.memory_space<vmem>>, %arg11: memref<128x32xf32, #tpu.memory_space<vmem>>, %arg12: memref<32x128xf32, #tpu.memory_space<vmem>>, %arg13: memref<1x128xf32, #tpu.memory_space<vmem>>, %arg14: memref<1x128xf32, #tpu.memory_space<vmem>>, %arg15: memref<128x128xf32, #tpu.memory_space<vmem>>, %arg16: memref<1x128xf32, #tpu.memory_space<vmem>>, %arg17: memref<128x128xf32, #tpu.memory_space<vmem>>, %arg18: memref<1x128xf32, #tpu.memory_space<vmem>>, %arg19: memref<1x128xf32, #tpu.memory_space<vmem>>, %arg20: memref<1x128xf32, #tpu.memory_space<vmem>>, %arg21: memref<1x8x128xf32, #tpu.memory_space<vmem>>) attributes {dimension_semantics = [#tpu.dimension_semantics<parallel>], iteration_bounds = array<i64: 2>, scalar_prefetch = 0 : i64, scratch_operands = 0 : i64, tpu.core_type = #tpu.core_type<tc>, window_params = [{transform_indices = @transform_0, window_bounds = array<i64: 1, 8, 128>}, {transform_indices = @transform_1, window_bounds = array<i64: 1, 8, 128>}, {pipeline_mode = #tpu.pipeline_mode<synchronous>, transform_indices = @transform_2, window_bounds = array<i64: 128, 32>}, {pipeline_mode = #tpu.pipeline_mode<synchronous>, transform_indices = @transform_3, window_bounds = array<i64: 128, 32>}, {pipeline_mode = #tpu.pipeline_mode<synchronous>, transform_indices = @transform_4, window_bounds = array<i64: 128, 32>}, {pipeline_mode = #tpu.pipeline_mode<synchronous>, transform_indices = @transform_5, window_bounds = array<i64: 32, 128>}, {pipeline_mode = #tpu.pipeline_mode<synchronous>, transform_indices = @transform_6, window_bounds = array<i64: 1, 128>}, {pipeline_mode = #tpu.pipeline_mode<synchronous>, transform_indices = @transform_7, window_bounds = array<i64: 1, 128>}, {pipeline_mode = #tpu.pipeline_mode<synchronous>, transform_indices = @transform_8, window_bounds = array<i64: 128, 32>}, {pipeline_mode = #tpu.pipeline_mode<synchronous>, transform_indices = @transform_9, window_bounds = array<i64: 128, 32>}, {pipeline_mode = #tpu.pipeline_mode<synchronous>, transform_indices = @transform_10, window_bounds = array<i64: 128, 32>}, {pipeline_mode = #tpu.pipeline_mode<synchronous>, transform_indices = @transform_11, window_bounds = array<i64: 32, 128>}, {pipeline_mode = #tpu.pipeline_mode<synchronous>, transform_indices = @transform_12, window_bounds = array<i64: 1, 128>}, {pipeline_mode = #tpu.pipeline_mode<synchronous>, transform_indices = @transform_13, window_bounds = array<i64: 1, 128>}, {pipeline_mode = #tpu.pipeline_mode<synchronous>, transform_indices = @transform_14, window_bounds = array<i64: 128, 128>}, {pipeline_mode = #tpu.pipeline_mode<synchronous>, transform_indices = @transform_15, window_bounds = array<i64: 1, 128>}, {pipeline_mode = #tpu.pipeline_mode<synchronous>, transform_indices = @transform_16, window_bounds = array<i64: 128, 128>}, {pipeline_mode = #tpu.pipeline_mode<synchronous>, transform_indices = @transform_17, window_bounds = array<i64: 1, 128>}, {pipeline_mode = #tpu.pipeline_mode<synchronous>, transform_indices = @transform_18, window_bounds = array<i64: 1, 128>}, {pipeline_mode = #tpu.pipeline_mode<synchronous>, transform_indices = @transform_19, window_bounds = array<i64: 1, 128>}, {transform_indices = @transform_20, window_bounds = array<i64: 1, 8, 128>}]} {
    %c0 = arith.constant 0 : index
    %c0_0 = arith.constant 0 : index
    %c0_1 = arith.constant 0 : index
    %0 = vector.load %arg1[%c0, %c0_0, %c0_1] : memref<1x8x128xf32, #tpu.memory_space<vmem>>, vector<1x8x128xf32>
    %1 = vector.shape_cast %0 : vector<1x8x128xf32> to vector<8x128xf32>
    %c0_2 = arith.constant 0 : index
    %c0_3 = arith.constant 0 : index
    %c0_4 = arith.constant 0 : index
    %2 = vector.load %arg2[%c0_2, %c0_3, %c0_4] : memref<1x8x128xf32, #tpu.memory_space<vmem>>, vector<1x8x128xf32>
    %3 = vector.shape_cast %2 : vector<1x8x128xf32> to vector<8x128xf32>
    %c0_5 = arith.constant 0 : index
    %c0_6 = arith.constant 0 : index
    %4 = vector.load %arg3[%c0_5, %c0_6] : memref<128x32xf32, #tpu.memory_space<vmem>>, vector<128x32xf32>
    %c0_7 = arith.constant 0 : index
    %c0_8 = arith.constant 0 : index
    %5 = vector.load %arg4[%c0_7, %c0_8] : memref<128x32xf32, #tpu.memory_space<vmem>>, vector<128x32xf32>
    %c0_9 = arith.constant 0 : index
    %c0_10 = arith.constant 0 : index
    %6 = vector.load %arg5[%c0_9, %c0_10] : memref<128x32xf32, #tpu.memory_space<vmem>>, vector<128x32xf32>
    %c0_11 = arith.constant 0 : index
    %c0_12 = arith.constant 0 : index
    %7 = vector.load %arg6[%c0_11, %c0_12] : memref<32x128xf32, #tpu.memory_space<vmem>>, vector<32x128xf32>
    %cst = arith.constant dense<0.000000e+00> : vector<8x32xf32>
    %8 = tpu.matmul %1, %4, %cst {dimension_numbers = #tpu.dot_dimension_numbers<[1], [0], [0], [1], [0, 0, 1, 1], [], []>} : vector<8x128xf32>, vector<128x32xf32>, vector<8x32xf32> -> vector<8x32xf32>
    %cst_13 = arith.constant dense<0.000000e+00> : vector<8x32xf32>
    %9 = tpu.matmul %1, %5, %cst_13 {dimension_numbers = #tpu.dot_dimension_numbers<[1], [0], [0], [1], [0, 0, 1, 1], [], []>} : vector<8x128xf32>, vector<128x32xf32>, vector<8x32xf32> -> vector<8x32xf32>
    %cst_14 = arith.constant dense<0.000000e+00> : vector<8x32xf32>
    %10 = tpu.matmul %1, %6, %cst_14 {dimension_numbers = #tpu.dot_dimension_numbers<[1], [0], [0], [1], [0, 0, 1, 1], [], []>} : vector<8x128xf32>, vector<128x32xf32>, vector<8x32xf32> -> vector<8x32xf32>
    %11 = tpu.iota {dimensions = array<i32: 0>} : vector<8x8xi32>
    %12 = tpu.iota {dimensions = array<i32: 1>} : vector<8x8xi32>
    %13 = arith.cmpi sgt, %12, %11 : vector<8x8xi32>
    %14 = vector.extract_strided_slice %8 {offsets = [0, 0], sizes = [8, 8], strides = [1, 1]} : vector<8x32xf32> to vector<8x8xf32>
    %15 = vector.extract_strided_slice %9 {offsets = [0, 0], sizes = [8, 8], strides = [1, 1]} : vector<8x32xf32> to vector<8x8xf32>
    %cst_15 = arith.constant dense<0.000000e+00> : vector<8x8xf32>
    %16 = tpu.matmul %14, %15, %cst_15 {dimension_numbers = #tpu.dot_dimension_numbers<[1], [1], [0], [0], [0, 0, 1, 0], [], []>} : vector<8x8xf32>, vector<8x8xf32>, vector<8x8xf32> -> vector<8x8xf32>
    %cst_16 = arith.constant 0xFF800000 : f32
    %17 = vector.broadcast %cst_16 : f32 to vector<8x8xf32>
    %18 = arith.select %13, %17, %16 : vector<8x8xi1>, vector<8x8xf32>
    %cst_17 = arith.constant 0.176776692 : f32
    %19 = vector.broadcast %cst_17 : f32 to vector<8x8xf32>
    %20 = arith.mulf %18, %19 : vector<8x8xf32>
    %cst_18 = arith.constant dense<0xFF800000> : vector<8xf32>
    %21 = vector.multi_reduction <maximumf>, %20, %cst_18 [1] : vector<8x8xf32> to vector<8xf32>
    %22 = vector.shape_cast %21 : vector<8xf32> to vector<8x1xf32>
    %23 = vector.broadcast %22 : vector<8x1xf32> to vector<8x8xf32>
    %24 = arith.subf %20, %23 : vector<8x8xf32>
    %25 = math.exp %24 : vector<8x8xf32>
    %cst_19 = arith.constant dense<0.000000e+00> : vector<8xf32>
    %26 = vector.multi_reduction <add>, %25, %cst_19 [1] : vector<8x8xf32> to vector<8xf32>
    %27 = vector.shape_cast %26 : vector<8xf32> to vector<8x1xf32>
    %28 = vector.broadcast %27 : vector<8x1xf32> to vector<8x8xf32>
    %29 = arith.divf %25, %28 : vector<8x8xf32>
    %30 = vector.extract_strided_slice %10 {offsets = [0, 0], sizes = [8, 8], strides = [1, 1]} : vector<8x32xf32> to vector<8x8xf32>
    %cst_20 = arith.constant dense<0.000000e+00> : vector<8x8xf32>
    %31 = tpu.matmul %29, %30, %cst_20 {dimension_numbers = #tpu.dot_dimension_numbers<[1], [0], [0], [1], [0, 0, 1, 1], [], []>} : vector<8x8xf32>, vector<8x8xf32>, vector<8x8xf32> -> vector<8x8xf32>
    %32 = vector.extract_strided_slice %8 {offsets = [0, 8], sizes = [8, 8], strides = [1, 1]} : vector<8x32xf32> to vector<8x8xf32>
    %33 = vector.extract_strided_slice %9 {offsets = [0, 8], sizes = [8, 8], strides = [1, 1]} : vector<8x32xf32> to vector<8x8xf32>
    %cst_21 = arith.constant dense<0.000000e+00> : vector<8x8xf32>
    %34 = tpu.matmul %32, %33, %cst_21 {dimension_numbers = #tpu.dot_dimension_numbers<[1], [1], [0], [0], [0, 0, 1, 0], [], []>} : vector<8x8xf32>, vector<8x8xf32>, vector<8x8xf32> -> vector<8x8xf32>
    %cst_22 = arith.constant 0xFF800000 : f32
    %35 = vector.broadcast %cst_22 : f32 to vector<8x8xf32>
    %36 = arith.select %13, %35, %34 : vector<8x8xi1>, vector<8x8xf32>
    %cst_23 = arith.constant 0.176776692 : f32
    %37 = vector.broadcast %cst_23 : f32 to vector<8x8xf32>
    %38 = arith.mulf %36, %37 : vector<8x8xf32>
    %cst_24 = arith.constant dense<0xFF800000> : vector<8xf32>
    %39 = vector.multi_reduction <maximumf>, %38, %cst_24 [1] : vector<8x8xf32> to vector<8xf32>
    %40 = vector.shape_cast %39 : vector<8xf32> to vector<8x1xf32>
    %41 = vector.broadcast %40 : vector<8x1xf32> to vector<8x8xf32>
    %42 = arith.subf %38, %41 : vector<8x8xf32>
    %43 = math.exp %42 : vector<8x8xf32>
    %cst_25 = arith.constant dense<0.000000e+00> : vector<8xf32>
    %44 = vector.multi_reduction <add>, %43, %cst_25 [1] : vector<8x8xf32> to vector<8xf32>
    %45 = vector.shape_cast %44 : vector<8xf32> to vector<8x1xf32>
    %46 = vector.broadcast %45 : vector<8x1xf32> to vector<8x8xf32>
    %47 = arith.divf %43, %46 : vector<8x8xf32>
    %48 = vector.extract_strided_slice %10 {offsets = [0, 8], sizes = [8, 8], strides = [1, 1]} : vector<8x32xf32> to vector<8x8xf32>
    %cst_26 = arith.constant dense<0.000000e+00> : vector<8x8xf32>
    %49 = tpu.matmul %47, %48, %cst_26 {dimension_numbers = #tpu.dot_dimension_numbers<[1], [0], [0], [1], [0, 0, 1, 1], [], []>} : vector<8x8xf32>, vector<8x8xf32>, vector<8x8xf32> -> vector<8x8xf32>
    %50 = vector.extract_strided_slice %8 {offsets = [0, 16], sizes = [8, 8], strides = [1, 1]} : vector<8x32xf32> to vector<8x8xf32>
    %51 = vector.extract_strided_slice %9 {offsets = [0, 16], sizes = [8, 8], strides = [1, 1]} : vector<8x32xf32> to vector<8x8xf32>
    %cst_27 = arith.constant dense<0.000000e+00> : vector<8x8xf32>
    %52 = tpu.matmul %50, %51, %cst_27 {dimension_numbers = #tpu.dot_dimension_numbers<[1], [1], [0], [0], [0, 0, 1, 0], [], []>} : vector<8x8xf32>, vector<8x8xf32>, vector<8x8xf32> -> vector<8x8xf32>
    %cst_28 = arith.constant 0xFF800000 : f32
    %53 = vector.broadcast %cst_28 : f32 to vector<8x8xf32>
    %54 = arith.select %13, %53, %52 : vector<8x8xi1>, vector<8x8xf32>
    %cst_29 = arith.constant 0.176776692 : f32
    %55 = vector.broadcast %cst_29 : f32 to vector<8x8xf32>
    %56 = arith.mulf %54, %55 : vector<8x8xf32>
    %cst_30 = arith.constant dense<0xFF800000> : vector<8xf32>
    %57 = vector.multi_reduction <maximumf>, %56, %cst_30 [1] : vector<8x8xf32> to vector<8xf32>
    %58 = vector.shape_cast %57 : vector<8xf32> to vector<8x1xf32>
    %59 = vector.broadcast %58 : vector<8x1xf32> to vector<8x8xf32>
    %60 = arith.subf %56, %59 : vector<8x8xf32>
    %61 = math.exp %60 : vector<8x8xf32>
    %cst_31 = arith.constant dense<0.000000e+00> : vector<8xf32>
    %62 = vector.multi_reduction <add>, %61, %cst_31 [1] : vector<8x8xf32> to vector<8xf32>
    %63 = vector.shape_cast %62 : vector<8xf32> to vector<8x1xf32>
    %64 = vector.broadcast %63 : vector<8x1xf32> to vector<8x8xf32>
    %65 = arith.divf %61, %64 : vector<8x8xf32>
    %66 = vector.extract_strided_slice %10 {offsets = [0, 16], sizes = [8, 8], strides = [1, 1]} : vector<8x32xf32> to vector<8x8xf32>
    %cst_32 = arith.constant dense<0.000000e+00> : vector<8x8xf32>
    %67 = tpu.matmul %65, %66, %cst_32 {dimension_numbers = #tpu.dot_dimension_numbers<[1], [0], [0], [1], [0, 0, 1, 1], [], []>} : vector<8x8xf32>, vector<8x8xf32>, vector<8x8xf32> -> vector<8x8xf32>
    %68 = vector.extract_strided_slice %8 {offsets = [0, 24], sizes = [8, 8], strides = [1, 1]} : vector<8x32xf32> to vector<8x8xf32>
    %69 = vector.extract_strided_slice %9 {offsets = [0, 24], sizes = [8, 8], strides = [1, 1]} : vector<8x32xf32> to vector<8x8xf32>
    %cst_33 = arith.constant dense<0.000000e+00> : vector<8x8xf32>
    %70 = tpu.matmul %68, %69, %cst_33 {dimension_numbers = #tpu.dot_dimension_numbers<[1], [1], [0], [0], [0, 0, 1, 0], [], []>} : vector<8x8xf32>, vector<8x8xf32>, vector<8x8xf32> -> vector<8x8xf32>
    %cst_34 = arith.constant 0xFF800000 : f32
    %71 = vector.broadcast %cst_34 : f32 to vector<8x8xf32>
    %72 = arith.select %13, %71, %70 : vector<8x8xi1>, vector<8x8xf32>
    %cst_35 = arith.constant 0.176776692 : f32
    %73 = vector.broadcast %cst_35 : f32 to vector<8x8xf32>
    %74 = arith.mulf %72, %73 : vector<8x8xf32>
    %cst_36 = arith.constant dense<0xFF800000> : vector<8xf32>
    %75 = vector.multi_reduction <maximumf>, %74, %cst_36 [1] : vector<8x8xf32> to vector<8xf32>
    %76 = vector.shape_cast %75 : vector<8xf32> to vector<8x1xf32>
    %77 = vector.broadcast %76 : vector<8x1xf32> to vector<8x8xf32>
    %78 = arith.subf %74, %77 : vector<8x8xf32>
    %79 = math.exp %78 : vector<8x8xf32>
    %cst_37 = arith.constant dense<0.000000e+00> : vector<8xf32>
    %80 = vector.multi_reduction <add>, %79, %cst_37 [1] : vector<8x8xf32> to vector<8xf32>
    %81 = vector.shape_cast %80 : vector<8xf32> to vector<8x1xf32>
    %82 = vector.broadcast %81 : vector<8x1xf32> to vector<8x8xf32>
    %83 = arith.divf %79, %82 : vector<8x8xf32>
    %84 = vector.extract_strided_slice %10 {offsets = [0, 24], sizes = [8, 8], strides = [1, 1]} : vector<8x32xf32> to vector<8x8xf32>
    %cst_38 = arith.constant dense<0.000000e+00> : vector<8x8xf32>
    %85 = tpu.matmul %83, %84, %cst_38 {dimension_numbers = #tpu.dot_dimension_numbers<[1], [0], [0], [1], [0, 0, 1, 1], [], []>} : vector<8x8xf32>, vector<8x8xf32>, vector<8x8xf32> -> vector<8x8xf32>
    %86 = tpu.concatenate %31, %49, %67, %85 in 1 : vector<8x8xf32>, vector<8x8xf32>, vector<8x8xf32>, vector<8x8xf32> -> vector<8x32xf32>
    %cst_39 = arith.constant dense<0.000000e+00> : vector<8x128xf32>
    %87 = tpu.matmul %86, %7, %cst_39 {dimension_numbers = #tpu.dot_dimension_numbers<[1], [0], [0], [1], [0, 0, 1, 1], [], []>} : vector<8x32xf32>, vector<32x128xf32>, vector<8x128xf32> -> vector<8x128xf32>
    %88 = arith.addf %1, %87 : vector<8x128xf32>
    %c0_40 = arith.constant 0 : index
    %c0_41 = arith.constant 0 : index
    %89 = vector.load %arg7[%c0_40, %c0_41] : memref<1x128xf32, #tpu.memory_space<vmem>>, vector<1x128xf32>
    %c0_42 = arith.constant 0 : index
    %c0_43 = arith.constant 0 : index
    %90 = vector.load %arg8[%c0_42, %c0_43] : memref<1x128xf32, #tpu.memory_space<vmem>>, vector<1x128xf32>
    %cst_44 = arith.constant dense<0.000000e+00> : vector<8xf32>
    %91 = vector.multi_reduction <add>, %88, %cst_44 [1] : vector<8x128xf32> to vector<8xf32>
    %92 = vector.shape_cast %91 : vector<8xf32> to vector<8x1xf32>
    %cst_45 = arith.constant 3.125000e-02 : f32
    %93 = vector.broadcast %cst_45 : f32 to vector<8x1xf32>
    %94 = arith.mulf %92, %93 : vector<8x1xf32>
    %95 = vector.broadcast %94 : vector<8x1xf32> to vector<8x128xf32>
    %96 = arith.subf %88, %95 : vector<8x128xf32>
    %97 = tpu.iota {dimensions = array<i32: 1>} : vector<8x128xi32>
    %c32_i32 = arith.constant 32 : i32
    %98 = vector.broadcast %c32_i32 : i32 to vector<8x128xi32>
    %99 = arith.cmpi slt, %97, %98 : vector<8x128xi32>
    %cst_46 = arith.constant 0.000000e+00 : f32
    %100 = vector.broadcast %cst_46 : f32 to vector<8x128xf32>
    %101 = arith.select %99, %96, %100 : vector<8x128xi1>, vector<8x128xf32>
    %102 = arith.mulf %101, %101 : vector<8x128xf32>
    %cst_47 = arith.constant dense<0.000000e+00> : vector<8xf32>
    %103 = vector.multi_reduction <add>, %102, %cst_47 [1] : vector<8x128xf32> to vector<8xf32>
    %104 = vector.shape_cast %103 : vector<8xf32> to vector<8x1xf32>
    %cst_48 = arith.constant 3.125000e-02 : f32
    %105 = vector.broadcast %cst_48 : f32 to vector<8x1xf32>
    %106 = arith.mulf %104, %105 : vector<8x1xf32>
    %107 = vector.broadcast %94 : vector<8x1xf32> to vector<8x128xf32>
    %108 = arith.subf %88, %107 : vector<8x128xf32>
    %cst_49 = arith.constant 9.99999974E-6 : f32
    %109 = vector.broadcast %cst_49 : f32 to vector<8x1xf32>
    %110 = arith.addf %106, %109 : vector<8x1xf32>
    %111 = math.rsqrt %110 : vector<8x1xf32>
    %112 = vector.broadcast %111 : vector<8x1xf32> to vector<8x128xf32>
    %113 = arith.mulf %108, %112 : vector<8x128xf32>
    %114 = vector.broadcast %89 : vector<1x128xf32> to vector<8x128xf32>
    %115 = arith.mulf %114, %113 : vector<8x128xf32>
    %116 = vector.broadcast %90 : vector<1x128xf32> to vector<8x128xf32>
    %117 = arith.addf %115, %116 : vector<8x128xf32>
    %c0_50 = arith.constant 0 : index
    %c0_51 = arith.constant 0 : index
    %118 = vector.load %arg9[%c0_50, %c0_51] : memref<128x32xf32, #tpu.memory_space<vmem>>, vector<128x32xf32>
    %c0_52 = arith.constant 0 : index
    %c0_53 = arith.constant 0 : index
    %119 = vector.load %arg10[%c0_52, %c0_53] : memref<128x32xf32, #tpu.memory_space<vmem>>, vector<128x32xf32>
    %c0_54 = arith.constant 0 : index
    %c0_55 = arith.constant 0 : index
    %120 = vector.load %arg11[%c0_54, %c0_55] : memref<128x32xf32, #tpu.memory_space<vmem>>, vector<128x32xf32>
    %c0_56 = arith.constant 0 : index
    %c0_57 = arith.constant 0 : index
    %121 = vector.load %arg12[%c0_56, %c0_57] : memref<32x128xf32, #tpu.memory_space<vmem>>, vector<32x128xf32>
    %cst_58 = arith.constant dense<0.000000e+00> : vector<8x32xf32>
    %122 = tpu.matmul %117, %118, %cst_58 {dimension_numbers = #tpu.dot_dimension_numbers<[1], [0], [0], [1], [0, 0, 1, 1], [], []>} : vector<8x128xf32>, vector<128x32xf32>, vector<8x32xf32> -> vector<8x32xf32>
    %cst_59 = arith.constant dense<0.000000e+00> : vector<8x32xf32>
    %123 = tpu.matmul %3, %119, %cst_59 {dimension_numbers = #tpu.dot_dimension_numbers<[1], [0], [0], [1], [0, 0, 1, 1], [], []>} : vector<8x128xf32>, vector<128x32xf32>, vector<8x32xf32> -> vector<8x32xf32>
    %cst_60 = arith.constant dense<0.000000e+00> : vector<8x32xf32>
    %124 = tpu.matmul %3, %120, %cst_60 {dimension_numbers = #tpu.dot_dimension_numbers<[1], [0], [0], [1], [0, 0, 1, 1], [], []>} : vector<8x128xf32>, vector<128x32xf32>, vector<8x32xf32> -> vector<8x32xf32>
    %125 = vector.extract_strided_slice %122 {offsets = [0, 0], sizes = [8, 8], strides = [1, 1]} : vector<8x32xf32> to vector<8x8xf32>
    %126 = vector.extract_strided_slice %123 {offsets = [0, 0], sizes = [8, 8], strides = [1, 1]} : vector<8x32xf32> to vector<8x8xf32>
    %cst_61 = arith.constant dense<0.000000e+00> : vector<8x8xf32>
    %127 = tpu.matmul %125, %126, %cst_61 {dimension_numbers = #tpu.dot_dimension_numbers<[1], [1], [0], [0], [0, 0, 1, 0], [], []>} : vector<8x8xf32>, vector<8x8xf32>, vector<8x8xf32> -> vector<8x8xf32>
    %cst_62 = arith.constant 0.176776692 : f32
    %128 = vector.broadcast %cst_62 : f32 to vector<8x8xf32>
    %129 = arith.mulf %127, %128 : vector<8x8xf32>
    %cst_63 = arith.constant dense<0xFF800000> : vector<8xf32>
    %130 = vector.multi_reduction <maximumf>, %129, %cst_63 [1] : vector<8x8xf32> to vector<8xf32>
    %131 = vector.shape_cast %130 : vector<8xf32> to vector<8x1xf32>
    %132 = vector.broadcast %131 : vector<8x1xf32> to vector<8x8xf32>
    %133 = arith.subf %129, %132 : vector<8x8xf32>
    %134 = math.exp %133 : vector<8x8xf32>
    %cst_64 = arith.constant dense<0.000000e+00> : vector<8xf32>
    %135 = vector.multi_reduction <add>, %134, %cst_64 [1] : vector<8x8xf32> to vector<8xf32>
    %136 = vector.shape_cast %135 : vector<8xf32> to vector<8x1xf32>
    %137 = vector.broadcast %136 : vector<8x1xf32> to vector<8x8xf32>
    %138 = arith.divf %134, %137 : vector<8x8xf32>
    %139 = vector.extract_strided_slice %124 {offsets = [0, 0], sizes = [8, 8], strides = [1, 1]} : vector<8x32xf32> to vector<8x8xf32>
    %cst_65 = arith.constant dense<0.000000e+00> : vector<8x8xf32>
    %140 = tpu.matmul %138, %139, %cst_65 {dimension_numbers = #tpu.dot_dimension_numbers<[1], [0], [0], [1], [0, 0, 1, 1], [], []>} : vector<8x8xf32>, vector<8x8xf32>, vector<8x8xf32> -> vector<8x8xf32>
    %141 = vector.extract_strided_slice %122 {offsets = [0, 8], sizes = [8, 8], strides = [1, 1]} : vector<8x32xf32> to vector<8x8xf32>
    %142 = vector.extract_strided_slice %123 {offsets = [0, 8], sizes = [8, 8], strides = [1, 1]} : vector<8x32xf32> to vector<8x8xf32>
    %cst_66 = arith.constant dense<0.000000e+00> : vector<8x8xf32>
    %143 = tpu.matmul %141, %142, %cst_66 {dimension_numbers = #tpu.dot_dimension_numbers<[1], [1], [0], [0], [0, 0, 1, 0], [], []>} : vector<8x8xf32>, vector<8x8xf32>, vector<8x8xf32> -> vector<8x8xf32>
    %cst_67 = arith.constant 0.176776692 : f32
    %144 = vector.broadcast %cst_67 : f32 to vector<8x8xf32>
    %145 = arith.mulf %143, %144 : vector<8x8xf32>
    %cst_68 = arith.constant dense<0xFF800000> : vector<8xf32>
    %146 = vector.multi_reduction <maximumf>, %145, %cst_68 [1] : vector<8x8xf32> to vector<8xf32>
    %147 = vector.shape_cast %146 : vector<8xf32> to vector<8x1xf32>
    %148 = vector.broadcast %147 : vector<8x1xf32> to vector<8x8xf32>
    %149 = arith.subf %145, %148 : vector<8x8xf32>
    %150 = math.exp %149 : vector<8x8xf32>
    %cst_69 = arith.constant dense<0.000000e+00> : vector<8xf32>
    %151 = vector.multi_reduction <add>, %150, %cst_69 [1] : vector<8x8xf32> to vector<8xf32>
    %152 = vector.shape_cast %151 : vector<8xf32> to vector<8x1xf32>
    %153 = vector.broadcast %152 : vector<8x1xf32> to vector<8x8xf32>
    %154 = arith.divf %150, %153 : vector<8x8xf32>
    %155 = vector.extract_strided_slice %124 {offsets = [0, 8], sizes = [8, 8], strides = [1, 1]} : vector<8x32xf32> to vector<8x8xf32>
    %cst_70 = arith.constant dense<0.000000e+00> : vector<8x8xf32>
    %156 = tpu.matmul %154, %155, %cst_70 {dimension_numbers = #tpu.dot_dimension_numbers<[1], [0], [0], [1], [0, 0, 1, 1], [], []>} : vector<8x8xf32>, vector<8x8xf32>, vector<8x8xf32> -> vector<8x8xf32>
    %157 = vector.extract_strided_slice %122 {offsets = [0, 16], sizes = [8, 8], strides = [1, 1]} : vector<8x32xf32> to vector<8x8xf32>
    %158 = vector.extract_strided_slice %123 {offsets = [0, 16], sizes = [8, 8], strides = [1, 1]} : vector<8x32xf32> to vector<8x8xf32>
    %cst_71 = arith.constant dense<0.000000e+00> : vector<8x8xf32>
    %159 = tpu.matmul %157, %158, %cst_71 {dimension_numbers = #tpu.dot_dimension_numbers<[1], [1], [0], [0], [0, 0, 1, 0], [], []>} : vector<8x8xf32>, vector<8x8xf32>, vector<8x8xf32> -> vector<8x8xf32>
    %cst_72 = arith.constant 0.176776692 : f32
    %160 = vector.broadcast %cst_72 : f32 to vector<8x8xf32>
    %161 = arith.mulf %159, %160 : vector<8x8xf32>
    %cst_73 = arith.constant dense<0xFF800000> : vector<8xf32>
    %162 = vector.multi_reduction <maximumf>, %161, %cst_73 [1] : vector<8x8xf32> to vector<8xf32>
    %163 = vector.shape_cast %162 : vector<8xf32> to vector<8x1xf32>
    %164 = vector.broadcast %163 : vector<8x1xf32> to vector<8x8xf32>
    %165 = arith.subf %161, %164 : vector<8x8xf32>
    %166 = math.exp %165 : vector<8x8xf32>
    %cst_74 = arith.constant dense<0.000000e+00> : vector<8xf32>
    %167 = vector.multi_reduction <add>, %166, %cst_74 [1] : vector<8x8xf32> to vector<8xf32>
    %168 = vector.shape_cast %167 : vector<8xf32> to vector<8x1xf32>
    %169 = vector.broadcast %168 : vector<8x1xf32> to vector<8x8xf32>
    %170 = arith.divf %166, %169 : vector<8x8xf32>
    %171 = vector.extract_strided_slice %124 {offsets = [0, 16], sizes = [8, 8], strides = [1, 1]} : vector<8x32xf32> to vector<8x8xf32>
    %cst_75 = arith.constant dense<0.000000e+00> : vector<8x8xf32>
    %172 = tpu.matmul %170, %171, %cst_75 {dimension_numbers = #tpu.dot_dimension_numbers<[1], [0], [0], [1], [0, 0, 1, 1], [], []>} : vector<8x8xf32>, vector<8x8xf32>, vector<8x8xf32> -> vector<8x8xf32>
    %173 = vector.extract_strided_slice %122 {offsets = [0, 24], sizes = [8, 8], strides = [1, 1]} : vector<8x32xf32> to vector<8x8xf32>
    %174 = vector.extract_strided_slice %123 {offsets = [0, 24], sizes = [8, 8], strides = [1, 1]} : vector<8x32xf32> to vector<8x8xf32>
    %cst_76 = arith.constant dense<0.000000e+00> : vector<8x8xf32>
    %175 = tpu.matmul %173, %174, %cst_76 {dimension_numbers = #tpu.dot_dimension_numbers<[1], [1], [0], [0], [0, 0, 1, 0], [], []>} : vector<8x8xf32>, vector<8x8xf32>, vector<8x8xf32> -> vector<8x8xf32>
    %cst_77 = arith.constant 0.176776692 : f32
    %176 = vector.broadcast %cst_77 : f32 to vector<8x8xf32>
    %177 = arith.mulf %175, %176 : vector<8x8xf32>
    %cst_78 = arith.constant dense<0xFF800000> : vector<8xf32>
    %178 = vector.multi_reduction <maximumf>, %177, %cst_78 [1] : vector<8x8xf32> to vector<8xf32>
    %179 = vector.shape_cast %178 : vector<8xf32> to vector<8x1xf32>
    %180 = vector.broadcast %179 : vector<8x1xf32> to vector<8x8xf32>
    %181 = arith.subf %177, %180 : vector<8x8xf32>
    %182 = math.exp %181 : vector<8x8xf32>
    %cst_79 = arith.constant dense<0.000000e+00> : vector<8xf32>
    %183 = vector.multi_reduction <add>, %182, %cst_79 [1] : vector<8x8xf32> to vector<8xf32>
    %184 = vector.shape_cast %183 : vector<8xf32> to vector<8x1xf32>
    %185 = vector.broadcast %184 : vector<8x1xf32> to vector<8x8xf32>
    %186 = arith.divf %182, %185 : vector<8x8xf32>
    %187 = vector.extract_strided_slice %124 {offsets = [0, 24], sizes = [8, 8], strides = [1, 1]} : vector<8x32xf32> to vector<8x8xf32>
    %cst_80 = arith.constant dense<0.000000e+00> : vector<8x8xf32>
    %188 = tpu.matmul %186, %187, %cst_80 {dimension_numbers = #tpu.dot_dimension_numbers<[1], [0], [0], [1], [0, 0, 1, 1], [], []>} : vector<8x8xf32>, vector<8x8xf32>, vector<8x8xf32> -> vector<8x8xf32>
    %189 = tpu.concatenate %140, %156, %172, %188 in 1 : vector<8x8xf32>, vector<8x8xf32>, vector<8x8xf32>, vector<8x8xf32> -> vector<8x32xf32>
    %cst_81 = arith.constant dense<0.000000e+00> : vector<8x128xf32>
    %190 = tpu.matmul %189, %121, %cst_81 {dimension_numbers = #tpu.dot_dimension_numbers<[1], [0], [0], [1], [0, 0, 1, 1], [], []>} : vector<8x32xf32>, vector<32x128xf32>, vector<8x128xf32> -> vector<8x128xf32>
    %191 = arith.addf %117, %190 : vector<8x128xf32>
    %c0_82 = arith.constant 0 : index
    %c0_83 = arith.constant 0 : index
    %192 = vector.load %arg13[%c0_82, %c0_83] : memref<1x128xf32, #tpu.memory_space<vmem>>, vector<1x128xf32>
    %c0_84 = arith.constant 0 : index
    %c0_85 = arith.constant 0 : index
    %193 = vector.load %arg14[%c0_84, %c0_85] : memref<1x128xf32, #tpu.memory_space<vmem>>, vector<1x128xf32>
    %cst_86 = arith.constant dense<0.000000e+00> : vector<8xf32>
    %194 = vector.multi_reduction <add>, %191, %cst_86 [1] : vector<8x128xf32> to vector<8xf32>
    %195 = vector.shape_cast %194 : vector<8xf32> to vector<8x1xf32>
    %cst_87 = arith.constant 3.125000e-02 : f32
    %196 = vector.broadcast %cst_87 : f32 to vector<8x1xf32>
    %197 = arith.mulf %195, %196 : vector<8x1xf32>
    %198 = vector.broadcast %197 : vector<8x1xf32> to vector<8x128xf32>
    %199 = arith.subf %191, %198 : vector<8x128xf32>
    %200 = tpu.iota {dimensions = array<i32: 1>} : vector<8x128xi32>
    %c32_i32_88 = arith.constant 32 : i32
    %201 = vector.broadcast %c32_i32_88 : i32 to vector<8x128xi32>
    %202 = arith.cmpi slt, %200, %201 : vector<8x128xi32>
    %cst_89 = arith.constant 0.000000e+00 : f32
    %203 = vector.broadcast %cst_89 : f32 to vector<8x128xf32>
    %204 = arith.select %202, %199, %203 : vector<8x128xi1>, vector<8x128xf32>
    %205 = arith.mulf %204, %204 : vector<8x128xf32>
    %cst_90 = arith.constant dense<0.000000e+00> : vector<8xf32>
    %206 = vector.multi_reduction <add>, %205, %cst_90 [1] : vector<8x128xf32> to vector<8xf32>
    %207 = vector.shape_cast %206 : vector<8xf32> to vector<8x1xf32>
    %cst_91 = arith.constant 3.125000e-02 : f32
    %208 = vector.broadcast %cst_91 : f32 to vector<8x1xf32>
    %209 = arith.mulf %207, %208 : vector<8x1xf32>
    %210 = vector.broadcast %197 : vector<8x1xf32> to vector<8x128xf32>
    %211 = arith.subf %191, %210 : vector<8x128xf32>
    %cst_92 = arith.constant 9.99999974E-6 : f32
    %212 = vector.broadcast %cst_92 : f32 to vector<8x1xf32>
    %213 = arith.addf %209, %212 : vector<8x1xf32>
    %214 = math.rsqrt %213 : vector<8x1xf32>
    %215 = vector.broadcast %214 : vector<8x1xf32> to vector<8x128xf32>
    %216 = arith.mulf %211, %215 : vector<8x128xf32>
    %217 = vector.broadcast %192 : vector<1x128xf32> to vector<8x128xf32>
    %218 = arith.mulf %217, %216 : vector<8x128xf32>
    %219 = vector.broadcast %193 : vector<1x128xf32> to vector<8x128xf32>
    %220 = arith.addf %218, %219 : vector<8x128xf32>
    %c0_93 = arith.constant 0 : index
    %c0_94 = arith.constant 0 : index
    %221 = vector.load %arg15[%c0_93, %c0_94] : memref<128x128xf32, #tpu.memory_space<vmem>>, vector<128x128xf32>
    %c0_95 = arith.constant 0 : index
    %c0_96 = arith.constant 0 : index
    %222 = vector.load %arg16[%c0_95, %c0_96] : memref<1x128xf32, #tpu.memory_space<vmem>>, vector<1x128xf32>
    %c0_97 = arith.constant 0 : index
    %c0_98 = arith.constant 0 : index
    %223 = vector.load %arg17[%c0_97, %c0_98] : memref<128x128xf32, #tpu.memory_space<vmem>>, vector<128x128xf32>
    %c0_99 = arith.constant 0 : index
    %c0_100 = arith.constant 0 : index
    %224 = vector.load %arg18[%c0_99, %c0_100] : memref<1x128xf32, #tpu.memory_space<vmem>>, vector<1x128xf32>
    %cst_101 = arith.constant dense<0.000000e+00> : vector<8x128xf32>
    %225 = tpu.matmul %220, %221, %cst_101 {dimension_numbers = #tpu.dot_dimension_numbers<[1], [0], [0], [1], [0, 0, 1, 1], [], []>} : vector<8x128xf32>, vector<128x128xf32>, vector<8x128xf32> -> vector<8x128xf32>
    %226 = vector.broadcast %222 : vector<1x128xf32> to vector<8x128xf32>
    %227 = arith.addf %225, %226 : vector<8x128xf32>
    %cst_102 = arith.constant 0.000000e+00 : f32
    %228 = vector.broadcast %cst_102 : f32 to vector<8x128xf32>
    %229 = arith.maximumf %227, %228 : vector<8x128xf32>
    %cst_103 = arith.constant dense<0.000000e+00> : vector<8x128xf32>
    %230 = tpu.matmul %229, %223, %cst_103 {dimension_numbers = #tpu.dot_dimension_numbers<[1], [0], [0], [1], [0, 0, 1, 1], [], []>} : vector<8x128xf32>, vector<128x128xf32>, vector<8x128xf32> -> vector<8x128xf32>
    %231 = vector.broadcast %224 : vector<1x128xf32> to vector<8x128xf32>
    %232 = arith.addf %230, %231 : vector<8x128xf32>
    %233 = arith.addf %220, %232 : vector<8x128xf32>
    %c0_104 = arith.constant 0 : index
    %c0_105 = arith.constant 0 : index
    %234 = vector.load %arg19[%c0_104, %c0_105] : memref<1x128xf32, #tpu.memory_space<vmem>>, vector<1x128xf32>
    %c0_106 = arith.constant 0 : index
    %c0_107 = arith.constant 0 : index
    %235 = vector.load %arg20[%c0_106, %c0_107] : memref<1x128xf32, #tpu.memory_space<vmem>>, vector<1x128xf32>
    %cst_108 = arith.constant dense<0.000000e+00> : vector<8xf32>
    %236 = vector.multi_reduction <add>, %233, %cst_108 [1] : vector<8x128xf32> to vector<8xf32>
    %237 = vector.shape_cast %236 : vector<8xf32> to vector<8x1xf32>
    %cst_109 = arith.constant 3.125000e-02 : f32
    %238 = vector.broadcast %cst_109 : f32 to vector<8x1xf32>
    %239 = arith.mulf %237, %238 : vector<8x1xf32>
    %240 = vector.broadcast %239 : vector<8x1xf32> to vector<8x128xf32>
    %241 = arith.subf %233, %240 : vector<8x128xf32>
    %242 = tpu.iota {dimensions = array<i32: 1>} : vector<8x128xi32>
    %c32_i32_110 = arith.constant 32 : i32
    %243 = vector.broadcast %c32_i32_110 : i32 to vector<8x128xi32>
    %244 = arith.cmpi slt, %242, %243 : vector<8x128xi32>
    %cst_111 = arith.constant 0.000000e+00 : f32
    %245 = vector.broadcast %cst_111 : f32 to vector<8x128xf32>
    %246 = arith.select %244, %241, %245 : vector<8x128xi1>, vector<8x128xf32>
    %247 = arith.mulf %246, %246 : vector<8x128xf32>
    %cst_112 = arith.constant dense<0.000000e+00> : vector<8xf32>
    %248 = vector.multi_reduction <add>, %247, %cst_112 [1] : vector<8x128xf32> to vector<8xf32>
    %249 = vector.shape_cast %248 : vector<8xf32> to vector<8x1xf32>
    %cst_113 = arith.constant 3.125000e-02 : f32
    %250 = vector.broadcast %cst_113 : f32 to vector<8x1xf32>
    %251 = arith.mulf %249, %250 : vector<8x1xf32>
    %252 = vector.broadcast %239 : vector<8x1xf32> to vector<8x128xf32>
    %253 = arith.subf %233, %252 : vector<8x128xf32>
    %cst_114 = arith.constant 9.99999974E-6 : f32
    %254 = vector.broadcast %cst_114 : f32 to vector<8x1xf32>
    %255 = arith.addf %251, %254 : vector<8x1xf32>
    %256 = math.rsqrt %255 : vector<8x1xf32>
    %257 = vector.broadcast %256 : vector<8x1xf32> to vector<8x128xf32>
    %258 = arith.mulf %253, %257 : vector<8x128xf32>
    %259 = vector.broadcast %234 : vector<1x128xf32> to vector<8x128xf32>
    %260 = arith.mulf %259, %258 : vector<8x128xf32>
    %261 = vector.broadcast %235 : vector<1x128xf32> to vector<8x128xf32>
    %262 = arith.addf %260, %261 : vector<8x128xf32>
    %c0_115 = arith.constant 0 : index
    %c0_116 = arith.constant 0 : index
    %c0_117 = arith.constant 0 : index
    %263 = vector.load %arg21[%c0_115, %c0_116, %c0_117] : memref<1x8x128xf32, #tpu.memory_space<vmem>>, vector<1x8x128xf32>
    %264 = vector.shape_cast %263 : vector<1x8x128xf32> to vector<8x128xf32>
    %265 = vector.shape_cast %262 : vector<8x128xf32> to vector<1x8x128xf32>
    tpu.vector_store %arg21[%c0_115, %c0_116, %c0_117], %265 {strides = array<i32>} : memref<1x8x128xf32, #tpu.memory_space<vmem>>, vector<1x8x128xf32>,
    return
  }
  func.func @transform_0(%arg0: i32) -> (i32, i32, i32) {
    %c0_i32 = arith.constant 0 : i32
    %c0_i32_0 = arith.constant 0 : i32
    %c0_i32_1 = arith.constant 0 : i32
    return %arg0, %c0_i32, %c0_i32_0 : i32, i32, i32
  }
  func.func @transform_1(%arg0: i32) -> (i32, i32, i32) {
    %c0_i32 = arith.constant 0 : i32
    %c0_i32_0 = arith.constant 0 : i32
    %c0_i32_1 = arith.constant 0 : i32
    return %arg0, %c0_i32, %c0_i32_0 : i32, i32, i32
  }
  func.func @transform_2(%arg0: i32) -> (i32, i32) {
    %c0_i32 = arith.constant 0 : i32
    %c0_i32_0 = arith.constant 0 : i32
    %c0_i32_1 = arith.constant 0 : i32
    return %c0_i32, %c0_i32_0 : i32, i32
  }
  func.func @transform_3(%arg0: i32) -> (i32, i32) {
    %c0_i32 = arith.constant 0 : i32
    %c0_i32_0 = arith.constant 0 : i32
    %c0_i32_1 = arith.constant 0 : i32
    return %c0_i32, %c0_i32_0 : i32, i32
  }
  func.func @transform_4(%arg0: i32) -> (i32, i32) {
    %c0_i32 = arith.constant 0 : i32
    %c0_i32_0 = arith.constant 0 : i32
    %c0_i32_1 = arith.constant 0 : i32
    return %c0_i32, %c0_i32_0 : i32, i32
  }
  func.func @transform_5(%arg0: i32) -> (i32, i32) {
    %c0_i32 = arith.constant 0 : i32
    %c0_i32_0 = arith.constant 0 : i32
    %c0_i32_1 = arith.constant 0 : i32
    return %c0_i32, %c0_i32_0 : i32, i32
  }
  func.func @transform_6(%arg0: i32) -> (i32, i32) {
    %c0_i32 = arith.constant 0 : i32
    %c0_i32_0 = arith.constant 0 : i32
    %c0_i32_1 = arith.constant 0 : i32
    return %c0_i32, %c0_i32_0 : i32, i32
  }
  func.func @transform_7(%arg0: i32) -> (i32, i32) {
    %c0_i32 = arith.constant 0 : i32
    %c0_i32_0 = arith.constant 0 : i32
    %c0_i32_1 = arith.constant 0 : i32
    return %c0_i32, %c0_i32_0 : i32, i32
  }
  func.func @transform_8(%arg0: i32) -> (i32, i32) {
    %c0_i32 = arith.constant 0 : i32
    %c0_i32_0 = arith.constant 0 : i32
    %c0_i32_1 = arith.constant 0 : i32
    return %c0_i32, %c0_i32_0 : i32, i32
  }
  func.func @transform_9(%arg0: i32) -> (i32, i32) {
    %c0_i32 = arith.constant 0 : i32
    %c0_i32_0 = arith.constant 0 : i32
    %c0_i32_1 = arith.constant 0 : i32
    return %c0_i32, %c0_i32_0 : i32, i32
  }
  func.func @transform_10(%arg0: i32) -> (i32, i32) {
    %c0_i32 = arith.constant 0 : i32
    %c0_i32_0 = arith.constant 0 : i32
    %c0_i32_1 = arith.constant 0 : i32
    return %c0_i32, %c0_i32_0 : i32, i32
  }
  func.func @transform_11(%arg0: i32) -> (i32, i32) {
    %c0_i32 = arith.constant 0 : i32
    %c0_i32_0 = arith.constant 0 : i32
    %c0_i32_1 = arith.constant 0 : i32
    return %c0_i32, %c0_i32_0 : i32, i32
  }
  func.func @transform_12(%arg0: i32) -> (i32, i32) {
    %c0_i32 = arith.constant 0 : i32
    %c0_i32_0 = arith.constant 0 : i32
    %c0_i32_1 = arith.constant 0 : i32
    return %c0_i32, %c0_i32_0 : i32, i32
  }
  func.func @transform_13(%arg0: i32) -> (i32, i32) {
    %c0_i32 = arith.constant 0 : i32
    %c0_i32_0 = arith.constant 0 : i32
    %c0_i32_1 = arith.constant 0 : i32
    return %c0_i32, %c0_i32_0 : i32, i32
  }
  func.func @transform_14(%arg0: i32) -> (i32, i32) {
    %c0_i32 = arith.constant 0 : i32
    %c0_i32_0 = arith.constant 0 : i32
    %c0_i32_1 = arith.constant 0 : i32
    return %c0_i32, %c0_i32_0 : i32, i32
  }
  func.func @transform_15(%arg0: i32) -> (i32, i32) {
    %c0_i32 = arith.constant 0 : i32
    %c0_i32_0 = arith.constant 0 : i32
    %c0_i32_1 = arith.constant 0 : i32
    return %c0_i32, %c0_i32_0 : i32, i32
  }
  func.func @transform_16(%arg0: i32) -> (i32, i32) {
    %c0_i32 = arith.constant 0 : i32
    %c0_i32_0 = arith.constant 0 : i32
    %c0_i32_1 = arith.constant 0 : i32
    return %c0_i32, %c0_i32_0 : i32, i32
  }
  func.func @transform_17(%arg0: i32) -> (i32, i32) {
    %c0_i32 = arith.constant 0 : i32
    %c0_i32_0 = arith.constant 0 : i32
    %c0_i32_1 = arith.constant 0 : i32
    return %c0_i32, %c0_i32_0 : i32, i32
  }
  func.func @transform_18(%arg0: i32) -> (i32, i32) {
    %c0_i32 = arith.constant 0 : i32
    %c0_i32_0 = arith.constant 0 : i32
    %c0_i32_1 = arith.constant 0 : i32
    return %c0_i32, %c0_i32_0 : i32, i32
  }
  func.func @transform_19(%arg0: i32) -> (i32, i32) {
    %c0_i32 = arith.constant 0 : i32
    %c0_i32_0 = arith.constant 0 : i32
    %c0_i32_1 = arith.constant 0 : i32
    return %c0_i32, %c0_i32_0 : i32, i32
  }
  func.func @transform_20(%arg0: i32) -> (i32, i32, i32) {
    %c0_i32 = arith.constant 0 : i32
    %c0_i32_0 = arith.constant 0 : i32
    %c0_i32_1 = arith.constant 0 : i32
    return %arg0, %c0_i32, %c0_i32_0 : i32, i32, i32
  }
}

</mosaic_0001>

<llo_original>
// kernel: transformer_forward.9
$region0: #{transformer_forward.9}
  #allocation0 [shape = 'u32[]', space=smem, size = 0x4, offset = 0x4, fixed_abs, tag = 'smem constant byte address 0x4 - core index']
  #allocation1 [shape = 'u32[144,128]{1,0:T(1,128)}', space=vmem, size = 0x12000, scoped, tag = 'internal scratch']
  %s0 = inlined_call_operand.vmem [shape: f32[16,128], index: 0, kind: input, shape index: {}]
  %s1 = inlined_call_operand.vmem [shape: f32[128,128], index: 1, kind: input, shape index: {}]
  %s2 = inlined_call_operand.vmem [shape: f32[1,128], index: 2, kind: input, shape index: {}]
  %s3 = inlined_call_operand.vmem [shape: f32[16,128], index: 3, kind: output, shape index: {}]
  %s4 = sld [smem:[#allocation0]]
  $region22: #{transformer_forward.9} parent=0
    _
  %s6 = ssub.s32 1, %s4
  %s7 = scalar_select 0, %s6, %s4
  // Predicated region
  $region2: #{transformer_forward.9} parent=0 // pred_check
    _
  $region3: #{transformer_forward.9} parent=0 // pred_check_branch
    %9 = sbr.rel (0) target = $region5
  $region4: #{transformer_forward.9} parent=0 // pred_region
    _
  $region5: #{transformer_forward.9} parent=0 // pred_fallthru
    _
  // Predicated region
  $region6: #{transformer_forward.9} parent=0 // pred_check
    _
  $region7: #{transformer_forward.9} parent=0 // pred_check_branch
    %11 = sbr.rel (0) target = $region9
  $region8: #{transformer_forward.9} parent=0 // pred_region
    _
  $region9: #{transformer_forward.9} parent=0 // pred_fallthru
    _
  // Predicated region
  $region10: #{transformer_forward.9} parent=0 // pred_check
    _
  $region11: #{transformer_forward.9} parent=0 // pred_check_branch
    %13 = sbr.rel (0) target = $region13
  $region12: #{transformer_forward.9} parent=0 // pred_region
    _
  $region13: #{transformer_forward.9} parent=0 // pred_fallthru
    _
  %v14 = vld [vmem:[%s0] sm:$0xff]
  %v15 = vld [vmem:[%s0 + $0x8] sm:$0xff]
  %v16 = vld [vmem:[%s1] sm:$0xff]
  %v17 = vld [vmem:[%s1 + $0x8] sm:$0xff]
  %v18 = vld [vmem:[%s1 + $0x10] sm:$0xff]
  %v19 = vld [vmem:[%s1 + $0x18] sm:$0xff]
  %v20 = vld [vmem:[%s1 + $0x20] sm:$0xff]
  %v21 = vld [vmem:[%s1 + $0x28] sm:$0xff]
  %v22 = vld [vmem:[%s1 + $0x30] sm:$0xff]
  %v23 = vld [vmem:[%s1 + $0x38] sm:$0xff]
  %v24 = vld [vmem:[%s1 + $0x40] sm:$0xff]
  %v25 = vld [vmem:[%s1 + $0x48] sm:$0xff]
  %v26 = vld [vmem:[%s1 + $0x50] sm:$0xff]
  %v27 = vld [vmem:[%s1 + $0x58] sm:$0xff]
  %v28 = vld [vmem:[%s1 + $0x60] sm:$0xff]
  %v29 = vld [vmem:[%s1 + $0x68] sm:$0xff]
  %v30 = vld [vmem:[%s1 + $0x70] sm:$0xff]
  %v31 = vld [vmem:[%s1 + $0x78] sm:$0xff]
  %v32 = vld [vmem:[%s2] sm:$0x1]
  %v34 = vlaneseq
  %v35 = vshrl.u32 %v34, 7
  %v36 = vsub.s32 0, %v35
  %v37 = vrot.slane %v32, %v36
  %39 = vmatprep.subr.mxu0 0.0
  %40 = vmatpush1.msra.mxu0 %v16
  %41 = vmatprep.subr.mxu0 0.0
  %42 = vmatpush1.msra.mxu0 %v17
  %43 = vmatprep.subr.mxu0 0.0
  %44 = vmatpush1.msra.mxu0 %v18
  %45 = vmatprep.subr.mxu0 0.0
  %46 = vmatpush1.msra.mxu0 %v19
  %47 = vmatprep.subr.mxu0 0.0
  %48 = vmatpush1.msra.mxu0 %v20
  %49 = vmatprep.subr.mxu0 0.0
  %50 = vmatpush1.msra.mxu0 %v21
  %51 = vmatprep.subr.mxu0 0.0
  %52 = vmatpush1.msra.mxu0 %v22
  %53 = vmatprep.subr.mxu0 0.0
  %54 = vmatpush1.msra.mxu0 %v23
  %55 = vmatprep.subr.mxu0 0.0
  %56 = vmatpush1.msra.mxu0 %v24
  %57 = vmatprep.subr.mxu0 0.0
  %58 = vmatpush1.msra.mxu0 %v25
  %59 = vmatprep.subr.mxu0 0.0
  %60 = vmatpush1.msra.mxu0 %v26
  %61 = vmatprep.subr.mxu0 0.0
  %62 = vmatpush1.msra.mxu0 %v27
  %63 = vmatprep.subr.mxu0 0.0
  %64 = vmatpush1.msra.mxu0 %v28
  %65 = vmatprep.subr.mxu0 0.0
  %66 = vmatpush1.msra.mxu0 %v29
  %67 = vmatprep.subr.mxu0 0.0
  %68 = vmatpush1.msra.mxu0 %v30
  %69 = vmatprep.subr.mxu0 0.0
  %70 = vmatpush1.msra.mxu0 %v31
  %71 = vmatprep.subr.mxu0 0.0
  %72 = vmatpush1.msra.mxu0 0.0
  %73 = vmatprep.subr.mxu0 0.0
  %74 = vmatpush1.msra.mxu0 0.0
  %75 = vmatprep.subr.mxu0 0.0
  %76 = vmatpush1.msra.mxu0 0.0
  %77 = vmatprep.subr.mxu0 0.0
  %78 = vmatpush1.msra.mxu0 0.0
  %79 = vmatprep.subr.mxu0 0.0
  %80 = vmatpush1.msra.mxu0 0.0
  %81 = vmatprep.subr.mxu0 0.0
  %82 = vmatpush1.msra.mxu0 0.0
  %83 = vmatprep.subr.mxu0 0.0
  %84 = vmatpush1.msra.mxu0 0.0
  %85 = vmatprep.subr.mxu0 0.0
  %86 = vmatpush1.msra.mxu0 0.0
  %87 = vmatprep.subr.mxu0 0.0
  %88 = vmatpush1.msra.mxu0 0.0
  %89 = vmatprep.subr.mxu0 0.0
  %90 = vmatpush1.msra.mxu0 0.0
  %91 = vmatprep.subr.mxu0 0.0
  %92 = vmatpush1.msra.mxu0 0.0
  %93 = vmatprep.subr.mxu0 0.0
  %94 = vmatpush1.msra.mxu0 0.0
  %95 = vmatprep.subr.mxu0 0.0
  %96 = vmatpush1.msra.mxu0 0.0
  %97 = vmatprep.subr.mxu0 0.0
  %98 = vmatpush1.msra.mxu0 0.0
  %99 = vmatprep.subr.mxu0 0.0
  %100 = vmatpush1.msra.mxu0 0.0
  %101 = vmatprep.subr.mxu0 0.0
  %102 = vmatpush1.msra.mxu0 0.0
  %103 = vmatprep.mubr.f32.mxu0 0.0
  %104 = vmatmul.mubr.f32.gmra.mrb[0].mxu0 %v14
  %v105 = vpop.f32.mrb[0].mxu0
  %v106 = vadd.f32 %v37, %v105
  %v107 = vpop.f32.mrb[0].mxu0
  %108 = vmatprep.mubr.f32.mxu0 0.0
  %109 = vmatmul.mubr.f32.gmra.mrb[0].mxu0 %v15
  %v110 = vpop.f32.mrb[0].mxu0
  %v111 = vadd.f32 %v37, %v110
  %v112 = vpop.f32.mrb[0].mxu0
  %113 = vdwg.mxu0
  %114 = vst [vmem:[%s3] sm:$0xff] %v106
  %115 = vst [vmem:[%s3 + $0x8] sm:$0xff] %v111
  // Predicated region
  $region14: #{transformer_forward.9} parent=0 // pred_check
    _
  $region15: #{transformer_forward.9} parent=0 // pred_check_branch
    %117 = sbr.rel (0) target = $region17
  $region16: #{transformer_forward.9} parent=0 // pred_region
    _
  $region17: #{transformer_forward.9} parent=0 // pred_fallthru
    _
  // Predicated region
  $region18: #{transformer_forward.9} parent=0 // pred_check
    _
  $region19: #{transformer_forward.9} parent=0 // pred_check_branch
    %119 = sbr.rel (0) target = $region21
  $region20: #{transformer_forward.9} parent=0 // pred_region
    _
  $region21: #{transformer_forward.9} parent=0 // pred_fallthru
    _

// kernel: transformer_forward.6
$region0: #{transformer_forward.6}
  #allocation0 [shape = 'u32[]', space=smem, size = 0x4, offset = 0x4, fixed_abs, tag = 'smem constant byte address 0x4 - core index']
  #allocation1 [shape = 'u32[144,128]{1,0:T(1,128)}', space=vmem, size = 0x12000, scoped, tag = 'internal scratch']
  %s0 = inlined_call_operand.vmem [shape: f32[2,8,128], index: 0, kind: input, shape index: {}]
  %s1 = inlined_call_operand.vmem [shape: f32[128,32], index: 1, kind: input, shape index: {}]
  %s2 = inlined_call_operand.vmem [shape: f32[128,32], index: 2, kind: input, shape index: {}]
  %s3 = inlined_call_operand.hbm [shape: f32[128,32], index: 3, kind: input, shape index: {}]
  %s4 = inlined_call_operand.vmem [shape: f32[32,128], index: 4, kind: input, shape index: {}]
  %s5 = inlined_call_operand.vmem [shape: f32[1,128], index: 5, kind: input, shape index: {}, may-alias: {5,11}]
  %s6 = inlined_call_operand.vmem [shape: f32[1,128], index: 6, kind: input, shape index: {}, may-alias: {6,8,10,12}]
  %s7 = inlined_call_operand.hbm [shape: f32[128,128], index: 7, kind: input, shape index: {}]
  %s8 = inlined_call_operand.vmem [shape: f32[1,128], index: 8, kind: input, shape index: {}, may-alias: {6,8,10,12}]
  %s9 = inlined_call_operand.hbm [shape: f32[128,128], index: 9, kind: input, shape index: {}]
  %s10 = inlined_call_operand.vmem [shape: f32[1,128], index: 10, kind: input, shape index: {}, may-alias: {6,8,10,12}]
  %s11 = inlined_call_operand.vmem [shape: f32[1,128], index: 11, kind: input, shape index: {}, may-alias: {5,11}]
  %s12 = inlined_call_operand.vmem [shape: f32[1,128], index: 12, kind: input, shape index: {}, may-alias: {6,8,10,12}]
  %s13 = inlined_call_operand.vmem [shape: f32[2,8,128], index: 13, kind: output, shape index: {}]
  %s14 = sld [smem:[#allocation0]]
  $region97: #{transformer_forward.6} parent=0
    _
  %s16 = ssub.s32 1, %s14
  %s17 = scalar_select 0, %s16, %s14
  $region1: #{transformer_forward.6} parent=0
    #allocation2 [shape = 'u8[65536]{0}', space=vmem, size = 0x10000, scoped, tag = 'input window, operand 3, single buffered']
    #allocation3 [shape = 's32[2]{0}', space=sflag, size = 0x8, scoped, tag = 'scoped memory for transformer_forward.6']
    #allocation4 [shape = 'u8[65536]{0}', space=vmem, size = 0x10000, scoped, tag = 'input window, operand 7, single buffered']
    #allocation5 [shape = 's32[1]{0}', space=sflag, size = 0x4, scoped, tag = 'scoped memory for transformer_forward.6']
    #allocation6 [shape = 'u8[65536]{0}', space=vmem, size = 0x10000, scoped, tag = 'input window, operand 9, single buffered']
    %18 = vsyncpa [#allocation3], 0
    %19 = vsyncpa [#allocation5], 0
    loop: start=0, step=1, limit=4
    $region2: #{transformer_forward.6} parent=1 // loop_pre_header
      _
    $region3: #{transformer_forward.6} parent=1 // loop_header
      %s21 = sphi 0, %s25
      %p22 = scmp.ge.s32.totalorder %s21, 4
      %s31 = sphi 0, %s33
      %s34 = sphi 0, %s31
      %s35 = sphi 0, %s34
      %s51 = sphi 0, %s35
      %s55 = sphi 0, %s55
      %s57 = sphi 0, %s55
      %s58 = sphi 0, %s57
      %s72 = sphi 0, %s58
      %s76 = sphi 0, %s76
      %s78 = sphi 0, %s76
      %s79 = sphi 0, %s78
      %s93 = sphi 0, %s79
      %s97 = sphi 0, %s97
      %s99 = sphi 0, %s97
      %s100 = sphi 0, %s99
      %s114 = sphi 0, %s100
      %s118 = sphi 0, %s118
      %s120 = sphi 0, %s118
      %s121 = sphi 0, %s120
      %s135 = sphi 0, %s121
      %s139 = sphi 0, %s139
      %s141 = sphi 0, %s139
      %s142 = sphi 0, %s141
      %s156 = sphi 0, %s142
      %s160 = sphi 0, %s160
      %s162 = sphi 0, %s160
      %s163 = sphi 0, %s162
      %s177 = sphi 0, %s163
      %s181 = sphi 0, %s181
      %s183 = sphi 0, %s181
      %s184 = sphi 0, %s183
      %s198 = sphi 0, %s184
      %s202 = sphi 0, %s202
      %s204 = sphi 0, %s202
      %s205 = sphi 0, %s204
      %s219 = sphi 0, %s205
      %s223 = sphi 0, %s223
      %s225 = sphi 0, %s223
      %s226 = sphi 0, %s225
      %s240 = sphi 0, %s226
      %s244 = sphi 0, %s244
      %s246 = sphi 0, %s244
      %s247 = sphi 0, %s246
      %s261 = sphi 0, %s247
      %s265 = sphi 0, %s265
      %s267 = sphi 0, %s265
      %s268 = sphi 0, %s267
      %s282 = sphi 0, %s268
      %s286 = sphi 0, %s286
      %s288 = sphi 0, %s286
      %s289 = sphi 0, %s288
      %s303 = sphi 0, %s289
      %s309 = sphi 0, %s311
      %s312 = sphi 0, %s309
      %s313 = sphi 0, %s312
      %s329 = sphi 0, %s313
    $region4: #{transformer_forward.6} parent=1 // loop_header_branch
      %24 = sbr.rel (%p22) target = $region8
    $region5: #{transformer_forward.6} parent=1 // loop_body
      %s26 = ssub.s32 %s21, 1
      %s27 = ssub.s32 %s21, 2
      %s28 = sadd.s32 %s21, 1
      %s29 = ssub.s32 %s21, %s28
      %p30 = scmp.eq.s32.totalorder %s29, 0
      %s32 = sadd.s32 %s31, 1
      %s33 = scalar_select %p30, %s31, %s32
      %p36 = pneg %p30
      %p37 = scmp.eq.s32.totalorder %s21, 1
      %p38 = por %p36, %p37
      %p39 = scmp.ne.s32.totalorder %s31, %s34
      %p40 = scmp.eq.s32.totalorder %s21, 0
      %p41 = por %p39, %p40
      %p42 = scmp.ne.s32.totalorder %s31, %s34
      %p43 = scmp.eq.s32.totalorder %s26, 1
      %p44 = por %p42, %p43
      %p45 = scmp.ne.s32.totalorder %s34, %s35
      %p46 = scmp.eq.s32.totalorder %s26, 0
      %p47 = por %p45, %p46
      %p48 = scmp.ne.s32.totalorder %s34, %s35
      %p49 = scmp.eq.s32.totalorder %s27, 1
      %p50 = por %p48, %p49
      %p52 = scmp.ne.s32.totalorder %s35, %s51
      %p53 = scmp.eq.s32.totalorder %s27, 0
      %p54 = por %p52, %p53
      %s56 = sadd.s32 %s55, 1
      %p59 = scmp.eq.s32.totalorder %s21, 1
      %p60 = scmp.ne.s32.totalorder %s55, %s57
      %p61 = scmp.eq.s32.totalorder %s21, 0
      %p62 = por %p60, %p61
      %p63 = scmp.ne.s32.totalorder %s55, %s57
      %p64 = scmp.eq.s32.totalorder %s26, 1
      %p65 = por %p63, %p64
      %p66 = scmp.ne.s32.totalorder %s57, %s58
      %p67 = scmp.eq.s32.totalorder %s26, 0
      %p68 = por %p66, %p67
      %p69 = scmp.ne.s32.totalorder %s57, %s58
      %p70 = scmp.eq.s32.totalorder %s27, 1
      %p71 = por %p69, %p70
      %p73 = scmp.ne.s32.totalorder %s58, %s72
      %p74 = scmp.eq.s32.totalorder %s27, 0
      %p75 = por %p73, %p74
      %s77 = sadd.s32 %s76, 1
      %p80 = scmp.eq.s32.totalorder %s21, 1
      %p81 = scmp.ne.s32.totalorder %s76, %s78
      %p82 = scmp.eq.s32.totalorder %s21, 0
      %p83 = por %p81, %p82
      %p84 = scmp.ne.s32.totalorder %s76, %s78
      %p85 = scmp.eq.s32.totalorder %s26, 1
      %p86 = por %p84, %p85
      %p87 = scmp.ne.s32.totalorder %s78, %s79
      %p88 = scmp.eq.s32.totalorder %s26, 0
      %p89 = por %p87, %p88
      %p90 = scmp.ne.s32.totalorder %s78, %s79
      %p91 = scmp.eq.s32.totalorder %s27, 1
      %p92 = por %p90, %p91
      %p94 = scmp.ne.s32.totalorder %s79, %s93
      %p95 = scmp.eq.s32.totalorder %s27, 0
      %p96 = por %p94, %p95
      %s98 = sadd.s32 %s97, 1
      %p101 = scmp.eq.s32.totalorder %s21, 1
      %p102 = scmp.ne.s32.totalorder %s97, %s99
      %p103 = scmp.eq.s32.totalorder %s21, 0
      %p104 = por %p102, %p103
      %p105 = scmp.ne.s32.totalorder %s97, %s99
      %p106 = scmp.eq.s32.totalorder %s26, 1
      %p107 = por %p105, %p106
      %p108 = scmp.ne.s32.totalorder %s99, %s100
      %p109 = scmp.eq.s32.totalorder %s26, 0
      %p110 = por %p108, %p109
      %p111 = scmp.ne.s32.totalorder %s99, %s100
      %p112 = scmp.eq.s32.totalorder %s27, 1
      %p113 = por %p111, %p112
      %p115 = scmp.ne.s32.totalorder %s100, %s114
      %p116 = scmp.eq.s32.totalorder %s27, 0
      %p117 = por %p115, %p116
      %s119 = sadd.s32 %s118, 1
      %p122 = scmp.eq.s32.totalorder %s21, 1
      %p123 = scmp.ne.s32.totalorder %s118, %s120
      %p124 = scmp.eq.s32.totalorder %s21, 0
      %p125 = por %p123, %p124
      %p126 = scmp.ne.s32.totalorder %s118, %s120
      %p127 = scmp.eq.s32.totalorder %s26, 1
      %p128 = por %p126, %p127
      %p129 = scmp.ne.s32.totalorder %s120, %s121
      %p130 = scmp.eq.s32.totalorder %s26, 0
      %p131 = por %p129, %p130
      %p132 = scmp.ne.s32.totalorder %s120, %s121
      %p133 = scmp.eq.s32.totalorder %s27, 1
      %p134 = por %p132, %p133
      %p136 = scmp.ne.s32.totalorder %s121, %s135
      %p137 = scmp.eq.s32.totalorder %s27, 0
      %p138 = por %p136, %p137
      %s140 = sadd.s32 %s139, 1
      %p143 = scmp.eq.s32.totalorder %s21, 1
      %p144 = scmp.ne.s32.totalorder %s139, %s141
      %p145 = scmp.eq.s32.totalorder %s21, 0
      %p146 = por %p144, %p145
      %p147 = scmp.ne.s32.totalorder %s139, %s141
      %p148 = scmp.eq.s32.totalorder %s26, 1
      %p149 = por %p147, %p148
      %p150 = scmp.ne.s32.totalorder %s141, %s142
      %p151 = scmp.eq.s32.totalorder %s26, 0
      %p152 = por %p150, %p151
      %p153 = scmp.ne.s32.totalorder %s141, %s142
      %p154 = scmp.eq.s32.totalorder %s27, 1
      %p155 = por %p153, %p154
      %p157 = scmp.ne.s32.totalorder %s142, %s156
      %p158 = scmp.eq.s32.totalorder %s27, 0
      %p159 = por %p157, %p158
      %s161 = sadd.s32 %s160, 1
      %p164 = scmp.eq.s32.totalorder %s21, 1
      %p165 = scmp.ne.s32.totalorder %s160, %s162
      %p166 = scmp.eq.s32.totalorder %s21, 0
      %p167 = por %p165, %p166
      %p168 = scmp.ne.s32.totalorder %s160, %s162
      %p169 = scmp.eq.s32.totalorder %s26, 1
      %p170 = por %p168, %p169
      %p171 = scmp.ne.s32.totalorder %s162, %s163
      %p172 = scmp.eq.s32.totalorder %s26, 0
      %p173 = por %p171, %p172
      %p174 = scmp.ne.s32.totalorder %s162, %s163
      %p175 = scmp.eq.s32.totalorder %s27, 1
      %p176 = por %p174, %p175
      %p178 = scmp.ne.s32.totalorder %s163, %s177
      %p179 = scmp.eq.s32.totalorder %s27, 0
      %p180 = por %p178, %p179
      %s182 = sadd.s32 %s181, 1
      %p185 = scmp.eq.s32.totalorder %s21, 1
      %p186 = scmp.ne.s32.totalorder %s181, %s183
      %p187 = scmp.eq.s32.totalorder %s21, 0
      %p188 = por %p186, %p187
      %p189 = scmp.ne.s32.totalorder %s181, %s183
      %p190 = scmp.eq.s32.totalorder %s26, 1
      %p191 = por %p189, %p190
      %p192 = scmp.ne.s32.totalorder %s183, %s184
      %p193 = scmp.eq.s32.totalorder %s26, 0
      %p194 = por %p192, %p193
      %p195 = scmp.ne.s32.totalorder %s183, %s184
      %p196 = scmp.eq.s32.totalorder %s27, 1
      %p197 = por %p195, %p196
      %p199 = scmp.ne.s32.totalorder %s184, %s198
      %p200 = scmp.eq.s32.totalorder %s27, 0
      %p201 = por %p199, %p200
      %s203 = sadd.s32 %s202, 1
      %p206 = scmp.eq.s32.totalorder %s21, 1
      %p207 = scmp.ne.s32.totalorder %s202, %s204
      %p208 = scmp.eq.s32.totalorder %s21, 0
      %p209 = por %p207, %p208
      %p210 = scmp.ne.s32.totalorder %s202, %s204
      %p211 = scmp.eq.s32.totalorder %s26, 1
      %p212 = por %p210, %p211
      %p213 = scmp.ne.s32.totalorder %s204, %s205
      %p214 = scmp.eq.s32.totalorder %s26, 0
      %p215 = por %p213, %p214
      %p216 = scmp.ne.s32.totalorder %s204, %s205
      %p217 = scmp.eq.s32.totalorder %s27, 1
      %p218 = por %p216, %p217
      %p220 = scmp.ne.s32.totalorder %s205, %s219
      %p221 = scmp.eq.s32.totalorder %s27, 0
      %p222 = por %p220, %p221
      %s224 = sadd.s32 %s223, 1
      %p227 = scmp.eq.s32.totalorder %s21, 1
      %p228 = scmp.ne.s32.totalorder %s223, %s225
      %p229 = scmp.eq.s32.totalorder %s21, 0
      %p230 = por %p228, %p229
      %p231 = scmp.ne.s32.totalorder %s223, %s225
      %p232 = scmp.eq.s32.totalorder %s26, 1
      %p233 = por %p231, %p232
      %p234 = scmp.ne.s32.totalorder %s225, %s226
      %p235 = scmp.eq.s32.totalorder %s26, 0
      %p236 = por %p234, %p235
      %p237 = scmp.ne.s32.totalorder %s225, %s226
      %p238 = scmp.eq.s32.totalorder %s27, 1
      %p239 = por %p237, %p238
      %p241 = scmp.ne.s32.totalorder %s226, %s240
      %p242 = scmp.eq.s32.totalorder %s27, 0
      %p243 = por %p241, %p242
      %s245 = sadd.s32 %s244, 1
      %p248 = scmp.eq.s32.totalorder %s21, 1
      %p249 = scmp.ne.s32.totalorder %s244, %s246
      %p250 = scmp.eq.s32.totalorder %s21, 0
      %p251 = por %p249, %p250
      %p252 = scmp.ne.s32.totalorder %s244, %s246
      %p253 = scmp.eq.s32.totalorder %s26, 1
      %p254 = por %p252, %p253
      %p255 = scmp.ne.s32.totalorder %s246, %s247
      %p256 = scmp.eq.s32.totalorder %s26, 0
      %p257 = por %p255, %p256
      %p258 = scmp.ne.s32.totalorder %s246, %s247
      %p259 = scmp.eq.s32.totalorder %s27, 1
      %p260 = por %p258, %p259
      %p262 = scmp.ne.s32.totalorder %s247, %s261
      %p263 = scmp.eq.s32.totalorder %s27, 0
      %p264 = por %p262, %p263
      %s266 = sadd.s32 %s265, 1
      %p269 = scmp.eq.s32.totalorder %s21, 1
      %p270 = scmp.ne.s32.totalorder %s265, %s267
      %p271 = scmp.eq.s32.totalorder %s21, 0
      %p272 = por %p270, %p271
      %p273 = scmp.ne.s32.totalorder %s265, %s267
      %p274 = scmp.eq.s32.totalorder %s26, 1
      %p275 = por %p273, %p274
      %p276 = scmp.ne.s32.totalorder %s267, %s268
      %p277 = scmp.eq.s32.totalorder %s26, 0
      %p278 = por %p276, %p277
      %p279 = scmp.ne.s32.totalorder %s267, %s268
      %p280 = scmp.eq.s32.totalorder %s27, 1
      %p281 = por %p279, %p280
      %p283 = scmp.ne.s32.totalorder %s268, %s282
      %p284 = scmp.eq.s32.totalorder %s27, 0
      %p285 = por %p283, %p284
      %s287 = sadd.s32 %s286, 1
      %p290 = scmp.eq.s32.totalorder %s21, 1
      %p291 = scmp.ne.s32.totalorder %s286, %s288
      %p292 = scmp.eq.s32.totalorder %s21, 0
      %p293 = por %p291, %p292
      %p294 = scmp.ne.s32.totalorder %s286, %s288
      %p295 = scmp.eq.s32.totalorder %s26, 1
      %p296 = por %p294, %p295
      %p297 = scmp.ne.s32.totalorder %s288, %s289
      %p298 = scmp.eq.s32.totalorder %s26, 0
      %p299 = por %p297, %p298
      %p300 = scmp.ne.s32.totalorder %s288, %s289
      %p301 = scmp.eq.s32.totalorder %s27, 1
      %p302 = por %p300, %p301
      %p304 = scmp.ne.s32.totalorder %s289, %s303
      %p305 = scmp.eq.s32.totalorder %s27, 0
      %p306 = por %p304, %p305
      %s307 = ssub.s32 %s21, %s28
      %p308 = scmp.eq.s32.totalorder %s307, 0
      %s310 = sadd.s32 %s309, 1
      %s311 = scalar_select %p308, %s309, %s310
      %p314 = pneg %p308
      %p315 = scmp.eq.s32.totalorder %s21, 1
      %p316 = por %p314, %p315
      %p317 = scmp.ne.s32.totalorder %s309, %s312
      %p318 = scmp.eq.s32.totalorder %s21, 0
      %p319 = por %p317, %p318
      %p320 = scmp.ne.s32.totalorder %s309, %s312
      %p321 = scmp.eq.s32.totalorder %s26, 1
      %p322 = por %p320, %p321
      %p323 = scmp.ne.s32.totalorder %s312, %s313
      %p324 = scmp.eq.s32.totalorder %s26, 0
      %p325 = por %p323, %p324
      %p326 = scmp.ne.s32.totalorder %s312, %s313
      %p327 = scmp.eq.s32.totalorder %s27, 1
      %p328 = por %p326, %p327
      %p330 = scmp.ne.s32.totalorder %s313, %s329
      %p331 = scmp.eq.s32.totalorder %s27, 0
      %p332 = por %p330, %p331
      %p333 = scmp.le.s32.totalorder 1, %s21
      %p334 = scmp.lt.s32.totalorder %s21, 3
      %p335 = pnand %p333, %p334
      %p336 = pneg %p335
      // Predicated region
      $region9: #{transformer_forward.6} parent=5 // pred_check
        _
      $region10: #{transformer_forward.6} parent=5 // pred_check_branch
        %338 = sbr.rel (%p335) target = $region12
      $region11: #{transformer_forward.6} parent=5 // pred_region
        %s339 = ssub.s32 %s21, 1
        // Predicated region
        $region13: #{transformer_forward.6} parent=11 // pred_check
          %p340 = pneg %p68
        $region14: #{transformer_forward.6} parent=11 // pred_check_branch
          %342 = sbr.rel (%p340) target = $region16
        $region15: #{transformer_forward.6} parent=11 // pred_region
          _
        $region16: #{transformer_forward.6} parent=11 // pred_fallthru
          _
        // Predicated region
        $region17: #{transformer_forward.6} parent=11 // pred_check
          %p343 = pneg %p89
        $region18: #{transformer_forward.6} parent=11 // pred_check_branch
          %345 = sbr.rel (%p343) target = $region20
        $region19: #{transformer_forward.6} parent=11 // pred_region
          _
        $region20: #{transformer_forward.6} parent=11 // pred_fallthru
          _
        // Predicated region
        $region21: #{transformer_forward.6} parent=11 // pred_check
          %p346 = pneg %p110
        $region22: #{transformer_forward.6} parent=11 // pred_check_branch
          %348 = sbr.rel (%p346) target = $region24
        $region23: #{transformer_forward.6} parent=11 // pred_region
          %s350 = ssub.s32 2048, 2048
          %351 = vsyncadd [#allocation3], %s350
          %s352 = sshll.u32 [#allocation2], 4
          %s353 = int_to_ptr.vmem [resolvable:$true] %s352
          %358 = dma.hbm_to_vmem [thread:$0]  %s3, 2048, %s353, [#allocation3], 128, 128, 8
        $region24: #{transformer_forward.6} parent=11 // pred_fallthru
          _
        // Predicated region
        $region25: #{transformer_forward.6} parent=11 // pred_check
          %p359 = pneg %p131
        $region26: #{transformer_forward.6} parent=11 // pred_check_branch
          %361 = sbr.rel (%p359) target = $region28
        $region27: #{transformer_forward.6} parent=11 // pred_region
          _
        $region28: #{transformer_forward.6} parent=11 // pred_fallthru
          _
        // Predicated region
        $region29: #{transformer_forward.6} parent=11 // pred_check
          %p362 = pneg %p152
        $region30: #{transformer_forward.6} parent=11 // pred_check_branch
          %364 = sbr.rel (%p362) target = $region32
        $region31: #{transformer_forward.6} parent=11 // pred_region
          _
        $region32: #{transformer_forward.6} parent=11 // pred_fallthru
          _
        // Predicated region
        $region33: #{transformer_forward.6} parent=11 // pred_check
          %p365 = pneg %p173
        $region34: #{transformer_forward.6} parent=11 // pred_check_branch
          %367 = sbr.rel (%p365) target = $region36
        $region35: #{transformer_forward.6} parent=11 // pred_region
          _
        $region36: #{transformer_forward.6} parent=11 // pred_fallthru
          _
        // Predicated region
        $region37: #{transformer_forward.6} parent=11 // pred_check
          %p368 = pneg %p194
        $region38: #{transformer_forward.6} parent=11 // pred_check_branch
          %370 = sbr.rel (%p368) target = $region40
        $region39: #{transformer_forward.6} parent=11 // pred_region
          %s372 = ssub.s32 2048, 2048
          %373 = vsyncadd [#allocation5], %s372
          %s374 = sshll.u32 [#allocation4], 4
          %s375 = int_to_ptr.vmem [resolvable:$true] %s374
          %380 = dma.hbm_to_vmem [thread:$0]  %s7, 2048, %s375, [#allocation5], 128, 128, 8
        $region40: #{transformer_forward.6} parent=11 // pred_fallthru
          _
        // Predicated region
        $region41: #{transformer_forward.6} parent=11 // pred_check
          %p381 = pneg %p215
        $region42: #{transformer_forward.6} parent=11 // pred_check_branch
          %383 = sbr.rel (%p381) target = $region44
        $region43: #{transformer_forward.6} parent=11 // pred_region
          _
        $region44: #{transformer_forward.6} parent=11 // pred_fallthru
          _
        // Predicated region
        $region45: #{transformer_forward.6} parent=11 // pred_check
          %p384 = pneg %p236
        $region46: #{transformer_forward.6} parent=11 // pred_check_branch
          %386 = sbr.rel (%p384) target = $region48
        $region47: #{transformer_forward.6} parent=11 // pred_region
          %s388 = ssub.s32 2048, 2048
          %389 = vsyncadd [#allocation5], %s388
          %s390 = sshll.u32 [#allocation6], 4
          %s391 = int_to_ptr.vmem [resolvable:$true] %s390
          %396 = dma.hbm_to_vmem [thread:$0]  %s9, 2048, %s391, [#allocation5], 128, 128, 8
        $region48: #{transformer_forward.6} parent=11 // pred_fallthru
          _
        // Predicated region
        $region49: #{transformer_forward.6} parent=11 // pred_check
          %p397 = pneg %p257
        $region50: #{transformer_forward.6} parent=11 // pred_check_branch
          %399 = sbr.rel (%p397) target = $region52
        $region51: #{transformer_forward.6} parent=11 // pred_region
          _
        $region52: #{transformer_forward.6} parent=11 // pred_fallthru
          _
        // Predicated region
        $region53: #{transformer_forward.6} parent=11 // pred_check
          %p400 = pneg %p278
        $region54: #{transformer_forward.6} parent=11 // pred_check_branch
          %402 = sbr.rel (%p400) target = $region56
        $region55: #{transformer_forward.6} parent=11 // pred_region
          _
        $region56: #{transformer_forward.6} parent=11 // pred_fallthru
          _
        // Predicated region
        $region57: #{transformer_forward.6} parent=11 // pred_check
          %p403 = pneg %p299
        $region58: #{transformer_forward.6} parent=11 // pred_check_branch
          %405 = sbr.rel (%p403) target = $region60
        $region59: #{transformer_forward.6} parent=11 // pred_region
          _
        $region60: #{transformer_forward.6} parent=11 // pred_fallthru
          _
      $region12: #{transformer_forward.6} parent=5 // pred_fallthru
        _
      %p406 = scmp.lt.s32.totalorder %s21, 2
      // Predicated region
      $region61: #{transformer_forward.6} parent=5 // pred_check
        %p407 = pneg %p406
      $region62: #{transformer_forward.6} parent=5 // pred_check_branch
        %409 = sbr.rel (%p407) target = $region64
      $region63: #{transformer_forward.6} parent=5 // pred_region
        // Predicated region
        $region65: #{transformer_forward.6} parent=63 // pred_check
          %p410 = pneg %p41
        $region66: #{transformer_forward.6} parent=63 // pred_check_branch
          %412 = sbr.rel (%p410) target = $region68
        $region67: #{transformer_forward.6} parent=63 // pred_region
          %p413 = scmp.lt.s32.totalorder %s21, 1
          %s414 = scalar_select %p413, %s21, 1
          %s415 = smul.addr %s414, 8
          %s416 = scalar_lea.vmem %s0, %s415
        $region68: #{transformer_forward.6} parent=63 // pred_fallthru
          _
      $region64: #{transformer_forward.6} parent=5 // pred_fallthru
        _
      %p417 = scmp.le.s32.totalorder 1, %s21
      %p418 = scmp.lt.s32.totalorder %s21, 3
      %p419 = pnand %p417, %p418
      %p420 = pneg %p419
      // Predicated region
      $region69: #{transformer_forward.6} parent=5 // pred_check
        _
      $region70: #{transformer_forward.6} parent=5 // pred_check_branch
        %422 = sbr.rel (%p419) target = $region72
      $region71: #{transformer_forward.6} parent=5 // pred_region
        %s423 = ssub.s32 %s21, 1
        // Predicated region
        $region73: #{transformer_forward.6} parent=71 // pred_check
          %p424 = pneg %p110
        $region74: #{transformer_forward.6} parent=71 // pred_check_branch
          %426 = sbr.rel (%p424) target = $region76
        $region75: #{transformer_forward.6} parent=71 // pred_region
          %427 = dma.done [#allocation3], 2048
        $region76: #{transformer_forward.6} parent=71 // pred_fallthru
          _
        // Predicated region
        $region77: #{transformer_forward.6} parent=71 // pred_check
          %p428 = pneg %p194
        $region78: #{transformer_forward.6} parent=71 // pred_check_branch
          %430 = sbr.rel (%p428) target = $region80
        $region79: #{transformer_forward.6} parent=71 // pred_region
          %431 = dma.done [#allocation5], 2048
        $region80: #{transformer_forward.6} parent=71 // pred_fallthru
          _
        // Predicated region
        $region81: #{transformer_forward.6} parent=71 // pred_check
          %p432 = pneg %p236
        $region82: #{transformer_forward.6} parent=71 // pred_check_branch
          %434 = sbr.rel (%p432) target = $region84
        $region83: #{transformer_forward.6} parent=71 // pred_region
          %435 = dma.done [#allocation5], 2048
        $region84: #{transformer_forward.6} parent=71 // pred_fallthru
          _
        %p436 = scmp.lt.s32.totalorder %s26, 1
        %s437 = scalar_select %p436, %s26, 1
        %s438 = smul.addr %s437, 8
        %s439 = scalar_lea.vmem %s0, %s438
        %p440 = pneg %p47
        %p441 = pneg %p44
        %p442 = pneg %p68
        %p443 = pneg %p65
        %p444 = pneg %p89
        %p445 = pneg %p86
        %p446 = pneg %p110
        %p447 = pneg %p107
        %p448 = pneg %p131
        %p449 = pneg %p128
        %p450 = pneg %p152
        %p451 = pneg %p149
        %p452 = pneg %p173
        %p453 = pneg %p170
        %p454 = pneg %p194
        %p455 = pneg %p191
        %p456 = pneg %p215
        %p457 = pneg %p212
        %p458 = pneg %p236
        %p459 = pneg %p233
        %p460 = pneg %p257
        %p461 = pneg %p254
        %p462 = pneg %p278
        %p463 = pneg %p275
        %p464 = pneg %p299
        %p465 = pneg %p296
        %p466 = pneg %p325
        %p467 = pneg %p322
        %p468 = scmp.lt.s32.totalorder %s26, 1
        %s469 = scalar_select %p468, %s26, 1
        %s470 = smul.addr %s469, 8
        %s471 = scalar_lea.vmem %s13, %s470
        %p472 = scmp.lt.s32.totalorder %s26, 1
        %s473 = scalar_select %p472, %s26, 1
        %s474 = smul.addr %s473, 8
        %s475 = scalar_lea.vmem %s0, %s474
        %p476 = scmp.lt.s32.totalorder %s26, 1
        %s477 = scalar_select %p476, %s26, 1
        %s478 = smul.addr %s477, 8
        %s479 = scalar_lea.vmem %s13, %s478
        %v480 = vld [vmem:[%s475] sm:$0xff]
        %v481 = vld [vmem:[%s1] sm:$0xff]
        %v482 = vld [vmem:[%s1 + $0x8] sm:$0xff]
        %v483 = vld [vmem:[%s1 + $0x10] sm:$0xff]
        %v484 = vld [vmem:[%s1 + $0x18] sm:$0xff]
        %v485 = vld [vmem:[%s1 + $0x20] sm:$0xff]
        %v486 = vld [vmem:[%s1 + $0x28] sm:$0xff]
        %v487 = vld [vmem:[%s1 + $0x30] sm:$0xff]
        %v488 = vld [vmem:[%s1 + $0x38] sm:$0xff]
        %v489 = vld [vmem:[%s1 + $0x40] sm:$0xff]
        %v490 = vld [vmem:[%s1 + $0x48] sm:$0xff]
        %v491 = vld [vmem:[%s1 + $0x50] sm:$0xff]
        %v492 = vld [vmem:[%s1 + $0x58] sm:$0xff]
        %v493 = vld [vmem:[%s1 + $0x60] sm:$0xff]
        %v494 = vld [vmem:[%s1 + $0x68] sm:$0xff]
        %v495 = vld [vmem:[%s1 + $0x70] sm:$0xff]
        %v496 = vld [vmem:[%s1 + $0x78] sm:$0xff]
        %v497 = vld [vmem:[%s2] sm:$0xff]
        %v498 = vld [vmem:[%s2 + $0x8] sm:$0xff]
        %v499 = vld [vmem:[%s2 + $0x10] sm:$0xff]
        %v500 = vld [vmem:[%s2 + $0x18] sm:$0xff]
        %v501 = vld [vmem:[%s2 + $0x20] sm:$0xff]
        %v502 = vld [vmem:[%s2 + $0x28] sm:$0xff]
        %v503 = vld [vmem:[%s2 + $0x30] sm:$0xff]
        %v504 = vld [vmem:[%s2 + $0x38] sm:$0xff]
        %v505 = vld [vmem:[%s2 + $0x40] sm:$0xff]
        %v506 = vld [vmem:[%s2 + $0x48] sm:$0xff]
        %v507 = vld [vmem:[%s2 + $0x50] sm:$0xff]
        %v508 = vld [vmem:[%s2 + $0x58] sm:$0xff]
        %v509 = vld [vmem:[%s2 + $0x60] sm:$0xff]
        %v510 = vld [vmem:[%s2 + $0x68] sm:$0xff]
        %v511 = vld [vmem:[%s2 + $0x70] sm:$0xff]
        %v512 = vld [vmem:[%s2 + $0x78] sm:$0xff]
        %v513 = vld [vmem:[#allocation2] sm:$0xff]
        %v514 = vld [vmem:[#allocation2 + $0x8] sm:$0xff]
        %v515 = vld [vmem:[#allocation2 + $0x10] sm:$0xff]
        %v516 = vld [vmem:[#allocation2 + $0x18] sm:$0xff]
        %v517 = vld [vmem:[#allocation2 + $0x20] sm:$0xff]
        %v518 = vld [vmem:[#allocation2 + $0x28] sm:$0xff]
        %v519 = vld [vmem:[#allocation2 + $0x30] sm:$0xff]
        %v520 = vld [vmem:[#allocation2 + $0x38] sm:$0xff]
        %v521 = vld [vmem:[#allocation2 + $0x40] sm:$0xff]
        %v522 = vld [vmem:[#allocation2 + $0x48] sm:$0xff]
        %v523 = vld [vmem:[#allocation2 + $0x50] sm:$0xff]
        %v524 = vld [vmem:[#allocation2 + $0x58] sm:$0xff]
        %v525 = vld [vmem:[#allocation2 + $0x60] sm:$0xff]
        %v526 = vld [vmem:[#allocation2 + $0x68] sm:$0xff]
        %v527 = vld [vmem:[#allocation2 + $0x70] sm:$0xff]
        %v528 = vld [vmem:[#allocation2 + $0x78] sm:$0xff]
        %v529 = vld [vmem:[%s4] sm:$0xff]
        %v530 = vld [vmem:[%s4 + $0x8] sm:$0xff]
        %v531 = vld [vmem:[%s4 + $0x10] sm:$0xff]
        %v532 = vld [vmem:[%s4 + $0x18] sm:$0xff]
        %533 = vmatprep.subr.mxu0 0.0
        %534 = vmatpush1.msra.mxu0 %v481
        %535 = vmatprep.subr.mxu0 0.0
        %536 = vmatpush1.msra.mxu0 %v482
        %537 = vmatprep.subr.mxu0 0.0
        %538 = vmatpush1.msra.mxu0 %v483
        %539 = vmatprep.subr.mxu0 0.0
        %540 = vmatpush1.msra.mxu0 %v484
        %541 = vmatprep.subr.mxu0 0.0
        %542 = vmatpush1.msra.mxu0 %v485
        %543 = vmatprep.subr.mxu0 0.0
        %544 = vmatpush1.msra.mxu0 %v486
        %545 = vmatprep.subr.mxu0 0.0
        %546 = vmatpush1.msra.mxu0 %v487
        %547 = vmatprep.subr.mxu0 0.0
        %548 = vmatpush1.msra.mxu0 %v488
        %549 = vmatprep.subr.mxu0 0.0
        %550 = vmatpush1.msra.mxu0 %v489
        %551 = vmatprep.subr.mxu0 0.0
        %552 = vmatpush1.msra.mxu0 %v490
        %553 = vmatprep.subr.mxu0 0.0
        %554 = vmatpush1.msra.mxu0 %v491
        %555 = vmatprep.subr.mxu0 0.0
        %556 = vmatpush1.msra.mxu0 %v492
        %557 = vmatprep.subr.mxu0 0.0
        %558 = vmatpush1.msra.mxu0 %v493
        %559 = vmatprep.subr.mxu0 0.0
        %560 = vmatpush1.msra.mxu0 %v494
        %561 = vmatprep.subr.mxu0 0.0
        %562 = vmatpush1.msra.mxu0 %v495
        %563 = vmatprep.subr.mxu0 0.0
        %564 = vmatpush1.msra.mxu0 %v496
        %565 = vmatprep.subr.mxu0 0.0
        %566 = vmatpush1.msra.mxu0 0.0
        %567 = vmatprep.subr.mxu0 0.0
        %568 = vmatpush1.msra.mxu0 0.0
        %569 = vmatprep.subr.mxu0 0.0
        %570 = vmatpush1.msra.mxu0 0.0
        %571 = vmatprep.subr.mxu0 0.0
        %572 = vmatpush1.msra.mxu0 0.0
        %573 = vmatprep.subr.mxu0 0.0
        %574 = vmatpush1.msra.mxu0 0.0
        %575 = vmatprep.subr.mxu0 0.0
        %576 = vmatpush1.msra.mxu0 0.0
        %577 = vmatprep.subr.mxu0 0.0
        %578 = vmatpush1.msra.mxu0 0.0
        %579 = vmatprep.subr.mxu0 0.0
        %580 = vmatpush1.msra.mxu0 0.0
        %581 = vmatprep.subr.mxu0 0.0
        %582 = vmatpush1.msra.mxu0 0.0
        %583 = vmatprep.subr.mxu0 0.0
        %584 = vmatpush1.msra.mxu0 0.0
        %585 = vmatprep.subr.mxu0 0.0
        %586 = vmatpush1.msra.mxu0 0.0
        %587 = vmatprep.subr.mxu0 0.0
        %588 = vmatpush1.msra.mxu0 0.0
        %589 = vmatprep.subr.mxu0 0.0
        %590 = vmatpush1.msra.mxu0 0.0
        %591 = vmatprep.subr.mxu0 0.0
        %592 = vmatpush1.msra.mxu0 0.0
        %593 = vmatprep.subr.mxu0 0.0
        %594 = vmatpush1.msra.mxu0 0.0
        %595 = vmatprep.subr.mxu0 0.0
        %596 = vmatpush1.msra.mxu0 0.0
        %597 = vmatprep.mubr.f32.mxu0 0.0
        %598 = vmatmul.mubr.f32.gmra.mrb[0].mxu0 %v480
        %v599 = vpop.f32.mrb[0].mxu0
        %v600 = vadd.f32 0.0, %v599
        %v601 = vpop.f32.mrb[0].mxu0
        %602 = vdwg.mxu0
        %603 = vmatprep.subr.mxu0 0.0
        %604 = vmatpush1.msra.mxu0 %v497
        %605 = vmatprep.subr.mxu0 0.0
        %606 = vmatpush1.msra.mxu0 %v498
        %607 = vmatprep.subr.mxu0 0.0
        %608 = vmatpush1.msra.mxu0 %v499
        %609 = vmatprep.subr.mxu0 0.0
        %610 = vmatpush1.msra.mxu0 %v500
        %611 = vmatprep.subr.mxu0 0.0
        %612 = vmatpush1.msra.mxu0 %v501
        %613 = vmatprep.subr.mxu0 0.0
        %614 = vmatpush1.msra.mxu0 %v502
        %615 = vmatprep.subr.mxu0 0.0
        %616 = vmatpush1.msra.mxu0 %v503
        %617 = vmatprep.subr.mxu0 0.0
        %618 = vmatpush1.msra.mxu0 %v504
        %619 = vmatprep.subr.mxu0 0.0
        %620 = vmatpush1.msra.mxu0 %v505
        %621 = vmatprep.subr.mxu0 0.0
        %622 = vmatpush1.msra.mxu0 %v506
        %623 = vmatprep.subr.mxu0 0.0
        %624 = vmatpush1.msra.mxu0 %v507
        %625 = vmatprep.subr.mxu0 0.0
        %626 = vmatpush1.msra.mxu0 %v508
        %627 = vmatprep.subr.mxu0 0.0
        %628 = vmatpush1.msra.mxu0 %v509
        %629 = vmatprep.subr.mxu0 0.0
        %630 = vmatpush1.msra.mxu0 %v510
        %631 = vmatprep.subr.mxu0 0.0
        %632 = vmatpush1.msra.mxu0 %v511
        %633 = vmatprep.subr.mxu0 0.0
        %634 = vmatpush1.msra.mxu0 %v512
        %635 = vmatprep.subr.mxu0 0.0
        %636 = vmatpush1.msra.mxu0 0.0
        %637 = vmatprep.subr.mxu0 0.0
        %638 = vmatpush1.msra.mxu0 0.0
        %639 = vmatprep.subr.mxu0 0.0
        %640 = vmatpush1.msra.mxu0 0.0
        %641 = vmatprep.subr.mxu0 0.0
        %642 = vmatpush1.msra.mxu0 0.0
        %643 = vmatprep.subr.mxu0 0.0
        %644 = vmatpush1.msra.mxu0 0.0
        %645 = vmatprep.subr.mxu0 0.0
        %646 = vmatpush1.msra.mxu0 0.0
        %647 = vmatprep.subr.mxu0 0.0
        %648 = vmatpush1.msra.mxu0 0.0
        %649 = vmatprep.subr.mxu0 0.0
        %650 = vmatpush1.msra.mxu0 0.0
        %651 = vmatprep.subr.mxu0 0.0
        %652 = vmatpush1.msra.mxu0 0.0
        %653 = vmatprep.subr.mxu0 0.0
        %654 = vmatpush1.msra.mxu0 0.0
        %655 = vmatprep.subr.mxu0 0.0
        %656 = vmatpush1.msra.mxu0 0.0
        %657 = vmatprep.subr.mxu0 0.0
        %658 = vmatpush1.msra.mxu0 0.0
        %659 = vmatprep.subr.mxu0 0.0
        %660 = vmatpush1.msra.mxu0 0.0
        %661 = vmatprep.subr.mxu0 0.0
        %662 = vmatpush1.msra.mxu0 0.0
        %663 = vmatprep.subr.mxu0 0.0
        %664 = vmatpush1.msra.mxu0 0.0
        %665 = vmatprep.subr.mxu0 0.0
        %666 = vmatpush1.msra.mxu0 0.0
        %667 = vmatprep.mubr.f32.mxu0 0.0
        %668 = vmatmul.mubr.f32.gmra.mrb[0].mxu0 %v480
        %v669 = vpop.f32.mrb[0].mxu0
        %v670 = vadd.f32 0.0, %v669
        %v671 = vpop.f32.mrb[0].mxu0
        %672 = vdwg.mxu0
        %673 = vmatprep.subr.mxu0 0.0
        %674 = vmatpush1.msra.mxu0 %v513
        %675 = vmatprep.subr.mxu0 0.0
        %676 = vmatpush1.msra.mxu0 %v514
        %677 = vmatprep.subr.mxu0 0.0
        %678 = vmatpush1.msra.mxu0 %v515
        %679 = vmatprep.subr.mxu0 0.0
        %680 = vmatpush1.msra.mxu0 %v516
        %681 = vmatprep.subr.mxu0 0.0
        %682 = vmatpush1.msra.mxu0 %v517
        %683 = vmatprep.subr.mxu0 0.0
        %684 = vmatpush1.msra.mxu0 %v518
        %685 = vmatprep.subr.mxu0 0.0
        %686 = vmatpush1.msra.mxu0 %v519
        %687 = vmatprep.subr.mxu0 0.0
        %688 = vmatpush1.msra.mxu0 %v520
        %689 = vmatprep.subr.mxu0 0.0
        %690 = vmatpush1.msra.mxu0 %v521
        %691 = vmatprep.subr.mxu0 0.0
        %692 = vmatpush1.msra.mxu0 %v522
        %693 = vmatprep.subr.mxu0 0.0
        %694 = vmatpush1.msra.mxu0 %v523
        %695 = vmatprep.subr.mxu0 0.0
        %696 = vmatpush1.msra.mxu0 %v524
        %697 = vmatprep.subr.mxu0 0.0
        %698 = vmatpush1.msra.mxu0 %v525
        %699 = vmatprep.subr.mxu0 0.0
        %700 = vmatpush1.msra.mxu0 %v526
        %701 = vmatprep.subr.mxu0 0.0
        %702 = vmatpush1.msra.mxu0 %v527
        %703 = vmatprep.subr.mxu0 0.0
        %704 = vmatpush1.msra.mxu0 %v528
        %705 = vmatprep.subr.mxu0 0.0
        %706 = vmatpush1.msra.mxu0 0.0
        %707 = vmatprep.subr.mxu0 0.0
        %708 = vmatpush1.msra.mxu0 0.0
        %709 = vmatprep.subr.mxu0 0.0
        %710 = vmatpush1.msra.mxu0 0.0
        %711 = vmatprep.subr.mxu0 0.0
        %712 = vmatpush1.msra.mxu0 0.0
        %713 = vmatprep.subr.mxu0 0.0
        %714 = vmatpush1.msra.mxu0 0.0
        %715 = vmatprep.subr.mxu0 0.0
        %716 = vmatpush1.msra.mxu0 0.0
        %717 = vmatprep.subr.mxu0 0.0
        %718 = vmatpush1.msra.mxu0 0.0
        %719 = vmatprep.subr.mxu0 0.0
        %720 = vmatpush1.msra.mxu0 0.0
        %721 = vmatprep.subr.mxu0 0.0
        %722 = vmatpush1.msra.mxu0 0.0
        %723 = vmatprep.subr.mxu0 0.0
        %724 = vmatpush1.msra.mxu0 0.0
        %725 = vmatprep.subr.mxu0 0.0
        %726 = vmatpush1.msra.mxu0 0.0
        %727 = vmatprep.subr.mxu0 0.0
        %728 = vmatpush1.msra.mxu0 0.0
        %729 = vmatprep.subr.mxu0 0.0
        %730 = vmatpush1.msra.mxu0 0.0
        %731 = vmatprep.subr.mxu0 0.0
        %732 = vmatpush1.msra.mxu0 0.0
        %733 = vmatprep.subr.mxu0 0.0
        %734 = vmatpush1.msra.mxu0 0.0
        %735 = vmatprep.subr.mxu0 0.0
        %736 = vmatpush1.msra.mxu0 0.0
        %737 = vmatprep.mubr.f32.mxu0 0.0
        %738 = vmatmul.mubr.f32.gmra.mrb[0].mxu0 %v480
        %v739 = vpop.f32.mrb[0].mxu0
        %v740 = vadd.f32 0.0, %v739
        %v741 = vpop.f32.mrb[0].mxu0
        %742 = vdwg.mxu0
        %vm743 = vcmask 64512
        %v745 = vsel %vm743, %v600, 0
        %v748 = vsel %vm743, %v670, 0
        %750 = vmatprep.subr.mxu0 0.0
        %751 = vmatpush1.xpose.msra.mxu0 %v748
        %752 = vmatprep.subr.mxu0 0.0
        %753 = vmatpush1.xpose.msra.mxu0 0.0
        %754 = vmatprep.subr.mxu0 0.0
        %755 = vmatpush1.xpose.msra.mxu0 0.0
        %756 = vmatprep.subr.mxu0 0.0
        %757 = vmatpush1.xpose.msra.mxu0 0.0
        %758 = vmatprep.subr.mxu0 0.0
        %759 = vmatpush1.xpose.msra.mxu0 0.0
        %760 = vmatprep.subr.mxu0 0.0
        %761 = vmatpush1.xpose.msra.mxu0 0.0
        %762 = vmatprep.subr.mxu0 0.0
        %763 = vmatpush1.xpose.msra.mxu0 0.0
        %764 = vmatprep.subr.mxu0 0.0
        %765 = vmatpush1.xpose.msra.mxu0 0.0
        %766 = vmatprep.subr.mxu0 0.0
        %767 = vmatpush1.xpose.msra.mxu0 0.0
        %768 = vmatprep.subr.mxu0 0.0
        %769 = vmatpush1.xpose.msra.mxu0 0.0
        %770 = vmatprep.subr.mxu0 0.0
        %771 = vmatpush1.xpose.msra.mxu0 0.0
        %772 = vmatprep.subr.mxu0 0.0
        %773 = vmatpush1.xpose.msra.mxu0 0.0
        %774 = vmatprep.subr.mxu0 0.0
        %775 = vmatpush1.xpose.msra.mxu0 0.0
        %776 = vmatprep.subr.mxu0 0.0
        %777 = vmatpush1.xpose.msra.mxu0 0.0
        %778 = vmatprep.subr.mxu0 0.0
        %779 = vmatpush1.xpose.msra.mxu0 0.0
        %780 = vmatprep.subr.mxu0 0.0
        %781 = vmatpush1.xpose.msra.mxu0 0.0
        %782 = vmatprep.subr.mxu0 0.0
        %783 = vmatpush1.xpose.msra.mxu0 0.0
        %784 = vmatprep.subr.mxu0 0.0
        %785 = vmatpush1.xpose.msra.mxu0 0.0
        %786 = vmatprep.subr.mxu0 0.0
        %787 = vmatpush1.xpose.msra.mxu0 0.0
        %788 = vmatprep.subr.mxu0 0.0
        %789 = vmatpush1.xpose.msra.mxu0 0.0
        %790 = vmatprep.subr.mxu0 0.0
        %791 = vmatpush1.xpose.msra.mxu0 0.0
        %792 = vmatprep.subr.mxu0 0.0
        %793 = vmatpush1.xpose.msra.mxu0 0.0
        %794 = vmatprep.subr.mxu0 0.0
        %795 = vmatpush1.xpose.msra.mxu0 0.0
        %796 = vmatprep.subr.mxu0 0.0
        %797 = vmatpush1.xpose.msra.mxu0 0.0
        %798 = vmatprep.subr.mxu0 0.0
        %799 = vmatpush1.xpose.msra.mxu0 0.0
        %800 = vmatprep.subr.mxu0 0.0
        %801 = vmatpush1.xpose.msra.mxu0 0.0
        %802 = vmatprep.subr.mxu0 0.0
        %803 = vmatpush1.xpose.msra.mxu0 0.0
        %804 = vmatprep.subr.mxu0 0.0
        %805 = vmatpush1.xpose.msra.mxu0 0.0
        %806 = vmatprep.subr.mxu0 0.0
        %807 = vmatpush1.xpose.msra.mxu0 0.0
        %808 = vmatprep.subr.mxu0 0.0
        %809 = vmatpush1.xpose.msra.mxu0 0.0
        %810 = vmatprep.subr.mxu0 0.0
        %811 = vmatpush1.xpose.msra.mxu0 0.0
        %812 = vmatprep.subr.mxu0 0.0
        %813 = vmatpush1.xpose.msra.mxu0 0.0
        %814 = vmatprep.mubr.f32.mxu0 0.0
        %815 = vmatmul.mubr.f32.gmra.mrb[0].mxu0 %v745
        %v816 = vpop.f32.mrb[0].mxu0
        %v817 = vadd.f32 0.0, %v816
        %v818 = vpop.f32.mrb[0].mxu0
        %819 = vdwg.mxu0
        %v820 = vmul.f32 %v817, 0.17677669
        %v821 = vsel %vm743, %v820, -inf
        %822 = vmax.xlane.f32.xlu0 %v821
        %v823 = vpop.xlane.xlu0 %822
        %v824 = vsub.f32 %v820, %v823
        %v825 = vmul.f32 %v824, 1.442695
        %v826 = vpow.pop %v825
        %v827 = vsel %vm743, %v826, 0.0
        %828 = vadd.xlane.f32.xlu0 %v827
        %v829 = vpop.xlane.xlu0 %828
        %v830 = vrcp.pop %v829
        %v831 = vmul.f32 %v826, %v830
        %v833 = vsel %vm743, %v831, 0
        %835 = vmatprep.subr.mxu0 0.0
        %836 = vmatpush1.msra.mxu0 %v740
        %837 = vmatprep.subr.mxu0 0.0
        %838 = vmatpush1.msra.mxu0 0.0
        %839 = vmatprep.subr.mxu0 0.0
        %840 = vmatpush1.msra.mxu0 0.0
        %841 = vmatprep.subr.mxu0 0.0
        %842 = vmatpush1.msra.mxu0 0.0
        %843 = vmatprep.subr.mxu0 0.0
        %844 = vmatpush1.msra.mxu0 0.0
        %845 = vmatprep.subr.mxu0 0.0
        %846 = vmatpush1.msra.mxu0 0.0
        %847 = vmatprep.subr.mxu0 0.0
        %848 = vmatpush1.msra.mxu0 0.0
        %849 = vmatprep.subr.mxu0 0.0
        %850 = vmatpush1.msra.mxu0 0.0
        %851 = vmatprep.subr.mxu0 0.0
        %852 = vmatpush1.msra.mxu0 0.0
        %853 = vmatprep.subr.mxu0 0.0
        %854 = vmatpush1.msra.mxu0 0.0
        %855 = vmatprep.subr.mxu0 0.0
        %856 = vmatpush1.msra.mxu0 0.0
        %857 = vmatprep.subr.mxu0 0.0
        %858 = vmatpush1.msra.mxu0 0.0
        %859 = vmatprep.subr.mxu0 0.0
        %860 = vmatpush1.msra.mxu0 0.0
        %861 = vmatprep.subr.mxu0 0.0
        %862 = vmatpush1.msra.mxu0 0.0
        %863 = vmatprep.subr.mxu0 0.0
        %864 = vmatpush1.msra.mxu0 0.0
        %865 = vmatprep.subr.mxu0 0.0
        %866 = vmatpush1.msra.mxu0 0.0
        %867 = vmatprep.subr.mxu0 0.0
        %868 = vmatpush1.msra.mxu0 0.0
        %869 = vmatprep.subr.mxu0 0.0
        %870 = vmatpush1.msra.mxu0 0.0
        %871 = vmatprep.subr.mxu0 0.0
        %872 = vmatpush1.msra.mxu0 0.0
        %873 = vmatprep.subr.mxu0 0.0
        %874 = vmatpush1.msra.mxu0 0.0
        %875 = vmatprep.subr.mxu0 0.0
        %876 = vmatpush1.msra.mxu0 0.0
        %877 = vmatprep.subr.mxu0 0.0
        %878 = vmatpush1.msra.mxu0 0.0
        %879 = vmatprep.subr.mxu0 0.0
        %880 = vmatpush1.msra.mxu0 0.0
        %881 = vmatprep.subr.mxu0 0.0
        %882 = vmatpush1.msra.mxu0 0.0
        %883 = vmatprep.subr.mxu0 0.0
        %884 = vmatpush1.msra.mxu0 0.0
        %885 = vmatprep.subr.mxu0 0.0
        %886 = vmatpush1.msra.mxu0 0.0
        %887 = vmatprep.subr.mxu0 0.0
        %888 = vmatpush1.msra.mxu0 0.0
        %889 = vmatprep.subr.mxu0 0.0
        %890 = vmatpush1.msra.mxu0 0.0
        %891 = vmatprep.subr.mxu0 0.0
        %892 = vmatpush1.msra.mxu0 0.0
        %893 = vmatprep.subr.mxu0 0.0
        %894 = vmatpush1.msra.mxu0 0.0
        %895 = vmatprep.subr.mxu0 0.0
        %896 = vmatpush1.msra.mxu0 0.0
        %897 = vmatprep.subr.mxu0 0.0
        %898 = vmatpush1.msra.mxu0 0.0
        %899 = vmatprep.mubr.f32.mxu0 0.0
        %900 = vmatmul.mubr.f32.gmra.mrb[0].mxu0 %v833
        %v901 = vpop.f32.mrb[0].mxu0
        %v902 = vadd.f32 0.0, %v901
        %v903 = vpop.f32.mrb[0].mxu0
        %904 = vdwg.mxu0
        %905 = vrot.lane.b32.xlu0 %v600, 120
        %v906 = vpop.permute.xlu0 %905
        %907 = vrot.lane.b32.xlu0 %v670, 120
        %v908 = vpop.permute.xlu0 %907
        %v909 = vsel %vm743, %v906, 0
        %v911 = vsel %vm743, %v908, 0
        %913 = vmatprep.subr.mxu0 0.0
        %914 = vmatpush1.xpose.msra.mxu0 %v911
        %915 = vmatprep.subr.mxu0 0.0
        %916 = vmatpush1.xpose.msra.mxu0 0.0
        %917 = vmatprep.subr.mxu0 0.0
        %918 = vmatpush1.xpose.msra.mxu0 0.0
        %919 = vmatprep.subr.mxu0 0.0
        %920 = vmatpush1.xpose.msra.mxu0 0.0
        %921 = vmatprep.subr.mxu0 0.0
        %922 = vmatpush1.xpose.msra.mxu0 0.0
        %923 = vmatprep.subr.mxu0 0.0
        %924 = vmatpush1.xpose.msra.mxu0 0.0
        %925 = vmatprep.subr.mxu0 0.0
        %926 = vmatpush1.xpose.msra.mxu0 0.0
        %927 = vmatprep.subr.mxu0 0.0
        %928 = vmatpush1.xpose.msra.mxu0 0.0
        %929 = vmatprep.subr.mxu0 0.0
        %930 = vmatpush1.xpose.msra.mxu0 0.0
        %931 = vmatprep.subr.mxu0 0.0
        %932 = vmatpush1.xpose.msra.mxu0 0.0
        %933 = vmatprep.subr.mxu0 0.0
        %934 = vmatpush1.xpose.msra.mxu0 0.0
        %935 = vmatprep.subr.mxu0 0.0
        %936 = vmatpush1.xpose.msra.mxu0 0.0
        %937 = vmatprep.subr.mxu0 0.0
        %938 = vmatpush1.xpose.msra.mxu0 0.0
        %939 = vmatprep.subr.mxu0 0.0
        %940 = vmatpush1.xpose.msra.mxu0 0.0
        %941 = vmatprep.subr.mxu0 0.0
        %942 = vmatpush1.xpose.msra.mxu0 0.0
        %943 = vmatprep.subr.mxu0 0.0
        %944 = vmatpush1.xpose.msra.mxu0 0.0
        %945 = vmatprep.subr.mxu0 0.0
        %946 = vmatpush1.xpose.msra.mxu0 0.0
        %947 = vmatprep.subr.mxu0 0.0
        %948 = vmatpush1.xpose.msra.mxu0 0.0
        %949 = vmatprep.subr.mxu0 0.0
        %950 = vmatpush1.xpose.msra.mxu0 0.0
        %951 = vmatprep.subr.mxu0 0.0
        %952 = vmatpush1.xpose.msra.mxu0 0.0
        %953 = vmatprep.subr.mxu0 0.0
        %954 = vmatpush1.xpose.msra.mxu0 0.0
        %955 = vmatprep.subr.mxu0 0.0
        %956 = vmatpush1.xpose.msra.mxu0 0.0
        %957 = vmatprep.subr.mxu0 0.0
        %958 = vmatpush1.xpose.msra.mxu0 0.0
        %959 = vmatprep.subr.mxu0 0.0
        %960 = vmatpush1.xpose.msra.mxu0 0.0
        %961 = vmatprep.subr.mxu0 0.0
        %962 = vmatpush1.xpose.msra.mxu0 0.0
        %963 = vmatprep.subr.mxu0 0.0
        %964 = vmatpush1.xpose.msra.mxu0 0.0
        %965 = vmatprep.subr.mxu0 0.0
        %966 = vmatpush1.xpose.msra.mxu0 0.0
        %967 = vmatprep.subr.mxu0 0.0
        %968 = vmatpush1.xpose.msra.mxu0 0.0
        %969 = vmatprep.subr.mxu0 0.0
        %970 = vmatpush1.xpose.msra.mxu0 0.0
        %971 = vmatprep.subr.mxu0 0.0
        %972 = vmatpush1.xpose.msra.mxu0 0.0
        %973 = vmatprep.subr.mxu0 0.0
        %974 = vmatpush1.xpose.msra.mxu0 0.0
        %975 = vmatprep.subr.mxu0 0.0
        %976 = vmatpush1.xpose.msra.mxu0 0.0
        %977 = vmatprep.mubr.f32.mxu0 0.0
        %978 = vmatmul.mubr.f32.gmra.mrb[0].mxu0 %v909
        %v979 = vpop.f32.mrb[0].mxu0
        %v980 = vadd.f32 0.0, %v979
        %v981 = vpop.f32.mrb[0].mxu0
        %982 = vdwg.mxu0
        %v983 = vmul.f32 %v980, 0.17677669
        %v984 = vsel %vm743, %v983, -inf
        %985 = vmax.xlane.f32.xlu0 %v984
        %v986 = vpop.xlane.xlu0 %985
        %v987 = vsub.f32 %v983, %v986
        %v988 = vmul.f32 %v987, 1.442695
        %v989 = vpow.pop %v988
        %v990 = vsel %vm743, %v989, 0.0
        %991 = vadd.xlane.f32.xlu0 %v990
        %v992 = vpop.xlane.xlu0 %991
        %v993 = vrcp.pop %v992
        %v994 = vmul.f32 %v989, %v993
        %996 = vrot.lane.b32.xlu0 %v740, 120
        %v997 = vpop.permute.xlu0 %996
        %v1000 = vsel %vm743, %v994, 0
        %1002 = vmatprep.subr.mxu0 0.0
        %1003 = vmatpush1.msra.mxu0 %v997
        %1004 = vmatprep.subr.mxu0 0.0
        %1005 = vmatpush1.msra.mxu0 0.0
        %1006 = vmatprep.subr.mxu0 0.0
        %1007 = vmatpush1.msra.mxu0 0.0
        %1008 = vmatprep.subr.mxu0 0.0
        %1009 = vmatpush1.msra.mxu0 0.0
        %1010 = vmatprep.subr.mxu0 0.0
        %1011 = vmatpush1.msra.mxu0 0.0
        %1012 = vmatprep.subr.mxu0 0.0
        %1013 = vmatpush1.msra.mxu0 0.0
        %1014 = vmatprep.subr.mxu0 0.0
        %1015 = vmatpush1.msra.mxu0 0.0
        %1016 = vmatprep.subr.mxu0 0.0
        %1017 = vmatpush1.msra.mxu0 0.0
        %1018 = vmatprep.subr.mxu0 0.0
        %1019 = vmatpush1.msra.mxu0 0.0
        %1020 = vmatprep.subr.mxu0 0.0
        %1021 = vmatpush1.msra.mxu0 0.0
        %1022 = vmatprep.subr.mxu0 0.0
        %1023 = vmatpush1.msra.mxu0 0.0
        %1024 = vmatprep.subr.mxu0 0.0
        %1025 = vmatpush1.msra.mxu0 0.0
        %1026 = vmatprep.subr.mxu0 0.0
        %1027 = vmatpush1.msra.mxu0 0.0
        %1028 = vmatprep.subr.mxu0 0.0
        %1029 = vmatpush1.msra.mxu0 0.0
        %1030 = vmatprep.subr.mxu0 0.0
        %1031 = vmatpush1.msra.mxu0 0.0
        %1032 = vmatprep.subr.mxu0 0.0
        %1033 = vmatpush1.msra.mxu0 0.0
        %1034 = vmatprep.subr.mxu0 0.0
        %1035 = vmatpush1.msra.mxu0 0.0
        %1036 = vmatprep.subr.mxu0 0.0
        %1037 = vmatpush1.msra.mxu0 0.0
        %1038 = vmatprep.subr.mxu0 0.0
        %1039 = vmatpush1.msra.mxu0 0.0
        %1040 = vmatprep.subr.mxu0 0.0
        %1041 = vmatpush1.msra.mxu0 0.0
        %1042 = vmatprep.subr.mxu0 0.0
        %1043 = vmatpush1.msra.mxu0 0.0
        %1044 = vmatprep.subr.mxu0 0.0
        %1045 = vmatpush1.msra.mxu0 0.0
        %1046 = vmatprep.subr.mxu0 0.0
        %1047 = vmatpush1.msra.mxu0 0.0
        %1048 = vmatprep.subr.mxu0 0.0
        %1049 = vmatpush1.msra.mxu0 0.0
        %1050 = vmatprep.subr.mxu0 0.0
        %1051 = vmatpush1.msra.mxu0 0.0
        %1052 = vmatprep.subr.mxu0 0.0
        %1053 = vmatpush1.msra.mxu0 0.0
        %1054 = vmatprep.subr.mxu0 0.0
        %1055 = vmatpush1.msra.mxu0 0.0
        %1056 = vmatprep.subr.mxu0 0.0
        %1057 = vmatpush1.msra.mxu0 0.0
        %1058 = vmatprep.subr.mxu0 0.0
        %1059 = vmatpush1.msra.mxu0 0.0
        %1060 = vmatprep.subr.mxu0 0.0
        %1061 = vmatpush1.msra.mxu0 0.0
        %1062 = vmatprep.subr.mxu0 0.0
        %1063 = vmatpush1.msra.mxu0 0.0
        %1064 = vmatprep.subr.mxu0 0.0
        %1065 = vmatpush1.msra.mxu0 0.0
        %1066 = vmatprep.mubr.f32.mxu0 0.0
        %1067 = vmatmul.mubr.f32.gmra.mrb[0].mxu0 %v1000
        %v1068 = vpop.f32.mrb[0].mxu0
        %v1069 = vadd.f32 0.0, %v1068
        %v1070 = vpop.f32.mrb[0].mxu0
        %1071 = vdwg.mxu0
        %1072 = vrot.lane.b32.xlu0 %v600, 112
        %v1073 = vpop.permute.xlu0 %1072
        %1074 = vrot.lane.b32.xlu0 %v670, 112
        %v1075 = vpop.permute.xlu0 %1074
        %v1076 = vsel %vm743, %v1073, 0
        %v1078 = vsel %vm743, %v1075, 0
        %1080 = vmatprep.subr.mxu0 0.0
        %1081 = vmatpush1.xpose.msra.mxu0 %v1078
        %1082 = vmatprep.subr.mxu0 0.0
        %1083 = vmatpush1.xpose.msra.mxu0 0.0
        %1084 = vmatprep.subr.mxu0 0.0
        %1085 = vmatpush1.xpose.msra.mxu0 0.0
        %1086 = vmatprep.subr.mxu0 0.0
        %1087 = vmatpush1.xpose.msra.mxu0 0.0
        %1088 = vmatprep.subr.mxu0 0.0
        %1089 = vmatpush1.xpose.msra.mxu0 0.0
        %1090 = vmatprep.subr.mxu0 0.0
        %1091 = vmatpush1.xpose.msra.mxu0 0.0
        %1092 = vmatprep.subr.mxu0 0.0
        %1093 = vmatpush1.xpose.msra.mxu0 0.0
        %1094 = vmatprep.subr.mxu0 0.0
        %1095 = vmatpush1.xpose.msra.mxu0 0.0
        %1096 = vmatprep.subr.mxu0 0.0
        %1097 = vmatpush1.xpose.msra.mxu0 0.0
        %1098 = vmatprep.subr.mxu0 0.0
        %1099 = vmatpush1.xpose.msra.mxu0 0.0
        %1100 = vmatprep.subr.mxu0 0.0
        %1101 = vmatpush1.xpose.msra.mxu0 0.0
        %1102 = vmatprep.subr.mxu0 0.0
        %1103 = vmatpush1.xpose.msra.mxu0 0.0
        %1104 = vmatprep.subr.mxu0 0.0
        %1105 = vmatpush1.xpose.msra.mxu0 0.0
        %1106 = vmatprep.subr.mxu0 0.0
        %1107 = vmatpush1.xpose.msra.mxu0 0.0
        %1108 = vmatprep.subr.mxu0 0.0
        %1109 = vmatpush1.xpose.msra.mxu0 0.0
        %1110 = vmatprep.subr.mxu0 0.0
        %1111 = vmatpush1.xpose.msra.mxu0 0.0
        %1112 = vmatprep.subr.mxu0 0.0
        %1113 = vmatpush1.xpose.msra.mxu0 0.0
        %1114 = vmatprep.subr.mxu0 0.0
        %1115 = vmatpush1.xpose.msra.mxu0 0.0
        %1116 = vmatprep.subr.mxu0 0.0
        %1117 = vmatpush1.xpose.msra.mxu0 0.0
        %1118 = vmatprep.subr.mxu0 0.0
        %1119 = vmatpush1.xpose.msra.mxu0 0.0
        %1120 = vmatprep.subr.mxu0 0.0
        %1121 = vmatpush1.xpose.msra.mxu0 0.0
        %1122 = vmatprep.subr.mxu0 0.0
        %1123 = vmatpush1.xpose.msra.mxu0 0.0
        %1124 = vmatprep.subr.mxu0 0.0
        %1125 = vmatpush1.xpose.msra.mxu0 0.0
        %1126 = vmatprep.subr.mxu0 0.0
        %1127 = vmatpush1.xpose.msra.mxu0 0.0
        %1128 = vmatprep.subr.mxu0 0.0
        %1129 = vmatpush1.xpose.msra.mxu0 0.0
        %1130 = vmatprep.subr.mxu0 0.0
        %1131 = vmatpush1.xpose.msra.mxu0 0.0
        %1132 = vmatprep.subr.mxu0 0.0
        %1133 = vmatpush1.xpose.msra.mxu0 0.0
        %1134 = vmatprep.subr.mxu0 0.0
        %1135 = vmatpush1.xpose.msra.mxu0 0.0
        %1136 = vmatprep.subr.mxu0 0.0
        %1137 = vmatpush1.xpose.msra.mxu0 0.0
        %1138 = vmatprep.subr.mxu0 0.0
        %1139 = vmatpush1.xpose.msra.mxu0 0.0
        %1140 = vmatprep.subr.mxu0 0.0
        %1141 = vmatpush1.xpose.msra.mxu0 0.0
        %1142 = vmatprep.subr.mxu0 0.0
        %1143 = vmatpush1.xpose.msra.mxu0 0.0
        %1144 = vmatprep.mubr.f32.mxu0 0.0
        %1145 = vmatmul.mubr.f32.gmra.mrb[0].mxu0 %v1076
        %v1146 = vpop.f32.mrb[0].mxu0
        %v1147 = vadd.f32 0.0, %v1146
        %v1148 = vpop.f32.mrb[0].mxu0
        %1149 = vdwg.mxu0
        %v1150 = vmul.f32 %v1147, 0.17677669
        %v1151 = vsel %vm743, %v1150, -inf
        %1152 = vmax.xlane.f32.xlu0 %v1151
        %v1153 = vpop.xlane.xlu0 %1152
        %v1154 = vsub.f32 %v1150, %v1153
        %v1155 = vmul.f32 %v1154, 1.442695
        %v1156 = vpow.pop %v1155
        %v1157 = vsel %vm743, %v1156, 0.0
        %1158 = vadd.xlane.f32.xlu0 %v1157
        %v1159 = vpop.xlane.xlu0 %1158
        %v1160 = vrcp.pop %v1159
        %v1161 = vmul.f32 %v1156, %v1160
        %1162 = vrot.lane.b32.xlu0 %v740, 112
        %v1163 = vpop.permute.xlu0 %1162
        %v1166 = vsel %vm743, %v1161, 0
        %1168 = vmatprep.subr.mxu0 0.0
        %1169 = vmatpush1.msra.mxu0 %v1163
        %1170 = vmatprep.subr.mxu0 0.0
        %1171 = vmatpush1.msra.mxu0 0.0
        %1172 = vmatprep.subr.mxu0 0.0
        %1173 = vmatpush1.msra.mxu0 0.0
        %1174 = vmatprep.subr.mxu0 0.0
        %1175 = vmatpush1.msra.mxu0 0.0
        %1176 = vmatprep.subr.mxu0 0.0
        %1177 = vmatpush1.msra.mxu0 0.0
        %1178 = vmatprep.subr.mxu0 0.0
        %1179 = vmatpush1.msra.mxu0 0.0
        %1180 = vmatprep.subr.mxu0 0.0
        %1181 = vmatpush1.msra.mxu0 0.0
        %1182 = vmatprep.subr.mxu0 0.0
        %1183 = vmatpush1.msra.mxu0 0.0
        %1184 = vmatprep.subr.mxu0 0.0
        %1185 = vmatpush1.msra.mxu0 0.0
        %1186 = vmatprep.subr.mxu0 0.0
        %1187 = vmatpush1.msra.mxu0 0.0
        %1188 = vmatprep.subr.mxu0 0.0
        %1189 = vmatpush1.msra.mxu0 0.0
        %1190 = vmatprep.subr.mxu0 0.0
        %1191 = vmatpush1.msra.mxu0 0.0
        %1192 = vmatprep.subr.mxu0 0.0
        %1193 = vmatpush1.msra.mxu0 0.0
        %1194 = vmatprep.subr.mxu0 0.0
        %1195 = vmatpush1.msra.mxu0 0.0
        %1196 = vmatprep.subr.mxu0 0.0
        %1197 = vmatpush1.msra.mxu0 0.0
        %1198 = vmatprep.subr.mxu0 0.0
        %1199 = vmatpush1.msra.mxu0 0.0
        %1200 = vmatprep.subr.mxu0 0.0
        %1201 = vmatpush1.msra.mxu0 0.0
        %1202 = vmatprep.subr.mxu0 0.0
        %1203 = vmatpush1.msra.mxu0 0.0
        %1204 = vmatprep.subr.mxu0 0.0
        %1205 = vmatpush1.msra.mxu0 0.0
        %1206 = vmatprep.subr.mxu0 0.0
        %1207 = vmatpush1.msra.mxu0 0.0
        %1208 = vmatprep.subr.mxu0 0.0
        %1209 = vmatpush1.msra.mxu0 0.0
        %1210 = vmatprep.subr.mxu0 0.0
        %1211 = vmatpush1.msra.mxu0 0.0
        %1212 = vmatprep.subr.mxu0 0.0
        %1213 = vmatpush1.msra.mxu0 0.0
        %1214 = vmatprep.subr.mxu0 0.0
        %1215 = vmatpush1.msra.mxu0 0.0
        %1216 = vmatprep.subr.mxu0 0.0
        %1217 = vmatpush1.msra.mxu0 0.0
        %1218 = vmatprep.subr.mxu0 0.0
        %1219 = vmatpush1.msra.mxu0 0.0
        %1220 = vmatprep.subr.mxu0 0.0
        %1221 = vmatpush1.msra.mxu0 0.0
        %1222 = vmatprep.subr.mxu0 0.0
        %1223 = vmatpush1.msra.mxu0 0.0
        %1224 = vmatprep.subr.mxu0 0.0
        %1225 = vmatpush1.msra.mxu0 0.0
        %1226 = vmatprep.subr.mxu0 0.0
        %1227 = vmatpush1.msra.mxu0 0.0
        %1228 = vmatprep.subr.mxu0 0.0
        %1229 = vmatpush1.msra.mxu0 0.0
        %1230 = vmatprep.subr.mxu0 0.0
        %1231 = vmatpush1.msra.mxu0 0.0
        %1232 = vmatprep.mubr.f32.mxu0 0.0
        %1233 = vmatmul.mubr.f32.gmra.mrb[0].mxu0 %v1166
        %v1234 = vpop.f32.mrb[0].mxu0
        %v1235 = vadd.f32 0.0, %v1234
        %v1236 = vpop.f32.mrb[0].mxu0
        %1237 = vdwg.mxu0
        %1238 = vrot.lane.b32.xlu0 %v600, 104
        %v1239 = vpop.permute.xlu0 %1238
        %1240 = vrot.lane.b32.xlu0 %v670, 104
        %v1241 = vpop.permute.xlu0 %1240
        %v1242 = vsel %vm743, %v1239, 0
        %v1244 = vsel %vm743, %v1241, 0
        %1246 = vmatprep.subr.mxu0 0.0
        %1247 = vmatpush1.xpose.msra.mxu0 %v1244
        %1248 = vmatprep.subr.mxu0 0.0
        %1249 = vmatpush1.xpose.msra.mxu0 0.0
        %1250 = vmatprep.subr.mxu0 0.0
        %1251 = vmatpush1.xpose.msra.mxu0 0.0
        %1252 = vmatprep.subr.mxu0 0.0
        %1253 = vmatpush1.xpose.msra.mxu0 0.0
        %1254 = vmatprep.subr.mxu0 0.0
        %1255 = vmatpush1.xpose.msra.mxu0 0.0
        %1256 = vmatprep.subr.mxu0 0.0
        %1257 = vmatpush1.xpose.msra.mxu0 0.0
        %1258 = vmatprep.subr.mxu0 0.0
        %1259 = vmatpush1.xpose.msra.mxu0 0.0
        %1260 = vmatprep.subr.mxu0 0.0
        %1261 = vmatpush1.xpose.msra.mxu0 0.0
        %1262 = vmatprep.subr.mxu0 0.0
        %1263 = vmatpush1.xpose.msra.mxu0 0.0
        %1264 = vmatprep.subr.mxu0 0.0
        %1265 = vmatpush1.xpose.msra.mxu0 0.0
        %1266 = vmatprep.subr.mxu0 0.0
        %1267 = vmatpush1.xpose.msra.mxu0 0.0
        %1268 = vmatprep.subr.mxu0 0.0
        %1269 = vmatpush1.xpose.msra.mxu0 0.0
        %1270 = vmatprep.subr.mxu0 0.0
        %1271 = vmatpush1.xpose.msra.mxu0 0.0
        %1272 = vmatprep.subr.mxu0 0.0
        %1273 = vmatpush1.xpose.msra.mxu0 0.0
        %1274 = vmatprep.subr.mxu0 0.0
        %1275 = vmatpush1.xpose.msra.mxu0 0.0
        %1276 = vmatprep.subr.mxu0 0.0
        %1277 = vmatpush1.xpose.msra.mxu0 0.0
        %1278 = vmatprep.subr.mxu0 0.0
        %1279 = vmatpush1.xpose.msra.mxu0 0.0
        %1280 = vmatprep.subr.mxu0 0.0
        %1281 = vmatpush1.xpose.msra.mxu0 0.0
        %1282 = vmatprep.subr.mxu0 0.0
        %1283 = vmatpush1.xpose.msra.mxu0 0.0
        %1284 = vmatprep.subr.mxu0 0.0
        %1285 = vmatpush1.xpose.msra.mxu0 0.0
        %1286 = vmatprep.subr.mxu0 0.0
        %1287 = vmatpush1.xpose.msra.mxu0 0.0
        %1288 = vmatprep.subr.mxu0 0.0
        %1289 = vmatpush1.xpose.msra.mxu0 0.0
        %1290 = vmatprep.subr.mxu0 0.0
        %1291 = vmatpush1.xpose.msra.mxu0 0.0
        %1292 = vmatprep.subr.mxu0 0.0
        %1293 = vmatpush1.xpose.msra.mxu0 0.0
        %1294 = vmatprep.subr.mxu0 0.0
        %1295 = vmatpush1.xpose.msra.mxu0 0.0
        %1296 = vmatprep.subr.mxu0 0.0
        %1297 = vmatpush1.xpose.msra.mxu0 0.0
        %1298 = vmatprep.subr.mxu0 0.0
        %1299 = vmatpush1.xpose.msra.mxu0 0.0
        %1300 = vmatprep.subr.mxu0 0.0
        %1301 = vmatpush1.xpose.msra.mxu0 0.0
        %1302 = vmatprep.subr.mxu0 0.0
        %1303 = vmatpush1.xpose.msra.mxu0 0.0
        %1304 = vmatprep.subr.mxu0 0.0
        %1305 = vmatpush1.xpose.msra.mxu0 0.0
        %1306 = vmatprep.subr.mxu0 0.0
        %1307 = vmatpush1.xpose.msra.mxu0 0.0
        %1308 = vmatprep.subr.mxu0 0.0
        %1309 = vmatpush1.xpose.msra.mxu0 0.0
        %1310 = vmatprep.mubr.f32.mxu0 0.0
        %1311 = vmatmul.mubr.f32.gmra.mrb[0].mxu0 %v1242
        %v1312 = vpop.f32.mrb[0].mxu0
        %v1313 = vadd.f32 0.0, %v1312
        %v1314 = vpop.f32.mrb[0].mxu0
        %1315 = vdwg.mxu0
        %v1316 = vmul.f32 %v1313, 0.17677669
        %v1317 = vsel %vm743, %v1316, -inf
        %1318 = vmax.xlane.f32.xlu0 %v1317
        %v1319 = vpop.xlane.xlu0 %1318
        %v1320 = vsub.f32 %v1316, %v1319
        %v1321 = vmul.f32 %v1320, 1.442695
        %v1322 = vpow.pop %v1321
        %v1323 = vsel %vm743, %v1322, 0.0
        %1324 = vadd.xlane.f32.xlu0 %v1323
        %v1325 = vpop.xlane.xlu0 %1324
        %v1326 = vrcp.pop %v1325
        %v1327 = vmul.f32 %v1322, %v1326
        %1328 = vrot.lane.b32.xlu0 %v740, 104
        %v1329 = vpop.permute.xlu0 %1328
        %v1332 = vsel %vm743, %v1327, 0
        %1334 = vmatprep.subr.mxu0 0.0
        %1335 = vmatpush1.msra.mxu0 %v1329
        %1336 = vmatprep.subr.mxu0 0.0
        %1337 = vmatpush1.msra.mxu0 0.0
        %1338 = vmatprep.subr.mxu0 0.0
        %1339 = vmatpush1.msra.mxu0 0.0
        %1340 = vmatprep.subr.mxu0 0.0
        %1341 = vmatpush1.msra.mxu0 0.0
        %1342 = vmatprep.subr.mxu0 0.0
        %1343 = vmatpush1.msra.mxu0 0.0
        %1344 = vmatprep.subr.mxu0 0.0
        %1345 = vmatpush1.msra.mxu0 0.0
        %1346 = vmatprep.subr.mxu0 0.0
        %1347 = vmatpush1.msra.mxu0 0.0
        %1348 = vmatprep.subr.mxu0 0.0
        %1349 = vmatpush1.msra.mxu0 0.0
        %1350 = vmatprep.subr.mxu0 0.0
        %1351 = vmatpush1.msra.mxu0 0.0
        %1352 = vmatprep.subr.mxu0 0.0
        %1353 = vmatpush1.msra.mxu0 0.0
        %1354 = vmatprep.subr.mxu0 0.0
        %1355 = vmatpush1.msra.mxu0 0.0
        %1356 = vmatprep.subr.mxu0 0.0
        %1357 = vmatpush1.msra.mxu0 0.0
        %1358 = vmatprep.subr.mxu0 0.0
        %1359 = vmatpush1.msra.mxu0 0.0
        %1360 = vmatprep.subr.mxu0 0.0
        %1361 = vmatpush1.msra.mxu0 0.0
        %1362 = vmatprep.subr.mxu0 0.0
        %1363 = vmatpush1.msra.mxu0 0.0
        %1364 = vmatprep.subr.mxu0 0.0
        %1365 = vmatpush1.msra.mxu0 0.0
        %1366 = vmatprep.subr.mxu0 0.0
        %1367 = vmatpush1.msra.mxu0 0.0
        %1368 = vmatprep.subr.mxu0 0.0
        %1369 = vmatpush1.msra.mxu0 0.0
        %1370 = vmatprep.subr.mxu0 0.0
        %1371 = vmatpush1.msra.mxu0 0.0
        %1372 = vmatprep.subr.mxu0 0.0
        %1373 = vmatpush1.msra.mxu0 0.0
        %1374 = vmatprep.subr.mxu0 0.0
        %1375 = vmatpush1.msra.mxu0 0.0
        %1376 = vmatprep.subr.mxu0 0.0
        %1377 = vmatpush1.msra.mxu0 0.0
        %1378 = vmatprep.subr.mxu0 0.0
        %1379 = vmatpush1.msra.mxu0 0.0
        %1380 = vmatprep.subr.mxu0 0.0
        %1381 = vmatpush1.msra.mxu0 0.0
        %1382 = vmatprep.subr.mxu0 0.0
        %1383 = vmatpush1.msra.mxu0 0.0
        %1384 = vmatprep.subr.mxu0 0.0
        %1385 = vmatpush1.msra.mxu0 0.0
        %1386 = vmatprep.subr.mxu0 0.0
        %1387 = vmatpush1.msra.mxu0 0.0
        %1388 = vmatprep.subr.mxu0 0.0
        %1389 = vmatpush1.msra.mxu0 0.0
        %1390 = vmatprep.subr.mxu0 0.0
        %1391 = vmatpush1.msra.mxu0 0.0
        %1392 = vmatprep.subr.mxu0 0.0
        %1393 = vmatpush1.msra.mxu0 0.0
        %1394 = vmatprep.subr.mxu0 0.0
        %1395 = vmatpush1.msra.mxu0 0.0
        %1396 = vmatprep.subr.mxu0 0.0
        %1397 = vmatpush1.msra.mxu0 0.0
        %1398 = vmatprep.mubr.f32.mxu0 0.0
        %1399 = vmatmul.mubr.f32.gmra.mrb[0].mxu0 %v1332
        %v1400 = vpop.f32.mrb[0].mxu0
        %v1401 = vadd.f32 0.0, %v1400
        %v1402 = vpop.f32.mrb[0].mxu0
        %1403 = vdwg.mxu0
        %1405 = vrot.lane.b32.xlu0 %v1069, 8
        %v1406 = vpop.permute.xlu0 %1405
        %1409 = vrot.lane.b32.xlu0 %v1235, 16
        %v1410 = vpop.permute.xlu0 %1409
        %1413 = vrot.lane.b32.xlu0 %v1401, 24
        %v1414 = vpop.permute.xlu0 %1413
        %v1416 = vsel %vm743, %v902, %v1406
        %vm1417 = vcmask 130048
        %v1418 = vsel %vm1417, %v1416, %v1410
        %vm1419 = vcmask 195584
        %v1420 = vsel %vm1419, %v1418, %v1414
        %vm1421 = vcmask 261120
        %v1423 = vsel %vm1421, %v1420, 0
        %1425 = vmatprep.subr.mxu0 0.0
        %1426 = vmatpush1.msra.mxu0 %v529
        %1427 = vmatprep.subr.mxu0 0.0
        %1428 = vmatpush1.msra.mxu0 %v530
        %1429 = vmatprep.subr.mxu0 0.0
        %1430 = vmatpush1.msra.mxu0 %v531
        %1431 = vmatprep.subr.mxu0 0.0
        %1432 = vmatpush1.msra.mxu0 %v532
        %1433 = vmatprep.subr.mxu0 0.0
        %1434 = vmatpush1.msra.mxu0 0.0
        %1435 = vmatprep.subr.mxu0 0.0
        %1436 = vmatpush1.msra.mxu0 0.0
        %1437 = vmatprep.subr.mxu0 0.0
        %1438 = vmatpush1.msra.mxu0 0.0
        %1439 = vmatprep.subr.mxu0 0.0
        %1440 = vmatpush1.msra.mxu0 0.0
        %1441 = vmatprep.subr.mxu0 0.0
        %1442 = vmatpush1.msra.mxu0 0.0
        %1443 = vmatprep.subr.mxu0 0.0
        %1444 = vmatpush1.msra.mxu0 0.0
        %1445 = vmatprep.subr.mxu0 0.0
        %1446 = vmatpush1.msra.mxu0 0.0
        %1447 = vmatprep.subr.mxu0 0.0
        %1448 = vmatpush1.msra.mxu0 0.0
        %1449 = vmatprep.subr.mxu0 0.0
        %1450 = vmatpush1.msra.mxu0 0.0
        %1451 = vmatprep.subr.mxu0 0.0
        %1452 = vmatpush1.msra.mxu0 0.0
        %1453 = vmatprep.subr.mxu0 0.0
        %1454 = vmatpush1.msra.mxu0 0.0
        %1455 = vmatprep.subr.mxu0 0.0
        %1456 = vmatpush1.msra.mxu0 0.0
        %1457 = vmatprep.subr.mxu0 0.0
        %1458 = vmatpush1.msra.mxu0 0.0
        %1459 = vmatprep.subr.mxu0 0.0
        %1460 = vmatpush1.msra.mxu0 0.0
        %1461 = vmatprep.subr.mxu0 0.0
        %1462 = vmatpush1.msra.mxu0 0.0
        %1463 = vmatprep.subr.mxu0 0.0
        %1464 = vmatpush1.msra.mxu0 0.0
        %1465 = vmatprep.subr.mxu0 0.0
        %1466 = vmatpush1.msra.mxu0 0.0
        %1467 = vmatprep.subr.mxu0 0.0
        %1468 = vmatpush1.msra.mxu0 0.0
        %1469 = vmatprep.subr.mxu0 0.0
        %1470 = vmatpush1.msra.mxu0 0.0
        %1471 = vmatprep.subr.mxu0 0.0
        %1472 = vmatpush1.msra.mxu0 0.0
        %1473 = vmatprep.subr.mxu0 0.0
        %1474 = vmatpush1.msra.mxu0 0.0
        %1475 = vmatprep.subr.mxu0 0.0
        %1476 = vmatpush1.msra.mxu0 0.0
        %1477 = vmatprep.subr.mxu0 0.0
        %1478 = vmatpush1.msra.mxu0 0.0
        %1479 = vmatprep.subr.mxu0 0.0
        %1480 = vmatpush1.msra.mxu0 0.0
        %1481 = vmatprep.subr.mxu0 0.0
        %1482 = vmatpush1.msra.mxu0 0.0
        %1483 = vmatprep.subr.mxu0 0.0
        %1484 = vmatpush1.msra.mxu0 0.0
        %1485 = vmatprep.subr.mxu0 0.0
        %1486 = vmatpush1.msra.mxu0 0.0
        %1487 = vmatprep.subr.mxu0 0.0
        %1488 = vmatpush1.msra.mxu0 0.0
        %1489 = vmatprep.mubr.f32.mxu0 0.0
        %1490 = vmatmul.mubr.f32.gmra.mrb[0].mxu0 %v1423
        %v1491 = vpop.f32.mrb[0].mxu0
        %v1492 = vadd.f32 0.0, %v1491
        %v1493 = vpop.f32.mrb[0].mxu0
        %1494 = vdwg.mxu0
        %v1495 = vadd.f32 %v480, %v1492
        %v1496 = vld [vmem:[%s5] sm:$0x1]
        %v1497 = vld [vmem:[%s6] sm:$0x1]
        %1498 = vadd.xlane.f32.xlu0 %v1495
        %v1499 = vpop.xlane.xlu0 %1498
        %v1500 = vmul.f32 %v1499, 0.03125
        %v1501 = vsub.f32 %v1495, %v1500
        %v1502 = vlaneseq
        %v1503 = vand.u32 %v1502, 127
        %vm1504 = vcmp.lt.s32.totalorder %v1503, 32
        %v1505 = vsel %vm1504, %v1501, 0.0
        %v1506 = vmul.f32 %v1505, %v1505
        %1507 = vadd.xlane.f32.xlu0 %v1506
        %v1508 = vpop.xlane.xlu0 %1507
        %v1509 = vmul.f32 %v1508, 0.03125
        %v1510 = vadd.f32 %v1509, 1e-05
        %v1511 = vrsqrt.pop %v1510
        %v1512 = vmul.f32 %v1501, %v1511
        %v1514 = vlaneseq
        %v1515 = vshrl.u32 %v1514, 7
        %v1516 = vsub.s32 0, %v1515
        %v1517 = vrot.slane %v1496, %v1516
        %v1519 = vmul.f32 %v1517, %v1512
        %v1521 = vlaneseq
        %v1522 = vshrl.u32 %v1521, 7
        %v1523 = vsub.s32 0, %v1522
        %v1524 = vrot.slane %v1497, %v1523
        %v1526 = vadd.f32 %v1519, %v1524
        %v1527 = vld [vmem:[#allocation4] sm:$0xff]
        %v1528 = vld [vmem:[#allocation4 + $0x8] sm:$0xff]
        %v1529 = vld [vmem:[#allocation4 + $0x10] sm:$0xff]
        %v1530 = vld [vmem:[#allocation4 + $0x18] sm:$0xff]
        %v1531 = vld [vmem:[#allocation4 + $0x20] sm:$0xff]
        %v1532 = vld [vmem:[#allocation4 + $0x28] sm:$0xff]
        %v1533 = vld [vmem:[#allocation4 + $0x30] sm:$0xff]
        %v1534 = vld [vmem:[#allocation4 + $0x38] sm:$0xff]
        %v1535 = vld [vmem:[#allocation4 + $0x40] sm:$0xff]
        %v1536 = vld [vmem:[#allocation4 + $0x48] sm:$0xff]
        %v1537 = vld [vmem:[#allocation4 + $0x50] sm:$0xff]
        %v1538 = vld [vmem:[#allocation4 + $0x58] sm:$0xff]
        %v1539 = vld [vmem:[#allocation4 + $0x60] sm:$0xff]
        %v1540 = vld [vmem:[#allocation4 + $0x68] sm:$0xff]
        %v1541 = vld [vmem:[#allocation4 + $0x70] sm:$0xff]
        %v1542 = vld [vmem:[#allocation4 + $0x78] sm:$0xff]
        %v1543 = vld [vmem:[%s8] sm:$0x1]
        %v1544 = vld [vmem:[#allocation6] sm:$0xff]
        %v1545 = vld [vmem:[#allocation6 + $0x8] sm:$0xff]
        %v1546 = vld [vmem:[#allocation6 + $0x10] sm:$0xff]
        %v1547 = vld [vmem:[#allocation6 + $0x18] sm:$0xff]
        %v1548 = vld [vmem:[#allocation6 + $0x20] sm:$0xff]
        %v1549 = vld [vmem:[#allocation6 + $0x28] sm:$0xff]
        %v1550 = vld [vmem:[#allocation6 + $0x30] sm:$0xff]
        %v1551 = vld [vmem:[#allocation6 + $0x38] sm:$0xff]
        %v1552 = vld [vmem:[#allocation6 + $0x40] sm:$0xff]
        %v1553 = vld [vmem:[#allocation6 + $0x48] sm:$0xff]
        %v1554 = vld [vmem:[#allocation6 + $0x50] sm:$0xff]
        %v1555 = vld [vmem:[#allocation6 + $0x58] sm:$0xff]
        %v1556 = vld [vmem:[#allocation6 + $0x60] sm:$0xff]
        %v1557 = vld [vmem:[#allocation6 + $0x68] sm:$0xff]
        %v1558 = vld [vmem:[#allocation6 + $0x70] sm:$0xff]
        %v1559 = vld [vmem:[#allocation6 + $0x78] sm:$0xff]
        %v1560 = vld [vmem:[%s10] sm:$0x1]
        %v1562 = vlaneseq
        %v1563 = vshrl.u32 %v1562, 7
        %v1564 = vsub.s32 0, %v1563
        %v1565 = vrot.slane %v1543, %v1564
        %1567 = vmatprep.subr.mxu0 0.0
        %1568 = vmatpush1.msra.mxu0 %v1527
        %1569 = vmatprep.subr.mxu0 0.0
        %1570 = vmatpush1.msra.mxu0 %v1528
        %1571 = vmatprep.subr.mxu0 0.0
        %1572 = vmatpush1.msra.mxu0 %v1529
        %1573 = vmatprep.subr.mxu0 0.0
        %1574 = vmatpush1.msra.mxu0 %v1530
        %1575 = vmatprep.subr.mxu0 0.0
        %1576 = vmatpush1.msra.mxu0 %v1531
        %1577 = vmatprep.subr.mxu0 0.0
        %1578 = vmatpush1.msra.mxu0 %v1532
        %1579 = vmatprep.subr.mxu0 0.0
        %1580 = vmatpush1.msra.mxu0 %v1533
        %1581 = vmatprep.subr.mxu0 0.0
        %1582 = vmatpush1.msra.mxu0 %v1534
        %1583 = vmatprep.subr.mxu0 0.0
        %1584 = vmatpush1.msra.mxu0 %v1535
        %1585 = vmatprep.subr.mxu0 0.0
        %1586 = vmatpush1.msra.mxu0 %v1536
        %1587 = vmatprep.subr.mxu0 0.0
        %1588 = vmatpush1.msra.mxu0 %v1537
        %1589 = vmatprep.subr.mxu0 0.0
        %1590 = vmatpush1.msra.mxu0 %v1538
        %1591 = vmatprep.subr.mxu0 0.0
        %1592 = vmatpush1.msra.mxu0 %v1539
        %1593 = vmatprep.subr.mxu0 0.0
        %1594 = vmatpush1.msra.mxu0 %v1540
        %1595 = vmatprep.subr.mxu0 0.0
        %1596 = vmatpush1.msra.mxu0 %v1541
        %1597 = vmatprep.subr.mxu0 0.0
        %1598 = vmatpush1.msra.mxu0 %v1542
        %1599 = vmatprep.subr.mxu0 0.0
        %1600 = vmatpush1.msra.mxu0 0.0
        %1601 = vmatprep.subr.mxu0 0.0
        %1602 = vmatpush1.msra.mxu0 0.0
        %1603 = vmatprep.subr.mxu0 0.0
        %1604 = vmatpush1.msra.mxu0 0.0
        %1605 = vmatprep.subr.mxu0 0.0
        %1606 = vmatpush1.msra.mxu0 0.0
        %1607 = vmatprep.subr.mxu0 0.0
        %1608 = vmatpush1.msra.mxu0 0.0
        %1609 = vmatprep.subr.mxu0 0.0
        %1610 = vmatpush1.msra.mxu0 0.0
        %1611 = vmatprep.subr.mxu0 0.0
        %1612 = vmatpush1.msra.mxu0 0.0
        %1613 = vmatprep.subr.mxu0 0.0
        %1614 = vmatpush1.msra.mxu0 0.0
        %1615 = vmatprep.subr.mxu0 0.0
        %1616 = vmatpush1.msra.mxu0 0.0
        %1617 = vmatprep.subr.mxu0 0.0
        %1618 = vmatpush1.msra.mxu0 0.0
        %1619 = vmatprep.subr.mxu0 0.0
        %1620 = vmatpush1.msra.mxu0 0.0
        %1621 = vmatprep.subr.mxu0 0.0
        %1622 = vmatpush1.msra.mxu0 0.0
        %1623 = vmatprep.subr.mxu0 0.0
        %1624 = vmatpush1.msra.mxu0 0.0
        %1625 = vmatprep.subr.mxu0 0.0
        %1626 = vmatpush1.msra.mxu0 0.0
        %1627 = vmatprep.subr.mxu0 0.0
        %1628 = vmatpush1.msra.mxu0 0.0
        %1629 = vmatprep.subr.mxu0 0.0
        %1630 = vmatpush1.msra.mxu0 0.0
        %1631 = vmatprep.mubr.f32.mxu0 0.0
        %1632 = vmatmul.mubr.f32.gmra.mrb[0].mxu0 %v1526
        %v1633 = vpop.f32.mrb[0].mxu0
        %v1634 = vadd.f32 %v1565, %v1633
        %v1635 = vpop.f32.mrb[0].mxu0
        %1636 = vdwg.mxu0
        %v1637 = vmax.f32 %v1634, 0.0
        %v1639 = vlaneseq
        %v1640 = vshrl.u32 %v1639, 7
        %v1641 = vsub.s32 0, %v1640
        %v1642 = vrot.slane %v1560, %v1641
        %1644 = vmatprep.subr.mxu0 0.0
        %1645 = vmatpush1.msra.mxu0 %v1544
        %1646 = vmatprep.subr.mxu0 0.0
        %1647 = vmatpush1.msra.mxu0 %v1545
        %1648 = vmatprep.subr.mxu0 0.0
        %1649 = vmatpush1.msra.mxu0 %v1546
        %1650 = vmatprep.subr.mxu0 0.0
        %1651 = vmatpush1.msra.mxu0 %v1547
        %1652 = vmatprep.subr.mxu0 0.0
        %1653 = vmatpush1.msra.mxu0 %v1548
        %1654 = vmatprep.subr.mxu0 0.0
        %1655 = vmatpush1.msra.mxu0 %v1549
        %1656 = vmatprep.subr.mxu0 0.0
        %1657 = vmatpush1.msra.mxu0 %v1550
        %1658 = vmatprep.subr.mxu0 0.0
        %1659 = vmatpush1.msra.mxu0 %v1551
        %1660 = vmatprep.subr.mxu0 0.0
        %1661 = vmatpush1.msra.mxu0 %v1552
        %1662 = vmatprep.subr.mxu0 0.0
        %1663 = vmatpush1.msra.mxu0 %v1553
        %1664 = vmatprep.subr.mxu0 0.0
        %1665 = vmatpush1.msra.mxu0 %v1554
        %1666 = vmatprep.subr.mxu0 0.0
        %1667 = vmatpush1.msra.mxu0 %v1555
        %1668 = vmatprep.subr.mxu0 0.0
        %1669 = vmatpush1.msra.mxu0 %v1556
        %1670 = vmatprep.subr.mxu0 0.0
        %1671 = vmatpush1.msra.mxu0 %v1557
        %1672 = vmatprep.subr.mxu0 0.0
        %1673 = vmatpush1.msra.mxu0 %v1558
        %1674 = vmatprep.subr.mxu0 0.0
        %1675 = vmatpush1.msra.mxu0 %v1559
        %1676 = vmatprep.subr.mxu0 0.0
        %1677 = vmatpush1.msra.mxu0 0.0
        %1678 = vmatprep.subr.mxu0 0.0
        %1679 = vmatpush1.msra.mxu0 0.0
        %1680 = vmatprep.subr.mxu0 0.0
        %1681 = vmatpush1.msra.mxu0 0.0
        %1682 = vmatprep.subr.mxu0 0.0
        %1683 = vmatpush1.msra.mxu0 0.0
        %1684 = vmatprep.subr.mxu0 0.0
        %1685 = vmatpush1.msra.mxu0 0.0
        %1686 = vmatprep.subr.mxu0 0.0
        %1687 = vmatpush1.msra.mxu0 0.0
        %1688 = vmatprep.subr.mxu0 0.0
        %1689 = vmatpush1.msra.mxu0 0.0
        %1690 = vmatprep.subr.mxu0 0.0
        %1691 = vmatpush1.msra.mxu0 0.0
        %1692 = vmatprep.subr.mxu0 0.0
        %1693 = vmatpush1.msra.mxu0 0.0
        %1694 = vmatprep.subr.mxu0 0.0
        %1695 = vmatpush1.msra.mxu0 0.0
        %1696 = vmatprep.subr.mxu0 0.0
        %1697 = vmatpush1.msra.mxu0 0.0
        %1698 = vmatprep.subr.mxu0 0.0
        %1699 = vmatpush1.msra.mxu0 0.0
        %1700 = vmatprep.subr.mxu0 0.0
        %1701 = vmatpush1.msra.mxu0 0.0
        %1702 = vmatprep.subr.mxu0 0.0
        %1703 = vmatpush1.msra.mxu0 0.0
        %1704 = vmatprep.subr.mxu0 0.0
        %1705 = vmatpush1.msra.mxu0 0.0
        %1706 = vmatprep.subr.mxu0 0.0
        %1707 = vmatpush1.msra.mxu0 0.0
        %1708 = vmatprep.mubr.f32.mxu0 0.0
        %1709 = vmatmul.mubr.f32.gmra.mrb[0].mxu0 %v1637
        %v1710 = vpop.f32.mrb[0].mxu0
        %v1711 = vadd.f32 %v1642, %v1710
        %v1712 = vpop.f32.mrb[0].mxu0
        %1713 = vdwg.mxu0
        %v1714 = vadd.f32 %v1526, %v1711
        %v1715 = vld [vmem:[%s11] sm:$0x1]
        %v1716 = vld [vmem:[%s12] sm:$0x1]
        %1717 = vadd.xlane.f32.xlu0 %v1714
        %v1718 = vpop.xlane.xlu0 %1717
        %v1719 = vmul.f32 %v1718, 0.03125
        %v1720 = vsub.f32 %v1714, %v1719
        %v1721 = vsel %vm1504, %v1720, 0.0
        %v1722 = vmul.f32 %v1721, %v1721
        %1723 = vadd.xlane.f32.xlu0 %v1722
        %v1724 = vpop.xlane.xlu0 %1723
        %v1725 = vmul.f32 %v1724, 0.03125
        %v1726 = vadd.f32 %v1725, 1e-05
        %v1727 = vrsqrt.pop %v1726
        %v1728 = vmul.f32 %v1720, %v1727
        %v1730 = vlaneseq
        %v1731 = vshrl.u32 %v1730, 7
        %v1732 = vsub.s32 0, %v1731
        %v1733 = vrot.slane %v1715, %v1732
        %v1735 = vmul.f32 %v1733, %v1728
        %v1737 = vlaneseq
        %v1738 = vshrl.u32 %v1737, 7
        %v1739 = vsub.s32 0, %v1738
        %v1740 = vrot.slane %v1716, %v1739
        %v1742 = vadd.f32 %v1735, %v1740
        %1743 = vst [vmem:[%s479] sm:$0xff] %v1742
        %p1744 = scmp.lt.s32.totalorder %s26, 1
        %s1745 = scalar_select %p1744, %s26, 1
        %s1746 = smul.addr %s1745, 8
        %s1747 = scalar_lea.vmem %s13, %s1746
        // Predicated region
        $region85: #{transformer_forward.6} parent=71 // pred_check
          %p1748 = pneg %p322
        $region86: #{transformer_forward.6} parent=71 // pred_check_branch
          %1750 = sbr.rel (%p1748) target = $region88
        $region87: #{transformer_forward.6} parent=71 // pred_region
          _
        $region88: #{transformer_forward.6} parent=71 // pred_fallthru
          _
      $region72: #{transformer_forward.6} parent=5 // pred_fallthru
        _
      %p1751 = scmp.le.s32.totalorder 2, %s21
      // Predicated region
      $region89: #{transformer_forward.6} parent=5 // pred_check
        %p1752 = pneg %p1751
      $region90: #{transformer_forward.6} parent=5 // pred_check_branch
        %1754 = sbr.rel (%p1752) target = $region92
      $region91: #{transformer_forward.6} parent=5 // pred_region
        %s1755 = ssub.s32 %s21, 2
        // Predicated region
        $region93: #{transformer_forward.6} parent=91 // pred_check
          %p1756 = pneg %p328
        $region94: #{transformer_forward.6} parent=91 // pred_check_branch
          %1758 = sbr.rel (%p1756) target = $region96
        $region95: #{transformer_forward.6} parent=91 // pred_region
          %p1759 = scmp.lt.s32.totalorder %s27, 1
          %s1760 = scalar_select %p1759, %s27, 1
          %s1761 = smul.addr %s1760, 8
          %s1762 = scalar_lea.vmem %s13, %s1761
        $region96: #{transformer_forward.6} parent=91 // pred_fallthru
          _
      $region92: #{transformer_forward.6} parent=5 // pred_fallthru
        _
    $region6: #{transformer_forward.6} parent=1 // loop_footer
      %s25 = sadd.s32 1, %s21
    $region7: #{transformer_forward.6} parent=1 // loop_footer_branch
      %20 = sbr.rel target = $region3
    $region8: #{transformer_forward.6} parent=1 // loop_exit
      _
    %1763 = vsyncpa [#allocation3], 1
    %s1764 = scalar_lea.sflag [#allocation3], 1
    %1765 = vsyncpa %s1764, 1
    %1766 = vsyncpa [#allocation5], 1

// kernel: transformer_forward.5
$region0: #{transformer_forward.5}
  #allocation0 [shape = 'u32[]', space=smem, size = 0x4, offset = 0x4, fixed_abs, tag = 'smem constant byte address 0x4 - core index']
  #allocation1 [shape = 'u32[144,128]{1,0:T(1,128)}', space=vmem, size = 0x12000, scoped, tag = 'internal scratch']
  %s0 = inlined_call_operand.vmem [shape: f32[2,8,128], index: 0, kind: input, shape index: {}]
  %s1 = inlined_call_operand.vmem [shape: f32[128,32], index: 1, kind: input, shape index: {}]
  %s2 = inlined_call_operand.vmem [shape: f32[128,32], index: 2, kind: input, shape index: {}]
  %s3 = inlined_call_operand.vmem [shape: f32[128,32], index: 3, kind: input, shape index: {}]
  %s4 = inlined_call_operand.vmem [shape: f32[32,128], index: 4, kind: input, shape index: {}]
  %s5 = inlined_call_operand.vmem [shape: f32[1,128], index: 5, kind: input, shape index: {}, may-alias: {5,11}]
  %s6 = inlined_call_operand.vmem [shape: f32[1,128], index: 6, kind: input, shape index: {}, may-alias: {6,8,10,12}]
  %s7 = inlined_call_operand.hbm [shape: f32[128,128], index: 7, kind: input, shape index: {}]
  %s8 = inlined_call_operand.vmem [shape: f32[1,128], index: 8, kind: input, shape index: {}, may-alias: {6,8,10,12}]
  %s9 = inlined_call_operand.hbm [shape: f32[128,128], index: 9, kind: input, shape index: {}]
  %s10 = inlined_call_operand.vmem [shape: f32[1,128], index: 10, kind: input, shape index: {}, may-alias: {6,8,10,12}]
  %s11 = inlined_call_operand.vmem [shape: f32[1,128], index: 11, kind: input, shape index: {}, may-alias: {5,11}]
  %s12 = inlined_call_operand.vmem [shape: f32[1,128], index: 12, kind: input, shape index: {}, may-alias: {6,8,10,12}]
  %s13 = inlined_call_operand.vmem [shape: f32[2,8,128], index: 13, kind: output, shape index: {}]
  %s14 = sld [smem:[#allocation0]]
  $region93: #{transformer_forward.5} parent=0
    _
  %s16 = ssub.s32 1, %s14
  %s17 = scalar_select 0, %s16, %s14
  $region1: #{transformer_forward.5} parent=0
    #allocation2 [shape = 'u8[65536]{0}', space=vmem, size = 0x10000, scoped, tag = 'input window, operand 7, single buffered']
    #allocation3 [shape = 's32[2]{0}', space=sflag, size = 0x8, scoped, tag = 'scoped memory for transformer_forward.5']
    #allocation4 [shape = 'u8[65536]{0}', space=vmem, size = 0x10000, scoped, tag = 'input window, operand 9, single buffered']
    #allocation5 [shape = 's32[1]{0}', space=sflag, size = 0x4, scoped, tag = 'scoped memory for transformer_forward.5']
    %18 = vsyncpa [#allocation3], 0
    %19 = vsyncpa [#allocation5], 0
    loop: start=0, step=1, limit=4
    $region2: #{transformer_forward.5} parent=1 // loop_pre_header
      _
    $region3: #{transformer_forward.5} parent=1 // loop_header
      %s21 = sphi 0, %s25
      %p22 = scmp.ge.s32.totalorder %s21, 4
      %s31 = sphi 0, %s33
      %s34 = sphi 0, %s31
      %s35 = sphi 0, %s34
      %s51 = sphi 0, %s35
      %s55 = sphi 0, %s55
      %s57 = sphi 0, %s55
      %s58 = sphi 0, %s57
      %s72 = sphi 0, %s58
      %s76 = sphi 0, %s76
      %s78 = sphi 0, %s76
      %s79 = sphi 0, %s78
      %s93 = sphi 0, %s79
      %s97 = sphi 0, %s97
      %s99 = sphi 0, %s97
      %s100 = sphi 0, %s99
      %s114 = sphi 0, %s100
      %s118 = sphi 0, %s118
      %s120 = sphi 0, %s118
      %s121 = sphi 0, %s120
      %s135 = sphi 0, %s121
      %s139 = sphi 0, %s139
      %s141 = sphi 0, %s139
      %s142 = sphi 0, %s141
      %s156 = sphi 0, %s142
      %s160 = sphi 0, %s160
      %s162 = sphi 0, %s160
      %s163 = sphi 0, %s162
      %s177 = sphi 0, %s163
      %s181 = sphi 0, %s181
      %s183 = sphi 0, %s181
      %s184 = sphi 0, %s183
      %s198 = sphi 0, %s184
      %s202 = sphi 0, %s202
      %s204 = sphi 0, %s202
      %s205 = sphi 0, %s204
      %s219 = sphi 0, %s205
      %s223 = sphi 0, %s223
      %s225 = sphi 0, %s223
      %s226 = sphi 0, %s225
      %s240 = sphi 0, %s226
      %s244 = sphi 0, %s244
      %s246 = sphi 0, %s244
      %s247 = sphi 0, %s246
      %s261 = sphi 0, %s247
      %s265 = sphi 0, %s265
      %s267 = sphi 0, %s265
      %s268 = sphi 0, %s267
      %s282 = sphi 0, %s268
      %s286 = sphi 0, %s286
      %s288 = sphi 0, %s286
      %s289 = sphi 0, %s288
      %s303 = sphi 0, %s289
      %s309 = sphi 0, %s311
      %s312 = sphi 0, %s309
      %s313 = sphi 0, %s312
      %s329 = sphi 0, %s313
    $region4: #{transformer_forward.5} parent=1 // loop_header_branch
      %24 = sbr.rel (%p22) target = $region8
    $region5: #{transformer_forward.5} parent=1 // loop_body
      %s26 = ssub.s32 %s21, 1
      %s27 = ssub.s32 %s21, 2
      %s28 = sadd.s32 %s21, 1
      %s29 = ssub.s32 %s21, %s28
      %p30 = scmp.eq.s32.totalorder %s29, 0
      %s32 = sadd.s32 %s31, 1
      %s33 = scalar_select %p30, %s31, %s32
      %p36 = pneg %p30
      %p37 = scmp.eq.s32.totalorder %s21, 1
      %p38 = por %p36, %p37
      %p39 = scmp.ne.s32.totalorder %s31, %s34
      %p40 = scmp.eq.s32.totalorder %s21, 0
      %p41 = por %p39, %p40
      %p42 = scmp.ne.s32.totalorder %s31, %s34
      %p43 = scmp.eq.s32.totalorder %s26, 1
      %p44 = por %p42, %p43
      %p45 = scmp.ne.s32.totalorder %s34, %s35
      %p46 = scmp.eq.s32.totalorder %s26, 0
      %p47 = por %p45, %p46
      %p48 = scmp.ne.s32.totalorder %s34, %s35
      %p49 = scmp.eq.s32.totalorder %s27, 1
      %p50 = por %p48, %p49
      %p52 = scmp.ne.s32.totalorder %s35, %s51
      %p53 = scmp.eq.s32.totalorder %s27, 0
      %p54 = por %p52, %p53
      %s56 = sadd.s32 %s55, 1
      %p59 = scmp.eq.s32.totalorder %s21, 1
      %p60 = scmp.ne.s32.totalorder %s55, %s57
      %p61 = scmp.eq.s32.totalorder %s21, 0
      %p62 = por %p60, %p61
      %p63 = scmp.ne.s32.totalorder %s55, %s57
      %p64 = scmp.eq.s32.totalorder %s26, 1
      %p65 = por %p63, %p64
      %p66 = scmp.ne.s32.totalorder %s57, %s58
      %p67 = scmp.eq.s32.totalorder %s26, 0
      %p68 = por %p66, %p67
      %p69 = scmp.ne.s32.totalorder %s57, %s58
      %p70 = scmp.eq.s32.totalorder %s27, 1
      %p71 = por %p69, %p70
      %p73 = scmp.ne.s32.totalorder %s58, %s72
      %p74 = scmp.eq.s32.totalorder %s27, 0
      %p75 = por %p73, %p74
      %s77 = sadd.s32 %s76, 1
      %p80 = scmp.eq.s32.totalorder %s21, 1
      %p81 = scmp.ne.s32.totalorder %s76, %s78
      %p82 = scmp.eq.s32.totalorder %s21, 0
      %p83 = por %p81, %p82
      %p84 = scmp.ne.s32.totalorder %s76, %s78
      %p85 = scmp.eq.s32.totalorder %s26, 1
      %p86 = por %p84, %p85
      %p87 = scmp.ne.s32.totalorder %s78, %s79
      %p88 = scmp.eq.s32.totalorder %s26, 0
      %p89 = por %p87, %p88
      %p90 = scmp.ne.s32.totalorder %s78, %s79
      %p91 = scmp.eq.s32.totalorder %s27, 1
      %p92 = por %p90, %p91
      %p94 = scmp.ne.s32.totalorder %s79, %s93
      %p95 = scmp.eq.s32.totalorder %s27, 0
      %p96 = por %p94, %p95
      %s98 = sadd.s32 %s97, 1
      %p101 = scmp.eq.s32.totalorder %s21, 1
      %p102 = scmp.ne.s32.totalorder %s97, %s99
      %p103 = scmp.eq.s32.totalorder %s21, 0
      %p104 = por %p102, %p103
      %p105 = scmp.ne.s32.totalorder %s97, %s99
      %p106 = scmp.eq.s32.totalorder %s26, 1
      %p107 = por %p105, %p106
      %p108 = scmp.ne.s32.totalorder %s99, %s100
      %p109 = scmp.eq.s32.totalorder %s26, 0
      %p110 = por %p108, %p109
      %p111 = scmp.ne.s32.totalorder %s99, %s100
      %p112 = scmp.eq.s32.totalorder %s27, 1
      %p113 = por %p111, %p112
      %p115 = scmp.ne.s32.totalorder %s100, %s114
      %p116 = scmp.eq.s32.totalorder %s27, 0
      %p117 = por %p115, %p116
      %s119 = sadd.s32 %s118, 1
      %p122 = scmp.eq.s32.totalorder %s21, 1
      %p123 = scmp.ne.s32.totalorder %s118, %s120
      %p124 = scmp.eq.s32.totalorder %s21, 0
      %p125 = por %p123, %p124
      %p126 = scmp.ne.s32.totalorder %s118, %s120
      %p127 = scmp.eq.s32.totalorder %s26, 1
      %p128 = por %p126, %p127
      %p129 = scmp.ne.s32.totalorder %s120, %s121
      %p130 = scmp.eq.s32.totalorder %s26, 0
      %p131 = por %p129, %p130
      %p132 = scmp.ne.s32.totalorder %s120, %s121
      %p133 = scmp.eq.s32.totalorder %s27, 1
      %p134 = por %p132, %p133
      %p136 = scmp.ne.s32.totalorder %s121, %s135
      %p137 = scmp.eq.s32.totalorder %s27, 0
      %p138 = por %p136, %p137
      %s140 = sadd.s32 %s139, 1
      %p143 = scmp.eq.s32.totalorder %s21, 1
      %p144 = scmp.ne.s32.totalorder %s139, %s141
      %p145 = scmp.eq.s32.totalorder %s21, 0
      %p146 = por %p144, %p145
      %p147 = scmp.ne.s32.totalorder %s139, %s141
      %p148 = scmp.eq.s32.totalorder %s26, 1
      %p149 = por %p147, %p148
      %p150 = scmp.ne.s32.totalorder %s141, %s142
      %p151 = scmp.eq.s32.totalorder %s26, 0
      %p152 = por %p150, %p151
      %p153 = scmp.ne.s32.totalorder %s141, %s142
      %p154 = scmp.eq.s32.totalorder %s27, 1
      %p155 = por %p153, %p154
      %p157 = scmp.ne.s32.totalorder %s142, %s156
      %p158 = scmp.eq.s32.totalorder %s27, 0
      %p159 = por %p157, %p158
      %s161 = sadd.s32 %s160, 1
      %p164 = scmp.eq.s32.totalorder %s21, 1
      %p165 = scmp.ne.s32.totalorder %s160, %s162
      %p166 = scmp.eq.s32.totalorder %s21, 0
      %p167 = por %p165, %p166
      %p168 = scmp.ne.s32.totalorder %s160, %s162
      %p169 = scmp.eq.s32.totalorder %s26, 1
      %p170 = por %p168, %p169
      %p171 = scmp.ne.s32.totalorder %s162, %s163
      %p172 = scmp.eq.s32.totalorder %s26, 0
      %p173 = por %p171, %p172
      %p174 = scmp.ne.s32.totalorder %s162, %s163
      %p175 = scmp.eq.s32.totalorder %s27, 1
      %p176 = por %p174, %p175
      %p178 = scmp.ne.s32.totalorder %s163, %s177
      %p179 = scmp.eq.s32.totalorder %s27, 0
      %p180 = por %p178, %p179
      %s182 = sadd.s32 %s181, 1
      %p185 = scmp.eq.s32.totalorder %s21, 1
      %p186 = scmp.ne.s32.totalorder %s181, %s183
      %p187 = scmp.eq.s32.totalorder %s21, 0
      %p188 = por %p186, %p187
      %p189 = scmp.ne.s32.totalorder %s181, %s183
      %p190 = scmp.eq.s32.totalorder %s26, 1
      %p191 = por %p189, %p190
      %p192 = scmp.ne.s32.totalorder %s183, %s184
      %p193 = scmp.eq.s32.totalorder %s26, 0
      %p194 = por %p192, %p193
      %p195 = scmp.ne.s32.totalorder %s183, %s184
      %p196 = scmp.eq.s32.totalorder %s27, 1
      %p197 = por %p195, %p196
      %p199 = scmp.ne.s32.totalorder %s184, %s198
      %p200 = scmp.eq.s32.totalorder %s27, 0
      %p201 = por %p199, %p200
      %s203 = sadd.s32 %s202, 1
      %p206 = scmp.eq.s32.totalorder %s21, 1
      %p207 = scmp.ne.s32.totalorder %s202, %s204
      %p208 = scmp.eq.s32.totalorder %s21, 0
      %p209 = por %p207, %p208
      %p210 = scmp.ne.s32.totalorder %s202, %s204
      %p211 = scmp.eq.s32.totalorder %s26, 1
      %p212 = por %p210, %p211
      %p213 = scmp.ne.s32.totalorder %s204, %s205
      %p214 = scmp.eq.s32.totalorder %s26, 0
      %p215 = por %p213, %p214
      %p216 = scmp.ne.s32.totalorder %s204, %s205
      %p217 = scmp.eq.s32.totalorder %s27, 1
      %p218 = por %p216, %p217
      %p220 = scmp.ne.s32.totalorder %s205, %s219
      %p221 = scmp.eq.s32.totalorder %s27, 0
      %p222 = por %p220, %p221
      %s224 = sadd.s32 %s223, 1
      %p227 = scmp.eq.s32.totalorder %s21, 1
      %p228 = scmp.ne.s32.totalorder %s223, %s225
      %p229 = scmp.eq.s32.totalorder %s21, 0
      %p230 = por %p228, %p229
      %p231 = scmp.ne.s32.totalorder %s223, %s225
      %p232 = scmp.eq.s32.totalorder %s26, 1
      %p233 = por %p231, %p232
      %p234 = scmp.ne.s32.totalorder %s225, %s226
      %p235 = scmp.eq.s32.totalorder %s26, 0
      %p236 = por %p234, %p235
      %p237 = scmp.ne.s32.totalorder %s225, %s226
      %p238 = scmp.eq.s32.totalorder %s27, 1
      %p239 = por %p237, %p238
      %p241 = scmp.ne.s32.totalorder %s226, %s240
      %p242 = scmp.eq.s32.totalorder %s27, 0
      %p243 = por %p241, %p242
      %s245 = sadd.s32 %s244, 1
      %p248 = scmp.eq.s32.totalorder %s21, 1
      %p249 = scmp.ne.s32.totalorder %s244, %s246
      %p250 = scmp.eq.s32.totalorder %s21, 0
      %p251 = por %p249, %p250
      %p252 = scmp.ne.s32.totalorder %s244, %s246
      %p253 = scmp.eq.s32.totalorder %s26, 1
      %p254 = por %p252, %p253
      %p255 = scmp.ne.s32.totalorder %s246, %s247
      %p256 = scmp.eq.s32.totalorder %s26, 0
      %p257 = por %p255, %p256
      %p258 = scmp.ne.s32.totalorder %s246, %s247
      %p259 = scmp.eq.s32.totalorder %s27, 1
      %p260 = por %p258, %p259
      %p262 = scmp.ne.s32.totalorder %s247, %s261
      %p263 = scmp.eq.s32.totalorder %s27, 0
      %p264 = por %p262, %p263
      %s266 = sadd.s32 %s265, 1
      %p269 = scmp.eq.s32.totalorder %s21, 1
      %p270 = scmp.ne.s32.totalorder %s265, %s267
      %p271 = scmp.eq.s32.totalorder %s21, 0
      %p272 = por %p270, %p271
      %p273 = scmp.ne.s32.totalorder %s265, %s267
      %p274 = scmp.eq.s32.totalorder %s26, 1
      %p275 = por %p273, %p274
      %p276 = scmp.ne.s32.totalorder %s267, %s268
      %p277 = scmp.eq.s32.totalorder %s26, 0
      %p278 = por %p276, %p277
      %p279 = scmp.ne.s32.totalorder %s267, %s268
      %p280 = scmp.eq.s32.totalorder %s27, 1
      %p281 = por %p279, %p280
      %p283 = scmp.ne.s32.totalorder %s268, %s282
      %p284 = scmp.eq.s32.totalorder %s27, 0
      %p285 = por %p283, %p284
      %s287 = sadd.s32 %s286, 1
      %p290 = scmp.eq.s32.totalorder %s21, 1
      %p291 = scmp.ne.s32.totalorder %s286, %s288
      %p292 = scmp.eq.s32.totalorder %s21, 0
      %p293 = por %p291, %p292
      %p294 = scmp.ne.s32.totalorder %s286, %s288
      %p295 = scmp.eq.s32.totalorder %s26, 1
      %p296 = por %p294, %p295
      %p297 = scmp.ne.s32.totalorder %s288, %s289
      %p298 = scmp.eq.s32.totalorder %s26, 0
      %p299 = por %p297, %p298
      %p300 = scmp.ne.s32.totalorder %s288, %s289
      %p301 = scmp.eq.s32.totalorder %s27, 1
      %p302 = por %p300, %p301
      %p304 = scmp.ne.s32.totalorder %s289, %s303
      %p305 = scmp.eq.s32.totalorder %s27, 0
      %p306 = por %p304, %p305
      %s307 = ssub.s32 %s21, %s28
      %p308 = scmp.eq.s32.totalorder %s307, 0
      %s310 = sadd.s32 %s309, 1
      %s311 = scalar_select %p308, %s309, %s310
      %p314 = pneg %p308
      %p315 = scmp.eq.s32.totalorder %s21, 1
      %p316 = por %p314, %p315
      %p317 = scmp.ne.s32.totalorder %s309, %s312
      %p318 = scmp.eq.s32.totalorder %s21, 0
      %p319 = por %p317, %p318
      %p320 = scmp.ne.s32.totalorder %s309, %s312
      %p321 = scmp.eq.s32.totalorder %s26, 1
      %p322 = por %p320, %p321
      %p323 = scmp.ne.s32.totalorder %s312, %s313
      %p324 = scmp.eq.s32.totalorder %s26, 0
      %p325 = por %p323, %p324
      %p326 = scmp.ne.s32.totalorder %s312, %s313
      %p327 = scmp.eq.s32.totalorder %s27, 1
      %p328 = por %p326, %p327
      %p330 = scmp.ne.s32.totalorder %s313, %s329
      %p331 = scmp.eq.s32.totalorder %s27, 0
      %p332 = por %p330, %p331
      %p333 = scmp.le.s32.totalorder 1, %s21
      %p334 = scmp.lt.s32.totalorder %s21, 3
      %p335 = pnand %p333, %p334
      %p336 = pneg %p335
      // Predicated region
      $region9: #{transformer_forward.5} parent=5 // pred_check
        _
      $region10: #{transformer_forward.5} parent=5 // pred_check_branch
        %338 = sbr.rel (%p335) target = $region12
      $region11: #{transformer_forward.5} parent=5 // pred_region
        %s339 = ssub.s32 %s21, 1
        // Predicated region
        $region13: #{transformer_forward.5} parent=11 // pred_check
          %p340 = pneg %p68
        $region14: #{transformer_forward.5} parent=11 // pred_check_branch
          %342 = sbr.rel (%p340) target = $region16
        $region15: #{transformer_forward.5} parent=11 // pred_region
          _
        $region16: #{transformer_forward.5} parent=11 // pred_fallthru
          _
        // Predicated region
        $region17: #{transformer_forward.5} parent=11 // pred_check
          %p343 = pneg %p89
        $region18: #{transformer_forward.5} parent=11 // pred_check_branch
          %345 = sbr.rel (%p343) target = $region20
        $region19: #{transformer_forward.5} parent=11 // pred_region
          _
        $region20: #{transformer_forward.5} parent=11 // pred_fallthru
          _
        // Predicated region
        $region21: #{transformer_forward.5} parent=11 // pred_check
          %p346 = pneg %p110
        $region22: #{transformer_forward.5} parent=11 // pred_check_branch
          %348 = sbr.rel (%p346) target = $region24
        $region23: #{transformer_forward.5} parent=11 // pred_region
          _
        $region24: #{transformer_forward.5} parent=11 // pred_fallthru
          _
        // Predicated region
        $region25: #{transformer_forward.5} parent=11 // pred_check
          %p349 = pneg %p131
        $region26: #{transformer_forward.5} parent=11 // pred_check_branch
          %351 = sbr.rel (%p349) target = $region28
        $region27: #{transformer_forward.5} parent=11 // pred_region
          _
        $region28: #{transformer_forward.5} parent=11 // pred_fallthru
          _
        // Predicated region
        $region29: #{transformer_forward.5} parent=11 // pred_check
          %p352 = pneg %p152
        $region30: #{transformer_forward.5} parent=11 // pred_check_branch
          %354 = sbr.rel (%p352) target = $region32
        $region31: #{transformer_forward.5} parent=11 // pred_region
          _
        $region32: #{transformer_forward.5} parent=11 // pred_fallthru
          _
        // Predicated region
        $region33: #{transformer_forward.5} parent=11 // pred_check
          %p355 = pneg %p173
        $region34: #{transformer_forward.5} parent=11 // pred_check_branch
          %357 = sbr.rel (%p355) target = $region36
        $region35: #{transformer_forward.5} parent=11 // pred_region
          _
        $region36: #{transformer_forward.5} parent=11 // pred_fallthru
          _
        // Predicated region
        $region37: #{transformer_forward.5} parent=11 // pred_check
          %p358 = pneg %p194
        $region38: #{transformer_forward.5} parent=11 // pred_check_branch
          %360 = sbr.rel (%p358) target = $region40
        $region39: #{transformer_forward.5} parent=11 // pred_region
          %s362 = ssub.s32 2048, 2048
          %363 = vsyncadd [#allocation3], %s362
          %s364 = sshll.u32 [#allocation2], 4
          %s365 = int_to_ptr.vmem [resolvable:$true] %s364
          %370 = dma.hbm_to_vmem [thread:$0]  %s7, 2048, %s365, [#allocation3], 128, 128, 8
        $region40: #{transformer_forward.5} parent=11 // pred_fallthru
          _
        // Predicated region
        $region41: #{transformer_forward.5} parent=11 // pred_check
          %p371 = pneg %p215
        $region42: #{transformer_forward.5} parent=11 // pred_check_branch
          %373 = sbr.rel (%p371) target = $region44
        $region43: #{transformer_forward.5} parent=11 // pred_region
          _
        $region44: #{transformer_forward.5} parent=11 // pred_fallthru
          _
        // Predicated region
        $region45: #{transformer_forward.5} parent=11 // pred_check
          %p374 = pneg %p236
        $region46: #{transformer_forward.5} parent=11 // pred_check_branch
          %376 = sbr.rel (%p374) target = $region48
        $region47: #{transformer_forward.5} parent=11 // pred_region
          %s378 = ssub.s32 2048, 2048
          %379 = vsyncadd [#allocation5], %s378
          %s380 = sshll.u32 [#allocation4], 4
          %s381 = int_to_ptr.vmem [resolvable:$true] %s380
          %386 = dma.hbm_to_vmem [thread:$0]  %s9, 2048, %s381, [#allocation5], 128, 128, 8
        $region48: #{transformer_forward.5} parent=11 // pred_fallthru
          _
        // Predicated region
        $region49: #{transformer_forward.5} parent=11 // pred_check
          %p387 = pneg %p257
        $region50: #{transformer_forward.5} parent=11 // pred_check_branch
          %389 = sbr.rel (%p387) target = $region52
        $region51: #{transformer_forward.5} parent=11 // pred_region
          _
        $region52: #{transformer_forward.5} parent=11 // pred_fallthru
          _
        // Predicated region
        $region53: #{transformer_forward.5} parent=11 // pred_check
          %p390 = pneg %p278
        $region54: #{transformer_forward.5} parent=11 // pred_check_branch
          %392 = sbr.rel (%p390) target = $region56
        $region55: #{transformer_forward.5} parent=11 // pred_region
          _
        $region56: #{transformer_forward.5} parent=11 // pred_fallthru
          _
        // Predicated region
        $region57: #{transformer_forward.5} parent=11 // pred_check
          %p393 = pneg %p299
        $region58: #{transformer_forward.5} parent=11 // pred_check_branch
          %395 = sbr.rel (%p393) target = $region60
        $region59: #{transformer_forward.5} parent=11 // pred_region
          _
        $region60: #{transformer_forward.5} parent=11 // pred_fallthru
          _
      $region12: #{transformer_forward.5} parent=5 // pred_fallthru
        _
      %p396 = scmp.lt.s32.totalorder %s21, 2
      // Predicated region
      $region61: #{transformer_forward.5} parent=5 // pred_check
        %p397 = pneg %p396
      $region62: #{transformer_forward.5} parent=5 // pred_check_branch
        %399 = sbr.rel (%p397) target = $region64
      $region63: #{transformer_forward.5} parent=5 // pred_region
        // Predicated region
        $region65: #{transformer_forward.5} parent=63 // pred_check
          %p400 = pneg %p41
        $region66: #{transformer_forward.5} parent=63 // pred_check_branch
          %402 = sbr.rel (%p400) target = $region68
        $region67: #{transformer_forward.5} parent=63 // pred_region
          %p403 = scmp.lt.s32.totalorder %s21, 1
          %s404 = scalar_select %p403, %s21, 1
          %s405 = smul.addr %s404, 8
          %s406 = scalar_lea.vmem %s0, %s405
        $region68: #{transformer_forward.5} parent=63 // pred_fallthru
          _
      $region64: #{transformer_forward.5} parent=5 // pred_fallthru
        _
      %p407 = scmp.le.s32.totalorder 1, %s21
      %p408 = scmp.lt.s32.totalorder %s21, 3
      %p409 = pnand %p407, %p408
      %p410 = pneg %p409
      // Predicated region
      $region69: #{transformer_forward.5} parent=5 // pred_check
        _
      $region70: #{transformer_forward.5} parent=5 // pred_check_branch
        %412 = sbr.rel (%p409) target = $region72
      $region71: #{transformer_forward.5} parent=5 // pred_region
        %s413 = ssub.s32 %s21, 1
        // Predicated region
        $region73: #{transformer_forward.5} parent=71 // pred_check
          %p414 = pneg %p194
        $region74: #{transformer_forward.5} parent=71 // pred_check_branch
          %416 = sbr.rel (%p414) target = $region76
        $region75: #{transformer_forward.5} parent=71 // pred_region
          %417 = dma.done [#allocation3], 2048
        $region76: #{transformer_forward.5} parent=71 // pred_fallthru
          _
        // Predicated region
        $region77: #{transformer_forward.5} parent=71 // pred_check
          %p418 = pneg %p236
        $region78: #{transformer_forward.5} parent=71 // pred_check_branch
          %420 = sbr.rel (%p418) target = $region80
        $region79: #{transformer_forward.5} parent=71 // pred_region
          %421 = dma.done [#allocation5], 2048
        $region80: #{transformer_forward.5} parent=71 // pred_fallthru
          _
        %p422 = scmp.lt.s32.totalorder %s26, 1
        %s423 = scalar_select %p422, %s26, 1
        %s424 = smul.addr %s423, 8
        %s425 = scalar_lea.vmem %s0, %s424
        %p426 = pneg %p47
        %p427 = pneg %p44
        %p428 = pneg %p68
        %p429 = pneg %p65
        %p430 = pneg %p89
        %p431 = pneg %p86
        %p432 = pneg %p110
        %p433 = pneg %p107
        %p434 = pneg %p131
        %p435 = pneg %p128
        %p436 = pneg %p152
        %p437 = pneg %p149
        %p438 = pneg %p173
        %p439 = pneg %p170
        %p440 = pneg %p194
        %p441 = pneg %p191
        %p442 = pneg %p215
        %p443 = pneg %p212
        %p444 = pneg %p236
        %p445 = pneg %p233
        %p446 = pneg %p257
        %p447 = pneg %p254
        %p448 = pneg %p278
        %p449 = pneg %p275
        %p450 = pneg %p299
        %p451 = pneg %p296
        %p452 = pneg %p325
        %p453 = pneg %p322
        %p454 = scmp.lt.s32.totalorder %s26, 1
        %s455 = scalar_select %p454, %s26, 1
        %s456 = smul.addr %s455, 8
        %s457 = scalar_lea.vmem %s13, %s456
        %p458 = scmp.lt.s32.totalorder %s26, 1
        %s459 = scalar_select %p458, %s26, 1
        %s460 = smul.addr %s459, 8
        %s461 = scalar_lea.vmem %s0, %s460
        %p462 = scmp.lt.s32.totalorder %s26, 1
        %s463 = scalar_select %p462, %s26, 1
        %s464 = smul.addr %s463, 8
        %s465 = scalar_lea.vmem %s13, %s464
        %v466 = vld [vmem:[%s461] sm:$0xff]
        %v467 = vld [vmem:[%s1] sm:$0xff]
        %v468 = vld [vmem:[%s1 + $0x8] sm:$0xff]
        %v469 = vld [vmem:[%s1 + $0x10] sm:$0xff]
        %v470 = vld [vmem:[%s1 + $0x18] sm:$0xff]
        %v471 = vld [vmem:[%s1 + $0x20] sm:$0xff]
        %v472 = vld [vmem:[%s1 + $0x28] sm:$0xff]
        %v473 = vld [vmem:[%s1 + $0x30] sm:$0xff]
        %v474 = vld [vmem:[%s1 + $0x38] sm:$0xff]
        %v475 = vld [vmem:[%s1 + $0x40] sm:$0xff]
        %v476 = vld [vmem:[%s1 + $0x48] sm:$0xff]
        %v477 = vld [vmem:[%s1 + $0x50] sm:$0xff]
        %v478 = vld [vmem:[%s1 + $0x58] sm:$0xff]
        %v479 = vld [vmem:[%s1 + $0x60] sm:$0xff]
        %v480 = vld [vmem:[%s1 + $0x68] sm:$0xff]
        %v481 = vld [vmem:[%s1 + $0x70] sm:$0xff]
        %v482 = vld [vmem:[%s1 + $0x78] sm:$0xff]
        %v483 = vld [vmem:[%s2] sm:$0xff]
        %v484 = vld [vmem:[%s2 + $0x8] sm:$0xff]
        %v485 = vld [vmem:[%s2 + $0x10] sm:$0xff]
        %v486 = vld [vmem:[%s2 + $0x18] sm:$0xff]
        %v487 = vld [vmem:[%s2 + $0x20] sm:$0xff]
        %v488 = vld [vmem:[%s2 + $0x28] sm:$0xff]
        %v489 = vld [vmem:[%s2 + $0x30] sm:$0xff]
        %v490 = vld [vmem:[%s2 + $0x38] sm:$0xff]
        %v491 = vld [vmem:[%s2 + $0x40] sm:$0xff]
        %v492 = vld [vmem:[%s2 + $0x48] sm:$0xff]
        %v493 = vld [vmem:[%s2 + $0x50] sm:$0xff]
        %v494 = vld [vmem:[%s2 + $0x58] sm:$0xff]
        %v495 = vld [vmem:[%s2 + $0x60] sm:$0xff]
        %v496 = vld [vmem:[%s2 + $0x68] sm:$0xff]
        %v497 = vld [vmem:[%s2 + $0x70] sm:$0xff]
        %v498 = vld [vmem:[%s2 + $0x78] sm:$0xff]
        %v499 = vld [vmem:[%s3] sm:$0xff]
        %v500 = vld [vmem:[%s3 + $0x8] sm:$0xff]
        %v501 = vld [vmem:[%s3 + $0x10] sm:$0xff]
        %v502 = vld [vmem:[%s3 + $0x18] sm:$0xff]
        %v503 = vld [vmem:[%s3 + $0x20] sm:$0xff]
        %v504 = vld [vmem:[%s3 + $0x28] sm:$0xff]
        %v505 = vld [vmem:[%s3 + $0x30] sm:$0xff]
        %v506 = vld [vmem:[%s3 + $0x38] sm:$0xff]
        %v507 = vld [vmem:[%s3 + $0x40] sm:$0xff]
        %v508 = vld [vmem:[%s3 + $0x48] sm:$0xff]
        %v509 = vld [vmem:[%s3 + $0x50] sm:$0xff]
        %v510 = vld [vmem:[%s3 + $0x58] sm:$0xff]
        %v511 = vld [vmem:[%s3 + $0x60] sm:$0xff]
        %v512 = vld [vmem:[%s3 + $0x68] sm:$0xff]
        %v513 = vld [vmem:[%s3 + $0x70] sm:$0xff]
        %v514 = vld [vmem:[%s3 + $0x78] sm:$0xff]
        %v515 = vld [vmem:[%s4] sm:$0xff]
        %v516 = vld [vmem:[%s4 + $0x8] sm:$0xff]
        %v517 = vld [vmem:[%s4 + $0x10] sm:$0xff]
        %v518 = vld [vmem:[%s4 + $0x18] sm:$0xff]
        %519 = vmatprep.subr.mxu0 0.0
        %520 = vmatpush1.msra.mxu0 %v467
        %521 = vmatprep.subr.mxu0 0.0
        %522 = vmatpush1.msra.mxu0 %v468
        %523 = vmatprep.subr.mxu0 0.0
        %524 = vmatpush1.msra.mxu0 %v469
        %525 = vmatprep.subr.mxu0 0.0
        %526 = vmatpush1.msra.mxu0 %v470
        %527 = vmatprep.subr.mxu0 0.0
        %528 = vmatpush1.msra.mxu0 %v471
        %529 = vmatprep.subr.mxu0 0.0
        %530 = vmatpush1.msra.mxu0 %v472
        %531 = vmatprep.subr.mxu0 0.0
        %532 = vmatpush1.msra.mxu0 %v473
        %533 = vmatprep.subr.mxu0 0.0
        %534 = vmatpush1.msra.mxu0 %v474
        %535 = vmatprep.subr.mxu0 0.0
        %536 = vmatpush1.msra.mxu0 %v475
        %537 = vmatprep.subr.mxu0 0.0
        %538 = vmatpush1.msra.mxu0 %v476
        %539 = vmatprep.subr.mxu0 0.0
        %540 = vmatpush1.msra.mxu0 %v477
        %541 = vmatprep.subr.mxu0 0.0
        %542 = vmatpush1.msra.mxu0 %v478
        %543 = vmatprep.subr.mxu0 0.0
        %544 = vmatpush1.msra.mxu0 %v479
        %545 = vmatprep.subr.mxu0 0.0
        %546 = vmatpush1.msra.mxu0 %v480
        %547 = vmatprep.subr.mxu0 0.0
        %548 = vmatpush1.msra.mxu0 %v481
        %549 = vmatprep.subr.mxu0 0.0
        %550 = vmatpush1.msra.mxu0 %v482
        %551 = vmatprep.subr.mxu0 0.0
        %552 = vmatpush1.msra.mxu0 0.0
        %553 = vmatprep.subr.mxu0 0.0
        %554 = vmatpush1.msra.mxu0 0.0
        %555 = vmatprep.subr.mxu0 0.0
        %556 = vmatpush1.msra.mxu0 0.0
        %557 = vmatprep.subr.mxu0 0.0
        %558 = vmatpush1.msra.mxu0 0.0
        %559 = vmatprep.subr.mxu0 0.0
        %560 = vmatpush1.msra.mxu0 0.0
        %561 = vmatprep.subr.mxu0 0.0
        %562 = vmatpush1.msra.mxu0 0.0
        %563 = vmatprep.subr.mxu0 0.0
        %564 = vmatpush1.msra.mxu0 0.0
        %565 = vmatprep.subr.mxu0 0.0
        %566 = vmatpush1.msra.mxu0 0.0
        %567 = vmatprep.subr.mxu0 0.0
        %568 = vmatpush1.msra.mxu0 0.0
        %569 = vmatprep.subr.mxu0 0.0
        %570 = vmatpush1.msra.mxu0 0.0
        %571 = vmatprep.subr.mxu0 0.0
        %572 = vmatpush1.msra.mxu0 0.0
        %573 = vmatprep.subr.mxu0 0.0
        %574 = vmatpush1.msra.mxu0 0.0
        %575 = vmatprep.subr.mxu0 0.0
        %576 = vmatpush1.msra.mxu0 0.0
        %577 = vmatprep.subr.mxu0 0.0
        %578 = vmatpush1.msra.mxu0 0.0
        %579 = vmatprep.subr.mxu0 0.0
        %580 = vmatpush1.msra.mxu0 0.0
        %581 = vmatprep.subr.mxu0 0.0
        %582 = vmatpush1.msra.mxu0 0.0
        %583 = vmatprep.mubr.f32.mxu0 0.0
        %584 = vmatmul.mubr.f32.gmra.mrb[0].mxu0 %v466
        %v585 = vpop.f32.mrb[0].mxu0
        %v586 = vadd.f32 0.0, %v585
        %v587 = vpop.f32.mrb[0].mxu0
        %588 = vdwg.mxu0
        %589 = vmatprep.subr.mxu0 0.0
        %590 = vmatpush1.msra.mxu0 %v483
        %591 = vmatprep.subr.mxu0 0.0
        %592 = vmatpush1.msra.mxu0 %v484
        %593 = vmatprep.subr.mxu0 0.0
        %594 = vmatpush1.msra.mxu0 %v485
        %595 = vmatprep.subr.mxu0 0.0
        %596 = vmatpush1.msra.mxu0 %v486
        %597 = vmatprep.subr.mxu0 0.0
        %598 = vmatpush1.msra.mxu0 %v487
        %599 = vmatprep.subr.mxu0 0.0
        %600 = vmatpush1.msra.mxu0 %v488
        %601 = vmatprep.subr.mxu0 0.0
        %602 = vmatpush1.msra.mxu0 %v489
        %603 = vmatprep.subr.mxu0 0.0
        %604 = vmatpush1.msra.mxu0 %v490
        %605 = vmatprep.subr.mxu0 0.0
        %606 = vmatpush1.msra.mxu0 %v491
        %607 = vmatprep.subr.mxu0 0.0
        %608 = vmatpush1.msra.mxu0 %v492
        %609 = vmatprep.subr.mxu0 0.0
        %610 = vmatpush1.msra.mxu0 %v493
        %611 = vmatprep.subr.mxu0 0.0
        %612 = vmatpush1.msra.mxu0 %v494
        %613 = vmatprep.subr.mxu0 0.0
        %614 = vmatpush1.msra.mxu0 %v495
        %615 = vmatprep.subr.mxu0 0.0
        %616 = vmatpush1.msra.mxu0 %v496
        %617 = vmatprep.subr.mxu0 0.0
        %618 = vmatpush1.msra.mxu0 %v497
        %619 = vmatprep.subr.mxu0 0.0
        %620 = vmatpush1.msra.mxu0 %v498
        %621 = vmatprep.subr.mxu0 0.0
        %622 = vmatpush1.msra.mxu0 0.0
        %623 = vmatprep.subr.mxu0 0.0
        %624 = vmatpush1.msra.mxu0 0.0
        %625 = vmatprep.subr.mxu0 0.0
        %626 = vmatpush1.msra.mxu0 0.0
        %627 = vmatprep.subr.mxu0 0.0
        %628 = vmatpush1.msra.mxu0 0.0
        %629 = vmatprep.subr.mxu0 0.0
        %630 = vmatpush1.msra.mxu0 0.0
        %631 = vmatprep.subr.mxu0 0.0
        %632 = vmatpush1.msra.mxu0 0.0
        %633 = vmatprep.subr.mxu0 0.0
        %634 = vmatpush1.msra.mxu0 0.0
        %635 = vmatprep.subr.mxu0 0.0
        %636 = vmatpush1.msra.mxu0 0.0
        %637 = vmatprep.subr.mxu0 0.0
        %638 = vmatpush1.msra.mxu0 0.0
        %639 = vmatprep.subr.mxu0 0.0
        %640 = vmatpush1.msra.mxu0 0.0
        %641 = vmatprep.subr.mxu0 0.0
        %642 = vmatpush1.msra.mxu0 0.0
        %643 = vmatprep.subr.mxu0 0.0
        %644 = vmatpush1.msra.mxu0 0.0
        %645 = vmatprep.subr.mxu0 0.0
        %646 = vmatpush1.msra.mxu0 0.0
        %647 = vmatprep.subr.mxu0 0.0
        %648 = vmatpush1.msra.mxu0 0.0
        %649 = vmatprep.subr.mxu0 0.0
        %650 = vmatpush1.msra.mxu0 0.0
        %651 = vmatprep.subr.mxu0 0.0
        %652 = vmatpush1.msra.mxu0 0.0
        %653 = vmatprep.mubr.f32.mxu0 0.0
        %654 = vmatmul.mubr.f32.gmra.mrb[0].mxu0 %v466
        %v655 = vpop.f32.mrb[0].mxu0
        %v656 = vadd.f32 0.0, %v655
        %v657 = vpop.f32.mrb[0].mxu0
        %658 = vdwg.mxu0
        %659 = vmatprep.subr.mxu0 0.0
        %660 = vmatpush1.msra.mxu0 %v499
        %661 = vmatprep.subr.mxu0 0.0
        %662 = vmatpush1.msra.mxu0 %v500
        %663 = vmatprep.subr.mxu0 0.0
        %664 = vmatpush1.msra.mxu0 %v501
        %665 = vmatprep.subr.mxu0 0.0
        %666 = vmatpush1.msra.mxu0 %v502
        %667 = vmatprep.subr.mxu0 0.0
        %668 = vmatpush1.msra.mxu0 %v503
        %669 = vmatprep.subr.mxu0 0.0
        %670 = vmatpush1.msra.mxu0 %v504
        %671 = vmatprep.subr.mxu0 0.0
        %672 = vmatpush1.msra.mxu0 %v505
        %673 = vmatprep.subr.mxu0 0.0
        %674 = vmatpush1.msra.mxu0 %v506
        %675 = vmatprep.subr.mxu0 0.0
        %676 = vmatpush1.msra.mxu0 %v507
        %677 = vmatprep.subr.mxu0 0.0
        %678 = vmatpush1.msra.mxu0 %v508
        %679 = vmatprep.subr.mxu0 0.0
        %680 = vmatpush1.msra.mxu0 %v509
        %681 = vmatprep.subr.mxu0 0.0
        %682 = vmatpush1.msra.mxu0 %v510
        %683 = vmatprep.subr.mxu0 0.0
        %684 = vmatpush1.msra.mxu0 %v511
        %685 = vmatprep.subr.mxu0 0.0
        %686 = vmatpush1.msra.mxu0 %v512
        %687 = vmatprep.subr.mxu0 0.0
        %688 = vmatpush1.msra.mxu0 %v513
        %689 = vmatprep.subr.mxu0 0.0
        %690 = vmatpush1.msra.mxu0 %v514
        %691 = vmatprep.subr.mxu0 0.0
        %692 = vmatpush1.msra.mxu0 0.0
        %693 = vmatprep.subr.mxu0 0.0
        %694 = vmatpush1.msra.mxu0 0.0
        %695 = vmatprep.subr.mxu0 0.0
        %696 = vmatpush1.msra.mxu0 0.0
        %697 = vmatprep.subr.mxu0 0.0
        %698 = vmatpush1.msra.mxu0 0.0
        %699 = vmatprep.subr.mxu0 0.0
        %700 = vmatpush1.msra.mxu0 0.0
        %701 = vmatprep.subr.mxu0 0.0
        %702 = vmatpush1.msra.mxu0 0.0
        %703 = vmatprep.subr.mxu0 0.0
        %704 = vmatpush1.msra.mxu0 0.0
        %705 = vmatprep.subr.mxu0 0.0
        %706 = vmatpush1.msra.mxu0 0.0
        %707 = vmatprep.subr.mxu0 0.0
        %708 = vmatpush1.msra.mxu0 0.0
        %709 = vmatprep.subr.mxu0 0.0
        %710 = vmatpush1.msra.mxu0 0.0
        %711 = vmatprep.subr.mxu0 0.0
        %712 = vmatpush1.msra.mxu0 0.0
        %713 = vmatprep.subr.mxu0 0.0
        %714 = vmatpush1.msra.mxu0 0.0
        %715 = vmatprep.subr.mxu0 0.0
        %716 = vmatpush1.msra.mxu0 0.0
        %717 = vmatprep.subr.mxu0 0.0
        %718 = vmatpush1.msra.mxu0 0.0
        %719 = vmatprep.subr.mxu0 0.0
        %720 = vmatpush1.msra.mxu0 0.0
        %721 = vmatprep.subr.mxu0 0.0
        %722 = vmatpush1.msra.mxu0 0.0
        %723 = vmatprep.mubr.f32.mxu0 0.0
        %724 = vmatmul.mubr.f32.gmra.mrb[0].mxu0 %v466
        %v725 = vpop.f32.mrb[0].mxu0
        %v726 = vadd.f32 0.0, %v725
        %v727 = vpop.f32.mrb[0].mxu0
        %728 = vdwg.mxu0
        %vm729 = vcmask 64512
        %v731 = vsel %vm729, %v586, 0
        %v734 = vsel %vm729, %v656, 0
        %736 = vmatprep.subr.mxu0 0.0
        %737 = vmatpush1.xpose.msra.mxu0 %v734
        %738 = vmatprep.subr.mxu0 0.0
        %739 = vmatpush1.xpose.msra.mxu0 0.0
        %740 = vmatprep.subr.mxu0 0.0
        %741 = vmatpush1.xpose.msra.mxu0 0.0
        %742 = vmatprep.subr.mxu0 0.0
        %743 = vmatpush1.xpose.msra.mxu0 0.0
        %744 = vmatprep.subr.mxu0 0.0
        %745 = vmatpush1.xpose.msra.mxu0 0.0
        %746 = vmatprep.subr.mxu0 0.0
        %747 = vmatpush1.xpose.msra.mxu0 0.0
        %748 = vmatprep.subr.mxu0 0.0
        %749 = vmatpush1.xpose.msra.mxu0 0.0
        %750 = vmatprep.subr.mxu0 0.0
        %751 = vmatpush1.xpose.msra.mxu0 0.0
        %752 = vmatprep.subr.mxu0 0.0
        %753 = vmatpush1.xpose.msra.mxu0 0.0
        %754 = vmatprep.subr.mxu0 0.0
        %755 = vmatpush1.xpose.msra.mxu0 0.0
        %756 = vmatprep.subr.mxu0 0.0
        %757 = vmatpush1.xpose.msra.mxu0 0.0
        %758 = vmatprep.subr.mxu0 0.0
        %759 = vmatpush1.xpose.msra.mxu0 0.0
        %760 = vmatprep.subr.mxu0 0.0
        %761 = vmatpush1.xpose.msra.mxu0 0.0
        %762 = vmatprep.subr.mxu0 0.0
        %763 = vmatpush1.xpose.msra.mxu0 0.0
        %764 = vmatprep.subr.mxu0 0.0
        %765 = vmatpush1.xpose.msra.mxu0 0.0
        %766 = vmatprep.subr.mxu0 0.0
        %767 = vmatpush1.xpose.msra.mxu0 0.0
        %768 = vmatprep.subr.mxu0 0.0
        %769 = vmatpush1.xpose.msra.mxu0 0.0
        %770 = vmatprep.subr.mxu0 0.0
        %771 = vmatpush1.xpose.msra.mxu0 0.0
        %772 = vmatprep.subr.mxu0 0.0
        %773 = vmatpush1.xpose.msra.mxu0 0.0
        %774 = vmatprep.subr.mxu0 0.0
        %775 = vmatpush1.xpose.msra.mxu0 0.0
        %776 = vmatprep.subr.mxu0 0.0
        %777 = vmatpush1.xpose.msra.mxu0 0.0
        %778 = vmatprep.subr.mxu0 0.0
        %779 = vmatpush1.xpose.msra.mxu0 0.0
        %780 = vmatprep.subr.mxu0 0.0
        %781 = vmatpush1.xpose.msra.mxu0 0.0
        %782 = vmatprep.subr.mxu0 0.0
        %783 = vmatpush1.xpose.msra.mxu0 0.0
        %784 = vmatprep.subr.mxu0 0.0
        %785 = vmatpush1.xpose.msra.mxu0 0.0
        %786 = vmatprep.subr.mxu0 0.0
        %787 = vmatpush1.xpose.msra.mxu0 0.0
        %788 = vmatprep.subr.mxu0 0.0
        %789 = vmatpush1.xpose.msra.mxu0 0.0
        %790 = vmatprep.subr.mxu0 0.0
        %791 = vmatpush1.xpose.msra.mxu0 0.0
        %792 = vmatprep.subr.mxu0 0.0
        %793 = vmatpush1.xpose.msra.mxu0 0.0
        %794 = vmatprep.subr.mxu0 0.0
        %795 = vmatpush1.xpose.msra.mxu0 0.0
        %796 = vmatprep.subr.mxu0 0.0
        %797 = vmatpush1.xpose.msra.mxu0 0.0
        %798 = vmatprep.subr.mxu0 0.0
        %799 = vmatpush1.xpose.msra.mxu0 0.0
        %800 = vmatprep.mubr.f32.mxu0 0.0
        %801 = vmatmul.mubr.f32.gmra.mrb[0].mxu0 %v731
        %v802 = vpop.f32.mrb[0].mxu0
        %v803 = vadd.f32 0.0, %v802
        %v804 = vpop.f32.mrb[0].mxu0
        %805 = vdwg.mxu0
        %v806 = vmul.f32 %v803, 0.17677669
        %v807 = vsel %vm729, %v806, -inf
        %808 = vmax.xlane.f32.xlu0 %v807
        %v809 = vpop.xlane.xlu0 %808
        %v810 = vsub.f32 %v806, %v809
        %v811 = vmul.f32 %v810, 1.442695
        %v812 = vpow.pop %v811
        %v813 = vsel %vm729, %v812, 0.0
        %814 = vadd.xlane.f32.xlu0 %v813
        %v815 = vpop.xlane.xlu0 %814
        %v816 = vrcp.pop %v815
        %v817 = vmul.f32 %v812, %v816
        %v819 = vsel %vm729, %v817, 0
        %821 = vmatprep.subr.mxu0 0.0
        %822 = vmatpush1.msra.mxu0 %v726
        %823 = vmatprep.subr.mxu0 0.0
        %824 = vmatpush1.msra.mxu0 0.0
        %825 = vmatprep.subr.mxu0 0.0
        %826 = vmatpush1.msra.mxu0 0.0
        %827 = vmatprep.subr.mxu0 0.0
        %828 = vmatpush1.msra.mxu0 0.0
        %829 = vmatprep.subr.mxu0 0.0
        %830 = vmatpush1.msra.mxu0 0.0
        %831 = vmatprep.subr.mxu0 0.0
        %832 = vmatpush1.msra.mxu0 0.0
        %833 = vmatprep.subr.mxu0 0.0
        %834 = vmatpush1.msra.mxu0 0.0
        %835 = vmatprep.subr.mxu0 0.0
        %836 = vmatpush1.msra.mxu0 0.0
        %837 = vmatprep.subr.mxu0 0.0
        %838 = vmatpush1.msra.mxu0 0.0
        %839 = vmatprep.subr.mxu0 0.0
        %840 = vmatpush1.msra.mxu0 0.0
        %841 = vmatprep.subr.mxu0 0.0
        %842 = vmatpush1.msra.mxu0 0.0
        %843 = vmatprep.subr.mxu0 0.0
        %844 = vmatpush1.msra.mxu0 0.0
        %845 = vmatprep.subr.mxu0 0.0
        %846 = vmatpush1.msra.mxu0 0.0
        %847 = vmatprep.subr.mxu0 0.0
        %848 = vmatpush1.msra.mxu0 0.0
        %849 = vmatprep.subr.mxu0 0.0
        %850 = vmatpush1.msra.mxu0 0.0
        %851 = vmatprep.subr.mxu0 0.0
        %852 = vmatpush1.msra.mxu0 0.0
        %853 = vmatprep.subr.mxu0 0.0
        %854 = vmatpush1.msra.mxu0 0.0
        %855 = vmatprep.subr.mxu0 0.0
        %856 = vmatpush1.msra.mxu0 0.0
        %857 = vmatprep.subr.mxu0 0.0
        %858 = vmatpush1.msra.mxu0 0.0
        %859 = vmatprep.subr.mxu0 0.0
        %860 = vmatpush1.msra.mxu0 0.0
        %861 = vmatprep.subr.mxu0 0.0
        %862 = vmatpush1.msra.mxu0 0.0
        %863 = vmatprep.subr.mxu0 0.0
        %864 = vmatpush1.msra.mxu0 0.0
        %865 = vmatprep.subr.mxu0 0.0
        %866 = vmatpush1.msra.mxu0 0.0
        %867 = vmatprep.subr.mxu0 0.0
        %868 = vmatpush1.msra.mxu0 0.0
        %869 = vmatprep.subr.mxu0 0.0
        %870 = vmatpush1.msra.mxu0 0.0
        %871 = vmatprep.subr.mxu0 0.0
        %872 = vmatpush1.msra.mxu0 0.0
        %873 = vmatprep.subr.mxu0 0.0
        %874 = vmatpush1.msra.mxu0 0.0
        %875 = vmatprep.subr.mxu0 0.0
        %876 = vmatpush1.msra.mxu0 0.0
        %877 = vmatprep.subr.mxu0 0.0
        %878 = vmatpush1.msra.mxu0 0.0
        %879 = vmatprep.subr.mxu0 0.0
        %880 = vmatpush1.msra.mxu0 0.0
        %881 = vmatprep.subr.mxu0 0.0
        %882 = vmatpush1.msra.mxu0 0.0
        %883 = vmatprep.subr.mxu0 0.0
        %884 = vmatpush1.msra.mxu0 0.0
        %885 = vmatprep.mubr.f32.mxu0 0.0
        %886 = vmatmul.mubr.f32.gmra.mrb[0].mxu0 %v819
        %v887 = vpop.f32.mrb[0].mxu0
        %v888 = vadd.f32 0.0, %v887
        %v889 = vpop.f32.mrb[0].mxu0
        %890 = vdwg.mxu0
        %891 = vrot.lane.b32.xlu0 %v586, 120
        %v892 = vpop.permute.xlu0 %891
        %893 = vrot.lane.b32.xlu0 %v656, 120
        %v894 = vpop.permute.xlu0 %893
        %v895 = vsel %vm729, %v892, 0
        %v897 = vsel %vm729, %v894, 0
        %899 = vmatprep.subr.mxu0 0.0
        %900 = vmatpush1.xpose.msra.mxu0 %v897
        %901 = vmatprep.subr.mxu0 0.0
        %902 = vmatpush1.xpose.msra.mxu0 0.0
        %903 = vmatprep.subr.mxu0 0.0
        %904 = vmatpush1.xpose.msra.mxu0 0.0
        %905 = vmatprep.subr.mxu0 0.0
        %906 = vmatpush1.xpose.msra.mxu0 0.0
        %907 = vmatprep.subr.mxu0 0.0
        %908 = vmatpush1.xpose.msra.mxu0 0.0
        %909 = vmatprep.subr.mxu0 0.0
        %910 = vmatpush1.xpose.msra.mxu0 0.0
        %911 = vmatprep.subr.mxu0 0.0
        %912 = vmatpush1.xpose.msra.mxu0 0.0
        %913 = vmatprep.subr.mxu0 0.0
        %914 = vmatpush1.xpose.msra.mxu0 0.0
        %915 = vmatprep.subr.mxu0 0.0
        %916 = vmatpush1.xpose.msra.mxu0 0.0
        %917 = vmatprep.subr.mxu0 0.0
        %918 = vmatpush1.xpose.msra.mxu0 0.0
        %919 = vmatprep.subr.mxu0 0.0
        %920 = vmatpush1.xpose.msra.mxu0 0.0
        %921 = vmatprep.subr.mxu0 0.0
        %922 = vmatpush1.xpose.msra.mxu0 0.0
        %923 = vmatprep.subr.mxu0 0.0
        %924 = vmatpush1.xpose.msra.mxu0 0.0
        %925 = vmatprep.subr.mxu0 0.0
        %926 = vmatpush1.xpose.msra.mxu0 0.0
        %927 = vmatprep.subr.mxu0 0.0
        %928 = vmatpush1.xpose.msra.mxu0 0.0
        %929 = vmatprep.subr.mxu0 0.0
        %930 = vmatpush1.xpose.msra.mxu0 0.0
        %931 = vmatprep.subr.mxu0 0.0
        %932 = vmatpush1.xpose.msra.mxu0 0.0
        %933 = vmatprep.subr.mxu0 0.0
        %934 = vmatpush1.xpose.msra.mxu0 0.0
        %935 = vmatprep.subr.mxu0 0.0
        %936 = vmatpush1.xpose.msra.mxu0 0.0
        %937 = vmatprep.subr.mxu0 0.0
        %938 = vmatpush1.xpose.msra.mxu0 0.0
        %939 = vmatprep.subr.mxu0 0.0
        %940 = vmatpush1.xpose.msra.mxu0 0.0
        %941 = vmatprep.subr.mxu0 0.0
        %942 = vmatpush1.xpose.msra.mxu0 0.0
        %943 = vmatprep.subr.mxu0 0.0
        %944 = vmatpush1.xpose.msra.mxu0 0.0
        %945 = vmatprep.subr.mxu0 0.0
        %946 = vmatpush1.xpose.msra.mxu0 0.0
        %947 = vmatprep.subr.mxu0 0.0
        %948 = vmatpush1.xpose.msra.mxu0 0.0
        %949 = vmatprep.subr.mxu0 0.0
        %950 = vmatpush1.xpose.msra.mxu0 0.0
        %951 = vmatprep.subr.mxu0 0.0
        %952 = vmatpush1.xpose.msra.mxu0 0.0
        %953 = vmatprep.subr.mxu0 0.0
        %954 = vmatpush1.xpose.msra.mxu0 0.0
        %955 = vmatprep.subr.mxu0 0.0
        %956 = vmatpush1.xpose.msra.mxu0 0.0
        %957 = vmatprep.subr.mxu0 0.0
        %958 = vmatpush1.xpose.msra.mxu0 0.0
        %959 = vmatprep.subr.mxu0 0.0
        %960 = vmatpush1.xpose.msra.mxu0 0.0
        %961 = vmatprep.subr.mxu0 0.0
        %962 = vmatpush1.xpose.msra.mxu0 0.0
        %963 = vmatprep.mubr.f32.mxu0 0.0
        %964 = vmatmul.mubr.f32.gmra.mrb[0].mxu0 %v895
        %v965 = vpop.f32.mrb[0].mxu0
        %v966 = vadd.f32 0.0, %v965
        %v967 = vpop.f32.mrb[0].mxu0
        %968 = vdwg.mxu0
        %v969 = vmul.f32 %v966, 0.17677669
        %v970 = vsel %vm729, %v969, -inf
        %971 = vmax.xlane.f32.xlu0 %v970
        %v972 = vpop.xlane.xlu0 %971
        %v973 = vsub.f32 %v969, %v972
        %v974 = vmul.f32 %v973, 1.442695
        %v975 = vpow.pop %v974
        %v976 = vsel %vm729, %v975, 0.0
        %977 = vadd.xlane.f32.xlu0 %v976
        %v978 = vpop.xlane.xlu0 %977
        %v979 = vrcp.pop %v978
        %v980 = vmul.f32 %v975, %v979
        %982 = vrot.lane.b32.xlu0 %v726, 120
        %v983 = vpop.permute.xlu0 %982
        %v986 = vsel %vm729, %v980, 0
        %988 = vmatprep.subr.mxu0 0.0
        %989 = vmatpush1.msra.mxu0 %v983
        %990 = vmatprep.subr.mxu0 0.0
        %991 = vmatpush1.msra.mxu0 0.0
        %992 = vmatprep.subr.mxu0 0.0
        %993 = vmatpush1.msra.mxu0 0.0
        %994 = vmatprep.subr.mxu0 0.0
        %995 = vmatpush1.msra.mxu0 0.0
        %996 = vmatprep.subr.mxu0 0.0
        %997 = vmatpush1.msra.mxu0 0.0
        %998 = vmatprep.subr.mxu0 0.0
        %999 = vmatpush1.msra.mxu0 0.0
        %1000 = vmatprep.subr.mxu0 0.0
        %1001 = vmatpush1.msra.mxu0 0.0
        %1002 = vmatprep.subr.mxu0 0.0
        %1003 = vmatpush1.msra.mxu0 0.0
        %1004 = vmatprep.subr.mxu0 0.0
        %1005 = vmatpush1.msra.mxu0 0.0
        %1006 = vmatprep.subr.mxu0 0.0
        %1007 = vmatpush1.msra.mxu0 0.0
        %1008 = vmatprep.subr.mxu0 0.0
        %1009 = vmatpush1.msra.mxu0 0.0
        %1010 = vmatprep.subr.mxu0 0.0
        %1011 = vmatpush1.msra.mxu0 0.0
        %1012 = vmatprep.subr.mxu0 0.0
        %1013 = vmatpush1.msra.mxu0 0.0
        %1014 = vmatprep.subr.mxu0 0.0
        %1015 = vmatpush1.msra.mxu0 0.0
        %1016 = vmatprep.subr.mxu0 0.0
        %1017 = vmatpush1.msra.mxu0 0.0
        %1018 = vmatprep.subr.mxu0 0.0
        %1019 = vmatpush1.msra.mxu0 0.0
        %1020 = vmatprep.subr.mxu0 0.0
        %1021 = vmatpush1.msra.mxu0 0.0
        %1022 = vmatprep.subr.mxu0 0.0
        %1023 = vmatpush1.msra.mxu0 0.0
        %1024 = vmatprep.subr.mxu0 0.0
        %1025 = vmatpush1.msra.mxu0 0.0
        %1026 = vmatprep.subr.mxu0 0.0
        %1027 = vmatpush1.msra.mxu0 0.0
        %1028 = vmatprep.subr.mxu0 0.0
        %1029 = vmatpush1.msra.mxu0 0.0
        %1030 = vmatprep.subr.mxu0 0.0
        %1031 = vmatpush1.msra.mxu0 0.0
        %1032 = vmatprep.subr.mxu0 0.0
        %1033 = vmatpush1.msra.mxu0 0.0
        %1034 = vmatprep.subr.mxu0 0.0
        %1035 = vmatpush1.msra.mxu0 0.0
        %1036 = vmatprep.subr.mxu0 0.0
        %1037 = vmatpush1.msra.mxu0 0.0
        %1038 = vmatprep.subr.mxu0 0.0
        %1039 = vmatpush1.msra.mxu0 0.0
        %1040 = vmatprep.subr.mxu0 0.0
        %1041 = vmatpush1.msra.mxu0 0.0
        %1042 = vmatprep.subr.mxu0 0.0
        %1043 = vmatpush1.msra.mxu0 0.0
        %1044 = vmatprep.subr.mxu0 0.0
        %1045 = vmatpush1.msra.mxu0 0.0
        %1046 = vmatprep.subr.mxu0 0.0
        %1047 = vmatpush1.msra.mxu0 0.0
        %1048 = vmatprep.subr.mxu0 0.0
        %1049 = vmatpush1.msra.mxu0 0.0
        %1050 = vmatprep.subr.mxu0 0.0
        %1051 = vmatpush1.msra.mxu0 0.0
        %1052 = vmatprep.mubr.f32.mxu0 0.0
        %1053 = vmatmul.mubr.f32.gmra.mrb[0].mxu0 %v986
        %v1054 = vpop.f32.mrb[0].mxu0
        %v1055 = vadd.f32 0.0, %v1054
        %v1056 = vpop.f32.mrb[0].mxu0
        %1057 = vdwg.mxu0
        %1058 = vrot.lane.b32.xlu0 %v586, 112
        %v1059 = vpop.permute.xlu0 %1058
        %1060 = vrot.lane.b32.xlu0 %v656, 112
        %v1061 = vpop.permute.xlu0 %1060
        %v1062 = vsel %vm729, %v1059, 0
        %v1064 = vsel %vm729, %v1061, 0
        %1066 = vmatprep.subr.mxu0 0.0
        %1067 = vmatpush1.xpose.msra.mxu0 %v1064
        %1068 = vmatprep.subr.mxu0 0.0
        %1069 = vmatpush1.xpose.msra.mxu0 0.0
        %1070 = vmatprep.subr.mxu0 0.0
        %1071 = vmatpush1.xpose.msra.mxu0 0.0
        %1072 = vmatprep.subr.mxu0 0.0
        %1073 = vmatpush1.xpose.msra.mxu0 0.0
        %1074 = vmatprep.subr.mxu0 0.0
        %1075 = vmatpush1.xpose.msra.mxu0 0.0
        %1076 = vmatprep.subr.mxu0 0.0
        %1077 = vmatpush1.xpose.msra.mxu0 0.0
        %1078 = vmatprep.subr.mxu0 0.0
        %1079 = vmatpush1.xpose.msra.mxu0 0.0
        %1080 = vmatprep.subr.mxu0 0.0
        %1081 = vmatpush1.xpose.msra.mxu0 0.0
        %1082 = vmatprep.subr.mxu0 0.0
        %1083 = vmatpush1.xpose.msra.mxu0 0.0
        %1084 = vmatprep.subr.mxu0 0.0
        %1085 = vmatpush1.xpose.msra.mxu0 0.0
        %1086 = vmatprep.subr.mxu0 0.0
        %1087 = vmatpush1.xpose.msra.mxu0 0.0
        %1088 = vmatprep.subr.mxu0 0.0
        %1089 = vmatpush1.xpose.msra.mxu0 0.0
        %1090 = vmatprep.subr.mxu0 0.0
        %1091 = vmatpush1.xpose.msra.mxu0 0.0
        %1092 = vmatprep.subr.mxu0 0.0
        %1093 = vmatpush1.xpose.msra.mxu0 0.0
        %1094 = vmatprep.subr.mxu0 0.0
        %1095 = vmatpush1.xpose.msra.mxu0 0.0
        %1096 = vmatprep.subr.mxu0 0.0
        %1097 = vmatpush1.xpose.msra.mxu0 0.0
        %1098 = vmatprep.subr.mxu0 0.0
        %1099 = vmatpush1.xpose.msra.mxu0 0.0
        %1100 = vmatprep.subr.mxu0 0.0
        %1101 = vmatpush1.xpose.msra.mxu0 0.0
        %1102 = vmatprep.subr.mxu0 0.0
        %1103 = vmatpush1.xpose.msra.mxu0 0.0
        %1104 = vmatprep.subr.mxu0 0.0
        %1105 = vmatpush1.xpose.msra.mxu0 0.0
        %1106 = vmatprep.subr.mxu0 0.0
        %1107 = vmatpush1.xpose.msra.mxu0 0.0
        %1108 = vmatprep.subr.mxu0 0.0
        %1109 = vmatpush1.xpose.msra.mxu0 0.0
        %1110 = vmatprep.subr.mxu0 0.0
        %1111 = vmatpush1.xpose.msra.mxu0 0.0
        %1112 = vmatprep.subr.mxu0 0.0
        %1113 = vmatpush1.xpose.msra.mxu0 0.0
        %1114 = vmatprep.subr.mxu0 0.0
        %1115 = vmatpush1.xpose.msra.mxu0 0.0
        %1116 = vmatprep.subr.mxu0 0.0
        %1117 = vmatpush1.xpose.msra.mxu0 0.0
        %1118 = vmatprep.subr.mxu0 0.0
        %1119 = vmatpush1.xpose.msra.mxu0 0.0
        %1120 = vmatprep.subr.mxu0 0.0
        %1121 = vmatpush1.xpose.msra.mxu0 0.0
        %1122 = vmatprep.subr.mxu0 0.0
        %1123 = vmatpush1.xpose.msra.mxu0 0.0
        %1124 = vmatprep.subr.mxu0 0.0
        %1125 = vmatpush1.xpose.msra.mxu0 0.0
        %1126 = vmatprep.subr.mxu0 0.0
        %1127 = vmatpush1.xpose.msra.mxu0 0.0
        %1128 = vmatprep.subr.mxu0 0.0
        %1129 = vmatpush1.xpose.msra.mxu0 0.0
        %1130 = vmatprep.mubr.f32.mxu0 0.0
        %1131 = vmatmul.mubr.f32.gmra.mrb[0].mxu0 %v1062
        %v1132 = vpop.f32.mrb[0].mxu0
        %v1133 = vadd.f32 0.0, %v1132
        %v1134 = vpop.f32.mrb[0].mxu0
        %1135 = vdwg.mxu0
        %v1136 = vmul.f32 %v1133, 0.17677669
        %v1137 = vsel %vm729, %v1136, -inf
        %1138 = vmax.xlane.f32.xlu0 %v1137
        %v1139 = vpop.xlane.xlu0 %1138
        %v1140 = vsub.f32 %v1136, %v1139
        %v1141 = vmul.f32 %v1140, 1.442695
        %v1142 = vpow.pop %v1141
        %v1143 = vsel %vm729, %v1142, 0.0
        %1144 = vadd.xlane.f32.xlu0 %v1143
        %v1145 = vpop.xlane.xlu0 %1144
        %v1146 = vrcp.pop %v1145
        %v1147 = vmul.f32 %v1142, %v1146
        %1148 = vrot.lane.b32.xlu0 %v726, 112
        %v1149 = vpop.permute.xlu0 %1148
        %v1152 = vsel %vm729, %v1147, 0
        %1154 = vmatprep.subr.mxu0 0.0
        %1155 = vmatpush1.msra.mxu0 %v1149
        %1156 = vmatprep.subr.mxu0 0.0
        %1157 = vmatpush1.msra.mxu0 0.0
        %1158 = vmatprep.subr.mxu0 0.0
        %1159 = vmatpush1.msra.mxu0 0.0
        %1160 = vmatprep.subr.mxu0 0.0
        %1161 = vmatpush1.msra.mxu0 0.0
        %1162 = vmatprep.subr.mxu0 0.0
        %1163 = vmatpush1.msra.mxu0 0.0
        %1164 = vmatprep.subr.mxu0 0.0
        %1165 = vmatpush1.msra.mxu0 0.0
        %1166 = vmatprep.subr.mxu0 0.0
        %1167 = vmatpush1.msra.mxu0 0.0
        %1168 = vmatprep.subr.mxu0 0.0
        %1169 = vmatpush1.msra.mxu0 0.0
        %1170 = vmatprep.subr.mxu0 0.0
        %1171 = vmatpush1.msra.mxu0 0.0
        %1172 = vmatprep.subr.mxu0 0.0
        %1173 = vmatpush1.msra.mxu0 0.0
        %1174 = vmatprep.subr.mxu0 0.0
        %1175 = vmatpush1.msra.mxu0 0.0
        %1176 = vmatprep.subr.mxu0 0.0
        %1177 = vmatpush1.msra.mxu0 0.0
        %1178 = vmatprep.subr.mxu0 0.0
        %1179 = vmatpush1.msra.mxu0 0.0
        %1180 = vmatprep.subr.mxu0 0.0
        %1181 = vmatpush1.msra.mxu0 0.0
        %1182 = vmatprep.subr.mxu0 0.0
        %1183 = vmatpush1.msra.mxu0 0.0
        %1184 = vmatprep.subr.mxu0 0.0
        %1185 = vmatpush1.msra.mxu0 0.0
        %1186 = vmatprep.subr.mxu0 0.0
        %1187 = vmatpush1.msra.mxu0 0.0
        %1188 = vmatprep.subr.mxu0 0.0
        %1189 = vmatpush1.msra.mxu0 0.0
        %1190 = vmatprep.subr.mxu0 0.0
        %1191 = vmatpush1.msra.mxu0 0.0
        %1192 = vmatprep.subr.mxu0 0.0
        %1193 = vmatpush1.msra.mxu0 0.0
        %1194 = vmatprep.subr.mxu0 0.0
        %1195 = vmatpush1.msra.mxu0 0.0
        %1196 = vmatprep.subr.mxu0 0.0
        %1197 = vmatpush1.msra.mxu0 0.0
        %1198 = vmatprep.subr.mxu0 0.0
        %1199 = vmatpush1.msra.mxu0 0.0
        %1200 = vmatprep.subr.mxu0 0.0
        %1201 = vmatpush1.msra.mxu0 0.0
        %1202 = vmatprep.subr.mxu0 0.0
        %1203 = vmatpush1.msra.mxu0 0.0
        %1204 = vmatprep.subr.mxu0 0.0
        %1205 = vmatpush1.msra.mxu0 0.0
        %1206 = vmatprep.subr.mxu0 0.0
        %1207 = vmatpush1.msra.mxu0 0.0
        %1208 = vmatprep.subr.mxu0 0.0
        %1209 = vmatpush1.msra.mxu0 0.0
        %1210 = vmatprep.subr.mxu0 0.0
        %1211 = vmatpush1.msra.mxu0 0.0
        %1212 = vmatprep.subr.mxu0 0.0
        %1213 = vmatpush1.msra.mxu0 0.0
        %1214 = vmatprep.subr.mxu0 0.0
        %1215 = vmatpush1.msra.mxu0 0.0
        %1216 = vmatprep.subr.mxu0 0.0
        %1217 = vmatpush1.msra.mxu0 0.0
        %1218 = vmatprep.mubr.f32.mxu0 0.0
        %1219 = vmatmul.mubr.f32.gmra.mrb[0].mxu0 %v1152
        %v1220 = vpop.f32.mrb[0].mxu0
        %v1221 = vadd.f32 0.0, %v1220
        %v1222 = vpop.f32.mrb[0].mxu0
        %1223 = vdwg.mxu0
        %1224 = vrot.lane.b32.xlu0 %v586, 104
        %v1225 = vpop.permute.xlu0 %1224
        %1226 = vrot.lane.b32.xlu0 %v656, 104
        %v1227 = vpop.permute.xlu0 %1226
        %v1228 = vsel %vm729, %v1225, 0
        %v1230 = vsel %vm729, %v1227, 0
        %1232 = vmatprep.subr.mxu0 0.0
        %1233 = vmatpush1.xpose.msra.mxu0 %v1230
        %1234 = vmatprep.subr.mxu0 0.0
        %1235 = vmatpush1.xpose.msra.mxu0 0.0
        %1236 = vmatprep.subr.mxu0 0.0
        %1237 = vmatpush1.xpose.msra.mxu0 0.0
        %1238 = vmatprep.subr.mxu0 0.0
        %1239 = vmatpush1.xpose.msra.mxu0 0.0
        %1240 = vmatprep.subr.mxu0 0.0
        %1241 = vmatpush1.xpose.msra.mxu0 0.0
        %1242 = vmatprep.subr.mxu0 0.0
        %1243 = vmatpush1.xpose.msra.mxu0 0.0
        %1244 = vmatprep.subr.mxu0 0.0
        %1245 = vmatpush1.xpose.msra.mxu0 0.0
        %1246 = vmatprep.subr.mxu0 0.0
        %1247 = vmatpush1.xpose.msra.mxu0 0.0
        %1248 = vmatprep.subr.mxu0 0.0
        %1249 = vmatpush1.xpose.msra.mxu0 0.0
        %1250 = vmatprep.subr.mxu0 0.0
        %1251 = vmatpush1.xpose.msra.mxu0 0.0
        %1252 = vmatprep.subr.mxu0 0.0
        %1253 = vmatpush1.xpose.msra.mxu0 0.0
        %1254 = vmatprep.subr.mxu0 0.0
        %1255 = vmatpush1.xpose.msra.mxu0 0.0
        %1256 = vmatprep.subr.mxu0 0.0
        %1257 = vmatpush1.xpose.msra.mxu0 0.0
        %1258 = vmatprep.subr.mxu0 0.0
        %1259 = vmatpush1.xpose.msra.mxu0 0.0
        %1260 = vmatprep.subr.mxu0 0.0
        %1261 = vmatpush1.xpose.msra.mxu0 0.0
        %1262 = vmatprep.subr.mxu0 0.0
        %1263 = vmatpush1.xpose.msra.mxu0 0.0
        %1264 = vmatprep.subr.mxu0 0.0
        %1265 = vmatpush1.xpose.msra.mxu0 0.0
        %1266 = vmatprep.subr.mxu0 0.0
        %1267 = vmatpush1.xpose.msra.mxu0 0.0
        %1268 = vmatprep.subr.mxu0 0.0
        %1269 = vmatpush1.xpose.msra.mxu0 0.0
        %1270 = vmatprep.subr.mxu0 0.0
        %1271 = vmatpush1.xpose.msra.mxu0 0.0
        %1272 = vmatprep.subr.mxu0 0.0
        %1273 = vmatpush1.xpose.msra.mxu0 0.0
        %1274 = vmatprep.subr.mxu0 0.0
        %1275 = vmatpush1.xpose.msra.mxu0 0.0
        %1276 = vmatprep.subr.mxu0 0.0
        %1277 = vmatpush1.xpose.msra.mxu0 0.0
        %1278 = vmatprep.subr.mxu0 0.0
        %1279 = vmatpush1.xpose.msra.mxu0 0.0
        %1280 = vmatprep.subr.mxu0 0.0
        %1281 = vmatpush1.xpose.msra.mxu0 0.0
        %1282 = vmatprep.subr.mxu0 0.0
        %1283 = vmatpush1.xpose.msra.mxu0 0.0
        %1284 = vmatprep.subr.mxu0 0.0
        %1285 = vmatpush1.xpose.msra.mxu0 0.0
        %1286 = vmatprep.subr.mxu0 0.0
        %1287 = vmatpush1.xpose.msra.mxu0 0.0
        %1288 = vmatprep.subr.mxu0 0.0
        %1289 = vmatpush1.xpose.msra.mxu0 0.0
        %1290 = vmatprep.subr.mxu0 0.0
        %1291 = vmatpush1.xpose.msra.mxu0 0.0
        %1292 = vmatprep.subr.mxu0 0.0
        %1293 = vmatpush1.xpose.msra.mxu0 0.0
        %1294 = vmatprep.subr.mxu0 0.0
        %1295 = vmatpush1.xpose.msra.mxu0 0.0
        %1296 = vmatprep.mubr.f32.mxu0 0.0
        %1297 = vmatmul.mubr.f32.gmra.mrb[0].mxu0 %v1228
        %v1298 = vpop.f32.mrb[0].mxu0
        %v1299 = vadd.f32 0.0, %v1298
        %v1300 = vpop.f32.mrb[0].mxu0
        %1301 = vdwg.mxu0
        %v1302 = vmul.f32 %v1299, 0.17677669
        %v1303 = vsel %vm729, %v1302, -inf
        %1304 = vmax.xlane.f32.xlu0 %v1303
        %v1305 = vpop.xlane.xlu0 %1304
        %v1306 = vsub.f32 %v1302, %v1305
        %v1307 = vmul.f32 %v1306, 1.442695
        %v1308 = vpow.pop %v1307
        %v1309 = vsel %vm729, %v1308, 0.0
        %1310 = vadd.xlane.f32.xlu0 %v1309
        %v1311 = vpop.xlane.xlu0 %1310
        %v1312 = vrcp.pop %v1311
        %v1313 = vmul.f32 %v1308, %v1312
        %1314 = vrot.lane.b32.xlu0 %v726, 104
        %v1315 = vpop.permute.xlu0 %1314
        %v1318 = vsel %vm729, %v1313, 0
        %1320 = vmatprep.subr.mxu0 0.0
        %1321 = vmatpush1.msra.mxu0 %v1315
        %1322 = vmatprep.subr.mxu0 0.0
        %1323 = vmatpush1.msra.mxu0 0.0
        %1324 = vmatprep.subr.mxu0 0.0
        %1325 = vmatpush1.msra.mxu0 0.0
        %1326 = vmatprep.subr.mxu0 0.0
        %1327 = vmatpush1.msra.mxu0 0.0
        %1328 = vmatprep.subr.mxu0 0.0
        %1329 = vmatpush1.msra.mxu0 0.0
        %1330 = vmatprep.subr.mxu0 0.0
        %1331 = vmatpush1.msra.mxu0 0.0
        %1332 = vmatprep.subr.mxu0 0.0
        %1333 = vmatpush1.msra.mxu0 0.0
        %1334 = vmatprep.subr.mxu0 0.0
        %1335 = vmatpush1.msra.mxu0 0.0
        %1336 = vmatprep.subr.mxu0 0.0
        %1337 = vmatpush1.msra.mxu0 0.0
        %1338 = vmatprep.subr.mxu0 0.0
        %1339 = vmatpush1.msra.mxu0 0.0
        %1340 = vmatprep.subr.mxu0 0.0
        %1341 = vmatpush1.msra.mxu0 0.0
        %1342 = vmatprep.subr.mxu0 0.0
        %1343 = vmatpush1.msra.mxu0 0.0
        %1344 = vmatprep.subr.mxu0 0.0
        %1345 = vmatpush1.msra.mxu0 0.0
        %1346 = vmatprep.subr.mxu0 0.0
        %1347 = vmatpush1.msra.mxu0 0.0
        %1348 = vmatprep.subr.mxu0 0.0
        %1349 = vmatpush1.msra.mxu0 0.0
        %1350 = vmatprep.subr.mxu0 0.0
        %1351 = vmatpush1.msra.mxu0 0.0
        %1352 = vmatprep.subr.mxu0 0.0
        %1353 = vmatpush1.msra.mxu0 0.0
        %1354 = vmatprep.subr.mxu0 0.0
        %1355 = vmatpush1.msra.mxu0 0.0
        %1356 = vmatprep.subr.mxu0 0.0
        %1357 = vmatpush1.msra.mxu0 0.0
        %1358 = vmatprep.subr.mxu0 0.0
        %1359 = vmatpush1.msra.mxu0 0.0
        %1360 = vmatprep.subr.mxu0 0.0
        %1361 = vmatpush1.msra.mxu0 0.0
        %1362 = vmatprep.subr.mxu0 0.0
        %1363 = vmatpush1.msra.mxu0 0.0
        %1364 = vmatprep.subr.mxu0 0.0
        %1365 = vmatpush1.msra.mxu0 0.0
        %1366 = vmatprep.subr.mxu0 0.0
        %1367 = vmatpush1.msra.mxu0 0.0
        %1368 = vmatprep.subr.mxu0 0.0
        %1369 = vmatpush1.msra.mxu0 0.0
        %1370 = vmatprep.subr.mxu0 0.0
        %1371 = vmatpush1.msra.mxu0 0.0
        %1372 = vmatprep.subr.mxu0 0.0
        %1373 = vmatpush1.msra.mxu0 0.0
        %1374 = vmatprep.subr.mxu0 0.0
        %1375 = vmatpush1.msra.mxu0 0.0
        %1376 = vmatprep.subr.mxu0 0.0
        %1377 = vmatpush1.msra.mxu0 0.0
        %1378 = vmatprep.subr.mxu0 0.0
        %1379 = vmatpush1.msra.mxu0 0.0
        %1380 = vmatprep.subr.mxu0 0.0
        %1381 = vmatpush1.msra.mxu0 0.0
        %1382 = vmatprep.subr.mxu0 0.0
        %1383 = vmatpush1.msra.mxu0 0.0
        %1384 = vmatprep.mubr.f32.mxu0 0.0
        %1385 = vmatmul.mubr.f32.gmra.mrb[0].mxu0 %v1318
        %v1386 = vpop.f32.mrb[0].mxu0
        %v1387 = vadd.f32 0.0, %v1386
        %v1388 = vpop.f32.mrb[0].mxu0
        %1389 = vdwg.mxu0
        %1391 = vrot.lane.b32.xlu0 %v1055, 8
        %v1392 = vpop.permute.xlu0 %1391
        %1395 = vrot.lane.b32.xlu0 %v1221, 16
        %v1396 = vpop.permute.xlu0 %1395
        %1399 = vrot.lane.b32.xlu0 %v1387, 24
        %v1400 = vpop.permute.xlu0 %1399
        %v1402 = vsel %vm729, %v888, %v1392
        %vm1403 = vcmask 130048
        %v1404 = vsel %vm1403, %v1402, %v1396
        %vm1405 = vcmask 195584
        %v1406 = vsel %vm1405, %v1404, %v1400
        %vm1407 = vcmask 261120
        %v1409 = vsel %vm1407, %v1406, 0
        %1411 = vmatprep.subr.mxu0 0.0
        %1412 = vmatpush1.msra.mxu0 %v515
        %1413 = vmatprep.subr.mxu0 0.0
        %1414 = vmatpush1.msra.mxu0 %v516
        %1415 = vmatprep.subr.mxu0 0.0
        %1416 = vmatpush1.msra.mxu0 %v517
        %1417 = vmatprep.subr.mxu0 0.0
        %1418 = vmatpush1.msra.mxu0 %v518
        %1419 = vmatprep.subr.mxu0 0.0
        %1420 = vmatpush1.msra.mxu0 0.0
        %1421 = vmatprep.subr.mxu0 0.0
        %1422 = vmatpush1.msra.mxu0 0.0
        %1423 = vmatprep.subr.mxu0 0.0
        %1424 = vmatpush1.msra.mxu0 0.0
        %1425 = vmatprep.subr.mxu0 0.0
        %1426 = vmatpush1.msra.mxu0 0.0
        %1427 = vmatprep.subr.mxu0 0.0
        %1428 = vmatpush1.msra.mxu0 0.0
        %1429 = vmatprep.subr.mxu0 0.0
        %1430 = vmatpush1.msra.mxu0 0.0
        %1431 = vmatprep.subr.mxu0 0.0
        %1432 = vmatpush1.msra.mxu0 0.0
        %1433 = vmatprep.subr.mxu0 0.0
        %1434 = vmatpush1.msra.mxu0 0.0
        %1435 = vmatprep.subr.mxu0 0.0
        %1436 = vmatpush1.msra.mxu0 0.0
        %1437 = vmatprep.subr.mxu0 0.0
        %1438 = vmatpush1.msra.mxu0 0.0
        %1439 = vmatprep.subr.mxu0 0.0
        %1440 = vmatpush1.msra.mxu0 0.0
        %1441 = vmatprep.subr.mxu0 0.0
        %1442 = vmatpush1.msra.mxu0 0.0
        %1443 = vmatprep.subr.mxu0 0.0
        %1444 = vmatpush1.msra.mxu0 0.0
        %1445 = vmatprep.subr.mxu0 0.0
        %1446 = vmatpush1.msra.mxu0 0.0
        %1447 = vmatprep.subr.mxu0 0.0
        %1448 = vmatpush1.msra.mxu0 0.0
        %1449 = vmatprep.subr.mxu0 0.0
        %1450 = vmatpush1.msra.mxu0 0.0
        %1451 = vmatprep.subr.mxu0 0.0
        %1452 = vmatpush1.msra.mxu0 0.0
        %1453 = vmatprep.subr.mxu0 0.0
        %1454 = vmatpush1.msra.mxu0 0.0
        %1455 = vmatprep.subr.mxu0 0.0
        %1456 = vmatpush1.msra.mxu0 0.0
        %1457 = vmatprep.subr.mxu0 0.0
        %1458 = vmatpush1.msra.mxu0 0.0
        %1459 = vmatprep.subr.mxu0 0.0
        %1460 = vmatpush1.msra.mxu0 0.0
        %1461 = vmatprep.subr.mxu0 0.0
        %1462 = vmatpush1.msra.mxu0 0.0
        %1463 = vmatprep.subr.mxu0 0.0
        %1464 = vmatpush1.msra.mxu0 0.0
        %1465 = vmatprep.subr.mxu0 0.0
        %1466 = vmatpush1.msra.mxu0 0.0
        %1467 = vmatprep.subr.mxu0 0.0
        %1468 = vmatpush1.msra.mxu0 0.0
        %1469 = vmatprep.subr.mxu0 0.0
        %1470 = vmatpush1.msra.mxu0 0.0
        %1471 = vmatprep.subr.mxu0 0.0
        %1472 = vmatpush1.msra.mxu0 0.0
        %1473 = vmatprep.subr.mxu0 0.0
        %1474 = vmatpush1.msra.mxu0 0.0
        %1475 = vmatprep.mubr.f32.mxu0 0.0
        %1476 = vmatmul.mubr.f32.gmra.mrb[0].mxu0 %v1409
        %v1477 = vpop.f32.mrb[0].mxu0
        %v1478 = vadd.f32 0.0, %v1477
        %v1479 = vpop.f32.mrb[0].mxu0
        %1480 = vdwg.mxu0
        %v1481 = vadd.f32 %v466, %v1478
        %v1482 = vld [vmem:[%s5] sm:$0x1]
        %v1483 = vld [vmem:[%s6] sm:$0x1]
        %1484 = vadd.xlane.f32.xlu0 %v1481
        %v1485 = vpop.xlane.xlu0 %1484
        %v1486 = vmul.f32 %v1485, 0.03125
        %v1487 = vsub.f32 %v1481, %v1486
        %v1488 = vlaneseq
        %v1489 = vand.u32 %v1488, 127
        %vm1490 = vcmp.lt.s32.totalorder %v1489, 32
        %v1491 = vsel %vm1490, %v1487, 0.0
        %v1492 = vmul.f32 %v1491, %v1491
        %1493 = vadd.xlane.f32.xlu0 %v1492
        %v1494 = vpop.xlane.xlu0 %1493
        %v1495 = vmul.f32 %v1494, 0.03125
        %v1496 = vadd.f32 %v1495, 1e-05
        %v1497 = vrsqrt.pop %v1496
        %v1498 = vmul.f32 %v1487, %v1497
        %v1500 = vlaneseq
        %v1501 = vshrl.u32 %v1500, 7
        %v1502 = vsub.s32 0, %v1501
        %v1503 = vrot.slane %v1482, %v1502
        %v1505 = vmul.f32 %v1503, %v1498
        %v1507 = vlaneseq
        %v1508 = vshrl.u32 %v1507, 7
        %v1509 = vsub.s32 0, %v1508
        %v1510 = vrot.slane %v1483, %v1509
        %v1512 = vadd.f32 %v1505, %v1510
        %v1513 = vld [vmem:[#allocation2] sm:$0xff]
        %v1514 = vld [vmem:[#allocation2 + $0x8] sm:$0xff]
        %v1515 = vld [vmem:[#allocation2 + $0x10] sm:$0xff]
        %v1516 = vld [vmem:[#allocation2 + $0x18] sm:$0xff]
        %v1517 = vld [vmem:[#allocation2 + $0x20] sm:$0xff]
        %v1518 = vld [vmem:[#allocation2 + $0x28] sm:$0xff]
        %v1519 = vld [vmem:[#allocation2 + $0x30] sm:$0xff]
        %v1520 = vld [vmem:[#allocation2 + $0x38] sm:$0xff]
        %v1521 = vld [vmem:[#allocation2 + $0x40] sm:$0xff]
        %v1522 = vld [vmem:[#allocation2 + $0x48] sm:$0xff]
        %v1523 = vld [vmem:[#allocation2 + $0x50] sm:$0xff]
        %v1524 = vld [vmem:[#allocation2 + $0x58] sm:$0xff]
        %v1525 = vld [vmem:[#allocation2 + $0x60] sm:$0xff]
        %v1526 = vld [vmem:[#allocation2 + $0x68] sm:$0xff]
        %v1527 = vld [vmem:[#allocation2 + $0x70] sm:$0xff]
        %v1528 = vld [vmem:[#allocation2 + $0x78] sm:$0xff]
        %v1529 = vld [vmem:[%s8] sm:$0x1]
        %v1530 = vld [vmem:[#allocation4] sm:$0xff]
        %v1531 = vld [vmem:[#allocation4 + $0x8] sm:$0xff]
        %v1532 = vld [vmem:[#allocation4 + $0x10] sm:$0xff]
        %v1533 = vld [vmem:[#allocation4 + $0x18] sm:$0xff]
        %v1534 = vld [vmem:[#allocation4 + $0x20] sm:$0xff]
        %v1535 = vld [vmem:[#allocation4 + $0x28] sm:$0xff]
        %v1536 = vld [vmem:[#allocation4 + $0x30] sm:$0xff]
        %v1537 = vld [vmem:[#allocation4 + $0x38] sm:$0xff]
        %v1538 = vld [vmem:[#allocation4 + $0x40] sm:$0xff]
        %v1539 = vld [vmem:[#allocation4 + $0x48] sm:$0xff]
        %v1540 = vld [vmem:[#allocation4 + $0x50] sm:$0xff]
        %v1541 = vld [vmem:[#allocation4 + $0x58] sm:$0xff]
        %v1542 = vld [vmem:[#allocation4 + $0x60] sm:$0xff]
        %v1543 = vld [vmem:[#allocation4 + $0x68] sm:$0xff]
        %v1544 = vld [vmem:[#allocation4 + $0x70] sm:$0xff]
        %v1545 = vld [vmem:[#allocation4 + $0x78] sm:$0xff]
        %v1546 = vld [vmem:[%s10] sm:$0x1]
        %v1548 = vlaneseq
        %v1549 = vshrl.u32 %v1548, 7
        %v1550 = vsub.s32 0, %v1549
        %v1551 = vrot.slane %v1529, %v1550
        %1553 = vmatprep.subr.mxu0 0.0
        %1554 = vmatpush1.msra.mxu0 %v1513
        %1555 = vmatprep.subr.mxu0 0.0
        %1556 = vmatpush1.msra.mxu0 %v1514
        %1557 = vmatprep.subr.mxu0 0.0
        %1558 = vmatpush1.msra.mxu0 %v1515
        %1559 = vmatprep.subr.mxu0 0.0
        %1560 = vmatpush1.msra.mxu0 %v1516
        %1561 = vmatprep.subr.mxu0 0.0
        %1562 = vmatpush1.msra.mxu0 %v1517
        %1563 = vmatprep.subr.mxu0 0.0
        %1564 = vmatpush1.msra.mxu0 %v1518
        %1565 = vmatprep.subr.mxu0 0.0
        %1566 = vmatpush1.msra.mxu0 %v1519
        %1567 = vmatprep.subr.mxu0 0.0
        %1568 = vmatpush1.msra.mxu0 %v1520
        %1569 = vmatprep.subr.mxu0 0.0
        %1570 = vmatpush1.msra.mxu0 %v1521
        %1571 = vmatprep.subr.mxu0 0.0
        %1572 = vmatpush1.msra.mxu0 %v1522
        %1573 = vmatprep.subr.mxu0 0.0
        %1574 = vmatpush1.msra.mxu0 %v1523
        %1575 = vmatprep.subr.mxu0 0.0
        %1576 = vmatpush1.msra.mxu0 %v1524
        %1577 = vmatprep.subr.mxu0 0.0
        %1578 = vmatpush1.msra.mxu0 %v1525
        %1579 = vmatprep.subr.mxu0 0.0
        %1580 = vmatpush1.msra.mxu0 %v1526
        %1581 = vmatprep.subr.mxu0 0.0
        %1582 = vmatpush1.msra.mxu0 %v1527
        %1583 = vmatprep.subr.mxu0 0.0
        %1584 = vmatpush1.msra.mxu0 %v1528
        %1585 = vmatprep.subr.mxu0 0.0
        %1586 = vmatpush1.msra.mxu0 0.0
        %1587 = vmatprep.subr.mxu0 0.0
        %1588 = vmatpush1.msra.mxu0 0.0
        %1589 = vmatprep.subr.mxu0 0.0
        %1590 = vmatpush1.msra.mxu0 0.0
        %1591 = vmatprep.subr.mxu0 0.0
        %1592 = vmatpush1.msra.mxu0 0.0
        %1593 = vmatprep.subr.mxu0 0.0
        %1594 = vmatpush1.msra.mxu0 0.0
        %1595 = vmatprep.subr.mxu0 0.0
        %1596 = vmatpush1.msra.mxu0 0.0
        %1597 = vmatprep.subr.mxu0 0.0
        %1598 = vmatpush1.msra.mxu0 0.0
        %1599 = vmatprep.subr.mxu0 0.0
        %1600 = vmatpush1.msra.mxu0 0.0
        %1601 = vmatprep.subr.mxu0 0.0
        %1602 = vmatpush1.msra.mxu0 0.0
        %1603 = vmatprep.subr.mxu0 0.0
        %1604 = vmatpush1.msra.mxu0 0.0
        %1605 = vmatprep.subr.mxu0 0.0
        %1606 = vmatpush1.msra.mxu0 0.0
        %1607 = vmatprep.subr.mxu0 0.0
        %1608 = vmatpush1.msra.mxu0 0.0
        %1609 = vmatprep.subr.mxu0 0.0
        %1610 = vmatpush1.msra.mxu0 0.0
        %1611 = vmatprep.subr.mxu0 0.0
        %1612 = vmatpush1.msra.mxu0 0.0
        %1613 = vmatprep.subr.mxu0 0.0
        %1614 = vmatpush1.msra.mxu0 0.0
        %1615 = vmatprep.subr.mxu0 0.0
        %1616 = vmatpush1.msra.mxu0 0.0
        %1617 = vmatprep.mubr.f32.mxu0 0.0
        %1618 = vmatmul.mubr.f32.gmra.mrb[0].mxu0 %v1512
        %v1619 = vpop.f32.mrb[0].mxu0
        %v1620 = vadd.f32 %v1551, %v1619
        %v1621 = vpop.f32.mrb[0].mxu0
        %1622 = vdwg.mxu0
        %v1623 = vmax.f32 %v1620, 0.0
        %v1625 = vlaneseq
        %v1626 = vshrl.u32 %v1625, 7
        %v1627 = vsub.s32 0, %v1626
        %v1628 = vrot.slane %v1546, %v1627
        %1630 = vmatprep.subr.mxu0 0.0
        %1631 = vmatpush1.msra.mxu0 %v1530
        %1632 = vmatprep.subr.mxu0 0.0
        %1633 = vmatpush1.msra.mxu0 %v1531
        %1634 = vmatprep.subr.mxu0 0.0
        %1635 = vmatpush1.msra.mxu0 %v1532
        %1636 = vmatprep.subr.mxu0 0.0
        %1637 = vmatpush1.msra.mxu0 %v1533
        %1638 = vmatprep.subr.mxu0 0.0
        %1639 = vmatpush1.msra.mxu0 %v1534
        %1640 = vmatprep.subr.mxu0 0.0
        %1641 = vmatpush1.msra.mxu0 %v1535
        %1642 = vmatprep.subr.mxu0 0.0
        %1643 = vmatpush1.msra.mxu0 %v1536
        %1644 = vmatprep.subr.mxu0 0.0
        %1645 = vmatpush1.msra.mxu0 %v1537
        %1646 = vmatprep.subr.mxu0 0.0
        %1647 = vmatpush1.msra.mxu0 %v1538
        %1648 = vmatprep.subr.mxu0 0.0
        %1649 = vmatpush1.msra.mxu0 %v1539
        %1650 = vmatprep.subr.mxu0 0.0
        %1651 = vmatpush1.msra.mxu0 %v1540
        %1652 = vmatprep.subr.mxu0 0.0
        %1653 = vmatpush1.msra.mxu0 %v1541
        %1654 = vmatprep.subr.mxu0 0.0
        %1655 = vmatpush1.msra.mxu0 %v1542
        %1656 = vmatprep.subr.mxu0 0.0
        %1657 = vmatpush1.msra.mxu0 %v1543
        %1658 = vmatprep.subr.mxu0 0.0
        %1659 = vmatpush1.msra.mxu0 %v1544
        %1660 = vmatprep.subr.mxu0 0.0
        %1661 = vmatpush1.msra.mxu0 %v1545
        %1662 = vmatprep.subr.mxu0 0.0
        %1663 = vmatpush1.msra.mxu0 0.0
        %1664 = vmatprep.subr.mxu0 0.0
        %1665 = vmatpush1.msra.mxu0 0.0
        %1666 = vmatprep.subr.mxu0 0.0
        %1667 = vmatpush1.msra.mxu0 0.0
        %1668 = vmatprep.subr.mxu0 0.0
        %1669 = vmatpush1.msra.mxu0 0.0
        %1670 = vmatprep.subr.mxu0 0.0
        %1671 = vmatpush1.msra.mxu0 0.0
        %1672 = vmatprep.subr.mxu0 0.0
        %1673 = vmatpush1.msra.mxu0 0.0
        %1674 = vmatprep.subr.mxu0 0.0
        %1675 = vmatpush1.msra.mxu0 0.0
        %1676 = vmatprep.subr.mxu0 0.0
        %1677 = vmatpush1.msra.mxu0 0.0
        %1678 = vmatprep.subr.mxu0 0.0
        %1679 = vmatpush1.msra.mxu0 0.0
        %1680 = vmatprep.subr.mxu0 0.0
        %1681 = vmatpush1.msra.mxu0 0.0
        %1682 = vmatprep.subr.mxu0 0.0
        %1683 = vmatpush1.msra.mxu0 0.0
        %1684 = vmatprep.subr.mxu0 0.0
        %1685 = vmatpush1.msra.mxu0 0.0
        %1686 = vmatprep.subr.mxu0 0.0
        %1687 = vmatpush1.msra.mxu0 0.0
        %1688 = vmatprep.subr.mxu0 0.0
        %1689 = vmatpush1.msra.mxu0 0.0
        %1690 = vmatprep.subr.mxu0 0.0
        %1691 = vmatpush1.msra.mxu0 0.0
        %1692 = vmatprep.subr.mxu0 0.0
        %1693 = vmatpush1.msra.mxu0 0.0
        %1694 = vmatprep.mubr.f32.mxu0 0.0
        %1695 = vmatmul.mubr.f32.gmra.mrb[0].mxu0 %v1623
        %v1696 = vpop.f32.mrb[0].mxu0
        %v1697 = vadd.f32 %v1628, %v1696
        %v1698 = vpop.f32.mrb[0].mxu0
        %1699 = vdwg.mxu0
        %v1700 = vadd.f32 %v1512, %v1697
        %v1701 = vld [vmem:[%s11] sm:$0x1]
        %v1702 = vld [vmem:[%s12] sm:$0x1]
        %1703 = vadd.xlane.f32.xlu0 %v1700
        %v1704 = vpop.xlane.xlu0 %1703
        %v1705 = vmul.f32 %v1704, 0.03125
        %v1706 = vsub.f32 %v1700, %v1705
        %v1707 = vsel %vm1490, %v1706, 0.0
        %v1708 = vmul.f32 %v1707, %v1707
        %1709 = vadd.xlane.f32.xlu0 %v1708
        %v1710 = vpop.xlane.xlu0 %1709
        %v1711 = vmul.f32 %v1710, 0.03125
        %v1712 = vadd.f32 %v1711, 1e-05
        %v1713 = vrsqrt.pop %v1712
        %v1714 = vmul.f32 %v1706, %v1713
        %v1716 = vlaneseq
        %v1717 = vshrl.u32 %v1716, 7
        %v1718 = vsub.s32 0, %v1717
        %v1719 = vrot.slane %v1701, %v1718
        %v1721 = vmul.f32 %v1719, %v1714
        %v1723 = vlaneseq
        %v1724 = vshrl.u32 %v1723, 7
        %v1725 = vsub.s32 0, %v1724
        %v1726 = vrot.slane %v1702, %v1725
        %v1728 = vadd.f32 %v1721, %v1726
        %1729 = vst [vmem:[%s465] sm:$0xff] %v1728
        %p1730 = scmp.lt.s32.totalorder %s26, 1
        %s1731 = scalar_select %p1730, %s26, 1
        %s1732 = smul.addr %s1731, 8
        %s1733 = scalar_lea.vmem %s13, %s1732
        // Predicated region
        $region81: #{transformer_forward.5} parent=71 // pred_check
          %p1734 = pneg %p322
        $region82: #{transformer_forward.5} parent=71 // pred_check_branch
          %1736 = sbr.rel (%p1734) target = $region84
        $region83: #{transformer_forward.5} parent=71 // pred_region
          _
        $region84: #{transformer_forward.5} parent=71 // pred_fallthru
          _
      $region72: #{transformer_forward.5} parent=5 // pred_fallthru
        _
      %p1737 = scmp.le.s32.totalorder 2, %s21
      // Predicated region
      $region85: #{transformer_forward.5} parent=5 // pred_check
        %p1738 = pneg %p1737
      $region86: #{transformer_forward.5} parent=5 // pred_check_branch
        %1740 = sbr.rel (%p1738) target = $region88
      $region87: #{transformer_forward.5} parent=5 // pred_region
        %s1741 = ssub.s32 %s21, 2
        // Predicated region
        $region89: #{transformer_forward.5} parent=87 // pred_check
          %p1742 = pneg %p328
        $region90: #{transformer_forward.5} parent=87 // pred_check_branch
          %1744 = sbr.rel (%p1742) target = $region92
        $region91: #{transformer_forward.5} parent=87 // pred_region
          %p1745 = scmp.lt.s32.totalorder %s27, 1
          %s1746 = scalar_select %p1745, %s27, 1
          %s1747 = smul.addr %s1746, 8
          %s1748 = scalar_lea.vmem %s13, %s1747
        $region92: #{transformer_forward.5} parent=87 // pred_fallthru
          _
      $region88: #{transformer_forward.5} parent=5 // pred_fallthru
        _
    $region6: #{transformer_forward.5} parent=1 // loop_footer
      %s25 = sadd.s32 1, %s21
    $region7: #{transformer_forward.5} parent=1 // loop_footer_branch
      %20 = sbr.rel target = $region3
    $region8: #{transformer_forward.5} parent=1 // loop_exit
      _
    %1749 = vsyncpa [#allocation3], 1
    %s1750 = scalar_lea.sflag [#allocation3], 1
    %1751 = vsyncpa %s1750, 1
    %1752 = vsyncpa [#allocation5], 1

// kernel: transformer_forward.7
$region0: #{transformer_forward.7}
  #allocation0 [shape = 'u32[]', space=smem, size = 0x4, offset = 0x4, fixed_abs, tag = 'smem constant byte address 0x4 - core index']
  #allocation1 [shape = 'u32[144,128]{1,0:T(1,128)}', space=vmem, size = 0x12000, scoped, tag = 'internal scratch']
  %s0 = inlined_call_operand.vmem [shape: f32[2,8,128], index: 0, kind: input, shape index: {}]
  %s1 = inlined_call_operand.vmem [shape: f32[2,8,128], index: 1, kind: input, shape index: {}]
  %s2 = inlined_call_operand.vmem [shape: f32[128,32], index: 2, kind: input, shape index: {}]
  %s3 = inlined_call_operand.vmem [shape: f32[128,32], index: 3, kind: input, shape index: {}]
  %s4 = inlined_call_operand.vmem [shape: f32[128,32], index: 4, kind: input, shape index: {}]
  %s5 = inlined_call_operand.vmem [shape: f32[32,128], index: 5, kind: input, shape index: {}]
  %s6 = inlined_call_operand.vmem [shape: f32[1,128], index: 6, kind: input, shape index: {}, may-alias: {6,12,18}]
  %s7 = inlined_call_operand.vmem [shape: f32[1,128], index: 7, kind: input, shape index: {}, may-alias: {7,13,15,17,19}]
  %s8 = inlined_call_operand.vmem [shape: f32[128,32], index: 8, kind: input, shape index: {}]
  %s9 = inlined_call_operand.vmem [shape: f32[128,32], index: 9, kind: input, shape index: {}]
  %s10 = inlined_call_operand.vmem [shape: f32[128,32], index: 10, kind: input, shape index: {}]
  %s11 = inlined_call_operand.vmem [shape: f32[32,128], index: 11, kind: input, shape index: {}]
  %s12 = inlined_call_operand.vmem [shape: f32[1,128], index: 12, kind: input, shape index: {}, may-alias: {6,12,18}]
  %s13 = inlined_call_operand.vmem [shape: f32[1,128], index: 13, kind: input, shape index: {}, may-alias: {7,13,15,17,19}]
  %s14 = inlined_call_operand.vmem [shape: f32[128,128], index: 14, kind: input, shape index: {}]
  %s15 = inlined_call_operand.vmem [shape: f32[1,128], index: 15, kind: input, shape index: {}, may-alias: {7,13,15,17,19}]
  %s16 = inlined_call_operand.vmem [shape: f32[128,128], index: 16, kind: input, shape index: {}]
  %s17 = inlined_call_operand.vmem [shape: f32[1,128], index: 17, kind: input, shape index: {}, may-alias: {7,13,15,17,19}]
  %s18 = inlined_call_operand.vmem [shape: f32[1,128], index: 18, kind: input, shape index: {}, may-alias: {6,12,18}]
  %s19 = inlined_call_operand.vmem [shape: f32[1,128], index: 19, kind: input, shape index: {}, may-alias: {7,13,15,17,19}]
  %s20 = inlined_call_operand.vmem [shape: f32[2,8,128], index: 20, kind: output, shape index: {}]
  %s21 = sld [smem:[#allocation0]]
  $region113: #{transformer_forward.7} parent=0
    _
  %s23 = ssub.s32 1, %s21
  %s24 = scalar_select 0, %s23, %s21
  loop: start=0, step=1, limit=4
  $region2: #{transformer_forward.7} parent=0 // loop_pre_header
    _
  $region3: #{transformer_forward.7} parent=0 // loop_header
    %s26 = sphi 0, %s30
    %p27 = scmp.ge.s32.totalorder %s26, 4
    %s36 = sphi 0, %s38
    %s39 = sphi 0, %s36
    %s40 = sphi 0, %s39
    %s56 = sphi 0, %s40
    %s62 = sphi 0, %s64
    %s65 = sphi 0, %s62
    %s66 = sphi 0, %s65
    %s82 = sphi 0, %s66
    %s86 = sphi 0, %s86
    %s88 = sphi 0, %s86
    %s89 = sphi 0, %s88
    %s103 = sphi 0, %s89
    %s107 = sphi 0, %s107
    %s109 = sphi 0, %s107
    %s110 = sphi 0, %s109
    %s124 = sphi 0, %s110
    %s128 = sphi 0, %s128
    %s130 = sphi 0, %s128
    %s131 = sphi 0, %s130
    %s145 = sphi 0, %s131
    %s149 = sphi 0, %s149
    %s151 = sphi 0, %s149
    %s152 = sphi 0, %s151
    %s166 = sphi 0, %s152
    %s170 = sphi 0, %s170
    %s172 = sphi 0, %s170
    %s173 = sphi 0, %s172
    %s187 = sphi 0, %s173
    %s191 = sphi 0, %s191
    %s193 = sphi 0, %s191
    %s194 = sphi 0, %s193
    %s208 = sphi 0, %s194
    %s212 = sphi 0, %s212
    %s214 = sphi 0, %s212
    %s215 = sphi 0, %s214
    %s229 = sphi 0, %s215
    %s233 = sphi 0, %s233
    %s235 = sphi 0, %s233
    %s236 = sphi 0, %s235
    %s250 = sphi 0, %s236
    %s254 = sphi 0, %s254
    %s256 = sphi 0, %s254
    %s257 = sphi 0, %s256
    %s271 = sphi 0, %s257
    %s275 = sphi 0, %s275
    %s277 = sphi 0, %s275
    %s278 = sphi 0, %s277
    %s292 = sphi 0, %s278
    %s296 = sphi 0, %s296
    %s298 = sphi 0, %s296
    %s299 = sphi 0, %s298
    %s313 = sphi 0, %s299
    %s317 = sphi 0, %s317
    %s319 = sphi 0, %s317
    %s320 = sphi 0, %s319
    %s334 = sphi 0, %s320
    %s338 = sphi 0, %s338
    %s340 = sphi 0, %s338
    %s341 = sphi 0, %s340
    %s355 = sphi 0, %s341
    %s359 = sphi 0, %s359
    %s361 = sphi 0, %s359
    %s362 = sphi 0, %s361
    %s376 = sphi 0, %s362
    %s380 = sphi 0, %s380
    %s382 = sphi 0, %s380
    %s383 = sphi 0, %s382
    %s397 = sphi 0, %s383
    %s401 = sphi 0, %s401
    %s403 = sphi 0, %s401
    %s404 = sphi 0, %s403
    %s418 = sphi 0, %s404
    %s422 = sphi 0, %s422
    %s424 = sphi 0, %s422
    %s425 = sphi 0, %s424
    %s439 = sphi 0, %s425
    %s443 = sphi 0, %s443
    %s445 = sphi 0, %s443
    %s446 = sphi 0, %s445
    %s460 = sphi 0, %s446
    %s466 = sphi 0, %s468
    %s469 = sphi 0, %s466
    %s470 = sphi 0, %s469
    %s486 = sphi 0, %s470
  $region4: #{transformer_forward.7} parent=0 // loop_header_branch
    %29 = sbr.rel (%p27) target = $region8
  $region5: #{transformer_forward.7} parent=0 // loop_body
    %s31 = ssub.s32 %s26, 1
    %s32 = ssub.s32 %s26, 2
    %s33 = sadd.s32 %s26, 1
    %s34 = ssub.s32 %s26, %s33
    %p35 = scmp.eq.s32.totalorder %s34, 0
    %s37 = sadd.s32 %s36, 1
    %s38 = scalar_select %p35, %s36, %s37
    %p41 = pneg %p35
    %p42 = scmp.eq.s32.totalorder %s26, 1
    %p43 = por %p41, %p42
    %p44 = scmp.ne.s32.totalorder %s36, %s39
    %p45 = scmp.eq.s32.totalorder %s26, 0
    %p46 = por %p44, %p45
    %p47 = scmp.ne.s32.totalorder %s36, %s39
    %p48 = scmp.eq.s32.totalorder %s31, 1
    %p49 = por %p47, %p48
    %p50 = scmp.ne.s32.totalorder %s39, %s40
    %p51 = scmp.eq.s32.totalorder %s31, 0
    %p52 = por %p50, %p51
    %p53 = scmp.ne.s32.totalorder %s39, %s40
    %p54 = scmp.eq.s32.totalorder %s32, 1
    %p55 = por %p53, %p54
    %p57 = scmp.ne.s32.totalorder %s40, %s56
    %p58 = scmp.eq.s32.totalorder %s32, 0
    %p59 = por %p57, %p58
    %s60 = ssub.s32 %s26, %s33
    %p61 = scmp.eq.s32.totalorder %s60, 0
    %s63 = sadd.s32 %s62, 1
    %s64 = scalar_select %p61, %s62, %s63
    %p67 = pneg %p61
    %p68 = scmp.eq.s32.totalorder %s26, 1
    %p69 = por %p67, %p68
    %p70 = scmp.ne.s32.totalorder %s62, %s65
    %p71 = scmp.eq.s32.totalorder %s26, 0
    %p72 = por %p70, %p71
    %p73 = scmp.ne.s32.totalorder %s62, %s65
    %p74 = scmp.eq.s32.totalorder %s31, 1
    %p75 = por %p73, %p74
    %p76 = scmp.ne.s32.totalorder %s65, %s66
    %p77 = scmp.eq.s32.totalorder %s31, 0
    %p78 = por %p76, %p77
    %p79 = scmp.ne.s32.totalorder %s65, %s66
    %p80 = scmp.eq.s32.totalorder %s32, 1
    %p81 = por %p79, %p80
    %p83 = scmp.ne.s32.totalorder %s66, %s82
    %p84 = scmp.eq.s32.totalorder %s32, 0
    %p85 = por %p83, %p84
    %s87 = sadd.s32 %s86, 1
    %p90 = scmp.eq.s32.totalorder %s26, 1
    %p91 = scmp.ne.s32.totalorder %s86, %s88
    %p92 = scmp.eq.s32.totalorder %s26, 0
    %p93 = por %p91, %p92
    %p94 = scmp.ne.s32.totalorder %s86, %s88
    %p95 = scmp.eq.s32.totalorder %s31, 1
    %p96 = por %p94, %p95
    %p97 = scmp.ne.s32.totalorder %s88, %s89
    %p98 = scmp.eq.s32.totalorder %s31, 0
    %p99 = por %p97, %p98
    %p100 = scmp.ne.s32.totalorder %s88, %s89
    %p101 = scmp.eq.s32.totalorder %s32, 1
    %p102 = por %p100, %p101
    %p104 = scmp.ne.s32.totalorder %s89, %s103
    %p105 = scmp.eq.s32.totalorder %s32, 0
    %p106 = por %p104, %p105
    %s108 = sadd.s32 %s107, 1
    %p111 = scmp.eq.s32.totalorder %s26, 1
    %p112 = scmp.ne.s32.totalorder %s107, %s109
    %p113 = scmp.eq.s32.totalorder %s26, 0
    %p114 = por %p112, %p113
    %p115 = scmp.ne.s32.totalorder %s107, %s109
    %p116 = scmp.eq.s32.totalorder %s31, 1
    %p117 = por %p115, %p116
    %p118 = scmp.ne.s32.totalorder %s109, %s110
    %p119 = scmp.eq.s32.totalorder %s31, 0
    %p120 = por %p118, %p119
    %p121 = scmp.ne.s32.totalorder %s109, %s110
    %p122 = scmp.eq.s32.totalorder %s32, 1
    %p123 = por %p121, %p122
    %p125 = scmp.ne.s32.totalorder %s110, %s124
    %p126 = scmp.eq.s32.totalorder %s32, 0
    %p127 = por %p125, %p126
    %s129 = sadd.s32 %s128, 1
    %p132 = scmp.eq.s32.totalorder %s26, 1
    %p133 = scmp.ne.s32.totalorder %s128, %s130
    %p134 = scmp.eq.s32.totalorder %s26, 0
    %p135 = por %p133, %p134
    %p136 = scmp.ne.s32.totalorder %s128, %s130
    %p137 = scmp.eq.s32.totalorder %s31, 1
    %p138 = por %p136, %p137
    %p139 = scmp.ne.s32.totalorder %s130, %s131
    %p140 = scmp.eq.s32.totalorder %s31, 0
    %p141 = por %p139, %p140
    %p142 = scmp.ne.s32.totalorder %s130, %s131
    %p143 = scmp.eq.s32.totalorder %s32, 1
    %p144 = por %p142, %p143
    %p146 = scmp.ne.s32.totalorder %s131, %s145
    %p147 = scmp.eq.s32.totalorder %s32, 0
    %p148 = por %p146, %p147
    %s150 = sadd.s32 %s149, 1
    %p153 = scmp.eq.s32.totalorder %s26, 1
    %p154 = scmp.ne.s32.totalorder %s149, %s151
    %p155 = scmp.eq.s32.totalorder %s26, 0
    %p156 = por %p154, %p155
    %p157 = scmp.ne.s32.totalorder %s149, %s151
    %p158 = scmp.eq.s32.totalorder %s31, 1
    %p159 = por %p157, %p158
    %p160 = scmp.ne.s32.totalorder %s151, %s152
    %p161 = scmp.eq.s32.totalorder %s31, 0
    %p162 = por %p160, %p161
    %p163 = scmp.ne.s32.totalorder %s151, %s152
    %p164 = scmp.eq.s32.totalorder %s32, 1
    %p165 = por %p163, %p164
    %p167 = scmp.ne.s32.totalorder %s152, %s166
    %p168 = scmp.eq.s32.totalorder %s32, 0
    %p169 = por %p167, %p168
    %s171 = sadd.s32 %s170, 1
    %p174 = scmp.eq.s32.totalorder %s26, 1
    %p175 = scmp.ne.s32.totalorder %s170, %s172
    %p176 = scmp.eq.s32.totalorder %s26, 0
    %p177 = por %p175, %p176
    %p178 = scmp.ne.s32.totalorder %s170, %s172
    %p179 = scmp.eq.s32.totalorder %s31, 1
    %p180 = por %p178, %p179
    %p181 = scmp.ne.s32.totalorder %s172, %s173
    %p182 = scmp.eq.s32.totalorder %s31, 0
    %p183 = por %p181, %p182
    %p184 = scmp.ne.s32.totalorder %s172, %s173
    %p185 = scmp.eq.s32.totalorder %s32, 1
    %p186 = por %p184, %p185
    %p188 = scmp.ne.s32.totalorder %s173, %s187
    %p189 = scmp.eq.s32.totalorder %s32, 0
    %p190 = por %p188, %p189
    %s192 = sadd.s32 %s191, 1
    %p195 = scmp.eq.s32.totalorder %s26, 1
    %p196 = scmp.ne.s32.totalorder %s191, %s193
    %p197 = scmp.eq.s32.totalorder %s26, 0
    %p198 = por %p196, %p197
    %p199 = scmp.ne.s32.totalorder %s191, %s193
    %p200 = scmp.eq.s32.totalorder %s31, 1
    %p201 = por %p199, %p200
    %p202 = scmp.ne.s32.totalorder %s193, %s194
    %p203 = scmp.eq.s32.totalorder %s31, 0
    %p204 = por %p202, %p203
    %p205 = scmp.ne.s32.totalorder %s193, %s194
    %p206 = scmp.eq.s32.totalorder %s32, 1
    %p207 = por %p205, %p206
    %p209 = scmp.ne.s32.totalorder %s194, %s208
    %p210 = scmp.eq.s32.totalorder %s32, 0
    %p211 = por %p209, %p210
    %s213 = sadd.s32 %s212, 1
    %p216 = scmp.eq.s32.totalorder %s26, 1
    %p217 = scmp.ne.s32.totalorder %s212, %s214
    %p218 = scmp.eq.s32.totalorder %s26, 0
    %p219 = por %p217, %p218
    %p220 = scmp.ne.s32.totalorder %s212, %s214
    %p221 = scmp.eq.s32.totalorder %s31, 1
    %p222 = por %p220, %p221
    %p223 = scmp.ne.s32.totalorder %s214, %s215
    %p224 = scmp.eq.s32.totalorder %s31, 0
    %p225 = por %p223, %p224
    %p226 = scmp.ne.s32.totalorder %s214, %s215
    %p227 = scmp.eq.s32.totalorder %s32, 1
    %p228 = por %p226, %p227
    %p230 = scmp.ne.s32.totalorder %s215, %s229
    %p231 = scmp.eq.s32.totalorder %s32, 0
    %p232 = por %p230, %p231
    %s234 = sadd.s32 %s233, 1
    %p237 = scmp.eq.s32.totalorder %s26, 1
    %p238 = scmp.ne.s32.totalorder %s233, %s235
    %p239 = scmp.eq.s32.totalorder %s26, 0
    %p240 = por %p238, %p239
    %p241 = scmp.ne.s32.totalorder %s233, %s235
    %p242 = scmp.eq.s32.totalorder %s31, 1
    %p243 = por %p241, %p242
    %p244 = scmp.ne.s32.totalorder %s235, %s236
    %p245 = scmp.eq.s32.totalorder %s31, 0
    %p246 = por %p244, %p245
    %p247 = scmp.ne.s32.totalorder %s235, %s236
    %p248 = scmp.eq.s32.totalorder %s32, 1
    %p249 = por %p247, %p248
    %p251 = scmp.ne.s32.totalorder %s236, %s250
    %p252 = scmp.eq.s32.totalorder %s32, 0
    %p253 = por %p251, %p252
    %s255 = sadd.s32 %s254, 1
    %p258 = scmp.eq.s32.totalorder %s26, 1
    %p259 = scmp.ne.s32.totalorder %s254, %s256
    %p260 = scmp.eq.s32.totalorder %s26, 0
    %p261 = por %p259, %p260
    %p262 = scmp.ne.s32.totalorder %s254, %s256
    %p263 = scmp.eq.s32.totalorder %s31, 1
    %p264 = por %p262, %p263
    %p265 = scmp.ne.s32.totalorder %s256, %s257
    %p266 = scmp.eq.s32.totalorder %s31, 0
    %p267 = por %p265, %p266
    %p268 = scmp.ne.s32.totalorder %s256, %s257
    %p269 = scmp.eq.s32.totalorder %s32, 1
    %p270 = por %p268, %p269
    %p272 = scmp.ne.s32.totalorder %s257, %s271
    %p273 = scmp.eq.s32.totalorder %s32, 0
    %p274 = por %p272, %p273
    %s276 = sadd.s32 %s275, 1
    %p279 = scmp.eq.s32.totalorder %s26, 1
    %p280 = scmp.ne.s32.totalorder %s275, %s277
    %p281 = scmp.eq.s32.totalorder %s26, 0
    %p282 = por %p280, %p281
    %p283 = scmp.ne.s32.totalorder %s275, %s277
    %p284 = scmp.eq.s32.totalorder %s31, 1
    %p285 = por %p283, %p284
    %p286 = scmp.ne.s32.totalorder %s277, %s278
    %p287 = scmp.eq.s32.totalorder %s31, 0
    %p288 = por %p286, %p287
    %p289 = scmp.ne.s32.totalorder %s277, %s278
    %p290 = scmp.eq.s32.totalorder %s32, 1
    %p291 = por %p289, %p290
    %p293 = scmp.ne.s32.totalorder %s278, %s292
    %p294 = scmp.eq.s32.totalorder %s32, 0
    %p295 = por %p293, %p294
    %s297 = sadd.s32 %s296, 1
    %p300 = scmp.eq.s32.totalorder %s26, 1
    %p301 = scmp.ne.s32.totalorder %s296, %s298
    %p302 = scmp.eq.s32.totalorder %s26, 0
    %p303 = por %p301, %p302
    %p304 = scmp.ne.s32.totalorder %s296, %s298
    %p305 = scmp.eq.s32.totalorder %s31, 1
    %p306 = por %p304, %p305
    %p307 = scmp.ne.s32.totalorder %s298, %s299
    %p308 = scmp.eq.s32.totalorder %s31, 0
    %p309 = por %p307, %p308
    %p310 = scmp.ne.s32.totalorder %s298, %s299
    %p311 = scmp.eq.s32.totalorder %s32, 1
    %p312 = por %p310, %p311
    %p314 = scmp.ne.s32.totalorder %s299, %s313
    %p315 = scmp.eq.s32.totalorder %s32, 0
    %p316 = por %p314, %p315
    %s318 = sadd.s32 %s317, 1
    %p321 = scmp.eq.s32.totalorder %s26, 1
    %p322 = scmp.ne.s32.totalorder %s317, %s319
    %p323 = scmp.eq.s32.totalorder %s26, 0
    %p324 = por %p322, %p323
    %p325 = scmp.ne.s32.totalorder %s317, %s319
    %p326 = scmp.eq.s32.totalorder %s31, 1
    %p327 = por %p325, %p326
    %p328 = scmp.ne.s32.totalorder %s319, %s320
    %p329 = scmp.eq.s32.totalorder %s31, 0
    %p330 = por %p328, %p329
    %p331 = scmp.ne.s32.totalorder %s319, %s320
    %p332 = scmp.eq.s32.totalorder %s32, 1
    %p333 = por %p331, %p332
    %p335 = scmp.ne.s32.totalorder %s320, %s334
    %p336 = scmp.eq.s32.totalorder %s32, 0
    %p337 = por %p335, %p336
    %s339 = sadd.s32 %s338, 1
    %p342 = scmp.eq.s32.totalorder %s26, 1
    %p343 = scmp.ne.s32.totalorder %s338, %s340
    %p344 = scmp.eq.s32.totalorder %s26, 0
    %p345 = por %p343, %p344
    %p346 = scmp.ne.s32.totalorder %s338, %s340
    %p347 = scmp.eq.s32.totalorder %s31, 1
    %p348 = por %p346, %p347
    %p349 = scmp.ne.s32.totalorder %s340, %s341
    %p350 = scmp.eq.s32.totalorder %s31, 0
    %p351 = por %p349, %p350
    %p352 = scmp.ne.s32.totalorder %s340, %s341
    %p353 = scmp.eq.s32.totalorder %s32, 1
    %p354 = por %p352, %p353
    %p356 = scmp.ne.s32.totalorder %s341, %s355
    %p357 = scmp.eq.s32.totalorder %s32, 0
    %p358 = por %p356, %p357
    %s360 = sadd.s32 %s359, 1
    %p363 = scmp.eq.s32.totalorder %s26, 1
    %p364 = scmp.ne.s32.totalorder %s359, %s361
    %p365 = scmp.eq.s32.totalorder %s26, 0
    %p366 = por %p364, %p365
    %p367 = scmp.ne.s32.totalorder %s359, %s361
    %p368 = scmp.eq.s32.totalorder %s31, 1
    %p369 = por %p367, %p368
    %p370 = scmp.ne.s32.totalorder %s361, %s362
    %p371 = scmp.eq.s32.totalorder %s31, 0
    %p372 = por %p370, %p371
    %p373 = scmp.ne.s32.totalorder %s361, %s362
    %p374 = scmp.eq.s32.totalorder %s32, 1
    %p375 = por %p373, %p374
    %p377 = scmp.ne.s32.totalorder %s362, %s376
    %p378 = scmp.eq.s32.totalorder %s32, 0
    %p379 = por %p377, %p378
    %s381 = sadd.s32 %s380, 1
    %p384 = scmp.eq.s32.totalorder %s26, 1
    %p385 = scmp.ne.s32.totalorder %s380, %s382
    %p386 = scmp.eq.s32.totalorder %s26, 0
    %p387 = por %p385, %p386
    %p388 = scmp.ne.s32.totalorder %s380, %s382
    %p389 = scmp.eq.s32.totalorder %s31, 1
    %p390 = por %p388, %p389
    %p391 = scmp.ne.s32.totalorder %s382, %s383
    %p392 = scmp.eq.s32.totalorder %s31, 0
    %p393 = por %p391, %p392
    %p394 = scmp.ne.s32.totalorder %s382, %s383
    %p395 = scmp.eq.s32.totalorder %s32, 1
    %p396 = por %p394, %p395
    %p398 = scmp.ne.s32.totalorder %s383, %s397
    %p399 = scmp.eq.s32.totalorder %s32, 0
    %p400 = por %p398, %p399
    %s402 = sadd.s32 %s401, 1
    %p405 = scmp.eq.s32.totalorder %s26, 1
    %p406 = scmp.ne.s32.totalorder %s401, %s403
    %p407 = scmp.eq.s32.totalorder %s26, 0
    %p408 = por %p406, %p407
    %p409 = scmp.ne.s32.totalorder %s401, %s403
    %p410 = scmp.eq.s32.totalorder %s31, 1
    %p411 = por %p409, %p410
    %p412 = scmp.ne.s32.totalorder %s403, %s404
    %p413 = scmp.eq.s32.totalorder %s31, 0
    %p414 = por %p412, %p413
    %p415 = scmp.ne.s32.totalorder %s403, %s404
    %p416 = scmp.eq.s32.totalorder %s32, 1
    %p417 = por %p415, %p416
    %p419 = scmp.ne.s32.totalorder %s404, %s418
    %p420 = scmp.eq.s32.totalorder %s32, 0
    %p421 = por %p419, %p420
    %s423 = sadd.s32 %s422, 1
    %p426 = scmp.eq.s32.totalorder %s26, 1
    %p427 = scmp.ne.s32.totalorder %s422, %s424
    %p428 = scmp.eq.s32.totalorder %s26, 0
    %p429 = por %p427, %p428
    %p430 = scmp.ne.s32.totalorder %s422, %s424
    %p431 = scmp.eq.s32.totalorder %s31, 1
    %p432 = por %p430, %p431
    %p433 = scmp.ne.s32.totalorder %s424, %s425
    %p434 = scmp.eq.s32.totalorder %s31, 0
    %p435 = por %p433, %p434
    %p436 = scmp.ne.s32.totalorder %s424, %s425
    %p437 = scmp.eq.s32.totalorder %s32, 1
    %p438 = por %p436, %p437
    %p440 = scmp.ne.s32.totalorder %s425, %s439
    %p441 = scmp.eq.s32.totalorder %s32, 0
    %p442 = por %p440, %p441
    %s444 = sadd.s32 %s443, 1
    %p447 = scmp.eq.s32.totalorder %s26, 1
    %p448 = scmp.ne.s32.totalorder %s443, %s445
    %p449 = scmp.eq.s32.totalorder %s26, 0
    %p450 = por %p448, %p449
    %p451 = scmp.ne.s32.totalorder %s443, %s445
    %p452 = scmp.eq.s32.totalorder %s31, 1
    %p453 = por %p451, %p452
    %p454 = scmp.ne.s32.totalorder %s445, %s446
    %p455 = scmp.eq.s32.totalorder %s31, 0
    %p456 = por %p454, %p455
    %p457 = scmp.ne.s32.totalorder %s445, %s446
    %p458 = scmp.eq.s32.totalorder %s32, 1
    %p459 = por %p457, %p458
    %p461 = scmp.ne.s32.totalorder %s446, %s460
    %p462 = scmp.eq.s32.totalorder %s32, 0
    %p463 = por %p461, %p462
    %s464 = ssub.s32 %s26, %s33
    %p465 = scmp.eq.s32.totalorder %s464, 0
    %s467 = sadd.s32 %s466, 1
    %s468 = scalar_select %p465, %s466, %s467
    %p471 = pneg %p465
    %p472 = scmp.eq.s32.totalorder %s26, 1
    %p473 = por %p471, %p472
    %p474 = scmp.ne.s32.totalorder %s466, %s469
    %p475 = scmp.eq.s32.totalorder %s26, 0
    %p476 = por %p474, %p475
    %p477 = scmp.ne.s32.totalorder %s466, %s469
    %p478 = scmp.eq.s32.totalorder %s31, 1
    %p479 = por %p477, %p478
    %p480 = scmp.ne.s32.totalorder %s469, %s470
    %p481 = scmp.eq.s32.totalorder %s31, 0
    %p482 = por %p480, %p481
    %p483 = scmp.ne.s32.totalorder %s469, %s470
    %p484 = scmp.eq.s32.totalorder %s32, 1
    %p485 = por %p483, %p484
    %p487 = scmp.ne.s32.totalorder %s470, %s486
    %p488 = scmp.eq.s32.totalorder %s32, 0
    %p489 = por %p487, %p488
    %p490 = scmp.le.s32.totalorder 1, %s26
    %p491 = scmp.lt.s32.totalorder %s26, 3
    %p492 = pnand %p490, %p491
    %p493 = pneg %p492
    // Predicated region
    $region9: #{transformer_forward.7} parent=5 // pred_check
      _
    $region10: #{transformer_forward.7} parent=5 // pred_check_branch
      %495 = sbr.rel (%p492) target = $region12
    $region11: #{transformer_forward.7} parent=5 // pred_region
      %s496 = ssub.s32 %s26, 1
      // Predicated region
      $region13: #{transformer_forward.7} parent=11 // pred_check
        %p497 = pneg %p99
      $region14: #{transformer_forward.7} parent=11 // pred_check_branch
        %499 = sbr.rel (%p497) target = $region16
      $region15: #{transformer_forward.7} parent=11 // pred_region
        _
      $region16: #{transformer_forward.7} parent=11 // pred_fallthru
        _
      // Predicated region
      $region17: #{transformer_forward.7} parent=11 // pred_check
        %p500 = pneg %p120
      $region18: #{transformer_forward.7} parent=11 // pred_check_branch
        %502 = sbr.rel (%p500) target = $region20
      $region19: #{transformer_forward.7} parent=11 // pred_region
        _
      $region20: #{transformer_forward.7} parent=11 // pred_fallthru
        _
      // Predicated region
      $region21: #{transformer_forward.7} parent=11 // pred_check
        %p503 = pneg %p141
      $region22: #{transformer_forward.7} parent=11 // pred_check_branch
        %505 = sbr.rel (%p503) target = $region24
      $region23: #{transformer_forward.7} parent=11 // pred_region
        _
      $region24: #{transformer_forward.7} parent=11 // pred_fallthru
        _
      // Predicated region
      $region25: #{transformer_forward.7} parent=11 // pred_check
        %p506 = pneg %p162
      $region26: #{transformer_forward.7} parent=11 // pred_check_branch
        %508 = sbr.rel (%p506) target = $region28
      $region27: #{transformer_forward.7} parent=11 // pred_region
        _
      $region28: #{transformer_forward.7} parent=11 // pred_fallthru
        _
      // Predicated region
      $region29: #{transformer_forward.7} parent=11 // pred_check
        %p509 = pneg %p183
      $region30: #{transformer_forward.7} parent=11 // pred_check_branch
        %511 = sbr.rel (%p509) target = $region32
      $region31: #{transformer_forward.7} parent=11 // pred_region
        _
      $region32: #{transformer_forward.7} parent=11 // pred_fallthru
        _
      // Predicated region
      $region33: #{transformer_forward.7} parent=11 // pred_check
        %p512 = pneg %p204
      $region34: #{transformer_forward.7} parent=11 // pred_check_branch
        %514 = sbr.rel (%p512) target = $region36
      $region35: #{transformer_forward.7} parent=11 // pred_region
        _
      $region36: #{transformer_forward.7} parent=11 // pred_fallthru
        _
      // Predicated region
      $region37: #{transformer_forward.7} parent=11 // pred_check
        %p515 = pneg %p225
      $region38: #{transformer_forward.7} parent=11 // pred_check_branch
        %517 = sbr.rel (%p515) target = $region40
      $region39: #{transformer_forward.7} parent=11 // pred_region
        _
      $region40: #{transformer_forward.7} parent=11 // pred_fallthru
        _
      // Predicated region
      $region41: #{transformer_forward.7} parent=11 // pred_check
        %p518 = pneg %p246
      $region42: #{transformer_forward.7} parent=11 // pred_check_branch
        %520 = sbr.rel (%p518) target = $region44
      $region43: #{transformer_forward.7} parent=11 // pred_region
        _
      $region44: #{transformer_forward.7} parent=11 // pred_fallthru
        _
      // Predicated region
      $region45: #{transformer_forward.7} parent=11 // pred_check
        %p521 = pneg %p267
      $region46: #{transformer_forward.7} parent=11 // pred_check_branch
        %523 = sbr.rel (%p521) target = $region48
      $region47: #{transformer_forward.7} parent=11 // pred_region
        _
      $region48: #{transformer_forward.7} parent=11 // pred_fallthru
        _
      // Predicated region
      $region49: #{transformer_forward.7} parent=11 // pred_check
        %p524 = pneg %p288
      $region50: #{transformer_forward.7} parent=11 // pred_check_branch
        %526 = sbr.rel (%p524) target = $region52
      $region51: #{transformer_forward.7} parent=11 // pred_region
        _
      $region52: #{transformer_forward.7} parent=11 // pred_fallthru
        _
      // Predicated region
      $region53: #{transformer_forward.7} parent=11 // pred_check
        %p527 = pneg %p309
      $region54: #{transformer_forward.7} parent=11 // pred_check_branch
        %529 = sbr.rel (%p527) target = $region56
      $region55: #{transformer_forward.7} parent=11 // pred_region
        _
      $region56: #{transformer_forward.7} parent=11 // pred_fallthru
        _
      // Predicated region
      $region57: #{transformer_forward.7} parent=11 // pred_check
        %p530 = pneg %p330
      $region58: #{transformer_forward.7} parent=11 // pred_check_branch
        %532 = sbr.rel (%p530) target = $region60
      $region59: #{transformer_forward.7} parent=11 // pred_region
        _
      $region60: #{transformer_forward.7} parent=11 // pred_fallthru
        _
      // Predicated region
      $region61: #{transformer_forward.7} parent=11 // pred_check
        %p533 = pneg %p351
      $region62: #{transformer_forward.7} parent=11 // pred_check_branch
        %535 = sbr.rel (%p533) target = $region64
      $region63: #{transformer_forward.7} parent=11 // pred_region
        _
      $region64: #{transformer_forward.7} parent=11 // pred_fallthru
        _
      // Predicated region
      $region65: #{transformer_forward.7} parent=11 // pred_check
        %p536 = pneg %p372
      $region66: #{transformer_forward.7} parent=11 // pred_check_branch
        %538 = sbr.rel (%p536) target = $region68
      $region67: #{transformer_forward.7} parent=11 // pred_region
        _
      $region68: #{transformer_forward.7} parent=11 // pred_fallthru
        _
      // Predicated region
      $region69: #{transformer_forward.7} parent=11 // pred_check
        %p539 = pneg %p393
      $region70: #{transformer_forward.7} parent=11 // pred_check_branch
        %541 = sbr.rel (%p539) target = $region72
      $region71: #{transformer_forward.7} parent=11 // pred_region
        _
      $region72: #{transformer_forward.7} parent=11 // pred_fallthru
        _
      // Predicated region
      $region73: #{transformer_forward.7} parent=11 // pred_check
        %p542 = pneg %p414
      $region74: #{transformer_forward.7} parent=11 // pred_check_branch
        %544 = sbr.rel (%p542) target = $region76
      $region75: #{transformer_forward.7} parent=11 // pred_region
        _
      $region76: #{transformer_forward.7} parent=11 // pred_fallthru
        _
      // Predicated region
      $region77: #{transformer_forward.7} parent=11 // pred_check
        %p545 = pneg %p435
      $region78: #{transformer_forward.7} parent=11 // pred_check_branch
        %547 = sbr.rel (%p545) target = $region80
      $region79: #{transformer_forward.7} parent=11 // pred_region
        _
      $region80: #{transformer_forward.7} parent=11 // pred_fallthru
        _
      // Predicated region
      $region81: #{transformer_forward.7} parent=11 // pred_check
        %p548 = pneg %p456
      $region82: #{transformer_forward.7} parent=11 // pred_check_branch
        %550 = sbr.rel (%p548) target = $region84
      $region83: #{transformer_forward.7} parent=11 // pred_region
        _
      $region84: #{transformer_forward.7} parent=11 // pred_fallthru
        _
    $region12: #{transformer_forward.7} parent=5 // pred_fallthru
      _
    %p551 = scmp.lt.s32.totalorder %s26, 2
    // Predicated region
    $region85: #{transformer_forward.7} parent=5 // pred_check
      %p552 = pneg %p551
    $region86: #{transformer_forward.7} parent=5 // pred_check_branch
      %554 = sbr.rel (%p552) target = $region88
    $region87: #{transformer_forward.7} parent=5 // pred_region
      // Predicated region
      $region89: #{transformer_forward.7} parent=87 // pred_check
        %p555 = pneg %p46
      $region90: #{transformer_forward.7} parent=87 // pred_check_branch
        %557 = sbr.rel (%p555) target = $region92
      $region91: #{transformer_forward.7} parent=87 // pred_region
        %p558 = scmp.lt.s32.totalorder %s26, 1
        %s559 = scalar_select %p558, %s26, 1
        %s560 = smul.addr %s559, 8
        %s561 = scalar_lea.vmem %s0, %s560
      $region92: #{transformer_forward.7} parent=87 // pred_fallthru
        _
      // Predicated region
      $region93: #{transformer_forward.7} parent=87 // pred_check
        %p562 = pneg %p72
      $region94: #{transformer_forward.7} parent=87 // pred_check_branch
        %564 = sbr.rel (%p562) target = $region96
      $region95: #{transformer_forward.7} parent=87 // pred_region
        %p565 = scmp.lt.s32.totalorder %s26, 1
        %s566 = scalar_select %p565, %s26, 1
        %s567 = smul.addr %s566, 8
        %s568 = scalar_lea.vmem %s1, %s567
      $region96: #{transformer_forward.7} parent=87 // pred_fallthru
        _
    $region88: #{transformer_forward.7} parent=5 // pred_fallthru
      _
    %p569 = scmp.le.s32.totalorder 1, %s26
    %p570 = scmp.lt.s32.totalorder %s26, 3
    %p571 = pnand %p569, %p570
    %p572 = pneg %p571
    // Predicated region
    $region97: #{transformer_forward.7} parent=5 // pred_check
      _
    $region98: #{transformer_forward.7} parent=5 // pred_check_branch
      %574 = sbr.rel (%p571) target = $region100
    $region99: #{transformer_forward.7} parent=5 // pred_region
      %s575 = ssub.s32 %s26, 1
      %p576 = scmp.lt.s32.totalorder %s31, 1
      %s577 = scalar_select %p576, %s31, 1
      %s578 = smul.addr %s577, 8
      %s579 = scalar_lea.vmem %s0, %s578
      %p580 = pneg %p52
      %p581 = pneg %p49
      %p582 = scmp.lt.s32.totalorder %s31, 1
      %s583 = scalar_select %p582, %s31, 1
      %s584 = smul.addr %s583, 8
      %s585 = scalar_lea.vmem %s1, %s584
      %p586 = pneg %p78
      %p587 = pneg %p75
      %p588 = pneg %p99
      %p589 = pneg %p96
      %p590 = pneg %p120
      %p591 = pneg %p117
      %p592 = pneg %p141
      %p593 = pneg %p138
      %p594 = pneg %p162
      %p595 = pneg %p159
      %p596 = pneg %p183
      %p597 = pneg %p180
      %p598 = pneg %p204
      %p599 = pneg %p201
      %p600 = pneg %p225
      %p601 = pneg %p222
      %p602 = pneg %p246
      %p603 = pneg %p243
      %p604 = pneg %p267
      %p605 = pneg %p264
      %p606 = pneg %p288
      %p607 = pneg %p285
      %p608 = pneg %p309
      %p609 = pneg %p306
      %p610 = pneg %p330
      %p611 = pneg %p327
      %p612 = pneg %p351
      %p613 = pneg %p348
      %p614 = pneg %p372
      %p615 = pneg %p369
      %p616 = pneg %p393
      %p617 = pneg %p390
      %p618 = pneg %p414
      %p619 = pneg %p411
      %p620 = pneg %p435
      %p621 = pneg %p432
      %p622 = pneg %p456
      %p623 = pneg %p453
      %p624 = pneg %p482
      %p625 = pneg %p479
      %p626 = scmp.lt.s32.totalorder %s31, 1
      %s627 = scalar_select %p626, %s31, 1
      %s628 = smul.addr %s627, 8
      %s629 = scalar_lea.vmem %s20, %s628
      %p630 = scmp.lt.s32.totalorder %s31, 1
      %s631 = scalar_select %p630, %s31, 1
      %s632 = smul.addr %s631, 8
      %s633 = scalar_lea.vmem %s0, %s632
      %p634 = scmp.lt.s32.totalorder %s31, 1
      %s635 = scalar_select %p634, %s31, 1
      %s636 = smul.addr %s635, 8
      %s637 = scalar_lea.vmem %s1, %s636
      %p638 = scmp.lt.s32.totalorder %s31, 1
      %s639 = scalar_select %p638, %s31, 1
      %s640 = smul.addr %s639, 8
      %s641 = scalar_lea.vmem %s20, %s640
      %v642 = vld [vmem:[%s633] sm:$0xff]
      %v643 = vld [vmem:[%s637] sm:$0xff]
      %v644 = vld [vmem:[%s2] sm:$0xff]
      %v645 = vld [vmem:[%s2 + $0x8] sm:$0xff]
      %v646 = vld [vmem:[%s2 + $0x10] sm:$0xff]
      %v647 = vld [vmem:[%s2 + $0x18] sm:$0xff]
      %v648 = vld [vmem:[%s2 + $0x20] sm:$0xff]
      %v649 = vld [vmem:[%s2 + $0x28] sm:$0xff]
      %v650 = vld [vmem:[%s2 + $0x30] sm:$0xff]
      %v651 = vld [vmem:[%s2 + $0x38] sm:$0xff]
      %v652 = vld [vmem:[%s2 + $0x40] sm:$0xff]
      %v653 = vld [vmem:[%s2 + $0x48] sm:$0xff]
      %v654 = vld [vmem:[%s2 + $0x50] sm:$0xff]
      %v655 = vld [vmem:[%s2 + $0x58] sm:$0xff]
      %v656 = vld [vmem:[%s2 + $0x60] sm:$0xff]
      %v657 = vld [vmem:[%s2 + $0x68] sm:$0xff]
      %v658 = vld [vmem:[%s2 + $0x70] sm:$0xff]
      %v659 = vld [vmem:[%s2 + $0x78] sm:$0xff]
      %v660 = vld [vmem:[%s3] sm:$0xff]
      %v661 = vld [vmem:[%s3 + $0x8] sm:$0xff]
      %v662 = vld [vmem:[%s3 + $0x10] sm:$0xff]
      %v663 = vld [vmem:[%s3 + $0x18] sm:$0xff]
      %v664 = vld [vmem:[%s3 + $0x20] sm:$0xff]
      %v665 = vld [vmem:[%s3 + $0x28] sm:$0xff]
      %v666 = vld [vmem:[%s3 + $0x30] sm:$0xff]
      %v667 = vld [vmem:[%s3 + $0x38] sm:$0xff]
      %v668 = vld [vmem:[%s3 + $0x40] sm:$0xff]
      %v669 = vld [vmem:[%s3 + $0x48] sm:$0xff]
      %v670 = vld [vmem:[%s3 + $0x50] sm:$0xff]
      %v671 = vld [vmem:[%s3 + $0x58] sm:$0xff]
      %v672 = vld [vmem:[%s3 + $0x60] sm:$0xff]
      %v673 = vld [vmem:[%s3 + $0x68] sm:$0xff]
      %v674 = vld [vmem:[%s3 + $0x70] sm:$0xff]
      %v675 = vld [vmem:[%s3 + $0x78] sm:$0xff]
      %v676 = vld [vmem:[%s4] sm:$0xff]
      %v677 = vld [vmem:[%s4 + $0x8] sm:$0xff]
      %v678 = vld [vmem:[%s4 + $0x10] sm:$0xff]
      %v679 = vld [vmem:[%s4 + $0x18] sm:$0xff]
      %v680 = vld [vmem:[%s4 + $0x20] sm:$0xff]
      %v681 = vld [vmem:[%s4 + $0x28] sm:$0xff]
      %v682 = vld [vmem:[%s4 + $0x30] sm:$0xff]
      %v683 = vld [vmem:[%s4 + $0x38] sm:$0xff]
      %v684 = vld [vmem:[%s4 + $0x40] sm:$0xff]
      %v685 = vld [vmem:[%s4 + $0x48] sm:$0xff]
      %v686 = vld [vmem:[%s4 + $0x50] sm:$0xff]
      %v687 = vld [vmem:[%s4 + $0x58] sm:$0xff]
      %v688 = vld [vmem:[%s4 + $0x60] sm:$0xff]
      %v689 = vld [vmem:[%s4 + $0x68] sm:$0xff]
      %v690 = vld [vmem:[%s4 + $0x70] sm:$0xff]
      %v691 = vld [vmem:[%s4 + $0x78] sm:$0xff]
      %v692 = vld [vmem:[%s5] sm:$0xff]
      %v693 = vld [vmem:[%s5 + $0x8] sm:$0xff]
      %v694 = vld [vmem:[%s5 + $0x10] sm:$0xff]
      %v695 = vld [vmem:[%s5 + $0x18] sm:$0xff]
      %696 = vmatprep.subr.mxu0 0.0
      %697 = vmatpush1.msra.mxu0 %v644
      %698 = vmatprep.subr.mxu0 0.0
      %699 = vmatpush1.msra.mxu0 %v645
      %700 = vmatprep.subr.mxu0 0.0
      %701 = vmatpush1.msra.mxu0 %v646
      %702 = vmatprep.subr.mxu0 0.0
      %703 = vmatpush1.msra.mxu0 %v647
      %704 = vmatprep.subr.mxu0 0.0
      %705 = vmatpush1.msra.mxu0 %v648
      %706 = vmatprep.subr.mxu0 0.0
      %707 = vmatpush1.msra.mxu0 %v649
      %708 = vmatprep.subr.mxu0 0.0
      %709 = vmatpush1.msra.mxu0 %v650
      %710 = vmatprep.subr.mxu0 0.0
      %711 = vmatpush1.msra.mxu0 %v651
      %712 = vmatprep.subr.mxu0 0.0
      %713 = vmatpush1.msra.mxu0 %v652
      %714 = vmatprep.subr.mxu0 0.0
      %715 = vmatpush1.msra.mxu0 %v653
      %716 = vmatprep.subr.mxu0 0.0
      %717 = vmatpush1.msra.mxu0 %v654
      %718 = vmatprep.subr.mxu0 0.0
      %719 = vmatpush1.msra.mxu0 %v655
      %720 = vmatprep.subr.mxu0 0.0
      %721 = vmatpush1.msra.mxu0 %v656
      %722 = vmatprep.subr.mxu0 0.0
      %723 = vmatpush1.msra.mxu0 %v657
      %724 = vmatprep.subr.mxu0 0.0
      %725 = vmatpush1.msra.mxu0 %v658
      %726 = vmatprep.subr.mxu0 0.0
      %727 = vmatpush1.msra.mxu0 %v659
      %728 = vmatprep.subr.mxu0 0.0
      %729 = vmatpush1.msra.mxu0 0.0
      %730 = vmatprep.subr.mxu0 0.0
      %731 = vmatpush1.msra.mxu0 0.0
      %732 = vmatprep.subr.mxu0 0.0
      %733 = vmatpush1.msra.mxu0 0.0
      %734 = vmatprep.subr.mxu0 0.0
      %735 = vmatpush1.msra.mxu0 0.0
      %736 = vmatprep.subr.mxu0 0.0
      %737 = vmatpush1.msra.mxu0 0.0
      %738 = vmatprep.subr.mxu0 0.0
      %739 = vmatpush1.msra.mxu0 0.0
      %740 = vmatprep.subr.mxu0 0.0
      %741 = vmatpush1.msra.mxu0 0.0
      %742 = vmatprep.subr.mxu0 0.0
      %743 = vmatpush1.msra.mxu0 0.0
      %744 = vmatprep.subr.mxu0 0.0
      %745 = vmatpush1.msra.mxu0 0.0
      %746 = vmatprep.subr.mxu0 0.0
      %747 = vmatpush1.msra.mxu0 0.0
      %748 = vmatprep.subr.mxu0 0.0
      %749 = vmatpush1.msra.mxu0 0.0
      %750 = vmatprep.subr.mxu0 0.0
      %751 = vmatpush1.msra.mxu0 0.0
      %752 = vmatprep.subr.mxu0 0.0
      %753 = vmatpush1.msra.mxu0 0.0
      %754 = vmatprep.subr.mxu0 0.0
      %755 = vmatpush1.msra.mxu0 0.0
      %756 = vmatprep.subr.mxu0 0.0
      %757 = vmatpush1.msra.mxu0 0.0
      %758 = vmatprep.subr.mxu0 0.0
      %759 = vmatpush1.msra.mxu0 0.0
      %760 = vmatprep.mubr.f32.mxu0 0.0
      %761 = vmatmul.mubr.f32.gmra.mrb[0].mxu0 %v642
      %v762 = vpop.f32.mrb[0].mxu0
      %v763 = vadd.f32 0.0, %v762
      %v764 = vpop.f32.mrb[0].mxu0
      %765 = vdwg.mxu0
      %766 = vmatprep.subr.mxu0 0.0
      %767 = vmatpush1.msra.mxu0 %v660
      %768 = vmatprep.subr.mxu0 0.0
      %769 = vmatpush1.msra.mxu0 %v661
      %770 = vmatprep.subr.mxu0 0.0
      %771 = vmatpush1.msra.mxu0 %v662
      %772 = vmatprep.subr.mxu0 0.0
      %773 = vmatpush1.msra.mxu0 %v663
      %774 = vmatprep.subr.mxu0 0.0
      %775 = vmatpush1.msra.mxu0 %v664
      %776 = vmatprep.subr.mxu0 0.0
      %777 = vmatpush1.msra.mxu0 %v665
      %778 = vmatprep.subr.mxu0 0.0
      %779 = vmatpush1.msra.mxu0 %v666
      %780 = vmatprep.subr.mxu0 0.0
      %781 = vmatpush1.msra.mxu0 %v667
      %782 = vmatprep.subr.mxu0 0.0
      %783 = vmatpush1.msra.mxu0 %v668
      %784 = vmatprep.subr.mxu0 0.0
      %785 = vmatpush1.msra.mxu0 %v669
      %786 = vmatprep.subr.mxu0 0.0
      %787 = vmatpush1.msra.mxu0 %v670
      %788 = vmatprep.subr.mxu0 0.0
      %789 = vmatpush1.msra.mxu0 %v671
      %790 = vmatprep.subr.mxu0 0.0
      %791 = vmatpush1.msra.mxu0 %v672
      %792 = vmatprep.subr.mxu0 0.0
      %793 = vmatpush1.msra.mxu0 %v673
      %794 = vmatprep.subr.mxu0 0.0
      %795 = vmatpush1.msra.mxu0 %v674
      %796 = vmatprep.subr.mxu0 0.0
      %797 = vmatpush1.msra.mxu0 %v675
      %798 = vmatprep.subr.mxu0 0.0
      %799 = vmatpush1.msra.mxu0 0.0
      %800 = vmatprep.subr.mxu0 0.0
      %801 = vmatpush1.msra.mxu0 0.0
      %802 = vmatprep.subr.mxu0 0.0
      %803 = vmatpush1.msra.mxu0 0.0
      %804 = vmatprep.subr.mxu0 0.0
      %805 = vmatpush1.msra.mxu0 0.0
      %806 = vmatprep.subr.mxu0 0.0
      %807 = vmatpush1.msra.mxu0 0.0
      %808 = vmatprep.subr.mxu0 0.0
      %809 = vmatpush1.msra.mxu0 0.0
      %810 = vmatprep.subr.mxu0 0.0
      %811 = vmatpush1.msra.mxu0 0.0
      %812 = vmatprep.subr.mxu0 0.0
      %813 = vmatpush1.msra.mxu0 0.0
      %814 = vmatprep.subr.mxu0 0.0
      %815 = vmatpush1.msra.mxu0 0.0
      %816 = vmatprep.subr.mxu0 0.0
      %817 = vmatpush1.msra.mxu0 0.0
      %818 = vmatprep.subr.mxu0 0.0
      %819 = vmatpush1.msra.mxu0 0.0
      %820 = vmatprep.subr.mxu0 0.0
      %821 = vmatpush1.msra.mxu0 0.0
      %822 = vmatprep.subr.mxu0 0.0
      %823 = vmatpush1.msra.mxu0 0.0
      %824 = vmatprep.subr.mxu0 0.0
      %825 = vmatpush1.msra.mxu0 0.0
      %826 = vmatprep.subr.mxu0 0.0
      %827 = vmatpush1.msra.mxu0 0.0
      %828 = vmatprep.subr.mxu0 0.0
      %829 = vmatpush1.msra.mxu0 0.0
      %830 = vmatprep.mubr.f32.mxu0 0.0
      %831 = vmatmul.mubr.f32.gmra.mrb[0].mxu0 %v642
      %v832 = vpop.f32.mrb[0].mxu0
      %v833 = vadd.f32 0.0, %v832
      %v834 = vpop.f32.mrb[0].mxu0
      %835 = vdwg.mxu0
      %836 = vmatprep.subr.mxu0 0.0
      %837 = vmatpush1.msra.mxu0 %v676
      %838 = vmatprep.subr.mxu0 0.0
      %839 = vmatpush1.msra.mxu0 %v677
      %840 = vmatprep.subr.mxu0 0.0
      %841 = vmatpush1.msra.mxu0 %v678
      %842 = vmatprep.subr.mxu0 0.0
      %843 = vmatpush1.msra.mxu0 %v679
      %844 = vmatprep.subr.mxu0 0.0
      %845 = vmatpush1.msra.mxu0 %v680
      %846 = vmatprep.subr.mxu0 0.0
      %847 = vmatpush1.msra.mxu0 %v681
      %848 = vmatprep.subr.mxu0 0.0
      %849 = vmatpush1.msra.mxu0 %v682
      %850 = vmatprep.subr.mxu0 0.0
      %851 = vmatpush1.msra.mxu0 %v683
      %852 = vmatprep.subr.mxu0 0.0
      %853 = vmatpush1.msra.mxu0 %v684
      %854 = vmatprep.subr.mxu0 0.0
      %855 = vmatpush1.msra.mxu0 %v685
      %856 = vmatprep.subr.mxu0 0.0
      %857 = vmatpush1.msra.mxu0 %v686
      %858 = vmatprep.subr.mxu0 0.0
      %859 = vmatpush1.msra.mxu0 %v687
      %860 = vmatprep.subr.mxu0 0.0
      %861 = vmatpush1.msra.mxu0 %v688
      %862 = vmatprep.subr.mxu0 0.0
      %863 = vmatpush1.msra.mxu0 %v689
      %864 = vmatprep.subr.mxu0 0.0
      %865 = vmatpush1.msra.mxu0 %v690
      %866 = vmatprep.subr.mxu0 0.0
      %867 = vmatpush1.msra.mxu0 %v691
      %868 = vmatprep.subr.mxu0 0.0
      %869 = vmatpush1.msra.mxu0 0.0
      %870 = vmatprep.subr.mxu0 0.0
      %871 = vmatpush1.msra.mxu0 0.0
      %872 = vmatprep.subr.mxu0 0.0
      %873 = vmatpush1.msra.mxu0 0.0
      %874 = vmatprep.subr.mxu0 0.0
      %875 = vmatpush1.msra.mxu0 0.0
      %876 = vmatprep.subr.mxu0 0.0
      %877 = vmatpush1.msra.mxu0 0.0
      %878 = vmatprep.subr.mxu0 0.0
      %879 = vmatpush1.msra.mxu0 0.0
      %880 = vmatprep.subr.mxu0 0.0
      %881 = vmatpush1.msra.mxu0 0.0
      %882 = vmatprep.subr.mxu0 0.0
      %883 = vmatpush1.msra.mxu0 0.0
      %884 = vmatprep.subr.mxu0 0.0
      %885 = vmatpush1.msra.mxu0 0.0
      %886 = vmatprep.subr.mxu0 0.0
      %887 = vmatpush1.msra.mxu0 0.0
      %888 = vmatprep.subr.mxu0 0.0
      %889 = vmatpush1.msra.mxu0 0.0
      %890 = vmatprep.subr.mxu0 0.0
      %891 = vmatpush1.msra.mxu0 0.0
      %892 = vmatprep.subr.mxu0 0.0
      %893 = vmatpush1.msra.mxu0 0.0
      %894 = vmatprep.subr.mxu0 0.0
      %895 = vmatpush1.msra.mxu0 0.0
      %896 = vmatprep.subr.mxu0 0.0
      %897 = vmatpush1.msra.mxu0 0.0
      %898 = vmatprep.subr.mxu0 0.0
      %899 = vmatpush1.msra.mxu0 0.0
      %900 = vmatprep.mubr.f32.mxu0 0.0
      %901 = vmatmul.mubr.f32.gmra.mrb[0].mxu0 %v642
      %v902 = vpop.f32.mrb[0].mxu0
      %v903 = vadd.f32 0.0, %v902
      %v904 = vpop.f32.mrb[0].mxu0
      %905 = vdwg.mxu0
      %v906 = vlaneseq
      %v907 = vshrl.u32 %v906, 7
      %v908 = vlaneseq
      %v909 = vand.u32 %v908, 127
      %vm910 = vcmp.gt.s32.totalorder %v909, %v907
      %vm911 = vcmask 64512
      %v913 = vsel %vm911, %v763, 0
      %v916 = vsel %vm911, %v833, 0
      %918 = vmatprep.subr.mxu0 0.0
      %919 = vmatpush1.xpose.msra.mxu0 %v916
      %920 = vmatprep.subr.mxu0 0.0
      %921 = vmatpush1.xpose.msra.mxu0 0.0
      %922 = vmatprep.subr.mxu0 0.0
      %923 = vmatpush1.xpose.msra.mxu0 0.0
      %924 = vmatprep.subr.mxu0 0.0
      %925 = vmatpush1.xpose.msra.mxu0 0.0
      %926 = vmatprep.subr.mxu0 0.0
      %927 = vmatpush1.xpose.msra.mxu0 0.0
      %928 = vmatprep.subr.mxu0 0.0
      %929 = vmatpush1.xpose.msra.mxu0 0.0
      %930 = vmatprep.subr.mxu0 0.0
      %931 = vmatpush1.xpose.msra.mxu0 0.0
      %932 = vmatprep.subr.mxu0 0.0
      %933 = vmatpush1.xpose.msra.mxu0 0.0
      %934 = vmatprep.subr.mxu0 0.0
      %935 = vmatpush1.xpose.msra.mxu0 0.0
      %936 = vmatprep.subr.mxu0 0.0
      %937 = vmatpush1.xpose.msra.mxu0 0.0
      %938 = vmatprep.subr.mxu0 0.0
      %939 = vmatpush1.xpose.msra.mxu0 0.0
      %940 = vmatprep.subr.mxu0 0.0
      %941 = vmatpush1.xpose.msra.mxu0 0.0
      %942 = vmatprep.subr.mxu0 0.0
      %943 = vmatpush1.xpose.msra.mxu0 0.0
      %944 = vmatprep.subr.mxu0 0.0
      %945 = vmatpush1.xpose.msra.mxu0 0.0
      %946 = vmatprep.subr.mxu0 0.0
      %947 = vmatpush1.xpose.msra.mxu0 0.0
      %948 = vmatprep.subr.mxu0 0.0
      %949 = vmatpush1.xpose.msra.mxu0 0.0
      %950 = vmatprep.subr.mxu0 0.0
      %951 = vmatpush1.xpose.msra.mxu0 0.0
      %952 = vmatprep.subr.mxu0 0.0
      %953 = vmatpush1.xpose.msra.mxu0 0.0
      %954 = vmatprep.subr.mxu0 0.0
      %955 = vmatpush1.xpose.msra.mxu0 0.0
      %956 = vmatprep.subr.mxu0 0.0
      %957 = vmatpush1.xpose.msra.mxu0 0.0
      %958 = vmatprep.subr.mxu0 0.0
      %959 = vmatpush1.xpose.msra.mxu0 0.0
      %960 = vmatprep.subr.mxu0 0.0
      %961 = vmatpush1.xpose.msra.mxu0 0.0
      %962 = vmatprep.subr.mxu0 0.0
      %963 = vmatpush1.xpose.msra.mxu0 0.0
      %964 = vmatprep.subr.mxu0 0.0
      %965 = vmatpush1.xpose.msra.mxu0 0.0
      %966 = vmatprep.subr.mxu0 0.0
      %967 = vmatpush1.xpose.msra.mxu0 0.0
      %968 = vmatprep.subr.mxu0 0.0
      %969 = vmatpush1.xpose.msra.mxu0 0.0
      %970 = vmatprep.subr.mxu0 0.0
      %971 = vmatpush1.xpose.msra.mxu0 0.0
      %972 = vmatprep.subr.mxu0 0.0
      %973 = vmatpush1.xpose.msra.mxu0 0.0
      %974 = vmatprep.subr.mxu0 0.0
      %975 = vmatpush1.xpose.msra.mxu0 0.0
      %976 = vmatprep.subr.mxu0 0.0
      %977 = vmatpush1.xpose.msra.mxu0 0.0
      %978 = vmatprep.subr.mxu0 0.0
      %979 = vmatpush1.xpose.msra.mxu0 0.0
      %980 = vmatprep.subr.mxu0 0.0
      %981 = vmatpush1.xpose.msra.mxu0 0.0
      %982 = vmatprep.mubr.f32.mxu0 0.0
      %983 = vmatmul.mubr.f32.gmra.mrb[0].mxu0 %v913
      %v984 = vpop.f32.mrb[0].mxu0
      %v985 = vadd.f32 0.0, %v984
      %v986 = vpop.f32.mrb[0].mxu0
      %987 = vdwg.mxu0
      %v988 = vsel %vm910, -inf, %v985
      %v989 = vmul.f32 %v988, 0.17677669
      %v990 = vsel %vm911, %v989, -inf
      %991 = vmax.xlane.f32.xlu0 %v990
      %v992 = vpop.xlane.xlu0 %991
      %v993 = vsub.f32 %v989, %v992
      %v994 = vmul.f32 %v993, 1.442695
      %v995 = vpow.pop %v994
      %v996 = vsel %vm911, %v995, 0.0
      %997 = vadd.xlane.f32.xlu0 %v996
      %v998 = vpop.xlane.xlu0 %997
      %v999 = vrcp.pop %v998
      %v1000 = vmul.f32 %v995, %v999
      %v1002 = vsel %vm911, %v1000, 0
      %1004 = vmatprep.subr.mxu0 0.0
      %1005 = vmatpush1.msra.mxu0 %v903
      %1006 = vmatprep.subr.mxu0 0.0
      %1007 = vmatpush1.msra.mxu0 0.0
      %1008 = vmatprep.subr.mxu0 0.0
      %1009 = vmatpush1.msra.mxu0 0.0
      %1010 = vmatprep.subr.mxu0 0.0
      %1011 = vmatpush1.msra.mxu0 0.0
      %1012 = vmatprep.subr.mxu0 0.0
      %1013 = vmatpush1.msra.mxu0 0.0
      %1014 = vmatprep.subr.mxu0 0.0
      %1015 = vmatpush1.msra.mxu0 0.0
      %1016 = vmatprep.subr.mxu0 0.0
      %1017 = vmatpush1.msra.mxu0 0.0
      %1018 = vmatprep.subr.mxu0 0.0
      %1019 = vmatpush1.msra.mxu0 0.0
      %1020 = vmatprep.subr.mxu0 0.0
      %1021 = vmatpush1.msra.mxu0 0.0
      %1022 = vmatprep.subr.mxu0 0.0
      %1023 = vmatpush1.msra.mxu0 0.0
      %1024 = vmatprep.subr.mxu0 0.0
      %1025 = vmatpush1.msra.mxu0 0.0
      %1026 = vmatprep.subr.mxu0 0.0
      %1027 = vmatpush1.msra.mxu0 0.0
      %1028 = vmatprep.subr.mxu0 0.0
      %1029 = vmatpush1.msra.mxu0 0.0
      %1030 = vmatprep.subr.mxu0 0.0
      %1031 = vmatpush1.msra.mxu0 0.0
      %1032 = vmatprep.subr.mxu0 0.0
      %1033 = vmatpush1.msra.mxu0 0.0
      %1034 = vmatprep.subr.mxu0 0.0
      %1035 = vmatpush1.msra.mxu0 0.0
      %1036 = vmatprep.subr.mxu0 0.0
      %1037 = vmatpush1.msra.mxu0 0.0
      %1038 = vmatprep.subr.mxu0 0.0
      %1039 = vmatpush1.msra.mxu0 0.0
      %1040 = vmatprep.subr.mxu0 0.0
      %1041 = vmatpush1.msra.mxu0 0.0
      %1042 = vmatprep.subr.mxu0 0.0
      %1043 = vmatpush1.msra.mxu0 0.0
      %1044 = vmatprep.subr.mxu0 0.0
      %1045 = vmatpush1.msra.mxu0 0.0
      %1046 = vmatprep.subr.mxu0 0.0
      %1047 = vmatpush1.msra.mxu0 0.0
      %1048 = vmatprep.subr.mxu0 0.0
      %1049 = vmatpush1.msra.mxu0 0.0
      %1050 = vmatprep.subr.mxu0 0.0
      %1051 = vmatpush1.msra.mxu0 0.0
      %1052 = vmatprep.subr.mxu0 0.0
      %1053 = vmatpush1.msra.mxu0 0.0
      %1054 = vmatprep.subr.mxu0 0.0
      %1055 = vmatpush1.msra.mxu0 0.0
      %1056 = vmatprep.subr.mxu0 0.0
      %1057 = vmatpush1.msra.mxu0 0.0
      %1058 = vmatprep.subr.mxu0 0.0
      %1059 = vmatpush1.msra.mxu0 0.0
      %1060 = vmatprep.subr.mxu0 0.0
      %1061 = vmatpush1.msra.mxu0 0.0
      %1062 = vmatprep.subr.mxu0 0.0
      %1063 = vmatpush1.msra.mxu0 0.0
      %1064 = vmatprep.subr.mxu0 0.0
      %1065 = vmatpush1.msra.mxu0 0.0
      %1066 = vmatprep.subr.mxu0 0.0
      %1067 = vmatpush1.msra.mxu0 0.0
      %1068 = vmatprep.mubr.f32.mxu0 0.0
      %1069 = vmatmul.mubr.f32.gmra.mrb[0].mxu0 %v1002
      %v1070 = vpop.f32.mrb[0].mxu0
      %v1071 = vadd.f32 0.0, %v1070
      %v1072 = vpop.f32.mrb[0].mxu0
      %1073 = vdwg.mxu0
      %1074 = vrot.lane.b32.xlu0 %v763, 120
      %v1075 = vpop.permute.xlu0 %1074
      %1076 = vrot.lane.b32.xlu0 %v833, 120
      %v1077 = vpop.permute.xlu0 %1076
      %v1078 = vsel %vm911, %v1075, 0
      %v1080 = vsel %vm911, %v1077, 0
      %1082 = vmatprep.subr.mxu0 0.0
      %1083 = vmatpush1.xpose.msra.mxu0 %v1080
      %1084 = vmatprep.subr.mxu0 0.0
      %1085 = vmatpush1.xpose.msra.mxu0 0.0
      %1086 = vmatprep.subr.mxu0 0.0
      %1087 = vmatpush1.xpose.msra.mxu0 0.0
      %1088 = vmatprep.subr.mxu0 0.0
      %1089 = vmatpush1.xpose.msra.mxu0 0.0
      %1090 = vmatprep.subr.mxu0 0.0
      %1091 = vmatpush1.xpose.msra.mxu0 0.0
      %1092 = vmatprep.subr.mxu0 0.0
      %1093 = vmatpush1.xpose.msra.mxu0 0.0
      %1094 = vmatprep.subr.mxu0 0.0
      %1095 = vmatpush1.xpose.msra.mxu0 0.0
      %1096 = vmatprep.subr.mxu0 0.0
      %1097 = vmatpush1.xpose.msra.mxu0 0.0
      %1098 = vmatprep.subr.mxu0 0.0
      %1099 = vmatpush1.xpose.msra.mxu0 0.0
      %1100 = vmatprep.subr.mxu0 0.0
      %1101 = vmatpush1.xpose.msra.mxu0 0.0
      %1102 = vmatprep.subr.mxu0 0.0
      %1103 = vmatpush1.xpose.msra.mxu0 0.0
      %1104 = vmatprep.subr.mxu0 0.0
      %1105 = vmatpush1.xpose.msra.mxu0 0.0
      %1106 = vmatprep.subr.mxu0 0.0
      %1107 = vmatpush1.xpose.msra.mxu0 0.0
      %1108 = vmatprep.subr.mxu0 0.0
      %1109 = vmatpush1.xpose.msra.mxu0 0.0
      %1110 = vmatprep.subr.mxu0 0.0
      %1111 = vmatpush1.xpose.msra.mxu0 0.0
      %1112 = vmatprep.subr.mxu0 0.0
      %1113 = vmatpush1.xpose.msra.mxu0 0.0
      %1114 = vmatprep.subr.mxu0 0.0
      %1115 = vmatpush1.xpose.msra.mxu0 0.0
      %1116 = vmatprep.subr.mxu0 0.0
      %1117 = vmatpush1.xpose.msra.mxu0 0.0
      %1118 = vmatprep.subr.mxu0 0.0
      %1119 = vmatpush1.xpose.msra.mxu0 0.0
      %1120 = vmatprep.subr.mxu0 0.0
      %1121 = vmatpush1.xpose.msra.mxu0 0.0
      %1122 = vmatprep.subr.mxu0 0.0
      %1123 = vmatpush1.xpose.msra.mxu0 0.0
      %1124 = vmatprep.subr.mxu0 0.0
      %1125 = vmatpush1.xpose.msra.mxu0 0.0
      %1126 = vmatprep.subr.mxu0 0.0
      %1127 = vmatpush1.xpose.msra.mxu0 0.0
      %1128 = vmatprep.subr.mxu0 0.0
      %1129 = vmatpush1.xpose.msra.mxu0 0.0
      %1130 = vmatprep.subr.mxu0 0.0
      %1131 = vmatpush1.xpose.msra.mxu0 0.0
      %1132 = vmatprep.subr.mxu0 0.0
      %1133 = vmatpush1.xpose.msra.mxu0 0.0
      %1134 = vmatprep.subr.mxu0 0.0
      %1135 = vmatpush1.xpose.msra.mxu0 0.0
      %1136 = vmatprep.subr.mxu0 0.0
      %1137 = vmatpush1.xpose.msra.mxu0 0.0
      %1138 = vmatprep.subr.mxu0 0.0
      %1139 = vmatpush1.xpose.msra.mxu0 0.0
      %1140 = vmatprep.subr.mxu0 0.0
      %1141 = vmatpush1.xpose.msra.mxu0 0.0
      %1142 = vmatprep.subr.mxu0 0.0
      %1143 = vmatpush1.xpose.msra.mxu0 0.0
      %1144 = vmatprep.subr.mxu0 0.0
      %1145 = vmatpush1.xpose.msra.mxu0 0.0
      %1146 = vmatprep.mubr.f32.mxu0 0.0
      %1147 = vmatmul.mubr.f32.gmra.mrb[0].mxu0 %v1078
      %v1148 = vpop.f32.mrb[0].mxu0
      %v1149 = vadd.f32 0.0, %v1148
      %v1150 = vpop.f32.mrb[0].mxu0
      %1151 = vdwg.mxu0
      %v1152 = vsel %vm910, -inf, %v1149
      %v1153 = vmul.f32 %v1152, 0.17677669
      %v1154 = vsel %vm911, %v1153, -inf
      %1155 = vmax.xlane.f32.xlu0 %v1154
      %v1156 = vpop.xlane.xlu0 %1155
      %v1157 = vsub.f32 %v1153, %v1156
      %v1158 = vmul.f32 %v1157, 1.442695
      %v1159 = vpow.pop %v1158
      %v1160 = vsel %vm911, %v1159, 0.0
      %1161 = vadd.xlane.f32.xlu0 %v1160
      %v1162 = vpop.xlane.xlu0 %1161
      %v1163 = vrcp.pop %v1162
      %v1164 = vmul.f32 %v1159, %v1163
      %1166 = vrot.lane.b32.xlu0 %v903, 120
      %v1167 = vpop.permute.xlu0 %1166
      %v1170 = vsel %vm911, %v1164, 0
      %1172 = vmatprep.subr.mxu0 0.0
      %1173 = vmatpush1.msra.mxu0 %v1167
      %1174 = vmatprep.subr.mxu0 0.0
      %1175 = vmatpush1.msra.mxu0 0.0
      %1176 = vmatprep.subr.mxu0 0.0
      %1177 = vmatpush1.msra.mxu0 0.0
      %1178 = vmatprep.subr.mxu0 0.0
      %1179 = vmatpush1.msra.mxu0 0.0
      %1180 = vmatprep.subr.mxu0 0.0
      %1181 = vmatpush1.msra.mxu0 0.0
      %1182 = vmatprep.subr.mxu0 0.0
      %1183 = vmatpush1.msra.mxu0 0.0
      %1184 = vmatprep.subr.mxu0 0.0
      %1185 = vmatpush1.msra.mxu0 0.0
      %1186 = vmatprep.subr.mxu0 0.0
      %1187 = vmatpush1.msra.mxu0 0.0
      %1188 = vmatprep.subr.mxu0 0.0
      %1189 = vmatpush1.msra.mxu0 0.0
      %1190 = vmatprep.subr.mxu0 0.0
      %1191 = vmatpush1.msra.mxu0 0.0
      %1192 = vmatprep.subr.mxu0 0.0
      %1193 = vmatpush1.msra.mxu0 0.0
      %1194 = vmatprep.subr.mxu0 0.0
      %1195 = vmatpush1.msra.mxu0 0.0
      %1196 = vmatprep.subr.mxu0 0.0
      %1197 = vmatpush1.msra.mxu0 0.0
      %1198 = vmatprep.subr.mxu0 0.0
      %1199 = vmatpush1.msra.mxu0 0.0
      %1200 = vmatprep.subr.mxu0 0.0
      %1201 = vmatpush1.msra.mxu0 0.0
      %1202 = vmatprep.subr.mxu0 0.0
      %1203 = vmatpush1.msra.mxu0 0.0
      %1204 = vmatprep.subr.mxu0 0.0
      %1205 = vmatpush1.msra.mxu0 0.0
      %1206 = vmatprep.subr.mxu0 0.0
      %1207 = vmatpush1.msra.mxu0 0.0
      %1208 = vmatprep.subr.mxu0 0.0
      %1209 = vmatpush1.msra.mxu0 0.0
      %1210 = vmatprep.subr.mxu0 0.0
      %1211 = vmatpush1.msra.mxu0 0.0
      %1212 = vmatprep.subr.mxu0 0.0
      %1213 = vmatpush1.msra.mxu0 0.0
      %1214 = vmatprep.subr.mxu0 0.0
      %1215 = vmatpush1.msra.mxu0 0.0
      %1216 = vmatprep.subr.mxu0 0.0
      %1217 = vmatpush1.msra.mxu0 0.0
      %1218 = vmatprep.subr.mxu0 0.0
      %1219 = vmatpush1.msra.mxu0 0.0
      %1220 = vmatprep.subr.mxu0 0.0
      %1221 = vmatpush1.msra.mxu0 0.0
      %1222 = vmatprep.subr.mxu0 0.0
      %1223 = vmatpush1.msra.mxu0 0.0
      %1224 = vmatprep.subr.mxu0 0.0
      %1225 = vmatpush1.msra.mxu0 0.0
      %1226 = vmatprep.subr.mxu0 0.0
      %1227 = vmatpush1.msra.mxu0 0.0
      %1228 = vmatprep.subr.mxu0 0.0
      %1229 = vmatpush1.msra.mxu0 0.0
      %1230 = vmatprep.subr.mxu0 0.0
      %1231 = vmatpush1.msra.mxu0 0.0
      %1232 = vmatprep.subr.mxu0 0.0
      %1233 = vmatpush1.msra.mxu0 0.0
      %1234 = vmatprep.subr.mxu0 0.0
      %1235 = vmatpush1.msra.mxu0 0.0
      %1236 = vmatprep.mubr.f32.mxu0 0.0
      %1237 = vmatmul.mubr.f32.gmra.mrb[0].mxu0 %v1170
      %v1238 = vpop.f32.mrb[0].mxu0
      %v1239 = vadd.f32 0.0, %v1238
      %v1240 = vpop.f32.mrb[0].mxu0
      %1241 = vdwg.mxu0
      %1242 = vrot.lane.b32.xlu0 %v763, 112
      %v1243 = vpop.permute.xlu0 %1242
      %1244 = vrot.lane.b32.xlu0 %v833, 112
      %v1245 = vpop.permute.xlu0 %1244
      %v1246 = vsel %vm911, %v1243, 0
      %v1248 = vsel %vm911, %v1245, 0
      %1250 = vmatprep.subr.mxu0 0.0
      %1251 = vmatpush1.xpose.msra.mxu0 %v1248
      %1252 = vmatprep.subr.mxu0 0.0
      %1253 = vmatpush1.xpose.msra.mxu0 0.0
      %1254 = vmatprep.subr.mxu0 0.0
      %1255 = vmatpush1.xpose.msra.mxu0 0.0
      %1256 = vmatprep.subr.mxu0 0.0
      %1257 = vmatpush1.xpose.msra.mxu0 0.0
      %1258 = vmatprep.subr.mxu0 0.0
      %1259 = vmatpush1.xpose.msra.mxu0 0.0
      %1260 = vmatprep.subr.mxu0 0.0
      %1261 = vmatpush1.xpose.msra.mxu0 0.0
      %1262 = vmatprep.subr.mxu0 0.0
      %1263 = vmatpush1.xpose.msra.mxu0 0.0
      %1264 = vmatprep.subr.mxu0 0.0
      %1265 = vmatpush1.xpose.msra.mxu0 0.0
      %1266 = vmatprep.subr.mxu0 0.0
      %1267 = vmatpush1.xpose.msra.mxu0 0.0
      %1268 = vmatprep.subr.mxu0 0.0
      %1269 = vmatpush1.xpose.msra.mxu0 0.0
      %1270 = vmatprep.subr.mxu0 0.0
      %1271 = vmatpush1.xpose.msra.mxu0 0.0
      %1272 = vmatprep.subr.mxu0 0.0
      %1273 = vmatpush1.xpose.msra.mxu0 0.0
      %1274 = vmatprep.subr.mxu0 0.0
      %1275 = vmatpush1.xpose.msra.mxu0 0.0
      %1276 = vmatprep.subr.mxu0 0.0
      %1277 = vmatpush1.xpose.msra.mxu0 0.0
      %1278 = vmatprep.subr.mxu0 0.0
      %1279 = vmatpush1.xpose.msra.mxu0 0.0
      %1280 = vmatprep.subr.mxu0 0.0
      %1281 = vmatpush1.xpose.msra.mxu0 0.0
      %1282 = vmatprep.subr.mxu0 0.0
      %1283 = vmatpush1.xpose.msra.mxu0 0.0
      %1284 = vmatprep.subr.mxu0 0.0
      %1285 = vmatpush1.xpose.msra.mxu0 0.0
      %1286 = vmatprep.subr.mxu0 0.0
      %1287 = vmatpush1.xpose.msra.mxu0 0.0
      %1288 = vmatprep.subr.mxu0 0.0
      %1289 = vmatpush1.xpose.msra.mxu0 0.0
      %1290 = vmatprep.subr.mxu0 0.0
      %1291 = vmatpush1.xpose.msra.mxu0 0.0
      %1292 = vmatprep.subr.mxu0 0.0
      %1293 = vmatpush1.xpose.msra.mxu0 0.0
      %1294 = vmatprep.subr.mxu0 0.0
      %1295 = vmatpush1.xpose.msra.mxu0 0.0
      %1296 = vmatprep.subr.mxu0 0.0
      %1297 = vmatpush1.xpose.msra.mxu0 0.0
      %1298 = vmatprep.subr.mxu0 0.0
      %1299 = vmatpush1.xpose.msra.mxu0 0.0
      %1300 = vmatprep.subr.mxu0 0.0
      %1301 = vmatpush1.xpose.msra.mxu0 0.0
      %1302 = vmatprep.subr.mxu0 0.0
      %1303 = vmatpush1.xpose.msra.mxu0 0.0
      %1304 = vmatprep.subr.mxu0 0.0
      %1305 = vmatpush1.xpose.msra.mxu0 0.0
      %1306 = vmatprep.subr.mxu0 0.0
      %1307 = vmatpush1.xpose.msra.mxu0 0.0
      %1308 = vmatprep.subr.mxu0 0.0
      %1309 = vmatpush1.xpose.msra.mxu0 0.0
      %1310 = vmatprep.subr.mxu0 0.0
      %1311 = vmatpush1.xpose.msra.mxu0 0.0
      %1312 = vmatprep.subr.mxu0 0.0
      %1313 = vmatpush1.xpose.msra.mxu0 0.0
      %1314 = vmatprep.mubr.f32.mxu0 0.0
      %1315 = vmatmul.mubr.f32.gmra.mrb[0].mxu0 %v1246
      %v1316 = vpop.f32.mrb[0].mxu0
      %v1317 = vadd.f32 0.0, %v1316
      %v1318 = vpop.f32.mrb[0].mxu0
      %1319 = vdwg.mxu0
      %v1320 = vsel %vm910, -inf, %v1317
      %v1321 = vmul.f32 %v1320, 0.17677669
      %v1322 = vsel %vm911, %v1321, -inf
      %1323 = vmax.xlane.f32.xlu0 %v1322
      %v1324 = vpop.xlane.xlu0 %1323
      %v1325 = vsub.f32 %v1321, %v1324
      %v1326 = vmul.f32 %v1325, 1.442695
      %v1327 = vpow.pop %v1326
      %v1328 = vsel %vm911, %v1327, 0.0
      %1329 = vadd.xlane.f32.xlu0 %v1328
      %v1330 = vpop.xlane.xlu0 %1329
      %v1331 = vrcp.pop %v1330
      %v1332 = vmul.f32 %v1327, %v1331
      %1333 = vrot.lane.b32.xlu0 %v903, 112
      %v1334 = vpop.permute.xlu0 %1333
      %v1337 = vsel %vm911, %v1332, 0
      %1339 = vmatprep.subr.mxu0 0.0
      %1340 = vmatpush1.msra.mxu0 %v1334
      %1341 = vmatprep.subr.mxu0 0.0
      %1342 = vmatpush1.msra.mxu0 0.0
      %1343 = vmatprep.subr.mxu0 0.0
      %1344 = vmatpush1.msra.mxu0 0.0
      %1345 = vmatprep.subr.mxu0 0.0
      %1346 = vmatpush1.msra.mxu0 0.0
      %1347 = vmatprep.subr.mxu0 0.0
      %1348 = vmatpush1.msra.mxu0 0.0
      %1349 = vmatprep.subr.mxu0 0.0
      %1350 = vmatpush1.msra.mxu0 0.0
      %1351 = vmatprep.subr.mxu0 0.0
      %1352 = vmatpush1.msra.mxu0 0.0
      %1353 = vmatprep.subr.mxu0 0.0
      %1354 = vmatpush1.msra.mxu0 0.0
      %1355 = vmatprep.subr.mxu0 0.0
      %1356 = vmatpush1.msra.mxu0 0.0
      %1357 = vmatprep.subr.mxu0 0.0
      %1358 = vmatpush1.msra.mxu0 0.0
      %1359 = vmatprep.subr.mxu0 0.0
      %1360 = vmatpush1.msra.mxu0 0.0
      %1361 = vmatprep.subr.mxu0 0.0
      %1362 = vmatpush1.msra.mxu0 0.0
      %1363 = vmatprep.subr.mxu0 0.0
      %1364 = vmatpush1.msra.mxu0 0.0
      %1365 = vmatprep.subr.mxu0 0.0
      %1366 = vmatpush1.msra.mxu0 0.0
      %1367 = vmatprep.subr.mxu0 0.0
      %1368 = vmatpush1.msra.mxu0 0.0
      %1369 = vmatprep.subr.mxu0 0.0
      %1370 = vmatpush1.msra.mxu0 0.0
      %1371 = vmatprep.subr.mxu0 0.0
      %1372 = vmatpush1.msra.mxu0 0.0
      %1373 = vmatprep.subr.mxu0 0.0
      %1374 = vmatpush1.msra.mxu0 0.0
      %1375 = vmatprep.subr.mxu0 0.0
      %1376 = vmatpush1.msra.mxu0 0.0
      %1377 = vmatprep.subr.mxu0 0.0
      %1378 = vmatpush1.msra.mxu0 0.0
      %1379 = vmatprep.subr.mxu0 0.0
      %1380 = vmatpush1.msra.mxu0 0.0
      %1381 = vmatprep.subr.mxu0 0.0
      %1382 = vmatpush1.msra.mxu0 0.0
      %1383 = vmatprep.subr.mxu0 0.0
      %1384 = vmatpush1.msra.mxu0 0.0
      %1385 = vmatprep.subr.mxu0 0.0
      %1386 = vmatpush1.msra.mxu0 0.0
      %1387 = vmatprep.subr.mxu0 0.0
      %1388 = vmatpush1.msra.mxu0 0.0
      %1389 = vmatprep.subr.mxu0 0.0
      %1390 = vmatpush1.msra.mxu0 0.0
      %1391 = vmatprep.subr.mxu0 0.0
      %1392 = vmatpush1.msra.mxu0 0.0
      %1393 = vmatprep.subr.mxu0 0.0
      %1394 = vmatpush1.msra.mxu0 0.0
      %1395 = vmatprep.subr.mxu0 0.0
      %1396 = vmatpush1.msra.mxu0 0.0
      %1397 = vmatprep.subr.mxu0 0.0
      %1398 = vmatpush1.msra.mxu0 0.0
      %1399 = vmatprep.subr.mxu0 0.0
      %1400 = vmatpush1.msra.mxu0 0.0
      %1401 = vmatprep.subr.mxu0 0.0
      %1402 = vmatpush1.msra.mxu0 0.0
      %1403 = vmatprep.mubr.f32.mxu0 0.0
      %1404 = vmatmul.mubr.f32.gmra.mrb[0].mxu0 %v1337
      %v1405 = vpop.f32.mrb[0].mxu0
      %v1406 = vadd.f32 0.0, %v1405
      %v1407 = vpop.f32.mrb[0].mxu0
      %1408 = vdwg.mxu0
      %1409 = vrot.lane.b32.xlu0 %v763, 104
      %v1410 = vpop.permute.xlu0 %1409
      %1411 = vrot.lane.b32.xlu0 %v833, 104
      %v1412 = vpop.permute.xlu0 %1411
      %v1413 = vsel %vm911, %v1410, 0
      %v1415 = vsel %vm911, %v1412, 0
      %1417 = vmatprep.subr.mxu0 0.0
      %1418 = vmatpush1.xpose.msra.mxu0 %v1415
      %1419 = vmatprep.subr.mxu0 0.0
      %1420 = vmatpush1.xpose.msra.mxu0 0.0
      %1421 = vmatprep.subr.mxu0 0.0
      %1422 = vmatpush1.xpose.msra.mxu0 0.0
      %1423 = vmatprep.subr.mxu0 0.0
      %1424 = vmatpush1.xpose.msra.mxu0 0.0
      %1425 = vmatprep.subr.mxu0 0.0
      %1426 = vmatpush1.xpose.msra.mxu0 0.0
      %1427 = vmatprep.subr.mxu0 0.0
      %1428 = vmatpush1.xpose.msra.mxu0 0.0
      %1429 = vmatprep.subr.mxu0 0.0
      %1430 = vmatpush1.xpose.msra.mxu0 0.0
      %1431 = vmatprep.subr.mxu0 0.0
      %1432 = vmatpush1.xpose.msra.mxu0 0.0
      %1433 = vmatprep.subr.mxu0 0.0
      %1434 = vmatpush1.xpose.msra.mxu0 0.0
      %1435 = vmatprep.subr.mxu0 0.0
      %1436 = vmatpush1.xpose.msra.mxu0 0.0
      %1437 = vmatprep.subr.mxu0 0.0
      %1438 = vmatpush1.xpose.msra.mxu0 0.0
      %1439 = vmatprep.subr.mxu0 0.0
      %1440 = vmatpush1.xpose.msra.mxu0 0.0
      %1441 = vmatprep.subr.mxu0 0.0
      %1442 = vmatpush1.xpose.msra.mxu0 0.0
      %1443 = vmatprep.subr.mxu0 0.0
      %1444 = vmatpush1.xpose.msra.mxu0 0.0
      %1445 = vmatprep.subr.mxu0 0.0
      %1446 = vmatpush1.xpose.msra.mxu0 0.0
      %1447 = vmatprep.subr.mxu0 0.0
      %1448 = vmatpush1.xpose.msra.mxu0 0.0
      %1449 = vmatprep.subr.mxu0 0.0
      %1450 = vmatpush1.xpose.msra.mxu0 0.0
      %1451 = vmatprep.subr.mxu0 0.0
      %1452 = vmatpush1.xpose.msra.mxu0 0.0
      %1453 = vmatprep.subr.mxu0 0.0
      %1454 = vmatpush1.xpose.msra.mxu0 0.0
      %1455 = vmatprep.subr.mxu0 0.0
      %1456 = vmatpush1.xpose.msra.mxu0 0.0
      %1457 = vmatprep.subr.mxu0 0.0
      %1458 = vmatpush1.xpose.msra.mxu0 0.0
      %1459 = vmatprep.subr.mxu0 0.0
      %1460 = vmatpush1.xpose.msra.mxu0 0.0
      %1461 = vmatprep.subr.mxu0 0.0
      %1462 = vmatpush1.xpose.msra.mxu0 0.0
      %1463 = vmatprep.subr.mxu0 0.0
      %1464 = vmatpush1.xpose.msra.mxu0 0.0
      %1465 = vmatprep.subr.mxu0 0.0
      %1466 = vmatpush1.xpose.msra.mxu0 0.0
      %1467 = vmatprep.subr.mxu0 0.0
      %1468 = vmatpush1.xpose.msra.mxu0 0.0
      %1469 = vmatprep.subr.mxu0 0.0
      %1470 = vmatpush1.xpose.msra.mxu0 0.0
      %1471 = vmatprep.subr.mxu0 0.0
      %1472 = vmatpush1.xpose.msra.mxu0 0.0
      %1473 = vmatprep.subr.mxu0 0.0
      %1474 = vmatpush1.xpose.msra.mxu0 0.0
      %1475 = vmatprep.subr.mxu0 0.0
      %1476 = vmatpush1.xpose.msra.mxu0 0.0
      %1477 = vmatprep.subr.mxu0 0.0
      %1478 = vmatpush1.xpose.msra.mxu0 0.0
      %1479 = vmatprep.subr.mxu0 0.0
      %1480 = vmatpush1.xpose.msra.mxu0 0.0
      %1481 = vmatprep.mubr.f32.mxu0 0.0
      %1482 = vmatmul.mubr.f32.gmra.mrb[0].mxu0 %v1413
      %v1483 = vpop.f32.mrb[0].mxu0
      %v1484 = vadd.f32 0.0, %v1483
      %v1485 = vpop.f32.mrb[0].mxu0
      %1486 = vdwg.mxu0
      %v1487 = vsel %vm910, -inf, %v1484
      %v1488 = vmul.f32 %v1487, 0.17677669
      %v1489 = vsel %vm911, %v1488, -inf
      %1490 = vmax.xlane.f32.xlu0 %v1489
      %v1491 = vpop.xlane.xlu0 %1490
      %v1492 = vsub.f32 %v1488, %v1491
      %v1493 = vmul.f32 %v1492, 1.442695
      %v1494 = vpow.pop %v1493
      %v1495 = vsel %vm911, %v1494, 0.0
      %1496 = vadd.xlane.f32.xlu0 %v1495
      %v1497 = vpop.xlane.xlu0 %1496
      %v1498 = vrcp.pop %v1497
      %v1499 = vmul.f32 %v1494, %v1498
      %1500 = vrot.lane.b32.xlu0 %v903, 104
      %v1501 = vpop.permute.xlu0 %1500
      %v1504 = vsel %vm911, %v1499, 0
      %1506 = vmatprep.subr.mxu0 0.0
      %1507 = vmatpush1.msra.mxu0 %v1501
      %1508 = vmatprep.subr.mxu0 0.0
      %1509 = vmatpush1.msra.mxu0 0.0
      %1510 = vmatprep.subr.mxu0 0.0
      %1511 = vmatpush1.msra.mxu0 0.0
      %1512 = vmatprep.subr.mxu0 0.0
      %1513 = vmatpush1.msra.mxu0 0.0
      %1514 = vmatprep.subr.mxu0 0.0
      %1515 = vmatpush1.msra.mxu0 0.0
      %1516 = vmatprep.subr.mxu0 0.0
      %1517 = vmatpush1.msra.mxu0 0.0
      %1518 = vmatprep.subr.mxu0 0.0
      %1519 = vmatpush1.msra.mxu0 0.0
      %1520 = vmatprep.subr.mxu0 0.0
      %1521 = vmatpush1.msra.mxu0 0.0
      %1522 = vmatprep.subr.mxu0 0.0
      %1523 = vmatpush1.msra.mxu0 0.0
      %1524 = vmatprep.subr.mxu0 0.0
      %1525 = vmatpush1.msra.mxu0 0.0
      %1526 = vmatprep.subr.mxu0 0.0
      %1527 = vmatpush1.msra.mxu0 0.0
      %1528 = vmatprep.subr.mxu0 0.0
      %1529 = vmatpush1.msra.mxu0 0.0
      %1530 = vmatprep.subr.mxu0 0.0
      %1531 = vmatpush1.msra.mxu0 0.0
      %1532 = vmatprep.subr.mxu0 0.0
      %1533 = vmatpush1.msra.mxu0 0.0
      %1534 = vmatprep.subr.mxu0 0.0
      %1535 = vmatpush1.msra.mxu0 0.0
      %1536 = vmatprep.subr.mxu0 0.0
      %1537 = vmatpush1.msra.mxu0 0.0
      %1538 = vmatprep.subr.mxu0 0.0
      %1539 = vmatpush1.msra.mxu0 0.0
      %1540 = vmatprep.subr.mxu0 0.0
      %1541 = vmatpush1.msra.mxu0 0.0
      %1542 = vmatprep.subr.mxu0 0.0
      %1543 = vmatpush1.msra.mxu0 0.0
      %1544 = vmatprep.subr.mxu0 0.0
      %1545 = vmatpush1.msra.mxu0 0.0
      %1546 = vmatprep.subr.mxu0 0.0
      %1547 = vmatpush1.msra.mxu0 0.0
      %1548 = vmatprep.subr.mxu0 0.0
      %1549 = vmatpush1.msra.mxu0 0.0
      %1550 = vmatprep.subr.mxu0 0.0
      %1551 = vmatpush1.msra.mxu0 0.0
      %1552 = vmatprep.subr.mxu0 0.0
      %1553 = vmatpush1.msra.mxu0 0.0
      %1554 = vmatprep.subr.mxu0 0.0
      %1555 = vmatpush1.msra.mxu0 0.0
      %1556 = vmatprep.subr.mxu0 0.0
      %1557 = vmatpush1.msra.mxu0 0.0
      %1558 = vmatprep.subr.mxu0 0.0
      %1559 = vmatpush1.msra.mxu0 0.0
      %1560 = vmatprep.subr.mxu0 0.0
      %1561 = vmatpush1.msra.mxu0 0.0
      %1562 = vmatprep.subr.mxu0 0.0
      %1563 = vmatpush1.msra.mxu0 0.0
      %1564 = vmatprep.subr.mxu0 0.0
      %1565 = vmatpush1.msra.mxu0 0.0
      %1566 = vmatprep.subr.mxu0 0.0
      %1567 = vmatpush1.msra.mxu0 0.0
      %1568 = vmatprep.subr.mxu0 0.0
      %1569 = vmatpush1.msra.mxu0 0.0
      %1570 = vmatprep.mubr.f32.mxu0 0.0
      %1571 = vmatmul.mubr.f32.gmra.mrb[0].mxu0 %v1504
      %v1572 = vpop.f32.mrb[0].mxu0
      %v1573 = vadd.f32 0.0, %v1572
      %v1574 = vpop.f32.mrb[0].mxu0
      %1575 = vdwg.mxu0
      %1577 = vrot.lane.b32.xlu0 %v1239, 8
      %v1578 = vpop.permute.xlu0 %1577
      %1581 = vrot.lane.b32.xlu0 %v1406, 16
      %v1582 = vpop.permute.xlu0 %1581
      %1585 = vrot.lane.b32.xlu0 %v1573, 24
      %v1586 = vpop.permute.xlu0 %1585
      %v1588 = vsel %vm911, %v1071, %v1578
      %vm1589 = vcmask 130048
      %v1590 = vsel %vm1589, %v1588, %v1582
      %vm1591 = vcmask 195584
      %v1592 = vsel %vm1591, %v1590, %v1586
      %vm1593 = vcmask 261120
      %v1595 = vsel %vm1593, %v1592, 0
      %1597 = vmatprep.subr.mxu0 0.0
      %1598 = vmatpush1.msra.mxu0 %v692
      %1599 = vmatprep.subr.mxu0 0.0
      %1600 = vmatpush1.msra.mxu0 %v693
      %1601 = vmatprep.subr.mxu0 0.0
      %1602 = vmatpush1.msra.mxu0 %v694
      %1603 = vmatprep.subr.mxu0 0.0
      %1604 = vmatpush1.msra.mxu0 %v695
      %1605 = vmatprep.subr.mxu0 0.0
      %1606 = vmatpush1.msra.mxu0 0.0
      %1607 = vmatprep.subr.mxu0 0.0
      %1608 = vmatpush1.msra.mxu0 0.0
      %1609 = vmatprep.subr.mxu0 0.0
      %1610 = vmatpush1.msra.mxu0 0.0
      %1611 = vmatprep.subr.mxu0 0.0
      %1612 = vmatpush1.msra.mxu0 0.0
      %1613 = vmatprep.subr.mxu0 0.0
      %1614 = vmatpush1.msra.mxu0 0.0
      %1615 = vmatprep.subr.mxu0 0.0
      %1616 = vmatpush1.msra.mxu0 0.0
      %1617 = vmatprep.subr.mxu0 0.0
      %1618 = vmatpush1.msra.mxu0 0.0
      %1619 = vmatprep.subr.mxu0 0.0
      %1620 = vmatpush1.msra.mxu0 0.0
      %1621 = vmatprep.subr.mxu0 0.0
      %1622 = vmatpush1.msra.mxu0 0.0
      %1623 = vmatprep.subr.mxu0 0.0
      %1624 = vmatpush1.msra.mxu0 0.0
      %1625 = vmatprep.subr.mxu0 0.0
      %1626 = vmatpush1.msra.mxu0 0.0
      %1627 = vmatprep.subr.mxu0 0.0
      %1628 = vmatpush1.msra.mxu0 0.0
      %1629 = vmatprep.subr.mxu0 0.0
      %1630 = vmatpush1.msra.mxu0 0.0
      %1631 = vmatprep.subr.mxu0 0.0
      %1632 = vmatpush1.msra.mxu0 0.0
      %1633 = vmatprep.subr.mxu0 0.0
      %1634 = vmatpush1.msra.mxu0 0.0
      %1635 = vmatprep.subr.mxu0 0.0
      %1636 = vmatpush1.msra.mxu0 0.0
      %1637 = vmatprep.subr.mxu0 0.0
      %1638 = vmatpush1.msra.mxu0 0.0
      %1639 = vmatprep.subr.mxu0 0.0
      %1640 = vmatpush1.msra.mxu0 0.0
      %1641 = vmatprep.subr.mxu0 0.0
      %1642 = vmatpush1.msra.mxu0 0.0
      %1643 = vmatprep.subr.mxu0 0.0
      %1644 = vmatpush1.msra.mxu0 0.0
      %1645 = vmatprep.subr.mxu0 0.0
      %1646 = vmatpush1.msra.mxu0 0.0
      %1647 = vmatprep.subr.mxu0 0.0
      %1648 = vmatpush1.msra.mxu0 0.0
      %1649 = vmatprep.subr.mxu0 0.0
      %1650 = vmatpush1.msra.mxu0 0.0
      %1651 = vmatprep.subr.mxu0 0.0
      %1652 = vmatpush1.msra.mxu0 0.0
      %1653 = vmatprep.subr.mxu0 0.0
      %1654 = vmatpush1.msra.mxu0 0.0
      %1655 = vmatprep.subr.mxu0 0.0
      %1656 = vmatpush1.msra.mxu0 0.0
      %1657 = vmatprep.subr.mxu0 0.0
      %1658 = vmatpush1.msra.mxu0 0.0
      %1659 = vmatprep.subr.mxu0 0.0
      %1660 = vmatpush1.msra.mxu0 0.0
      %1661 = vmatprep.mubr.f32.mxu0 0.0
      %1662 = vmatmul.mubr.f32.gmra.mrb[0].mxu0 %v1595
      %v1663 = vpop.f32.mrb[0].mxu0
      %v1664 = vadd.f32 0.0, %v1663
      %v1665 = vpop.f32.mrb[0].mxu0
      %1666 = vdwg.mxu0
      %v1667 = vadd.f32 %v642, %v1664
      %v1668 = vld [vmem:[%s6] sm:$0x1]
      %v1669 = vld [vmem:[%s7] sm:$0x1]
      %1670 = vadd.xlane.f32.xlu0 %v1667
      %v1671 = vpop.xlane.xlu0 %1670
      %v1672 = vmul.f32 %v1671, 0.03125
      %v1673 = vsub.f32 %v1667, %v1672
      %vm1674 = vcmp.lt.s32.totalorder %v909, 32
      %v1675 = vsel %vm1674, %v1673, 0.0
      %v1676 = vmul.f32 %v1675, %v1675
      %1677 = vadd.xlane.f32.xlu0 %v1676
      %v1678 = vpop.xlane.xlu0 %1677
      %v1679 = vmul.f32 %v1678, 0.03125
      %v1680 = vadd.f32 %v1679, 1e-05
      %v1681 = vrsqrt.pop %v1680
      %v1682 = vmul.f32 %v1673, %v1681
      %v1684 = vlaneseq
      %v1685 = vshrl.u32 %v1684, 7
      %v1686 = vsub.s32 0, %v1685
      %v1687 = vrot.slane %v1668, %v1686
      %v1689 = vmul.f32 %v1687, %v1682
      %v1691 = vlaneseq
      %v1692 = vshrl.u32 %v1691, 7
      %v1693 = vsub.s32 0, %v1692
      %v1694 = vrot.slane %v1669, %v1693
      %v1696 = vadd.f32 %v1689, %v1694
      %v1697 = vld [vmem:[%s8] sm:$0xff]
      %v1698 = vld [vmem:[%s8 + $0x8] sm:$0xff]
      %v1699 = vld [vmem:[%s8 + $0x10] sm:$0xff]
      %v1700 = vld [vmem:[%s8 + $0x18] sm:$0xff]
      %v1701 = vld [vmem:[%s8 + $0x20] sm:$0xff]
      %v1702 = vld [vmem:[%s8 + $0x28] sm:$0xff]
      %v1703 = vld [vmem:[%s8 + $0x30] sm:$0xff]
      %v1704 = vld [vmem:[%s8 + $0x38] sm:$0xff]
      %v1705 = vld [vmem:[%s8 + $0x40] sm:$0xff]
      %v1706 = vld [vmem:[%s8 + $0x48] sm:$0xff]
      %v1707 = vld [vmem:[%s8 + $0x50] sm:$0xff]
      %v1708 = vld [vmem:[%s8 + $0x58] sm:$0xff]
      %v1709 = vld [vmem:[%s8 + $0x60] sm:$0xff]
      %v1710 = vld [vmem:[%s8 + $0x68] sm:$0xff]
      %v1711 = vld [vmem:[%s8 + $0x70] sm:$0xff]
      %v1712 = vld [vmem:[%s8 + $0x78] sm:$0xff]
      %v1713 = vld [vmem:[%s9] sm:$0xff]
      %v1714 = vld [vmem:[%s9 + $0x8] sm:$0xff]
      %v1715 = vld [vmem:[%s9 + $0x10] sm:$0xff]
      %v1716 = vld [vmem:[%s9 + $0x18] sm:$0xff]
      %v1717 = vld [vmem:[%s9 + $0x20] sm:$0xff]
      %v1718 = vld [vmem:[%s9 + $0x28] sm:$0xff]
      %v1719 = vld [vmem:[%s9 + $0x30] sm:$0xff]
      %v1720 = vld [vmem:[%s9 + $0x38] sm:$0xff]
      %v1721 = vld [vmem:[%s9 + $0x40] sm:$0xff]
      %v1722 = vld [vmem:[%s9 + $0x48] sm:$0xff]
      %v1723 = vld [vmem:[%s9 + $0x50] sm:$0xff]
      %v1724 = vld [vmem:[%s9 + $0x58] sm:$0xff]
      %v1725 = vld [vmem:[%s9 + $0x60] sm:$0xff]
      %v1726 = vld [vmem:[%s9 + $0x68] sm:$0xff]
      %v1727 = vld [vmem:[%s9 + $0x70] sm:$0xff]
      %v1728 = vld [vmem:[%s9 + $0x78] sm:$0xff]
      %v1729 = vld [vmem:[%s10] sm:$0xff]
      %v1730 = vld [vmem:[%s10 + $0x8] sm:$0xff]
      %v1731 = vld [vmem:[%s10 + $0x10] sm:$0xff]
      %v1732 = vld [vmem:[%s10 + $0x18] sm:$0xff]
      %v1733 = vld [vmem:[%s10 + $0x20] sm:$0xff]
      %v1734 = vld [vmem:[%s10 + $0x28] sm:$0xff]
      %v1735 = vld [vmem:[%s10 + $0x30] sm:$0xff]
      %v1736 = vld [vmem:[%s10 + $0x38] sm:$0xff]
      %v1737 = vld [vmem:[%s10 + $0x40] sm:$0xff]
      %v1738 = vld [vmem:[%s10 + $0x48] sm:$0xff]
      %v1739 = vld [vmem:[%s10 + $0x50] sm:$0xff]
      %v1740 = vld [vmem:[%s10 + $0x58] sm:$0xff]
      %v1741 = vld [vmem:[%s10 + $0x60] sm:$0xff]
      %v1742 = vld [vmem:[%s10 + $0x68] sm:$0xff]
      %v1743 = vld [vmem:[%s10 + $0x70] sm:$0xff]
      %v1744 = vld [vmem:[%s10 + $0x78] sm:$0xff]
      %v1745 = vld [vmem:[%s11] sm:$0xff]
      %v1746 = vld [vmem:[%s11 + $0x8] sm:$0xff]
      %v1747 = vld [vmem:[%s11 + $0x10] sm:$0xff]
      %v1748 = vld [vmem:[%s11 + $0x18] sm:$0xff]
      %1749 = vmatprep.subr.mxu0 0.0
      %1750 = vmatpush1.msra.mxu0 %v1697
      %1751 = vmatprep.subr.mxu0 0.0
      %1752 = vmatpush1.msra.mxu0 %v1698
      %1753 = vmatprep.subr.mxu0 0.0
      %1754 = vmatpush1.msra.mxu0 %v1699
      %1755 = vmatprep.subr.mxu0 0.0
      %1756 = vmatpush1.msra.mxu0 %v1700
      %1757 = vmatprep.subr.mxu0 0.0
      %1758 = vmatpush1.msra.mxu0 %v1701
      %1759 = vmatprep.subr.mxu0 0.0
      %1760 = vmatpush1.msra.mxu0 %v1702
      %1761 = vmatprep.subr.mxu0 0.0
      %1762 = vmatpush1.msra.mxu0 %v1703
      %1763 = vmatprep.subr.mxu0 0.0
      %1764 = vmatpush1.msra.mxu0 %v1704
      %1765 = vmatprep.subr.mxu0 0.0
      %1766 = vmatpush1.msra.mxu0 %v1705
      %1767 = vmatprep.subr.mxu0 0.0
      %1768 = vmatpush1.msra.mxu0 %v1706
      %1769 = vmatprep.subr.mxu0 0.0
      %1770 = vmatpush1.msra.mxu0 %v1707
      %1771 = vmatprep.subr.mxu0 0.0
      %1772 = vmatpush1.msra.mxu0 %v1708
      %1773 = vmatprep.subr.mxu0 0.0
      %1774 = vmatpush1.msra.mxu0 %v1709
      %1775 = vmatprep.subr.mxu0 0.0
      %1776 = vmatpush1.msra.mxu0 %v1710
      %1777 = vmatprep.subr.mxu0 0.0
      %1778 = vmatpush1.msra.mxu0 %v1711
      %1779 = vmatprep.subr.mxu0 0.0
      %1780 = vmatpush1.msra.mxu0 %v1712
      %1781 = vmatprep.subr.mxu0 0.0
      %1782 = vmatpush1.msra.mxu0 0.0
      %1783 = vmatprep.subr.mxu0 0.0
      %1784 = vmatpush1.msra.mxu0 0.0
      %1785 = vmatprep.subr.mxu0 0.0
      %1786 = vmatpush1.msra.mxu0 0.0
      %1787 = vmatprep.subr.mxu0 0.0
      %1788 = vmatpush1.msra.mxu0 0.0
      %1789 = vmatprep.subr.mxu0 0.0
      %1790 = vmatpush1.msra.mxu0 0.0
      %1791 = vmatprep.subr.mxu0 0.0
      %1792 = vmatpush1.msra.mxu0 0.0
      %1793 = vmatprep.subr.mxu0 0.0
      %1794 = vmatpush1.msra.mxu0 0.0
      %1795 = vmatprep.subr.mxu0 0.0
      %1796 = vmatpush1.msra.mxu0 0.0
      %1797 = vmatprep.subr.mxu0 0.0
      %1798 = vmatpush1.msra.mxu0 0.0
      %1799 = vmatprep.subr.mxu0 0.0
      %1800 = vmatpush1.msra.mxu0 0.0
      %1801 = vmatprep.subr.mxu0 0.0
      %1802 = vmatpush1.msra.mxu0 0.0
      %1803 = vmatprep.subr.mxu0 0.0
      %1804 = vmatpush1.msra.mxu0 0.0
      %1805 = vmatprep.subr.mxu0 0.0
      %1806 = vmatpush1.msra.mxu0 0.0
      %1807 = vmatprep.subr.mxu0 0.0
      %1808 = vmatpush1.msra.mxu0 0.0
      %1809 = vmatprep.subr.mxu0 0.0
      %1810 = vmatpush1.msra.mxu0 0.0
      %1811 = vmatprep.subr.mxu0 0.0
      %1812 = vmatpush1.msra.mxu0 0.0
      %1813 = vmatprep.mubr.f32.mxu0 0.0
      %1814 = vmatmul.mubr.f32.gmra.mrb[0].mxu0 %v1696
      %v1815 = vpop.f32.mrb[0].mxu0
      %v1816 = vadd.f32 0.0, %v1815
      %v1817 = vpop.f32.mrb[0].mxu0
      %1818 = vdwg.mxu0
      %1819 = vmatprep.subr.mxu0 0.0
      %1820 = vmatpush1.msra.mxu0 %v1713
      %1821 = vmatprep.subr.mxu0 0.0
      %1822 = vmatpush1.msra.mxu0 %v1714
      %1823 = vmatprep.subr.mxu0 0.0
      %1824 = vmatpush1.msra.mxu0 %v1715
      %1825 = vmatprep.subr.mxu0 0.0
      %1826 = vmatpush1.msra.mxu0 %v1716
      %1827 = vmatprep.subr.mxu0 0.0
      %1828 = vmatpush1.msra.mxu0 %v1717
      %1829 = vmatprep.subr.mxu0 0.0
      %1830 = vmatpush1.msra.mxu0 %v1718
      %1831 = vmatprep.subr.mxu0 0.0
      %1832 = vmatpush1.msra.mxu0 %v1719
      %1833 = vmatprep.subr.mxu0 0.0
      %1834 = vmatpush1.msra.mxu0 %v1720
      %1835 = vmatprep.subr.mxu0 0.0
      %1836 = vmatpush1.msra.mxu0 %v1721
      %1837 = vmatprep.subr.mxu0 0.0
      %1838 = vmatpush1.msra.mxu0 %v1722
      %1839 = vmatprep.subr.mxu0 0.0
      %1840 = vmatpush1.msra.mxu0 %v1723
      %1841 = vmatprep.subr.mxu0 0.0
      %1842 = vmatpush1.msra.mxu0 %v1724
      %1843 = vmatprep.subr.mxu0 0.0
      %1844 = vmatpush1.msra.mxu0 %v1725
      %1845 = vmatprep.subr.mxu0 0.0
      %1846 = vmatpush1.msra.mxu0 %v1726
      %1847 = vmatprep.subr.mxu0 0.0
      %1848 = vmatpush1.msra.mxu0 %v1727
      %1849 = vmatprep.subr.mxu0 0.0
      %1850 = vmatpush1.msra.mxu0 %v1728
      %1851 = vmatprep.subr.mxu0 0.0
      %1852 = vmatpush1.msra.mxu0 0.0
      %1853 = vmatprep.subr.mxu0 0.0
      %1854 = vmatpush1.msra.mxu0 0.0
      %1855 = vmatprep.subr.mxu0 0.0
      %1856 = vmatpush1.msra.mxu0 0.0
      %1857 = vmatprep.subr.mxu0 0.0
      %1858 = vmatpush1.msra.mxu0 0.0
      %1859 = vmatprep.subr.mxu0 0.0
      %1860 = vmatpush1.msra.mxu0 0.0
      %1861 = vmatprep.subr.mxu0 0.0
      %1862 = vmatpush1.msra.mxu0 0.0
      %1863 = vmatprep.subr.mxu0 0.0
      %1864 = vmatpush1.msra.mxu0 0.0
      %1865 = vmatprep.subr.mxu0 0.0
      %1866 = vmatpush1.msra.mxu0 0.0
      %1867 = vmatprep.subr.mxu0 0.0
      %1868 = vmatpush1.msra.mxu0 0.0
      %1869 = vmatprep.subr.mxu0 0.0
      %1870 = vmatpush1.msra.mxu0 0.0
      %1871 = vmatprep.subr.mxu0 0.0
      %1872 = vmatpush1.msra.mxu0 0.0
      %1873 = vmatprep.subr.mxu0 0.0
      %1874 = vmatpush1.msra.mxu0 0.0
      %1875 = vmatprep.subr.mxu0 0.0
      %1876 = vmatpush1.msra.mxu0 0.0
      %1877 = vmatprep.subr.mxu0 0.0
      %1878 = vmatpush1.msra.mxu0 0.0
      %1879 = vmatprep.subr.mxu0 0.0
      %1880 = vmatpush1.msra.mxu0 0.0
      %1881 = vmatprep.subr.mxu0 0.0
      %1882 = vmatpush1.msra.mxu0 0.0
      %1883 = vmatprep.mubr.f32.mxu0 0.0
      %1884 = vmatmul.mubr.f32.gmra.mrb[0].mxu0 %v643
      %v1885 = vpop.f32.mrb[0].mxu0
      %v1886 = vadd.f32 0.0, %v1885
      %v1887 = vpop.f32.mrb[0].mxu0
      %1888 = vdwg.mxu0
      %1889 = vmatprep.subr.mxu0 0.0
      %1890 = vmatpush1.msra.mxu0 %v1729
      %1891 = vmatprep.subr.mxu0 0.0
      %1892 = vmatpush1.msra.mxu0 %v1730
      %1893 = vmatprep.subr.mxu0 0.0
      %1894 = vmatpush1.msra.mxu0 %v1731
      %1895 = vmatprep.subr.mxu0 0.0
      %1896 = vmatpush1.msra.mxu0 %v1732
      %1897 = vmatprep.subr.mxu0 0.0
      %1898 = vmatpush1.msra.mxu0 %v1733
      %1899 = vmatprep.subr.mxu0 0.0
      %1900 = vmatpush1.msra.mxu0 %v1734
      %1901 = vmatprep.subr.mxu0 0.0
      %1902 = vmatpush1.msra.mxu0 %v1735
      %1903 = vmatprep.subr.mxu0 0.0
      %1904 = vmatpush1.msra.mxu0 %v1736
      %1905 = vmatprep.subr.mxu0 0.0
      %1906 = vmatpush1.msra.mxu0 %v1737
      %1907 = vmatprep.subr.mxu0 0.0
      %1908 = vmatpush1.msra.mxu0 %v1738
      %1909 = vmatprep.subr.mxu0 0.0
      %1910 = vmatpush1.msra.mxu0 %v1739
      %1911 = vmatprep.subr.mxu0 0.0
      %1912 = vmatpush1.msra.mxu0 %v1740
      %1913 = vmatprep.subr.mxu0 0.0
      %1914 = vmatpush1.msra.mxu0 %v1741
      %1915 = vmatprep.subr.mxu0 0.0
      %1916 = vmatpush1.msra.mxu0 %v1742
      %1917 = vmatprep.subr.mxu0 0.0
      %1918 = vmatpush1.msra.mxu0 %v1743
      %1919 = vmatprep.subr.mxu0 0.0
      %1920 = vmatpush1.msra.mxu0 %v1744
      %1921 = vmatprep.subr.mxu0 0.0
      %1922 = vmatpush1.msra.mxu0 0.0
      %1923 = vmatprep.subr.mxu0 0.0
      %1924 = vmatpush1.msra.mxu0 0.0
      %1925 = vmatprep.subr.mxu0 0.0
      %1926 = vmatpush1.msra.mxu0 0.0
      %1927 = vmatprep.subr.mxu0 0.0
      %1928 = vmatpush1.msra.mxu0 0.0
      %1929 = vmatprep.subr.mxu0 0.0
      %1930 = vmatpush1.msra.mxu0 0.0
      %1931 = vmatprep.subr.mxu0 0.0
      %1932 = vmatpush1.msra.mxu0 0.0
      %1933 = vmatprep.subr.mxu0 0.0
      %1934 = vmatpush1.msra.mxu0 0.0
      %1935 = vmatprep.subr.mxu0 0.0
      %1936 = vmatpush1.msra.mxu0 0.0
      %1937 = vmatprep.subr.mxu0 0.0
      %1938 = vmatpush1.msra.mxu0 0.0
      %1939 = vmatprep.subr.mxu0 0.0
      %1940 = vmatpush1.msra.mxu0 0.0
      %1941 = vmatprep.subr.mxu0 0.0
      %1942 = vmatpush1.msra.mxu0 0.0
      %1943 = vmatprep.subr.mxu0 0.0
      %1944 = vmatpush1.msra.mxu0 0.0
      %1945 = vmatprep.subr.mxu0 0.0
      %1946 = vmatpush1.msra.mxu0 0.0
      %1947 = vmatprep.subr.mxu0 0.0
      %1948 = vmatpush1.msra.mxu0 0.0
      %1949 = vmatprep.subr.mxu0 0.0
      %1950 = vmatpush1.msra.mxu0 0.0
      %1951 = vmatprep.subr.mxu0 0.0
      %1952 = vmatpush1.msra.mxu0 0.0
      %1953 = vmatprep.mubr.f32.mxu0 0.0
      %1954 = vmatmul.mubr.f32.gmra.mrb[0].mxu0 %v643
      %v1955 = vpop.f32.mrb[0].mxu0
      %v1956 = vadd.f32 0.0, %v1955
      %v1957 = vpop.f32.mrb[0].mxu0
      %1958 = vdwg.mxu0
      %v1960 = vsel %vm911, %v1816, 0
      %v1963 = vsel %vm911, %v1886, 0
      %1965 = vmatprep.subr.mxu0 0.0
      %1966 = vmatpush1.xpose.msra.mxu0 %v1963
      %1967 = vmatprep.subr.mxu0 0.0
      %1968 = vmatpush1.xpose.msra.mxu0 0.0
      %1969 = vmatprep.subr.mxu0 0.0
      %1970 = vmatpush1.xpose.msra.mxu0 0.0
      %1971 = vmatprep.subr.mxu0 0.0
      %1972 = vmatpush1.xpose.msra.mxu0 0.0
      %1973 = vmatprep.subr.mxu0 0.0
      %1974 = vmatpush1.xpose.msra.mxu0 0.0
      %1975 = vmatprep.subr.mxu0 0.0
      %1976 = vmatpush1.xpose.msra.mxu0 0.0
      %1977 = vmatprep.subr.mxu0 0.0
      %1978 = vmatpush1.xpose.msra.mxu0 0.0
      %1979 = vmatprep.subr.mxu0 0.0
      %1980 = vmatpush1.xpose.msra.mxu0 0.0
      %1981 = vmatprep.subr.mxu0 0.0
      %1982 = vmatpush1.xpose.msra.mxu0 0.0
      %1983 = vmatprep.subr.mxu0 0.0
      %1984 = vmatpush1.xpose.msra.mxu0 0.0
      %1985 = vmatprep.subr.mxu0 0.0
      %1986 = vmatpush1.xpose.msra.mxu0 0.0
      %1987 = vmatprep.subr.mxu0 0.0
      %1988 = vmatpush1.xpose.msra.mxu0 0.0
      %1989 = vmatprep.subr.mxu0 0.0
      %1990 = vmatpush1.xpose.msra.mxu0 0.0
      %1991 = vmatprep.subr.mxu0 0.0
      %1992 = vmatpush1.xpose.msra.mxu0 0.0
      %1993 = vmatprep.subr.mxu0 0.0
      %1994 = vmatpush1.xpose.msra.mxu0 0.0
      %1995 = vmatprep.subr.mxu0 0.0
      %1996 = vmatpush1.xpose.msra.mxu0 0.0
      %1997 = vmatprep.subr.mxu0 0.0
      %1998 = vmatpush1.xpose.msra.mxu0 0.0
      %1999 = vmatprep.subr.mxu0 0.0
      %2000 = vmatpush1.xpose.msra.mxu0 0.0
      %2001 = vmatprep.subr.mxu0 0.0
      %2002 = vmatpush1.xpose.msra.mxu0 0.0
      %2003 = vmatprep.subr.mxu0 0.0
      %2004 = vmatpush1.xpose.msra.mxu0 0.0
      %2005 = vmatprep.subr.mxu0 0.0
      %2006 = vmatpush1.xpose.msra.mxu0 0.0
      %2007 = vmatprep.subr.mxu0 0.0
      %2008 = vmatpush1.xpose.msra.mxu0 0.0
      %2009 = vmatprep.subr.mxu0 0.0
      %2010 = vmatpush1.xpose.msra.mxu0 0.0
      %2011 = vmatprep.subr.mxu0 0.0
      %2012 = vmatpush1.xpose.msra.mxu0 0.0
      %2013 = vmatprep.subr.mxu0 0.0
      %2014 = vmatpush1.xpose.msra.mxu0 0.0
      %2015 = vmatprep.subr.mxu0 0.0
      %2016 = vmatpush1.xpose.msra.mxu0 0.0
      %2017 = vmatprep.subr.mxu0 0.0
      %2018 = vmatpush1.xpose.msra.mxu0 0.0
      %2019 = vmatprep.subr.mxu0 0.0
      %2020 = vmatpush1.xpose.msra.mxu0 0.0
      %2021 = vmatprep.subr.mxu0 0.0
      %2022 = vmatpush1.xpose.msra.mxu0 0.0
      %2023 = vmatprep.subr.mxu0 0.0
      %2024 = vmatpush1.xpose.msra.mxu0 0.0
      %2025 = vmatprep.subr.mxu0 0.0
      %2026 = vmatpush1.xpose.msra.mxu0 0.0
      %2027 = vmatprep.subr.mxu0 0.0
      %2028 = vmatpush1.xpose.msra.mxu0 0.0
      %2029 = vmatprep.mubr.f32.mxu0 0.0
      %2030 = vmatmul.mubr.f32.gmra.mrb[0].mxu0 %v1960
      %v2031 = vpop.f32.mrb[0].mxu0
      %v2032 = vadd.f32 0.0, %v2031
      %v2033 = vpop.f32.mrb[0].mxu0
      %2034 = vdwg.mxu0
      %v2035 = vmul.f32 %v2032, 0.17677669
      %v2036 = vsel %vm911, %v2035, -inf
      %2037 = vmax.xlane.f32.xlu0 %v2036
      %v2038 = vpop.xlane.xlu0 %2037
      %v2039 = vsub.f32 %v2035, %v2038
      %v2040 = vmul.f32 %v2039, 1.442695
      %v2041 = vpow.pop %v2040
      %v2042 = vsel %vm911, %v2041, 0.0
      %2043 = vadd.xlane.f32.xlu0 %v2042
      %v2044 = vpop.xlane.xlu0 %2043
      %v2045 = vrcp.pop %v2044
      %v2046 = vmul.f32 %v2041, %v2045
      %v2048 = vsel %vm911, %v2046, 0
      %2050 = vmatprep.subr.mxu0 0.0
      %2051 = vmatpush1.msra.mxu0 %v1956
      %2052 = vmatprep.subr.mxu0 0.0
      %2053 = vmatpush1.msra.mxu0 0.0
      %2054 = vmatprep.subr.mxu0 0.0
      %2055 = vmatpush1.msra.mxu0 0.0
      %2056 = vmatprep.subr.mxu0 0.0
      %2057 = vmatpush1.msra.mxu0 0.0
      %2058 = vmatprep.subr.mxu0 0.0
      %2059 = vmatpush1.msra.mxu0 0.0
      %2060 = vmatprep.subr.mxu0 0.0
      %2061 = vmatpush1.msra.mxu0 0.0
      %2062 = vmatprep.subr.mxu0 0.0
      %2063 = vmatpush1.msra.mxu0 0.0
      %2064 = vmatprep.subr.mxu0 0.0
      %2065 = vmatpush1.msra.mxu0 0.0
      %2066 = vmatprep.subr.mxu0 0.0
      %2067 = vmatpush1.msra.mxu0 0.0
      %2068 = vmatprep.subr.mxu0 0.0
      %2069 = vmatpush1.msra.mxu0 0.0
      %2070 = vmatprep.subr.mxu0 0.0
      %2071 = vmatpush1.msra.mxu0 0.0
      %2072 = vmatprep.subr.mxu0 0.0
      %2073 = vmatpush1.msra.mxu0 0.0
      %2074 = vmatprep.subr.mxu0 0.0
      %2075 = vmatpush1.msra.mxu0 0.0
      %2076 = vmatprep.subr.mxu0 0.0
      %2077 = vmatpush1.msra.mxu0 0.0
      %2078 = vmatprep.subr.mxu0 0.0
      %2079 = vmatpush1.msra.mxu0 0.0
      %2080 = vmatprep.subr.mxu0 0.0
      %2081 = vmatpush1.msra.mxu0 0.0
      %2082 = vmatprep.subr.mxu0 0.0
      %2083 = vmatpush1.msra.mxu0 0.0
      %2084 = vmatprep.subr.mxu0 0.0
      %2085 = vmatpush1.msra.mxu0 0.0
      %2086 = vmatprep.subr.mxu0 0.0
      %2087 = vmatpush1.msra.mxu0 0.0
      %2088 = vmatprep.subr.mxu0 0.0
      %2089 = vmatpush1.msra.mxu0 0.0
      %2090 = vmatprep.subr.mxu0 0.0
      %2091 = vmatpush1.msra.mxu0 0.0
      %2092 = vmatprep.subr.mxu0 0.0
      %2093 = vmatpush1.msra.mxu0 0.0
      %2094 = vmatprep.subr.mxu0 0.0
      %2095 = vmatpush1.msra.mxu0 0.0
      %2096 = vmatprep.subr.mxu0 0.0
      %2097 = vmatpush1.msra.mxu0 0.0
      %2098 = vmatprep.subr.mxu0 0.0
      %2099 = vmatpush1.msra.mxu0 0.0
      %2100 = vmatprep.subr.mxu0 0.0
      %2101 = vmatpush1.msra.mxu0 0.0
      %2102 = vmatprep.subr.mxu0 0.0
      %2103 = vmatpush1.msra.mxu0 0.0
      %2104 = vmatprep.subr.mxu0 0.0
      %2105 = vmatpush1.msra.mxu0 0.0
      %2106 = vmatprep.subr.mxu0 0.0
      %2107 = vmatpush1.msra.mxu0 0.0
      %2108 = vmatprep.subr.mxu0 0.0
      %2109 = vmatpush1.msra.mxu0 0.0
      %2110 = vmatprep.subr.mxu0 0.0
      %2111 = vmatpush1.msra.mxu0 0.0
      %2112 = vmatprep.subr.mxu0 0.0
      %2113 = vmatpush1.msra.mxu0 0.0
      %2114 = vmatprep.mubr.f32.mxu0 0.0
      %2115 = vmatmul.mubr.f32.gmra.mrb[0].mxu0 %v2048
      %v2116 = vpop.f32.mrb[0].mxu0
      %v2117 = vadd.f32 0.0, %v2116
      %v2118 = vpop.f32.mrb[0].mxu0
      %2119 = vdwg.mxu0
      %2120 = vrot.lane.b32.xlu0 %v1816, 120
      %v2121 = vpop.permute.xlu0 %2120
      %2122 = vrot.lane.b32.xlu0 %v1886, 120
      %v2123 = vpop.permute.xlu0 %2122
      %v2124 = vsel %vm911, %v2121, 0
      %v2126 = vsel %vm911, %v2123, 0
      %2128 = vmatprep.subr.mxu0 0.0
      %2129 = vmatpush1.xpose.msra.mxu0 %v2126
      %2130 = vmatprep.subr.mxu0 0.0
      %2131 = vmatpush1.xpose.msra.mxu0 0.0
      %2132 = vmatprep.subr.mxu0 0.0
      %2133 = vmatpush1.xpose.msra.mxu0 0.0
      %2134 = vmatprep.subr.mxu0 0.0
      %2135 = vmatpush1.xpose.msra.mxu0 0.0
      %2136 = vmatprep.subr.mxu0 0.0
      %2137 = vmatpush1.xpose.msra.mxu0 0.0
      %2138 = vmatprep.subr.mxu0 0.0
      %2139 = vmatpush1.xpose.msra.mxu0 0.0
      %2140 = vmatprep.subr.mxu0 0.0
      %2141 = vmatpush1.xpose.msra.mxu0 0.0
      %2142 = vmatprep.subr.mxu0 0.0
      %2143 = vmatpush1.xpose.msra.mxu0 0.0
      %2144 = vmatprep.subr.mxu0 0.0
      %2145 = vmatpush1.xpose.msra.mxu0 0.0
      %2146 = vmatprep.subr.mxu0 0.0
      %2147 = vmatpush1.xpose.msra.mxu0 0.0
      %2148 = vmatprep.subr.mxu0 0.0
      %2149 = vmatpush1.xpose.msra.mxu0 0.0
      %2150 = vmatprep.subr.mxu0 0.0
      %2151 = vmatpush1.xpose.msra.mxu0 0.0
      %2152 = vmatprep.subr.mxu0 0.0
      %2153 = vmatpush1.xpose.msra.mxu0 0.0
      %2154 = vmatprep.subr.mxu0 0.0
      %2155 = vmatpush1.xpose.msra.mxu0 0.0
      %2156 = vmatprep.subr.mxu0 0.0
      %2157 = vmatpush1.xpose.msra.mxu0 0.0
      %2158 = vmatprep.subr.mxu0 0.0
      %2159 = vmatpush1.xpose.msra.mxu0 0.0
      %2160 = vmatprep.subr.mxu0 0.0
      %2161 = vmatpush1.xpose.msra.mxu0 0.0
      %2162 = vmatprep.subr.mxu0 0.0
      %2163 = vmatpush1.xpose.msra.mxu0 0.0
      %2164 = vmatprep.subr.mxu0 0.0
      %2165 = vmatpush1.xpose.msra.mxu0 0.0
      %2166 = vmatprep.subr.mxu0 0.0
      %2167 = vmatpush1.xpose.msra.mxu0 0.0
      %2168 = vmatprep.subr.mxu0 0.0
      %2169 = vmatpush1.xpose.msra.mxu0 0.0
      %2170 = vmatprep.subr.mxu0 0.0
      %2171 = vmatpush1.xpose.msra.mxu0 0.0
      %2172 = vmatprep.subr.mxu0 0.0
      %2173 = vmatpush1.xpose.msra.mxu0 0.0
      %2174 = vmatprep.subr.mxu0 0.0
      %2175 = vmatpush1.xpose.msra.mxu0 0.0
      %2176 = vmatprep.subr.mxu0 0.0
      %2177 = vmatpush1.xpose.msra.mxu0 0.0
      %2178 = vmatprep.subr.mxu0 0.0
      %2179 = vmatpush1.xpose.msra.mxu0 0.0
      %2180 = vmatprep.subr.mxu0 0.0
      %2181 = vmatpush1.xpose.msra.mxu0 0.0
      %2182 = vmatprep.subr.mxu0 0.0
      %2183 = vmatpush1.xpose.msra.mxu0 0.0
      %2184 = vmatprep.subr.mxu0 0.0
      %2185 = vmatpush1.xpose.msra.mxu0 0.0
      %2186 = vmatprep.subr.mxu0 0.0
      %2187 = vmatpush1.xpose.msra.mxu0 0.0
      %2188 = vmatprep.subr.mxu0 0.0
      %2189 = vmatpush1.xpose.msra.mxu0 0.0
      %2190 = vmatprep.subr.mxu0 0.0
      %2191 = vmatpush1.xpose.msra.mxu0 0.0
      %2192 = vmatprep.mubr.f32.mxu0 0.0
      %2193 = vmatmul.mubr.f32.gmra.mrb[0].mxu0 %v2124
      %v2194 = vpop.f32.mrb[0].mxu0
      %v2195 = vadd.f32 0.0, %v2194
      %v2196 = vpop.f32.mrb[0].mxu0
      %2197 = vdwg.mxu0
      %v2198 = vmul.f32 %v2195, 0.17677669
      %v2199 = vsel %vm911, %v2198, -inf
      %2200 = vmax.xlane.f32.xlu0 %v2199
      %v2201 = vpop.xlane.xlu0 %2200
      %v2202 = vsub.f32 %v2198, %v2201
      %v2203 = vmul.f32 %v2202, 1.442695
      %v2204 = vpow.pop %v2203
      %v2205 = vsel %vm911, %v2204, 0.0
      %2206 = vadd.xlane.f32.xlu0 %v2205
      %v2207 = vpop.xlane.xlu0 %2206
      %v2208 = vrcp.pop %v2207
      %v2209 = vmul.f32 %v2204, %v2208
      %2211 = vrot.lane.b32.xlu0 %v1956, 120
      %v2212 = vpop.permute.xlu0 %2211
      %v2215 = vsel %vm911, %v2209, 0
      %2217 = vmatprep.subr.mxu0 0.0
      %2218 = vmatpush1.msra.mxu0 %v2212
      %2219 = vmatprep.subr.mxu0 0.0
      %2220 = vmatpush1.msra.mxu0 0.0
      %2221 = vmatprep.subr.mxu0 0.0
      %2222 = vmatpush1.msra.mxu0 0.0
      %2223 = vmatprep.subr.mxu0 0.0
      %2224 = vmatpush1.msra.mxu0 0.0
      %2225 = vmatprep.subr.mxu0 0.0
      %2226 = vmatpush1.msra.mxu0 0.0
      %2227 = vmatprep.subr.mxu0 0.0
      %2228 = vmatpush1.msra.mxu0 0.0
      %2229 = vmatprep.subr.mxu0 0.0
      %2230 = vmatpush1.msra.mxu0 0.0
      %2231 = vmatprep.subr.mxu0 0.0
      %2232 = vmatpush1.msra.mxu0 0.0
      %2233 = vmatprep.subr.mxu0 0.0
      %2234 = vmatpush1.msra.mxu0 0.0
      %2235 = vmatprep.subr.mxu0 0.0
      %2236 = vmatpush1.msra.mxu0 0.0
      %2237 = vmatprep.subr.mxu0 0.0
      %2238 = vmatpush1.msra.mxu0 0.0
      %2239 = vmatprep.subr.mxu0 0.0
      %2240 = vmatpush1.msra.mxu0 0.0
      %2241 = vmatprep.subr.mxu0 0.0
      %2242 = vmatpush1.msra.mxu0 0.0
      %2243 = vmatprep.subr.mxu0 0.0
      %2244 = vmatpush1.msra.mxu0 0.0
      %2245 = vmatprep.subr.mxu0 0.0
      %2246 = vmatpush1.msra.mxu0 0.0
      %2247 = vmatprep.subr.mxu0 0.0
      %2248 = vmatpush1.msra.mxu0 0.0
      %2249 = vmatprep.subr.mxu0 0.0
      %2250 = vmatpush1.msra.mxu0 0.0
      %2251 = vmatprep.subr.mxu0 0.0
      %2252 = vmatpush1.msra.mxu0 0.0
      %2253 = vmatprep.subr.mxu0 0.0
      %2254 = vmatpush1.msra.mxu0 0.0
      %2255 = vmatprep.subr.mxu0 0.0
      %2256 = vmatpush1.msra.mxu0 0.0
      %2257 = vmatprep.subr.mxu0 0.0
      %2258 = vmatpush1.msra.mxu0 0.0
      %2259 = vmatprep.subr.mxu0 0.0
      %2260 = vmatpush1.msra.mxu0 0.0
      %2261 = vmatprep.subr.mxu0 0.0
      %2262 = vmatpush1.msra.mxu0 0.0
      %2263 = vmatprep.subr.mxu0 0.0
      %2264 = vmatpush1.msra.mxu0 0.0
      %2265 = vmatprep.subr.mxu0 0.0
      %2266 = vmatpush1.msra.mxu0 0.0
      %2267 = vmatprep.subr.mxu0 0.0
      %2268 = vmatpush1.msra.mxu0 0.0
      %2269 = vmatprep.subr.mxu0 0.0
      %2270 = vmatpush1.msra.mxu0 0.0
      %2271 = vmatprep.subr.mxu0 0.0
      %2272 = vmatpush1.msra.mxu0 0.0
      %2273 = vmatprep.subr.mxu0 0.0
      %2274 = vmatpush1.msra.mxu0 0.0
      %2275 = vmatprep.subr.mxu0 0.0
      %2276 = vmatpush1.msra.mxu0 0.0
      %2277 = vmatprep.subr.mxu0 0.0
      %2278 = vmatpush1.msra.mxu0 0.0
      %2279 = vmatprep.subr.mxu0 0.0
      %2280 = vmatpush1.msra.mxu0 0.0
      %2281 = vmatprep.mubr.f32.mxu0 0.0
      %2282 = vmatmul.mubr.f32.gmra.mrb[0].mxu0 %v2215
      %v2283 = vpop.f32.mrb[0].mxu0
      %v2284 = vadd.f32 0.0, %v2283
      %v2285 = vpop.f32.mrb[0].mxu0
      %2286 = vdwg.mxu0
      %2287 = vrot.lane.b32.xlu0 %v1816, 112
      %v2288 = vpop.permute.xlu0 %2287
      %2289 = vrot.lane.b32.xlu0 %v1886, 112
      %v2290 = vpop.permute.xlu0 %2289
      %v2291 = vsel %vm911, %v2288, 0
      %v2293 = vsel %vm911, %v2290, 0
      %2295 = vmatprep.subr.mxu0 0.0
      %2296 = vmatpush1.xpose.msra.mxu0 %v2293
      %2297 = vmatprep.subr.mxu0 0.0
      %2298 = vmatpush1.xpose.msra.mxu0 0.0
      %2299 = vmatprep.subr.mxu0 0.0
      %2300 = vmatpush1.xpose.msra.mxu0 0.0
      %2301 = vmatprep.subr.mxu0 0.0
      %2302 = vmatpush1.xpose.msra.mxu0 0.0
      %2303 = vmatprep.subr.mxu0 0.0
      %2304 = vmatpush1.xpose.msra.mxu0 0.0
      %2305 = vmatprep.subr.mxu0 0.0
      %2306 = vmatpush1.xpose.msra.mxu0 0.0
      %2307 = vmatprep.subr.mxu0 0.0
      %2308 = vmatpush1.xpose.msra.mxu0 0.0
      %2309 = vmatprep.subr.mxu0 0.0
      %2310 = vmatpush1.xpose.msra.mxu0 0.0
      %2311 = vmatprep.subr.mxu0 0.0
      %2312 = vmatpush1.xpose.msra.mxu0 0.0
      %2313 = vmatprep.subr.mxu0 0.0
      %2314 = vmatpush1.xpose.msra.mxu0 0.0
      %2315 = vmatprep.subr.mxu0 0.0
      %2316 = vmatpush1.xpose.msra.mxu0 0.0
      %2317 = vmatprep.subr.mxu0 0.0
      %2318 = vmatpush1.xpose.msra.mxu0 0.0
      %2319 = vmatprep.subr.mxu0 0.0
      %2320 = vmatpush1.xpose.msra.mxu0 0.0
      %2321 = vmatprep.subr.mxu0 0.0
      %2322 = vmatpush1.xpose.msra.mxu0 0.0
      %2323 = vmatprep.subr.mxu0 0.0
      %2324 = vmatpush1.xpose.msra.mxu0 0.0
      %2325 = vmatprep.subr.mxu0 0.0
      %2326 = vmatpush1.xpose.msra.mxu0 0.0
      %2327 = vmatprep.subr.mxu0 0.0
      %2328 = vmatpush1.xpose.msra.mxu0 0.0
      %2329 = vmatprep.subr.mxu0 0.0
      %2330 = vmatpush1.xpose.msra.mxu0 0.0
      %2331 = vmatprep.subr.mxu0 0.0
      %2332 = vmatpush1.xpose.msra.mxu0 0.0
      %2333 = vmatprep.subr.mxu0 0.0
      %2334 = vmatpush1.xpose.msra.mxu0 0.0
      %2335 = vmatprep.subr.mxu0 0.0
      %2336 = vmatpush1.xpose.msra.mxu0 0.0
      %2337 = vmatprep.subr.mxu0 0.0
      %2338 = vmatpush1.xpose.msra.mxu0 0.0
      %2339 = vmatprep.subr.mxu0 0.0
      %2340 = vmatpush1.xpose.msra.mxu0 0.0
      %2341 = vmatprep.subr.mxu0 0.0
      %2342 = vmatpush1.xpose.msra.mxu0 0.0
      %2343 = vmatprep.subr.mxu0 0.0
      %2344 = vmatpush1.xpose.msra.mxu0 0.0
      %2345 = vmatprep.subr.mxu0 0.0
      %2346 = vmatpush1.xpose.msra.mxu0 0.0
      %2347 = vmatprep.subr.mxu0 0.0
      %2348 = vmatpush1.xpose.msra.mxu0 0.0
      %2349 = vmatprep.subr.mxu0 0.0
      %2350 = vmatpush1.xpose.msra.mxu0 0.0
      %2351 = vmatprep.subr.mxu0 0.0
      %2352 = vmatpush1.xpose.msra.mxu0 0.0
      %2353 = vmatprep.subr.mxu0 0.0
      %2354 = vmatpush1.xpose.msra.mxu0 0.0
      %2355 = vmatprep.subr.mxu0 0.0
      %2356 = vmatpush1.xpose.msra.mxu0 0.0
      %2357 = vmatprep.subr.mxu0 0.0
      %2358 = vmatpush1.xpose.msra.mxu0 0.0
      %2359 = vmatprep.mubr.f32.mxu0 0.0
      %2360 = vmatmul.mubr.f32.gmra.mrb[0].mxu0 %v2291
      %v2361 = vpop.f32.mrb[0].mxu0
      %v2362 = vadd.f32 0.0, %v2361
      %v2363 = vpop.f32.mrb[0].mxu0
      %2364 = vdwg.mxu0
      %v2365 = vmul.f32 %v2362, 0.17677669
      %v2366 = vsel %vm911, %v2365, -inf
      %2367 = vmax.xlane.f32.xlu0 %v2366
      %v2368 = vpop.xlane.xlu0 %2367
      %v2369 = vsub.f32 %v2365, %v2368
      %v2370 = vmul.f32 %v2369, 1.442695
      %v2371 = vpow.pop %v2370
      %v2372 = vsel %vm911, %v2371, 0.0
      %2373 = vadd.xlane.f32.xlu0 %v2372
      %v2374 = vpop.xlane.xlu0 %2373
      %v2375 = vrcp.pop %v2374
      %v2376 = vmul.f32 %v2371, %v2375
      %2377 = vrot.lane.b32.xlu0 %v1956, 112
      %v2378 = vpop.permute.xlu0 %2377
      %v2381 = vsel %vm911, %v2376, 0
      %2383 = vmatprep.subr.mxu0 0.0
      %2384 = vmatpush1.msra.mxu0 %v2378
      %2385 = vmatprep.subr.mxu0 0.0
      %2386 = vmatpush1.msra.mxu0 0.0
      %2387 = vmatprep.subr.mxu0 0.0
      %2388 = vmatpush1.msra.mxu0 0.0
      %2389 = vmatprep.subr.mxu0 0.0
      %2390 = vmatpush1.msra.mxu0 0.0
      %2391 = vmatprep.subr.mxu0 0.0
      %2392 = vmatpush1.msra.mxu0 0.0
      %2393 = vmatprep.subr.mxu0 0.0
      %2394 = vmatpush1.msra.mxu0 0.0
      %2395 = vmatprep.subr.mxu0 0.0
      %2396 = vmatpush1.msra.mxu0 0.0
      %2397 = vmatprep.subr.mxu0 0.0
      %2398 = vmatpush1.msra.mxu0 0.0
      %2399 = vmatprep.subr.mxu0 0.0
      %2400 = vmatpush1.msra.mxu0 0.0
      %2401 = vmatprep.subr.mxu0 0.0
      %2402 = vmatpush1.msra.mxu0 0.0
      %2403 = vmatprep.subr.mxu0 0.0
      %2404 = vmatpush1.msra.mxu0 0.0
      %2405 = vmatprep.subr.mxu0 0.0
      %2406 = vmatpush1.msra.mxu0 0.0
      %2407 = vmatprep.subr.mxu0 0.0
      %2408 = vmatpush1.msra.mxu0 0.0
      %2409 = vmatprep.subr.mxu0 0.0
      %2410 = vmatpush1.msra.mxu0 0.0
      %2411 = vmatprep.subr.mxu0 0.0
      %2412 = vmatpush1.msra.mxu0 0.0
      %2413 = vmatprep.subr.mxu0 0.0
      %2414 = vmatpush1.msra.mxu0 0.0
      %2415 = vmatprep.subr.mxu0 0.0
      %2416 = vmatpush1.msra.mxu0 0.0
      %2417 = vmatprep.subr.mxu0 0.0
      %2418 = vmatpush1.msra.mxu0 0.0
      %2419 = vmatprep.subr.mxu0 0.0
      %2420 = vmatpush1.msra.mxu0 0.0
      %2421 = vmatprep.subr.mxu0 0.0
      %2422 = vmatpush1.msra.mxu0 0.0
      %2423 = vmatprep.subr.mxu0 0.0
      %2424 = vmatpush1.msra.mxu0 0.0
      %2425 = vmatprep.subr.mxu0 0.0
      %2426 = vmatpush1.msra.mxu0 0.0
      %2427 = vmatprep.subr.mxu0 0.0
      %2428 = vmatpush1.msra.mxu0 0.0
      %2429 = vmatprep.subr.mxu0 0.0
      %2430 = vmatpush1.msra.mxu0 0.0
      %2431 = vmatprep.subr.mxu0 0.0
      %2432 = vmatpush1.msra.mxu0 0.0
      %2433 = vmatprep.subr.mxu0 0.0
      %2434 = vmatpush1.msra.mxu0 0.0
      %2435 = vmatprep.subr.mxu0 0.0
      %2436 = vmatpush1.msra.mxu0 0.0
      %2437 = vmatprep.subr.mxu0 0.0
      %2438 = vmatpush1.msra.mxu0 0.0
      %2439 = vmatprep.subr.mxu0 0.0
      %2440 = vmatpush1.msra.mxu0 0.0
      %2441 = vmatprep.subr.mxu0 0.0
      %2442 = vmatpush1.msra.mxu0 0.0
      %2443 = vmatprep.subr.mxu0 0.0
      %2444 = vmatpush1.msra.mxu0 0.0
      %2445 = vmatprep.subr.mxu0 0.0
      %2446 = vmatpush1.msra.mxu0 0.0
      %2447 = vmatprep.mubr.f32.mxu0 0.0
      %2448 = vmatmul.mubr.f32.gmra.mrb[0].mxu0 %v2381
      %v2449 = vpop.f32.mrb[0].mxu0
      %v2450 = vadd.f32 0.0, %v2449
      %v2451 = vpop.f32.mrb[0].mxu0
      %2452 = vdwg.mxu0
      %2453 = vrot.lane.b32.xlu0 %v1816, 104
      %v2454 = vpop.permute.xlu0 %2453
      %2455 = vrot.lane.b32.xlu0 %v1886, 104
      %v2456 = vpop.permute.xlu0 %2455
      %v2457 = vsel %vm911, %v2454, 0
      %v2459 = vsel %vm911, %v2456, 0
      %2461 = vmatprep.subr.mxu0 0.0
      %2462 = vmatpush1.xpose.msra.mxu0 %v2459
      %2463 = vmatprep.subr.mxu0 0.0
      %2464 = vmatpush1.xpose.msra.mxu0 0.0
      %2465 = vmatprep.subr.mxu0 0.0
      %2466 = vmatpush1.xpose.msra.mxu0 0.0
      %2467 = vmatprep.subr.mxu0 0.0
      %2468 = vmatpush1.xpose.msra.mxu0 0.0
      %2469 = vmatprep.subr.mxu0 0.0
      %2470 = vmatpush1.xpose.msra.mxu0 0.0
      %2471 = vmatprep.subr.mxu0 0.0
      %2472 = vmatpush1.xpose.msra.mxu0 0.0
      %2473 = vmatprep.subr.mxu0 0.0
      %2474 = vmatpush1.xpose.msra.mxu0 0.0
      %2475 = vmatprep.subr.mxu0 0.0
      %2476 = vmatpush1.xpose.msra.mxu0 0.0
      %2477 = vmatprep.subr.mxu0 0.0
      %2478 = vmatpush1.xpose.msra.mxu0 0.0
      %2479 = vmatprep.subr.mxu0 0.0
      %2480 = vmatpush1.xpose.msra.mxu0 0.0
      %2481 = vmatprep.subr.mxu0 0.0
      %2482 = vmatpush1.xpose.msra.mxu0 0.0
      %2483 = vmatprep.subr.mxu0 0.0
      %2484 = vmatpush1.xpose.msra.mxu0 0.0
      %2485 = vmatprep.subr.mxu0 0.0
      %2486 = vmatpush1.xpose.msra.mxu0 0.0
      %2487 = vmatprep.subr.mxu0 0.0
      %2488 = vmatpush1.xpose.msra.mxu0 0.0
      %2489 = vmatprep.subr.mxu0 0.0
      %2490 = vmatpush1.xpose.msra.mxu0 0.0
      %2491 = vmatprep.subr.mxu0 0.0
      %2492 = vmatpush1.xpose.msra.mxu0 0.0
      %2493 = vmatprep.subr.mxu0 0.0
      %2494 = vmatpush1.xpose.msra.mxu0 0.0
      %2495 = vmatprep.subr.mxu0 0.0
      %2496 = vmatpush1.xpose.msra.mxu0 0.0
      %2497 = vmatprep.subr.mxu0 0.0
      %2498 = vmatpush1.xpose.msra.mxu0 0.0
      %2499 = vmatprep.subr.mxu0 0.0
      %2500 = vmatpush1.xpose.msra.mxu0 0.0
      %2501 = vmatprep.subr.mxu0 0.0
      %2502 = vmatpush1.xpose.msra.mxu0 0.0
      %2503 = vmatprep.subr.mxu0 0.0
      %2504 = vmatpush1.xpose.msra.mxu0 0.0
      %2505 = vmatprep.subr.mxu0 0.0
      %2506 = vmatpush1.xpose.msra.mxu0 0.0
      %2507 = vmatprep.subr.mxu0 0.0
      %2508 = vmatpush1.xpose.msra.mxu0 0.0
      %2509 = vmatprep.subr.mxu0 0.0
      %2510 = vmatpush1.xpose.msra.mxu0 0.0
      %2511 = vmatprep.subr.mxu0 0.0
      %2512 = vmatpush1.xpose.msra.mxu0 0.0
      %2513 = vmatprep.subr.mxu0 0.0
      %2514 = vmatpush1.xpose.msra.mxu0 0.0
      %2515 = vmatprep.subr.mxu0 0.0
      %2516 = vmatpush1.xpose.msra.mxu0 0.0
      %2517 = vmatprep.subr.mxu0 0.0
      %2518 = vmatpush1.xpose.msra.mxu0 0.0
      %2519 = vmatprep.subr.mxu0 0.0
      %2520 = vmatpush1.xpose.msra.mxu0 0.0
      %2521 = vmatprep.subr.mxu0 0.0
      %2522 = vmatpush1.xpose.msra.mxu0 0.0
      %2523 = vmatprep.subr.mxu0 0.0
      %2524 = vmatpush1.xpose.msra.mxu0 0.0
      %2525 = vmatprep.mubr.f32.mxu0 0.0
      %2526 = vmatmul.mubr.f32.gmra.mrb[0].mxu0 %v2457
      %v2527 = vpop.f32.mrb[0].mxu0
      %v2528 = vadd.f32 0.0, %v2527
      %v2529 = vpop.f32.mrb[0].mxu0
      %2530 = vdwg.mxu0
      %v2531 = vmul.f32 %v2528, 0.17677669
      %v2532 = vsel %vm911, %v2531, -inf
      %2533 = vmax.xlane.f32.xlu0 %v2532
      %v2534 = vpop.xlane.xlu0 %2533
      %v2535 = vsub.f32 %v2531, %v2534
      %v2536 = vmul.f32 %v2535, 1.442695
      %v2537 = vpow.pop %v2536
      %v2538 = vsel %vm911, %v2537, 0.0
      %2539 = vadd.xlane.f32.xlu0 %v2538
      %v2540 = vpop.xlane.xlu0 %2539
      %v2541 = vrcp.pop %v2540
      %v2542 = vmul.f32 %v2537, %v2541
      %2543 = vrot.lane.b32.xlu0 %v1956, 104
      %v2544 = vpop.permute.xlu0 %2543
      %v2547 = vsel %vm911, %v2542, 0
      %2549 = vmatprep.subr.mxu0 0.0
      %2550 = vmatpush1.msra.mxu0 %v2544
      %2551 = vmatprep.subr.mxu0 0.0
      %2552 = vmatpush1.msra.mxu0 0.0
      %2553 = vmatprep.subr.mxu0 0.0
      %2554 = vmatpush1.msra.mxu0 0.0
      %2555 = vmatprep.subr.mxu0 0.0
      %2556 = vmatpush1.msra.mxu0 0.0
      %2557 = vmatprep.subr.mxu0 0.0
      %2558 = vmatpush1.msra.mxu0 0.0
      %2559 = vmatprep.subr.mxu0 0.0
      %2560 = vmatpush1.msra.mxu0 0.0
      %2561 = vmatprep.subr.mxu0 0.0
      %2562 = vmatpush1.msra.mxu0 0.0
      %2563 = vmatprep.subr.mxu0 0.0
      %2564 = vmatpush1.msra.mxu0 0.0
      %2565 = vmatprep.subr.mxu0 0.0
      %2566 = vmatpush1.msra.mxu0 0.0
      %2567 = vmatprep.subr.mxu0 0.0
      %2568 = vmatpush1.msra.mxu0 0.0
      %2569 = vmatprep.subr.mxu0 0.0
      %2570 = vmatpush1.msra.mxu0 0.0
      %2571 = vmatprep.subr.mxu0 0.0
      %2572 = vmatpush1.msra.mxu0 0.0
      %2573 = vmatprep.subr.mxu0 0.0
      %2574 = vmatpush1.msra.mxu0 0.0
      %2575 = vmatprep.subr.mxu0 0.0
      %2576 = vmatpush1.msra.mxu0 0.0
      %2577 = vmatprep.subr.mxu0 0.0
      %2578 = vmatpush1.msra.mxu0 0.0
      %2579 = vmatprep.subr.mxu0 0.0
      %2580 = vmatpush1.msra.mxu0 0.0
      %2581 = vmatprep.subr.mxu0 0.0
      %2582 = vmatpush1.msra.mxu0 0.0
      %2583 = vmatprep.subr.mxu0 0.0
      %2584 = vmatpush1.msra.mxu0 0.0
      %2585 = vmatprep.subr.mxu0 0.0
      %2586 = vmatpush1.msra.mxu0 0.0
      %2587 = vmatprep.subr.mxu0 0.0
      %2588 = vmatpush1.msra.mxu0 0.0
      %2589 = vmatprep.subr.mxu0 0.0
      %2590 = vmatpush1.msra.mxu0 0.0
      %2591 = vmatprep.subr.mxu0 0.0
      %2592 = vmatpush1.msra.mxu0 0.0
      %2593 = vmatprep.subr.mxu0 0.0
      %2594 = vmatpush1.msra.mxu0 0.0
      %2595 = vmatprep.subr.mxu0 0.0
      %2596 = vmatpush1.msra.mxu0 0.0
      %2597 = vmatprep.subr.mxu0 0.0
      %2598 = vmatpush1.msra.mxu0 0.0
      %2599 = vmatprep.subr.mxu0 0.0
      %2600 = vmatpush1.msra.mxu0 0.0
      %2601 = vmatprep.subr.mxu0 0.0
      %2602 = vmatpush1.msra.mxu0 0.0
      %2603 = vmatprep.subr.mxu0 0.0
      %2604 = vmatpush1.msra.mxu0 0.0
      %2605 = vmatprep.subr.mxu0 0.0
      %2606 = vmatpush1.msra.mxu0 0.0
      %2607 = vmatprep.subr.mxu0 0.0
      %2608 = vmatpush1.msra.mxu0 0.0
      %2609 = vmatprep.subr.mxu0 0.0
      %2610 = vmatpush1.msra.mxu0 0.0
      %2611 = vmatprep.subr.mxu0 0.0
      %2612 = vmatpush1.msra.mxu0 0.0
      %2613 = vmatprep.mubr.f32.mxu0 0.0
      %2614 = vmatmul.mubr.f32.gmra.mrb[0].mxu0 %v2547
      %v2615 = vpop.f32.mrb[0].mxu0
      %v2616 = vadd.f32 0.0, %v2615
      %v2617 = vpop.f32.mrb[0].mxu0
      %2618 = vdwg.mxu0
      %2620 = vrot.lane.b32.xlu0 %v2284, 8
      %v2621 = vpop.permute.xlu0 %2620
      %2624 = vrot.lane.b32.xlu0 %v2450, 16
      %v2625 = vpop.permute.xlu0 %2624
      %2628 = vrot.lane.b32.xlu0 %v2616, 24
      %v2629 = vpop.permute.xlu0 %2628
      %v2631 = vsel %vm911, %v2117, %v2621
      %v2632 = vsel %vm1589, %v2631, %v2625
      %v2633 = vsel %vm1591, %v2632, %v2629
      %v2635 = vsel %vm1593, %v2633, 0
      %2637 = vmatprep.subr.mxu0 0.0
      %2638 = vmatpush1.msra.mxu0 %v1745
      %2639 = vmatprep.subr.mxu0 0.0
      %2640 = vmatpush1.msra.mxu0 %v1746
      %2641 = vmatprep.subr.mxu0 0.0
      %2642 = vmatpush1.msra.mxu0 %v1747
      %2643 = vmatprep.subr.mxu0 0.0
      %2644 = vmatpush1.msra.mxu0 %v1748
      %2645 = vmatprep.subr.mxu0 0.0
      %2646 = vmatpush1.msra.mxu0 0.0
      %2647 = vmatprep.subr.mxu0 0.0
      %2648 = vmatpush1.msra.mxu0 0.0
      %2649 = vmatprep.subr.mxu0 0.0
      %2650 = vmatpush1.msra.mxu0 0.0
      %2651 = vmatprep.subr.mxu0 0.0
      %2652 = vmatpush1.msra.mxu0 0.0
      %2653 = vmatprep.subr.mxu0 0.0
      %2654 = vmatpush1.msra.mxu0 0.0
      %2655 = vmatprep.subr.mxu0 0.0
      %2656 = vmatpush1.msra.mxu0 0.0
      %2657 = vmatprep.subr.mxu0 0.0
      %2658 = vmatpush1.msra.mxu0 0.0
      %2659 = vmatprep.subr.mxu0 0.0
      %2660 = vmatpush1.msra.mxu0 0.0
      %2661 = vmatprep.subr.mxu0 0.0
      %2662 = vmatpush1.msra.mxu0 0.0
      %2663 = vmatprep.subr.mxu0 0.0
      %2664 = vmatpush1.msra.mxu0 0.0
      %2665 = vmatprep.subr.mxu0 0.0
      %2666 = vmatpush1.msra.mxu0 0.0
      %2667 = vmatprep.subr.mxu0 0.0
      %2668 = vmatpush1.msra.mxu0 0.0
      %2669 = vmatprep.subr.mxu0 0.0
      %2670 = vmatpush1.msra.mxu0 0.0
      %2671 = vmatprep.subr.mxu0 0.0
      %2672 = vmatpush1.msra.mxu0 0.0
      %2673 = vmatprep.subr.mxu0 0.0
      %2674 = vmatpush1.msra.mxu0 0.0
      %2675 = vmatprep.subr.mxu0 0.0
      %2676 = vmatpush1.msra.mxu0 0.0
      %2677 = vmatprep.subr.mxu0 0.0
      %2678 = vmatpush1.msra.mxu0 0.0
      %2679 = vmatprep.subr.mxu0 0.0
      %2680 = vmatpush1.msra.mxu0 0.0
      %2681 = vmatprep.subr.mxu0 0.0
      %2682 = vmatpush1.msra.mxu0 0.0
      %2683 = vmatprep.subr.mxu0 0.0
      %2684 = vmatpush1.msra.mxu0 0.0
      %2685 = vmatprep.subr.mxu0 0.0
      %2686 = vmatpush1.msra.mxu0 0.0
      %2687 = vmatprep.subr.mxu0 0.0
      %2688 = vmatpush1.msra.mxu0 0.0
      %2689 = vmatprep.subr.mxu0 0.0
      %2690 = vmatpush1.msra.mxu0 0.0
      %2691 = vmatprep.subr.mxu0 0.0
      %2692 = vmatpush1.msra.mxu0 0.0
      %2693 = vmatprep.subr.mxu0 0.0
      %2694 = vmatpush1.msra.mxu0 0.0
      %2695 = vmatprep.subr.mxu0 0.0
      %2696 = vmatpush1.msra.mxu0 0.0
      %2697 = vmatprep.subr.mxu0 0.0
      %2698 = vmatpush1.msra.mxu0 0.0
      %2699 = vmatprep.subr.mxu0 0.0
      %2700 = vmatpush1.msra.mxu0 0.0
      %2701 = vmatprep.mubr.f32.mxu0 0.0
      %2702 = vmatmul.mubr.f32.gmra.mrb[0].mxu0 %v2635
      %v2703 = vpop.f32.mrb[0].mxu0
      %v2704 = vadd.f32 0.0, %v2703
      %v2705 = vpop.f32.mrb[0].mxu0
      %2706 = vdwg.mxu0
      %v2707 = vadd.f32 %v1696, %v2704
      %v2708 = vld [vmem:[%s12] sm:$0x1]
      %v2709 = vld [vmem:[%s13] sm:$0x1]
      %2710 = vadd.xlane.f32.xlu0 %v2707
      %v2711 = vpop.xlane.xlu0 %2710
      %v2712 = vmul.f32 %v2711, 0.03125
      %v2713 = vsub.f32 %v2707, %v2712
      %v2714 = vsel %vm1674, %v2713, 0.0
      %v2715 = vmul.f32 %v2714, %v2714
      %2716 = vadd.xlane.f32.xlu0 %v2715
      %v2717 = vpop.xlane.xlu0 %2716
      %v2718 = vmul.f32 %v2717, 0.03125
      %v2719 = vadd.f32 %v2718, 1e-05
      %v2720 = vrsqrt.pop %v2719
      %v2721 = vmul.f32 %v2713, %v2720
      %v2723 = vlaneseq
      %v2724 = vshrl.u32 %v2723, 7
      %v2725 = vsub.s32 0, %v2724
      %v2726 = vrot.slane %v2708, %v2725
      %v2728 = vmul.f32 %v2726, %v2721
      %v2730 = vlaneseq
      %v2731 = vshrl.u32 %v2730, 7
      %v2732 = vsub.s32 0, %v2731
      %v2733 = vrot.slane %v2709, %v2732
      %v2735 = vadd.f32 %v2728, %v2733
      %v2736 = vld [vmem:[%s14] sm:$0xff]
      %v2737 = vld [vmem:[%s14 + $0x8] sm:$0xff]
      %v2738 = vld [vmem:[%s14 + $0x10] sm:$0xff]
      %v2739 = vld [vmem:[%s14 + $0x18] sm:$0xff]
      %v2740 = vld [vmem:[%s14 + $0x20] sm:$0xff]
      %v2741 = vld [vmem:[%s14 + $0x28] sm:$0xff]
      %v2742 = vld [vmem:[%s14 + $0x30] sm:$0xff]
      %v2743 = vld [vmem:[%s14 + $0x38] sm:$0xff]
      %v2744 = vld [vmem:[%s14 + $0x40] sm:$0xff]
      %v2745 = vld [vmem:[%s14 + $0x48] sm:$0xff]
      %v2746 = vld [vmem:[%s14 + $0x50] sm:$0xff]
      %v2747 = vld [vmem:[%s14 + $0x58] sm:$0xff]
      %v2748 = vld [vmem:[%s14 + $0x60] sm:$0xff]
      %v2749 = vld [vmem:[%s14 + $0x68] sm:$0xff]
      %v2750 = vld [vmem:[%s14 + $0x70] sm:$0xff]
      %v2751 = vld [vmem:[%s14 + $0x78] sm:$0xff]
      %v2752 = vld [vmem:[%s15] sm:$0x1]
      %v2753 = vld [vmem:[%s16] sm:$0xff]
      %v2754 = vld [vmem:[%s16 + $0x8] sm:$0xff]
      %v2755 = vld [vmem:[%s16 + $0x10] sm:$0xff]
      %v2756 = vld [vmem:[%s16 + $0x18] sm:$0xff]
      %v2757 = vld [vmem:[%s16 + $0x20] sm:$0xff]
      %v2758 = vld [vmem:[%s16 + $0x28] sm:$0xff]
      %v2759 = vld [vmem:[%s16 + $0x30] sm:$0xff]
      %v2760 = vld [vmem:[%s16 + $0x38] sm:$0xff]
      %v2761 = vld [vmem:[%s16 + $0x40] sm:$0xff]
      %v2762 = vld [vmem:[%s16 + $0x48] sm:$0xff]
      %v2763 = vld [vmem:[%s16 + $0x50] sm:$0xff]
      %v2764 = vld [vmem:[%s16 + $0x58] sm:$0xff]
      %v2765 = vld [vmem:[%s16 + $0x60] sm:$0xff]
      %v2766 = vld [vmem:[%s16 + $0x68] sm:$0xff]
      %v2767 = vld [vmem:[%s16 + $0x70] sm:$0xff]
      %v2768 = vld [vmem:[%s16 + $0x78] sm:$0xff]
      %v2769 = vld [vmem:[%s17] sm:$0x1]
      %v2771 = vlaneseq
      %v2772 = vshrl.u32 %v2771, 7
      %v2773 = vsub.s32 0, %v2772
      %v2774 = vrot.slane %v2752, %v2773
      %2776 = vmatprep.subr.mxu0 0.0
      %2777 = vmatpush1.msra.mxu0 %v2736
      %2778 = vmatprep.subr.mxu0 0.0
      %2779 = vmatpush1.msra.mxu0 %v2737
      %2780 = vmatprep.subr.mxu0 0.0
      %2781 = vmatpush1.msra.mxu0 %v2738
      %2782 = vmatprep.subr.mxu0 0.0
      %2783 = vmatpush1.msra.mxu0 %v2739
      %2784 = vmatprep.subr.mxu0 0.0
      %2785 = vmatpush1.msra.mxu0 %v2740
      %2786 = vmatprep.subr.mxu0 0.0
      %2787 = vmatpush1.msra.mxu0 %v2741
      %2788 = vmatprep.subr.mxu0 0.0
      %2789 = vmatpush1.msra.mxu0 %v2742
      %2790 = vmatprep.subr.mxu0 0.0
      %2791 = vmatpush1.msra.mxu0 %v2743
      %2792 = vmatprep.subr.mxu0 0.0
      %2793 = vmatpush1.msra.mxu0 %v2744
      %2794 = vmatprep.subr.mxu0 0.0
      %2795 = vmatpush1.msra.mxu0 %v2745
      %2796 = vmatprep.subr.mxu0 0.0
      %2797 = vmatpush1.msra.mxu0 %v2746
      %2798 = vmatprep.subr.mxu0 0.0
      %2799 = vmatpush1.msra.mxu0 %v2747
      %2800 = vmatprep.subr.mxu0 0.0
      %2801 = vmatpush1.msra.mxu0 %v2748
      %2802 = vmatprep.subr.mxu0 0.0
      %2803 = vmatpush1.msra.mxu0 %v2749
      %2804 = vmatprep.subr.mxu0 0.0
      %2805 = vmatpush1.msra.mxu0 %v2750
      %2806 = vmatprep.subr.mxu0 0.0
      %2807 = vmatpush1.msra.mxu0 %v2751
      %2808 = vmatprep.subr.mxu0 0.0
      %2809 = vmatpush1.msra.mxu0 0.0
      %2810 = vmatprep.subr.mxu0 0.0
      %2811 = vmatpush1.msra.mxu0 0.0
      %2812 = vmatprep.subr.mxu0 0.0
      %2813 = vmatpush1.msra.mxu0 0.0
      %2814 = vmatprep.subr.mxu0 0.0
      %2815 = vmatpush1.msra.mxu0 0.0
      %2816 = vmatprep.subr.mxu0 0.0
      %2817 = vmatpush1.msra.mxu0 0.0
      %2818 = vmatprep.subr.mxu0 0.0
      %2819 = vmatpush1.msra.mxu0 0.0
      %2820 = vmatprep.subr.mxu0 0.0
      %2821 = vmatpush1.msra.mxu0 0.0
      %2822 = vmatprep.subr.mxu0 0.0
      %2823 = vmatpush1.msra.mxu0 0.0
      %2824 = vmatprep.subr.mxu0 0.0
      %2825 = vmatpush1.msra.mxu0 0.0
      %2826 = vmatprep.subr.mxu0 0.0
      %2827 = vmatpush1.msra.mxu0 0.0
      %2828 = vmatprep.subr.mxu0 0.0
      %2829 = vmatpush1.msra.mxu0 0.0
      %2830 = vmatprep.subr.mxu0 0.0
      %2831 = vmatpush1.msra.mxu0 0.0
      %2832 = vmatprep.subr.mxu0 0.0
      %2833 = vmatpush1.msra.mxu0 0.0
      %2834 = vmatprep.subr.mxu0 0.0
      %2835 = vmatpush1.msra.mxu0 0.0
      %2836 = vmatprep.subr.mxu0 0.0
      %2837 = vmatpush1.msra.mxu0 0.0
      %2838 = vmatprep.subr.mxu0 0.0
      %2839 = vmatpush1.msra.mxu0 0.0
      %2840 = vmatprep.mubr.f32.mxu0 0.0
      %2841 = vmatmul.mubr.f32.gmra.mrb[0].mxu0 %v2735
      %v2842 = vpop.f32.mrb[0].mxu0
      %v2843 = vadd.f32 %v2774, %v2842
      %v2844 = vpop.f32.mrb[0].mxu0
      %2845 = vdwg.mxu0
      %v2846 = vmax.f32 %v2843, 0.0
      %v2848 = vlaneseq
      %v2849 = vshrl.u32 %v2848, 7
      %v2850 = vsub.s32 0, %v2849
      %v2851 = vrot.slane %v2769, %v2850
      %2853 = vmatprep.subr.mxu0 0.0
      %2854 = vmatpush1.msra.mxu0 %v2753
      %2855 = vmatprep.subr.mxu0 0.0
      %2856 = vmatpush1.msra.mxu0 %v2754
      %2857 = vmatprep.subr.mxu0 0.0
      %2858 = vmatpush1.msra.mxu0 %v2755
      %2859 = vmatprep.subr.mxu0 0.0
      %2860 = vmatpush1.msra.mxu0 %v2756
      %2861 = vmatprep.subr.mxu0 0.0
      %2862 = vmatpush1.msra.mxu0 %v2757
      %2863 = vmatprep.subr.mxu0 0.0
      %2864 = vmatpush1.msra.mxu0 %v2758
      %2865 = vmatprep.subr.mxu0 0.0
      %2866 = vmatpush1.msra.mxu0 %v2759
      %2867 = vmatprep.subr.mxu0 0.0
      %2868 = vmatpush1.msra.mxu0 %v2760
      %2869 = vmatprep.subr.mxu0 0.0
      %2870 = vmatpush1.msra.mxu0 %v2761
      %2871 = vmatprep.subr.mxu0 0.0
      %2872 = vmatpush1.msra.mxu0 %v2762
      %2873 = vmatprep.subr.mxu0 0.0
      %2874 = vmatpush1.msra.mxu0 %v2763
      %2875 = vmatprep.subr.mxu0 0.0
      %2876 = vmatpush1.msra.mxu0 %v2764
      %2877 = vmatprep.subr.mxu0 0.0
      %2878 = vmatpush1.msra.mxu0 %v2765
      %2879 = vmatprep.subr.mxu0 0.0
      %2880 = vmatpush1.msra.mxu0 %v2766
      %2881 = vmatprep.subr.mxu0 0.0
      %2882 = vmatpush1.msra.mxu0 %v2767
      %2883 = vmatprep.subr.mxu0 0.0
      %2884 = vmatpush1.msra.mxu0 %v2768
      %2885 = vmatprep.subr.mxu0 0.0
      %2886 = vmatpush1.msra.mxu0 0.0
      %2887 = vmatprep.subr.mxu0 0.0
      %2888 = vmatpush1.msra.mxu0 0.0
      %2889 = vmatprep.subr.mxu0 0.0
      %2890 = vmatpush1.msra.mxu0 0.0
      %2891 = vmatprep.subr.mxu0 0.0
      %2892 = vmatpush1.msra.mxu0 0.0
      %2893 = vmatprep.subr.mxu0 0.0
      %2894 = vmatpush1.msra.mxu0 0.0
      %2895 = vmatprep.subr.mxu0 0.0
      %2896 = vmatpush1.msra.mxu0 0.0
      %2897 = vmatprep.subr.mxu0 0.0
      %2898 = vmatpush1.msra.mxu0 0.0
      %2899 = vmatprep.subr.mxu0 0.0
      %2900 = vmatpush1.msra.mxu0 0.0
      %2901 = vmatprep.subr.mxu0 0.0
      %2902 = vmatpush1.msra.mxu0 0.0
      %2903 = vmatprep.subr.mxu0 0.0
      %2904 = vmatpush1.msra.mxu0 0.0
      %2905 = vmatprep.subr.mxu0 0.0
      %2906 = vmatpush1.msra.mxu0 0.0
      %2907 = vmatprep.subr.mxu0 0.0
      %2908 = vmatpush1.msra.mxu0 0.0
      %2909 = vmatprep.subr.mxu0 0.0
      %2910 = vmatpush1.msra.mxu0 0.0
      %2911 = vmatprep.subr.mxu0 0.0
      %2912 = vmatpush1.msra.mxu0 0.0
      %2913 = vmatprep.subr.mxu0 0.0
      %2914 = vmatpush1.msra.mxu0 0.0
      %2915 = vmatprep.subr.mxu0 0.0
      %2916 = vmatpush1.msra.mxu0 0.0
      %2917 = vmatprep.mubr.f32.mxu0 0.0
      %2918 = vmatmul.mubr.f32.gmra.mrb[0].mxu0 %v2846
      %v2919 = vpop.f32.mrb[0].mxu0
      %v2920 = vadd.f32 %v2851, %v2919
      %v2921 = vpop.f32.mrb[0].mxu0
      %2922 = vdwg.mxu0
      %v2923 = vadd.f32 %v2735, %v2920
      %v2924 = vld [vmem:[%s18] sm:$0x1]
      %v2925 = vld [vmem:[%s19] sm:$0x1]
      %2926 = vadd.xlane.f32.xlu0 %v2923
      %v2927 = vpop.xlane.xlu0 %2926
      %v2928 = vmul.f32 %v2927, 0.03125
      %v2929 = vsub.f32 %v2923, %v2928
      %v2930 = vsel %vm1674, %v2929, 0.0
      %v2931 = vmul.f32 %v2930, %v2930
      %2932 = vadd.xlane.f32.xlu0 %v2931
      %v2933 = vpop.xlane.xlu0 %2932
      %v2934 = vmul.f32 %v2933, 0.03125
      %v2935 = vadd.f32 %v2934, 1e-05
      %v2936 = vrsqrt.pop %v2935
      %v2937 = vmul.f32 %v2929, %v2936
      %v2939 = vlaneseq
      %v2940 = vshrl.u32 %v2939, 7
      %v2941 = vsub.s32 0, %v2940
      %v2942 = vrot.slane %v2924, %v2941
      %v2944 = vmul.f32 %v2942, %v2937
      %v2946 = vlaneseq
      %v2947 = vshrl.u32 %v2946, 7
      %v2948 = vsub.s32 0, %v2947
      %v2949 = vrot.slane %v2925, %v2948
      %v2951 = vadd.f32 %v2944, %v2949
      %2952 = vst [vmem:[%s641] sm:$0xff] %v2951
      %p2953 = scmp.lt.s32.totalorder %s31, 1
      %s2954 = scalar_select %p2953, %s31, 1
      %s2955 = smul.addr %s2954, 8
      %s2956 = scalar_lea.vmem %s20, %s2955
      // Predicated region
      $region101: #{transformer_forward.7} parent=99 // pred_check
        %p2957 = pneg %p479
      $region102: #{transformer_forward.7} parent=99 // pred_check_branch
        %2959 = sbr.rel (%p2957) target = $region104
      $region103: #{transformer_forward.7} parent=99 // pred_region
        _
      $region104: #{transformer_forward.7} parent=99 // pred_fallthru
        _
    $region100: #{transformer_forward.7} parent=5 // pred_fallthru
      _
    %p2960 = scmp.le.s32.totalorder 2, %s26
    // Predicated region
    $region105: #{transformer_forward.7} parent=5 // pred_check
      %p2961 = pneg %p2960
    $region106: #{transformer_forward.7} parent=5 // pred_check_branch
      %2963 = sbr.rel (%p2961) target = $region108
    $region107: #{transformer_forward.7} parent=5 // pred_region
      %s2964 = ssub.s32 %s26, 2
      // Predicated region
      $region109: #{transformer_forward.7} parent=107 // pred_check
        %p2965 = pneg %p485
      $region110: #{transformer_forward.7} parent=107 // pred_check_branch
        %2967 = sbr.rel (%p2965) target = $region112
      $region111: #{transformer_forward.7} parent=107 // pred_region
        %p2968 = scmp.lt.s32.totalorder %s32, 1
        %s2969 = scalar_select %p2968, %s32, 1
        %s2970 = smul.addr %s2969, 8
        %s2971 = scalar_lea.vmem %s20, %s2970
      $region112: #{transformer_forward.7} parent=107 // pred_fallthru
        _
    $region108: #{transformer_forward.7} parent=5 // pred_fallthru
      _
  $region6: #{transformer_forward.7} parent=0 // loop_footer
    %s30 = sadd.s32 1, %s26
  $region7: #{transformer_forward.7} parent=0 // loop_footer_branch
    %25 = sbr.rel target = $region3
  $region8: #{transformer_forward.7} parent=0 // loop_exit
    _

</llo_original>
